<compile_context>
chip_gen: v7x
topology: tpu7x:2x2x1
jax: 0.10.0
libtpu: 0.0.40
codegen_flags: <defaults>
</compile_context>

<pallas_src>
import functools

import jax
import jax.numpy as jnp
from jax.experimental import pallas as pl
from jax.experimental.pallas import tpu as pltpu

CROSS_ATTENTION_DIM = 768   # segmind/tiny-sd cross_attention_dim
UNET_HOOK_DIM = 1280        # down_blocks.2.resnets.0.conv_shortcut out_channels
CONV_CH = 320               # model.conv_in out_channels / model.conv_out in_channels


# ----------------------------------------------------------- pltpu.roll direction probe
@functools.lru_cache(maxsize=1)
def _roll_convention():
    """Resolve pltpu.roll's direction once with a tiny one-off kernel.

    Returns +1 if pltpu.roll matches np.roll (out[i] = x[(i - shift) % n]),
    -1 if it is the inverse (out[i] = x[(i + shift) % n]), and 0 if it could not be
    determined — the lane-shift helper then falls back to slice+concatenate (correct,
    just not XLU-cheap).  Called once in __main__ before jit so the result is a plain
    Python int everywhere; ensure_compile_time_eval keeps it safe if traced first.
    """
    def probe(x_ref, o_ref):
        o_ref[...] = pltpu.roll(x_ref[...], 1, 1)

    try:
        with jax.ensure_compile_time_eval():
            x = jnp.broadcast_to(jnp.arange(128, dtype=jnp.float32)[None, :], (8, 128))
            out = pl.pallas_call(
                probe, out_shape=jax.ShapeDtypeStruct((8, 128), jnp.float32))(x)
            v = float(out[0, 0])
        if v == 127.0:
            return 1
        if v == 1.0:
            return -1
        return 0
    except Exception:  # pragma: no cover — any failure => safe slice-based fallback
        return 0


def _shift_lanes(v, s, conv):
    """out[..., p] = v[..., (p + s) % n]  (static s; wrapped lanes are masked later)."""
    n = v.shape[-1]
    s = s % n
    if s == 0:
        return v
    ax = v.ndim - 1
    if conv == 1:        # pltpu.roll == np.roll:  out[i] = v[i - shift]
        return pltpu.roll(v, n - s, ax)
    if conv == -1:       # inverted semantics:     out[i] = v[i + shift]
        return pltpu.roll(v, s, ax)
    # Fallback: two lane slices + concatenate (VPU copy chains, but always correct).
    return jnp.concatenate([v[..., s:], v[..., :s]], axis=-1)


# ----------------------------------------------------------------- tiled linear (bf16)
def _linear_kernel(x_ref, w_ref, b_ref, o_ref):
    # x: (B, K) bf16, w: (K, TN) bf16, b: (1, TN) f32, o: (B, TN) f32
    o_ref[...] = (
        jnp.dot(x_ref[...], w_ref[...], preferred_element_type=jnp.float32)
        + b_ref[...]
    )


def pallas_linear(x, w, b, *, tn=None):
    """y = x @ w + b.   x: (B, K), w: (K, N), b: (N,) -> (B, N) f32.

    The weight (the only large operand) is tiled over N in exactly TWO blocks: the
    HBM stream is double-buffer pipelined, per-grid-step overhead is minimal, and the
    'parallel' N axis splits evenly across v7x's two TensorCores.  Operands are bf16,
    accumulation is f32.  Per-step working set << scoped-VMEM defaults on all chips.
    """
    B, K = x.shape
    N = w.shape[1]
    if tn is None:
        tn = N // 2
    assert N % tn == 0 and tn % 128 == 0, (N, tn)
    xb = x.astype(jnp.bfloat16)
    wb = w.astype(jnp.bfloat16)
    b2 = b.reshape(1, N).astype(jnp.float32)
    return pl.pallas_call(
        _linear_kernel,
        out_shape=jax.ShapeDtypeStruct((B, N), jnp.float32),
        grid=(N // tn,),
        in_specs=[
            pl.BlockSpec((B, K), lambda j: (0, 0)),
            pl.BlockSpec((K, tn), lambda j: (0, j)),
            pl.BlockSpec((1, tn), lambda j: (0, j)),
        ],
        out_specs=pl.BlockSpec((B, tn), lambda j: (0, j)),
        compiler_params=pltpu.CompilerParams(dimension_semantics=("parallel",)),
        cost_estimate=pl.CostEstimate(
            flops=int(2 * B * K * N),
            transcendentals=0,
            bytes_accessed=int(B * K * 2 + K * N * 2 + N * 4 + B * N * 4),
        ),
    )(xb, wb, b2)


# ----------------------------- fused map_expert_to_unet Linear + cosine-align partials
def _map_align_kernel(x_ref, w_ref, b_ref, pooled_ref, dot_ref, nm_ref, nf_ref):
    # x: (B, K) bf16 (resident across steps), w: (K, TN) bf16, b: (1, TN) f32,
    # pooled: (B, TN) f32.  Outputs: per-N-tile partial sums of the cosine terms.
    mapped = (
        jnp.dot(x_ref[...], w_ref[...], preferred_element_type=jnp.float32)
        + b_ref[...]
    )                                                          # (B, TN) f32, VMEM only
    pooled = pooled_ref[...]                                   # (B, TN) f32
    dot_ref[0] = jnp.sum(mapped * pooled, axis=-1, keepdims=True)   # (B, 1)
    nm_ref[0] = jnp.sum(mapped * mapped, axis=-1, keepdims=True)
    nf_ref[0] = jnp.sum(pooled * pooled, axis=-1, keepdims=True)


def pallas_map_align_loss(expert, w, b, pooled, *, tn=640):
    """Fused map_expert_to_unet Linear(2048->1280) + cosine-similarity align loss.

    `mapped = expert @ w + b` never leaves VMEM; the kernel writes per-N-tile partial
    <mapped,pooled>, |mapped|^2 and |pooled|^2 (3 floats per sample per tile) and the
    tiny final cosine/mean combine fuses with the wrapper-side jnp.mean.  Two N tiles
    => double-buffered 2.5 MiB bf16 weight stream (fits every chip's scoped-VMEM
    default) and an even 'parallel' split across v7x's two TensorCores.
    """
    B, K = expert.shape
    N = w.shape[1]
    assert N % tn == 0 and tn % 128 == 0, (N, tn)
    nt = N // tn
    out_spec = pl.BlockSpec((1, B, 1), lambda j: (j, 0, 0))
    d_p, nm_p, nf_p = pl.pallas_call(
        _map_align_kernel,
        out_shape=(jax.ShapeDtypeStruct((nt, B, 1), jnp.float32),) * 3,
        grid=(nt,),
        in_specs=[
            pl.BlockSpec((B, K), lambda j: (0, 0)),
            pl.BlockSpec((K, tn), lambda j: (0, j)),
            pl.BlockSpec((1, tn), lambda j: (0, j)),
            pl.BlockSpec((B, tn), lambda j: (0, j)),
        ],
        out_specs=(out_spec, out_spec, out_spec),
        compiler_params=pltpu.CompilerParams(dimension_semantics=("parallel",)),
        cost_estimate=pl.CostEstimate(
            flops=int(2 * B * K * N + 6 * B * N),
            transcendentals=0,
            bytes_accessed=int(B * K * 2 + K * N * 2 + N * 4 + B * N * 4
                               + 3 * nt * B * 4),
        ),
    )(expert.astype(jnp.bfloat16), w.astype(jnp.bfloat16),
      b.reshape(1, N).astype(jnp.float32), pooled.astype(jnp.float32))
    d = jnp.sum(d_p, axis=0)[:, 0]
    nm = jnp.sum(nm_p, axis=0)[:, 0]
    nf = jnp.sum(nf_p, axis=0)[:, 0]
    eps = jnp.float32(1e-8)
    cos = d / (jnp.maximum(jnp.sqrt(nm), eps) * jnp.maximum(jnp.sqrt(nf), eps))
    return jnp.mean(1.0 - cos)


# ---------------------------------------------------- fused conv_in -> conv_out kernel
def _fused_conv_kernel(x_ref, w_in_ref, b_in_ref, w_out_ref, b_out_ref,
                       o_ref, h_ref, xcol_ref, *, width, roll_conv):
    # x_ref:     (1, 1, HW) flattened input image (Cin = 1), f32
    # w_in_ref:  (C, 9)  bf16 conv_in weight  (channel-major)
    # b_in_ref:  (C, 1)  f32  conv_in bias
    # w_out_ref: (9, C)  bf16 conv_out weight (tap-major)
    # b_out_ref: (1, 1)  f32  conv_out bias   (SMEM scalar)
    # o_ref:     (1, 1, HW) lane-dense conv_out output, f32
    # h_ref:     (C, HW) bf16 VMEM scratch — conv_in activation never leaves VMEM
    # xcol_ref:  (9, HW) f32  VMEM scratch — im2col rows for conv_in
    hw = o_ref.shape[-1]
    x = x_ref[0]                                               # (1, HW) f32

    # ---- per-tap boundary masks, generated in-kernel (iota + compares; no HBM stream)
    pos = jax.lax.broadcasted_iota(jnp.int32, (1, hw), 1)
    if (width & (width - 1)) == 0:
        col = jnp.bitwise_and(pos, width - 1)                  # width is a power of two
    else:
        col = pos % width

    # ---- conv_in: build 9 im2col rows (XLU roll + VPU mask), then ONE
    #      (C, 9) x (9, HW) MXU matmul with bf16 operands / f32 accumulation.
    masks = []
    for k in range(9):
        dh, dw = k // 3 - 1, k % 3 - 1
        row_ok = (pos >= -dh * width) & (pos < hw - dh * width)   # 0 <= r+dh < H
        col_ok = (col >= -dw) & (col < width - dw)                # 0 <= c+dw < W
        m = (row_ok & col_ok).astype(jnp.float32)
        masks.append(m)
        xcol_ref[k:k + 1, :] = _shift_lanes(x, dh * width + dw, roll_conv) * m
    h_ref[...] = (
        jnp.dot(w_in_ref[...], xcol_ref[...].astype(jnp.bfloat16),
                preferred_element_type=jnp.float32)
        + b_in_ref[...]
    ).astype(h_ref.dtype)

    # TODO(synk): the pretrained UNet2DConditionModel interior (time embedding, resnet
    # blocks, cross-attention over the text encoding) runs between conv_in and conv_out
    # and is not translated; h_ref is wired directly into conv_out.

    # ---- conv_out: ONE (9, C) x (C, HW) bf16 MXU matmul over channels, then combine
    #      the 9 taps with XLU rolls + masked FMAs; accumulator/store stay lane-dense.
    p = jnp.dot(w_out_ref[...], h_ref[...], preferred_element_type=jnp.float32)  # (9, HW)
    acc = jnp.zeros((1, hw), jnp.float32)
    for k in range(9):
        dh, dw = k // 3 - 1, k % 3 - 1
        acc = acc + _shift_lanes(p[k:k + 1, :], dh * width + dw, roll_conv) * masks[k]
    o_ref[0] = (acc + b_out_ref[0, 0]).astype(o_ref.dtype)


def pallas_fused_conv(img_nchw, w_in_c9, b_in, w_out_9c, b_out_11):
    """conv_in (1->320, 3x3, pad 1) -> conv_out (320->1, 3x3, pad 1), fused into one
    pallas_call per batch element (grid parallel over batch for v7x megacore).

    NOTE: no spatial tiling — the (C, HW) activation scratch must fit VMEM.  Fine at
    small resolutions; tile over HW (with a `width` halo / per-tile masks) before
    scaling H, W up (v7x's scoped-VMEM default is half of v5e/v6e).
    """
    B, Cin, H, W = img_nchw.shape
    assert Cin == 1
    HW = H * W
    C = w_in_c9.shape[0]
    x_flat = img_nchw.reshape(B, 1, HW).astype(jnp.float32)    # free reshape of NCHW
    kernel = functools.partial(_fused_conv_kernel, width=W,
                               roll_conv=_roll_convention())
    out = pl.pallas_call(
        kernel,
        out_shape=jax.ShapeDtypeStruct((B, 1, HW), jnp.float32),
        grid=(B,),
        in_specs=[
            pl.BlockSpec((1, 1, HW), lambda b: (b, 0, 0)),
            pl.BlockSpec((C, 9), lambda b: (0, 0)),
            pl.BlockSpec((C, 1), lambda b: (0, 0)),
            pl.BlockSpec((9, C), lambda b: (0, 0)),
            pl.BlockSpec(memory_space=pltpu.MemorySpace.SMEM),
        ],
        out_specs=pl.BlockSpec((1, 1, HW), lambda b: (b, 0, 0)),
        scratch_shapes=[
            pltpu.VMEM((C, HW), jnp.bfloat16),
            pltpu.VMEM((9, HW), jnp.float32),
        ],
        compiler_params=pltpu.CompilerParams(dimension_semantics=("parallel",)),
        cost_estimate=pl.CostEstimate(
            flops=int(4 * B * 9 * C * HW),
            transcendentals=0,
            bytes_accessed=int(2 * B * HW * 4 + 18 * C * 2 + C * 4 + 4),
        ),
    )(x_flat,
      w_in_c9.astype(jnp.bfloat16),
      b_in.reshape(C, 1).astype(jnp.float32),
      w_out_9c.astype(jnp.bfloat16),
      b_out_11.astype(jnp.float32))
    return out.reshape(B, 1, H, W)


# ------------------------------------------------------------------------------ params
def init_params(key):
    ks = jax.random.split(key, 8)

    def dense(k, shape, scale=0.02, dtype=jnp.float32):
        return (scale * jax.random.normal(k, shape, jnp.float32)).astype(dtype)

    return {
        # text_to_cross_dim Linear(512, 768): weight stored bf16 (K, N), bias f32
        "text_w": dense(ks[0], (512, CROSS_ATTENTION_DIM), dtype=jnp.bfloat16),
        "text_b": dense(ks[1], (CROSS_ATTENTION_DIM,)),
        # model.conv_in Conv2d(1, 320, 3x3, pad 1): stored (Cout, kh*kw), bf16
        "conv_in_w": dense(ks[2], (CONV_CH, 9), dtype=jnp.bfloat16),
        "conv_in_b": dense(ks[3], (CONV_CH,)),
        # model.conv_out Conv2d(320, 1, 3x3, pad 1): stored (kh*kw, Cin), bf16
        "conv_out_w": dense(ks[4], (9, CONV_CH), dtype=jnp.bfloat16),
        "conv_out_b": dense(ks[5], (1, 1)),
        # map_expert_to_unet Linear(2048, 1280): weight stored bf16
        "map_w": dense(ks[6], (2048, UNET_HOOK_DIM), dtype=jnp.bfloat16),
        "map_b": dense(ks[7], (UNET_HOOK_DIM,)),
    }


# ----------------------------------------------------------------------------- forward
def feature_aligned_diffusion_forward(params, img_nchw, timestep,
                                      text_feats, expert_feats, hook_feats_nchw):
    """Mirrors FeatureAlignedDiffusion.forward.

    img_nchw:        (B, 1, H, W)    diffusion input
    timestep:        (B,)            # TODO(synk): consumed only by the untranslated UNet interior
    text_feats:      (B, 512)        CLIP text features (CLIP tower is a pretrained black box)
    expert_feats:    (B, 2048)       ResNet50 expert features (backbone is a pretrained black box)
    hook_feats_nchw: (B, 1280, h, w) down_blocks.2.resnets.0.conv_shortcut activation
                                     (produced by the untranslated UNet interior)
    """
    del timestep

    # self.text_to_cross_dim(inputs).unsqueeze(1)
    enc = pallas_linear(text_feats, params["text_w"], params["text_b"])[:, None, :]

    # hook: mapped = map_expert_to_unet(expert_embeddings)
    #       align_loss = mean(1 - cos(mapped, adaptive_avg_pool(hook_out).squeeze()))
    # AdaptiveAvgPool2d((1,1)) stays a tiny wrapper-side reduce (keeps the fused kernel
    # rank-2 / lane-major); the Linear + cosine statistics are ONE fused pallas_call.
    pooled = jnp.mean(hook_feats_nchw, axis=(2, 3))            # (B, 1280)
    align_loss = pallas_map_align_loss(expert_feats, params["map_w"],
                                       params["map_b"], pooled)

    # UNet: conv_in -> [TODO(synk): untranslated pretrained UNet interior] -> conv_out
    sample = pallas_fused_conv(img_nchw, params["conv_in_w"], params["conv_in_b"],
                               params["conv_out_w"], params["conv_out_b"])
    return sample, align_loss, enc


# ------------------------------------------------------------------ pure-JAX reference
def _ref_forward(params, img_nchw, text_feats, expert_feats, hook_feats_nchw):
    hi = jax.lax.Precision.HIGHEST

    def ref_linear(x, w, b):
        return jnp.matmul(x.astype(jnp.bfloat16).astype(jnp.float32),
                          w.astype(jnp.float32), precision=hi) + b

    enc = ref_linear(text_feats, params["text_w"], params["text_b"])[:, None, :]
    mapped = ref_linear(expert_feats, params["map_w"], params["map_b"])
    pooled = jnp.mean(hook_feats_nchw, axis=(2, 3))
    eps = 1e-8
    nm = jnp.maximum(jnp.linalg.norm(mapped, axis=-1), eps)
    nf = jnp.maximum(jnp.linalg.norm(pooled, axis=-1), eps)
    cos = jnp.sum(mapped * pooled, -1) / (nm * nf)
    align_loss = jnp.mean(1.0 - cos)

    def conv(x_nhwc, w_hwio, b):
        return jax.lax.conv_general_dilated(
            x_nhwc, w_hwio, (1, 1), ((1, 1), (1, 1)),
            dimension_numbers=("NHWC", "HWIO", "NHWC"), precision=hi) + b

    w_in_hwio = jnp.transpose(params["conv_in_w"].astype(jnp.float32),
                              (1, 0)).reshape(3, 3, 1, CONV_CH)
    w_out_hwio = params["conv_out_w"].astype(jnp.float32).reshape(3, 3, CONV_CH, 1)
    x_nhwc = jnp.transpose(img_nchw, (0, 2, 3, 1))
    h = conv(x_nhwc, w_in_hwio, params["conv_in_b"])
    s = conv(h, w_out_hwio, params["conv_out_b"].reshape(1))
    return jnp.transpose(s, (0, 3, 1, 2)), align_loss, enc


# --------------------------------------------------------------------------------- main
if __name__ == "__main__":
    key = jax.random.PRNGKey(0)
    kp, ki, kt, ke, kh = jax.random.split(key, 5)
    params = init_params(kp)

    B, H, W = 2, 16, 16
    img = jax.random.normal(ki, (B, 1, H, W), jnp.float32)
    timestep = jnp.array([10, 10], jnp.int32)
    # TODO(synk): CLIPProcessor/CLIPModel text tower and the ResNet50 expert backbone are
    # pretrained black boxes; their outputs are synthesized deterministically here.
    text_feats = jax.random.normal(kt, (B, 512), jnp.float32)
    expert_feats = jax.random.normal(ke, (B, 2048), jnp.float32)
    hook_feats = jax.random.normal(kh, (B, UNET_HOOK_DIM, 4, 4), jnp.float32)

    _roll_convention()  # resolve pltpu.roll direction once, outside jit
    fwd = jax.jit(feature_aligned_diffusion_forward)
    sample, align_loss, enc = fwd(params, img, timestep, text_feats, expert_feats,
                                  hook_feats)
    jax.block_until_ready((sample, align_loss, enc))

    # Sanity-check against a pure-JAX reference.
    r_sample, r_loss, r_enc = _ref_forward(params, img, text_feats, expert_feats,
                                           hook_feats)
    assert sample.shape == (B, 1, H, W)
    assert enc.shape == (B, 1, CROSS_ATTENTION_DIM)
    assert jnp.allclose(enc, r_enc, rtol=2e-2, atol=2e-3)
    assert jnp.allclose(sample, r_sample, rtol=2e-2, atol=3e-3)
    assert jnp.allclose(align_loss, r_loss, rtol=2e-2, atol=2e-3)

    print("KERNEL_OK")
</pallas_src>

<mosaic_0001>
module attributes {stable_mosaic.version = 11 : i64} {
  func.func @probe(%arg0: memref<8x128xf32, #tpu.memory_space<vmem>>, %arg1: memref<8x128xf32, #tpu.memory_space<vmem>>) attributes {dimension_semantics = [], scalar_prefetch = 0 : i64, scratch_operands = 0 : i64, tpu.core_type = #tpu.core_type<tc>} {
    %c0 = arith.constant 0 : index
    %c0_0 = arith.constant 0 : index
    %0 = vector.load %arg0[%c0, %c0_0] : memref<8x128xf32, #tpu.memory_space<vmem>>, vector<8x128xf32>
    %c1_i32 = arith.constant 1 : i32
    %1 = tpu.dynamic_rotate %0 by %c1_i32 dim 1 : vector<8x128xf32>, i32 -> vector<8x128xf32>
    %c0_1 = arith.constant 0 : index
    %c0_2 = arith.constant 0 : index
    %2 = vector.load %arg1[%c0_1, %c0_2] : memref<8x128xf32, #tpu.memory_space<vmem>>, vector<8x128xf32>
    tpu.vector_store %arg1[%c0_1, %c0_2], %1 {strides = array<i32>} : memref<8x128xf32, #tpu.memory_space<vmem>>, vector<8x128xf32>,
    return
  }
}

module attributes {stable_mosaic.version = 11 : i64} {
  func.func @_fused_conv_kernel(%arg0: i32, %arg1: memref<1x1x256xf32, #tpu.memory_space<vmem>>, %arg2: memref<320x9xbf16, #tpu.memory_space<vmem>>, %arg3: memref<320x1xf32, #tpu.memory_space<vmem>>, %arg4: memref<9x320xbf16, #tpu.memory_space<vmem>>, %arg5: memref<1x1xf32, #tpu.memory_space<smem>>, %arg6: memref<1x1x256xf32, #tpu.memory_space<vmem>>, %arg7: memref<320x256xbf16, #tpu.memory_space<vmem>>, %arg8: memref<9x256xf32, #tpu.memory_space<vmem>>) attributes {dimension_semantics = [#tpu.dimension_semantics<parallel>], iteration_bounds = array<i64: 2>, scalar_prefetch = 0 : i64, scratch_operands = 2 : i64, tpu.core_type = #tpu.core_type<tc>, window_params = [{transform_indices = @transform_0, window_bounds = array<i64: 1, 1, 256>}, {pipeline_mode = #tpu.pipeline_mode<synchronous>, transform_indices = @transform_1, window_bounds = array<i64: 320, 9>}, {pipeline_mode = #tpu.pipeline_mode<synchronous>, transform_indices = @transform_2, window_bounds = array<i64: 320, 1>}, {pipeline_mode = #tpu.pipeline_mode<synchronous>, transform_indices = @transform_3, window_bounds = array<i64: 9, 320>}, {transform_indices = @transform_4, window_bounds = array<i64: 1, 1>}, {transform_indices = @transform_5, window_bounds = array<i64: 1, 1, 256>}]} {
    %c0 = arith.constant 0 : index
    %c0_0 = arith.constant 0 : index
    %c0_1 = arith.constant 0 : index
    %0 = vector.load %arg1[%c0, %c0_0, %c0_1] : memref<1x1x256xf32, #tpu.memory_space<vmem>>, vector<1x1x256xf32>
    %1 = vector.shape_cast %0 : vector<1x1x256xf32> to vector<1x256xf32>
    %2 = tpu.iota {dimensions = array<i32: 1>} : vector<1x256xi32>
    %c15_i32 = arith.constant 15 : i32
    %3 = vector.broadcast %c15_i32 : i32 to vector<1x256xi32>
    %4 = arith.andi %2, %3 : vector<1x256xi32>
    %c16_i32 = arith.constant 16 : i32
    %5 = vector.broadcast %c16_i32 : i32 to vector<1x256xi32>
    %6 = arith.cmpi sge, %2, %5 : vector<1x256xi32>
    %c272_i32 = arith.constant 272 : i32
    %7 = vector.broadcast %c272_i32 : i32 to vector<1x256xi32>
    %8 = arith.cmpi slt, %2, %7 : vector<1x256xi32>
    %9 = arith.andi %6, %8 : vector<1x256xi1>
    %c1_i32 = arith.constant 1 : i32
    %10 = vector.broadcast %c1_i32 : i32 to vector<1x256xi32>
    %11 = arith.cmpi sge, %4, %10 : vector<1x256xi32>
    %c17_i32 = arith.constant 17 : i32
    %12 = vector.broadcast %c17_i32 : i32 to vector<1x256xi32>
    %13 = arith.cmpi slt, %4, %12 : vector<1x256xi32>
    %14 = arith.andi %11, %13 : vector<1x256xi1>
    %15 = arith.andi %9, %14 : vector<1x256xi1>
    %16 = arith.extui %15 : vector<1x256xi1> to vector<1x256xi32>
    %17 = arith.sitofp %16 : vector<1x256xi32> to vector<1x256xf32>
    %18 = vector.extract_strided_slice %1 {offsets = [0, 239], sizes = [1, 17], strides = [1, 1]} : vector<1x256xf32> to vector<1x17xf32>
    %19 = vector.extract_strided_slice %1 {offsets = [0, 0], sizes = [1, 239], strides = [1, 1]} : vector<1x256xf32> to vector<1x239xf32>
    %20 = tpu.concatenate %18, %19 in 1 : vector<1x17xf32>, vector<1x239xf32> -> vector<1x256xf32>
    %21 = arith.mulf %20, %17 : vector<1x256xf32>
    %c0_2 = arith.constant 0 : index
    %c0_3 = arith.constant 0 : index
    %22 = vector.load %arg8[%c0_2, %c0_3] : memref<9x256xf32, #tpu.memory_space<vmem>>, vector<1x256xf32>
    tpu.vector_store %arg8[%c0_2, %c0_3], %21 {strides = array<i32>} : memref<9x256xf32, #tpu.memory_space<vmem>>, vector<1x256xf32>,
    %c16_i32_4 = arith.constant 16 : i32
    %23 = vector.broadcast %c16_i32_4 : i32 to vector<1x256xi32>
    %24 = arith.cmpi sge, %2, %23 : vector<1x256xi32>
    %c272_i32_5 = arith.constant 272 : i32
    %25 = vector.broadcast %c272_i32_5 : i32 to vector<1x256xi32>
    %26 = arith.cmpi slt, %2, %25 : vector<1x256xi32>
    %27 = arith.andi %24, %26 : vector<1x256xi1>
    %c0_i32 = arith.constant 0 : i32
    %28 = vector.broadcast %c0_i32 : i32 to vector<1x256xi32>
    %29 = arith.cmpi sge, %4, %28 : vector<1x256xi32>
    %c16_i32_6 = arith.constant 16 : i32
    %30 = vector.broadcast %c16_i32_6 : i32 to vector<1x256xi32>
    %31 = arith.cmpi slt, %4, %30 : vector<1x256xi32>
    %32 = arith.andi %29, %31 : vector<1x256xi1>
    %33 = arith.andi %27, %32 : vector<1x256xi1>
    %34 = arith.extui %33 : vector<1x256xi1> to vector<1x256xi32>
    %35 = arith.sitofp %34 : vector<1x256xi32> to vector<1x256xf32>
    %36 = vector.extract_strided_slice %1 {offsets = [0, 240], sizes = [1, 16], strides = [1, 1]} : vector<1x256xf32> to vector<1x16xf32>
    %37 = vector.extract_strided_slice %1 {offsets = [0, 0], sizes = [1, 240], strides = [1, 1]} : vector<1x256xf32> to vector<1x240xf32>
    %38 = tpu.concatenate %36, %37 in 1 : vector<1x16xf32>, vector<1x240xf32> -> vector<1x256xf32>
    %39 = arith.mulf %38, %35 : vector<1x256xf32>
    %c1 = arith.constant 1 : index
    %c0_7 = arith.constant 0 : index
    %40 = vector.load %arg8[%c1, %c0_7] : memref<9x256xf32, #tpu.memory_space<vmem>>, vector<1x256xf32>
    tpu.vector_store %arg8[%c1, %c0_7], %39 {strides = array<i32>} : memref<9x256xf32, #tpu.memory_space<vmem>>, vector<1x256xf32>,
    %c16_i32_8 = arith.constant 16 : i32
    %41 = vector.broadcast %c16_i32_8 : i32 to vector<1x256xi32>
    %42 = arith.cmpi sge, %2, %41 : vector<1x256xi32>
    %c272_i32_9 = arith.constant 272 : i32
    %43 = vector.broadcast %c272_i32_9 : i32 to vector<1x256xi32>
    %44 = arith.cmpi slt, %2, %43 : vector<1x256xi32>
    %45 = arith.andi %42, %44 : vector<1x256xi1>
    %c-1_i32 = arith.constant -1 : i32
    %46 = vector.broadcast %c-1_i32 : i32 to vector<1x256xi32>
    %47 = arith.cmpi sge, %4, %46 : vector<1x256xi32>
    %c15_i32_10 = arith.constant 15 : i32
    %48 = vector.broadcast %c15_i32_10 : i32 to vector<1x256xi32>
    %49 = arith.cmpi slt, %4, %48 : vector<1x256xi32>
    %50 = arith.andi %47, %49 : vector<1x256xi1>
    %51 = arith.andi %45, %50 : vector<1x256xi1>
    %52 = arith.extui %51 : vector<1x256xi1> to vector<1x256xi32>
    %53 = arith.sitofp %52 : vector<1x256xi32> to vector<1x256xf32>
    %54 = vector.extract_strided_slice %1 {offsets = [0, 241], sizes = [1, 15], strides = [1, 1]} : vector<1x256xf32> to vector<1x15xf32>
    %55 = vector.extract_strided_slice %1 {offsets = [0, 0], sizes = [1, 241], strides = [1, 1]} : vector<1x256xf32> to vector<1x241xf32>
    %56 = tpu.concatenate %54, %55 in 1 : vector<1x15xf32>, vector<1x241xf32> -> vector<1x256xf32>
    %57 = arith.mulf %56, %53 : vector<1x256xf32>
    %c2 = arith.constant 2 : index
    %c0_11 = arith.constant 0 : index
    %58 = vector.load %arg8[%c2, %c0_11] : memref<9x256xf32, #tpu.memory_space<vmem>>, vector<1x256xf32>
    tpu.vector_store %arg8[%c2, %c0_11], %57 {strides = array<i32>} : memref<9x256xf32, #tpu.memory_space<vmem>>, vector<1x256xf32>,
    %c0_i32_12 = arith.constant 0 : i32
    %59 = vector.broadcast %c0_i32_12 : i32 to vector<1x256xi32>
    %60 = arith.cmpi sge, %2, %59 : vector<1x256xi32>
    %c256_i32 = arith.constant 256 : i32
    %61 = vector.broadcast %c256_i32 : i32 to vector<1x256xi32>
    %62 = arith.cmpi slt, %2, %61 : vector<1x256xi32>
    %63 = arith.andi %60, %62 : vector<1x256xi1>
    %c1_i32_13 = arith.constant 1 : i32
    %64 = vector.broadcast %c1_i32_13 : i32 to vector<1x256xi32>
    %65 = arith.cmpi sge, %4, %64 : vector<1x256xi32>
    %c17_i32_14 = arith.constant 17 : i32
    %66 = vector.broadcast %c17_i32_14 : i32 to vector<1x256xi32>
    %67 = arith.cmpi slt, %4, %66 : vector<1x256xi32>
    %68 = arith.andi %65, %67 : vector<1x256xi1>
    %69 = arith.andi %63, %68 : vector<1x256xi1>
    %70 = arith.extui %69 : vector<1x256xi1> to vector<1x256xi32>
    %71 = arith.sitofp %70 : vector<1x256xi32> to vector<1x256xf32>
    %72 = vector.extract_strided_slice %1 {offsets = [0, 255], sizes = [1, 1], strides = [1, 1]} : vector<1x256xf32> to vector<1x1xf32>
    %73 = vector.extract_strided_slice %1 {offsets = [0, 0], sizes = [1, 255], strides = [1, 1]} : vector<1x256xf32> to vector<1x255xf32>
    %74 = tpu.concatenate %72, %73 in 1 : vector<1x1xf32>, vector<1x255xf32> -> vector<1x256xf32>
    %75 = arith.mulf %74, %71 : vector<1x256xf32>
    %c3 = arith.constant 3 : index
    %c0_15 = arith.constant 0 : index
    %76 = vector.load %arg8[%c3, %c0_15] : memref<9x256xf32, #tpu.memory_space<vmem>>, vector<1x256xf32>
    tpu.vector_store %arg8[%c3, %c0_15], %75 {strides = array<i32>} : memref<9x256xf32, #tpu.memory_space<vmem>>, vector<1x256xf32>,
    %c0_i32_16 = arith.constant 0 : i32
    %77 = vector.broadcast %c0_i32_16 : i32 to vector<1x256xi32>
    %78 = arith.cmpi sge, %2, %77 : vector<1x256xi32>
    %c256_i32_17 = arith.constant 256 : i32
    %79 = vector.broadcast %c256_i32_17 : i32 to vector<1x256xi32>
    %80 = arith.cmpi slt, %2, %79 : vector<1x256xi32>
    %81 = arith.andi %78, %80 : vector<1x256xi1>
    %c0_i32_18 = arith.constant 0 : i32
    %82 = vector.broadcast %c0_i32_18 : i32 to vector<1x256xi32>
    %83 = arith.cmpi sge, %4, %82 : vector<1x256xi32>
    %c16_i32_19 = arith.constant 16 : i32
    %84 = vector.broadcast %c16_i32_19 : i32 to vector<1x256xi32>
    %85 = arith.cmpi slt, %4, %84 : vector<1x256xi32>
    %86 = arith.andi %83, %85 : vector<1x256xi1>
    %87 = arith.andi %81, %86 : vector<1x256xi1>
    %88 = arith.extui %87 : vector<1x256xi1> to vector<1x256xi32>
    %89 = arith.sitofp %88 : vector<1x256xi32> to vector<1x256xf32>
    %90 = arith.mulf %1, %89 : vector<1x256xf32>
    %c4 = arith.constant 4 : index
    %c0_20 = arith.constant 0 : index
    %91 = vector.load %arg8[%c4, %c0_20] : memref<9x256xf32, #tpu.memory_space<vmem>>, vector<1x256xf32>
    tpu.vector_store %arg8[%c4, %c0_20], %90 {strides = array<i32>} : memref<9x256xf32, #tpu.memory_space<vmem>>, vector<1x256xf32>,
    %c0_i32_21 = arith.constant 0 : i32
    %92 = vector.broadcast %c0_i32_21 : i32 to vector<1x256xi32>
    %93 = arith.cmpi sge, %2, %92 : vector<1x256xi32>
    %c256_i32_22 = arith.constant 256 : i32
    %94 = vector.broadcast %c256_i32_22 : i32 to vector<1x256xi32>
    %95 = arith.cmpi slt, %2, %94 : vector<1x256xi32>
    %96 = arith.andi %93, %95 : vector<1x256xi1>
    %c-1_i32_23 = arith.constant -1 : i32
    %97 = vector.broadcast %c-1_i32_23 : i32 to vector<1x256xi32>
    %98 = arith.cmpi sge, %4, %97 : vector<1x256xi32>
    %c15_i32_24 = arith.constant 15 : i32
    %99 = vector.broadcast %c15_i32_24 : i32 to vector<1x256xi32>
    %100 = arith.cmpi slt, %4, %99 : vector<1x256xi32>
    %101 = arith.andi %98, %100 : vector<1x256xi1>
    %102 = arith.andi %96, %101 : vector<1x256xi1>
    %103 = arith.extui %102 : vector<1x256xi1> to vector<1x256xi32>
    %104 = arith.sitofp %103 : vector<1x256xi32> to vector<1x256xf32>
    %105 = vector.extract_strided_slice %1 {offsets = [0, 1], sizes = [1, 255], strides = [1, 1]} : vector<1x256xf32> to vector<1x255xf32>
    %106 = vector.extract_strided_slice %1 {offsets = [0, 0], sizes = [1, 1], strides = [1, 1]} : vector<1x256xf32> to vector<1x1xf32>
    %107 = tpu.concatenate %105, %106 in 1 : vector<1x255xf32>, vector<1x1xf32> -> vector<1x256xf32>
    %108 = arith.mulf %107, %104 : vector<1x256xf32>
    %c5 = arith.constant 5 : index
    %c0_25 = arith.constant 0 : index
    %109 = vector.load %arg8[%c5, %c0_25] : memref<9x256xf32, #tpu.memory_space<vmem>>, vector<1x256xf32>
    tpu.vector_store %arg8[%c5, %c0_25], %108 {strides = array<i32>} : memref<9x256xf32, #tpu.memory_space<vmem>>, vector<1x256xf32>,
    %c-16_i32 = arith.constant -16 : i32
    %110 = vector.broadcast %c-16_i32 : i32 to vector<1x256xi32>
    %111 = arith.cmpi sge, %2, %110 : vector<1x256xi32>
    %c240_i32 = arith.constant 240 : i32
    %112 = vector.broadcast %c240_i32 : i32 to vector<1x256xi32>
    %113 = arith.cmpi slt, %2, %112 : vector<1x256xi32>
    %114 = arith.andi %111, %113 : vector<1x256xi1>
    %c1_i32_26 = arith.constant 1 : i32
    %115 = vector.broadcast %c1_i32_26 : i32 to vector<1x256xi32>
    %116 = arith.cmpi sge, %4, %115 : vector<1x256xi32>
    %c17_i32_27 = arith.constant 17 : i32
    %117 = vector.broadcast %c17_i32_27 : i32 to vector<1x256xi32>
    %118 = arith.cmpi slt, %4, %117 : vector<1x256xi32>
    %119 = arith.andi %116, %118 : vector<1x256xi1>
    %120 = arith.andi %114, %119 : vector<1x256xi1>
    %121 = arith.extui %120 : vector<1x256xi1> to vector<1x256xi32>
    %122 = arith.sitofp %121 : vector<1x256xi32> to vector<1x256xf32>
    %123 = vector.extract_strided_slice %1 {offsets = [0, 15], sizes = [1, 241], strides = [1, 1]} : vector<1x256xf32> to vector<1x241xf32>
    %124 = vector.extract_strided_slice %1 {offsets = [0, 0], sizes = [1, 15], strides = [1, 1]} : vector<1x256xf32> to vector<1x15xf32>
    %125 = tpu.concatenate %123, %124 in 1 : vector<1x241xf32>, vector<1x15xf32> -> vector<1x256xf32>
    %126 = arith.mulf %125, %122 : vector<1x256xf32>
    %c6 = arith.constant 6 : index
    %c0_28 = arith.constant 0 : index
    %127 = vector.load %arg8[%c6, %c0_28] : memref<9x256xf32, #tpu.memory_space<vmem>>, vector<1x256xf32>
    tpu.vector_store %arg8[%c6, %c0_28], %126 {strides = array<i32>} : memref<9x256xf32, #tpu.memory_space<vmem>>, vector<1x256xf32>,
    %c-16_i32_29 = arith.constant -16 : i32
    %128 = vector.broadcast %c-16_i32_29 : i32 to vector<1x256xi32>
    %129 = arith.cmpi sge, %2, %128 : vector<1x256xi32>
    %c240_i32_30 = arith.constant 240 : i32
    %130 = vector.broadcast %c240_i32_30 : i32 to vector<1x256xi32>
    %131 = arith.cmpi slt, %2, %130 : vector<1x256xi32>
    %132 = arith.andi %129, %131 : vector<1x256xi1>
    %c0_i32_31 = arith.constant 0 : i32
    %133 = vector.broadcast %c0_i32_31 : i32 to vector<1x256xi32>
    %134 = arith.cmpi sge, %4, %133 : vector<1x256xi32>
    %c16_i32_32 = arith.constant 16 : i32
    %135 = vector.broadcast %c16_i32_32 : i32 to vector<1x256xi32>
    %136 = arith.cmpi slt, %4, %135 : vector<1x256xi32>
    %137 = arith.andi %134, %136 : vector<1x256xi1>
    %138 = arith.andi %132, %137 : vector<1x256xi1>
    %139 = arith.extui %138 : vector<1x256xi1> to vector<1x256xi32>
    %140 = arith.sitofp %139 : vector<1x256xi32> to vector<1x256xf32>
    %141 = vector.extract_strided_slice %1 {offsets = [0, 16], sizes = [1, 240], strides = [1, 1]} : vector<1x256xf32> to vector<1x240xf32>
    %142 = vector.extract_strided_slice %1 {offsets = [0, 0], sizes = [1, 16], strides = [1, 1]} : vector<1x256xf32> to vector<1x16xf32>
    %143 = tpu.concatenate %141, %142 in 1 : vector<1x240xf32>, vector<1x16xf32> -> vector<1x256xf32>
    %144 = arith.mulf %143, %140 : vector<1x256xf32>
    %c7 = arith.constant 7 : index
    %c0_33 = arith.constant 0 : index
    %145 = vector.load %arg8[%c7, %c0_33] : memref<9x256xf32, #tpu.memory_space<vmem>>, vector<1x256xf32>
    tpu.vector_store %arg8[%c7, %c0_33], %144 {strides = array<i32>} : memref<9x256xf32, #tpu.memory_space<vmem>>, vector<1x256xf32>,
    %c-16_i32_34 = arith.constant -16 : i32
    %146 = vector.broadcast %c-16_i32_34 : i32 to vector<1x256xi32>
    %147 = arith.cmpi sge, %2, %146 : vector<1x256xi32>
    %c240_i32_35 = arith.constant 240 : i32
    %148 = vector.broadcast %c240_i32_35 : i32 to vector<1x256xi32>
    %149 = arith.cmpi slt, %2, %148 : vector<1x256xi32>
    %150 = arith.andi %147, %149 : vector<1x256xi1>
    %c-1_i32_36 = arith.constant -1 : i32
    %151 = vector.broadcast %c-1_i32_36 : i32 to vector<1x256xi32>
    %152 = arith.cmpi sge, %4, %151 : vector<1x256xi32>
    %c15_i32_37 = arith.constant 15 : i32
    %153 = vector.broadcast %c15_i32_37 : i32 to vector<1x256xi32>
    %154 = arith.cmpi slt, %4, %153 : vector<1x256xi32>
    %155 = arith.andi %152, %154 : vector<1x256xi1>
    %156 = arith.andi %150, %155 : vector<1x256xi1>
    %157 = arith.extui %156 : vector<1x256xi1> to vector<1x256xi32>
    %158 = arith.sitofp %157 : vector<1x256xi32> to vector<1x256xf32>
    %159 = vector.extract_strided_slice %1 {offsets = [0, 17], sizes = [1, 239], strides = [1, 1]} : vector<1x256xf32> to vector<1x239xf32>
    %160 = vector.extract_strided_slice %1 {offsets = [0, 0], sizes = [1, 17], strides = [1, 1]} : vector<1x256xf32> to vector<1x17xf32>
    %161 = tpu.concatenate %159, %160 in 1 : vector<1x239xf32>, vector<1x17xf32> -> vector<1x256xf32>
    %162 = arith.mulf %161, %158 : vector<1x256xf32>
    %c8 = arith.constant 8 : index
    %c0_38 = arith.constant 0 : index
    %163 = vector.load %arg8[%c8, %c0_38] : memref<9x256xf32, #tpu.memory_space<vmem>>, vector<1x256xf32>
    tpu.vector_store %arg8[%c8, %c0_38], %162 {strides = array<i32>} : memref<9x256xf32, #tpu.memory_space<vmem>>, vector<1x256xf32>,
    %c0_39 = arith.constant 0 : index
    %c0_40 = arith.constant 0 : index
    %164 = vector.load %arg2[%c0_39, %c0_40] : memref<320x9xbf16, #tpu.memory_space<vmem>>, vector<320x9xbf16>
    %c0_41 = arith.constant 0 : index
    %c0_42 = arith.constant 0 : index
    %165 = vector.load %arg8[%c0_41, %c0_42] : memref<9x256xf32, #tpu.memory_space<vmem>>, vector<9x256xf32>
    %166 = arith.truncf %165 : vector<9x256xf32> to vector<9x256xbf16>
    %cst = arith.constant dense<0.000000e+00> : vector<320x256xf32>
    %167 = tpu.matmul %164, %166, %cst {dimension_numbers = #tpu.dot_dimension_numbers<[1], [0], [0], [1], [0, 0, 1, 1], [], []>} : vector<320x9xbf16>, vector<9x256xbf16>, vector<320x256xf32> -> vector<320x256xf32>
    %c0_43 = arith.constant 0 : index
    %c0_44 = arith.constant 0 : index
    %168 = vector.load %arg3[%c0_43, %c0_44] : memref<320x1xf32, #tpu.memory_space<vmem>>, vector<320x1xf32>
    %169 = vector.broadcast %168 : vector<320x1xf32> to vector<320x256xf32>
    %170 = arith.addf %167, %169 : vector<320x256xf32>
    %171 = arith.truncf %170 : vector<320x256xf32> to vector<320x256xbf16>
    %c0_45 = arith.constant 0 : index
    %c0_46 = arith.constant 0 : index
    %172 = vector.load %arg7[%c0_45, %c0_46] : memref<320x256xbf16, #tpu.memory_space<vmem>>, vector<320x256xbf16>
    tpu.vector_store %arg7[%c0_45, %c0_46], %171 {strides = array<i32>} : memref<320x256xbf16, #tpu.memory_space<vmem>>, vector<320x256xbf16>,
    %c0_47 = arith.constant 0 : index
    %c0_48 = arith.constant 0 : index
    %173 = vector.load %arg4[%c0_47, %c0_48] : memref<9x320xbf16, #tpu.memory_space<vmem>>, vector<9x320xbf16>
    %c0_49 = arith.constant 0 : index
    %c0_50 = arith.constant 0 : index
    %174 = vector.load %arg7[%c0_49, %c0_50] : memref<320x256xbf16, #tpu.memory_space<vmem>>, vector<320x256xbf16>
    %cst_51 = arith.constant dense<0.000000e+00> : vector<9x256xf32>
    %175 = tpu.matmul %173, %174, %cst_51 {dimension_numbers = #tpu.dot_dimension_numbers<[1], [0], [0], [1], [0, 0, 1, 1], [], []>} : vector<9x320xbf16>, vector<320x256xbf16>, vector<9x256xf32> -> vector<9x256xf32>
    %cst_52 = arith.constant 0.000000e+00 : f32
    %176 = vector.broadcast %cst_52 : f32 to vector<1x256xf32>
    %177 = vector.extract_strided_slice %175 {offsets = [0, 0], sizes = [1, 256], strides = [1, 1]} : vector<9x256xf32> to vector<1x256xf32>
    %178 = vector.extract_strided_slice %177 {offsets = [0, 239], sizes = [1, 17], strides = [1, 1]} : vector<1x256xf32> to vector<1x17xf32>
    %179 = vector.extract_strided_slice %177 {offsets = [0, 0], sizes = [1, 239], strides = [1, 1]} : vector<1x256xf32> to vector<1x239xf32>
    %180 = tpu.concatenate %178, %179 in 1 : vector<1x17xf32>, vector<1x239xf32> -> vector<1x256xf32>
    %181 = arith.mulf %180, %17 : vector<1x256xf32>
    %182 = arith.addf %176, %181 : vector<1x256xf32>
    %183 = vector.extract_strided_slice %175 {offsets = [1, 0], sizes = [1, 256], strides = [1, 1]} : vector<9x256xf32> to vector<1x256xf32>
    %184 = vector.extract_strided_slice %183 {offsets = [0, 240], sizes = [1, 16], strides = [1, 1]} : vector<1x256xf32> to vector<1x16xf32>
    %185 = vector.extract_strided_slice %183 {offsets = [0, 0], sizes = [1, 240], strides = [1, 1]} : vector<1x256xf32> to vector<1x240xf32>
    %186 = tpu.concatenate %184, %185 in 1 : vector<1x16xf32>, vector<1x240xf32> -> vector<1x256xf32>
    %187 = arith.mulf %186, %35 : vector<1x256xf32>
    %188 = arith.addf %182, %187 : vector<1x256xf32>
    %189 = vector.extract_strided_slice %175 {offsets = [2, 0], sizes = [1, 256], strides = [1, 1]} : vector<9x256xf32> to vector<1x256xf32>
    %190 = vector.extract_strided_slice %189 {offsets = [0, 241], sizes = [1, 15], strides = [1, 1]} : vector<1x256xf32> to vector<1x15xf32>
    %191 = vector.extract_strided_slice %189 {offsets = [0, 0], sizes = [1, 241], strides = [1, 1]} : vector<1x256xf32> to vector<1x241xf32>
    %192 = tpu.concatenate %190, %191 in 1 : vector<1x15xf32>, vector<1x241xf32> -> vector<1x256xf32>
    %193 = arith.mulf %192, %53 : vector<1x256xf32>
    %194 = arith.addf %188, %193 : vector<1x256xf32>
    %195 = vector.extract_strided_slice %175 {offsets = [3, 0], sizes = [1, 256], strides = [1, 1]} : vector<9x256xf32> to vector<1x256xf32>
    %196 = vector.extract_strided_slice %195 {offsets = [0, 255], sizes = [1, 1], strides = [1, 1]} : vector<1x256xf32> to vector<1x1xf32>
    %197 = vector.extract_strided_slice %195 {offsets = [0, 0], sizes = [1, 255], strides = [1, 1]} : vector<1x256xf32> to vector<1x255xf32>
    %198 = tpu.concatenate %196, %197 in 1 : vector<1x1xf32>, vector<1x255xf32> -> vector<1x256xf32>
    %199 = arith.mulf %198, %71 : vector<1x256xf32>
    %200 = arith.addf %194, %199 : vector<1x256xf32>
    %201 = vector.extract_strided_slice %175 {offsets = [4, 0], sizes = [1, 256], strides = [1, 1]} : vector<9x256xf32> to vector<1x256xf32>
    %202 = arith.mulf %201, %89 : vector<1x256xf32>
    %203 = arith.addf %200, %202 : vector<1x256xf32>
    %204 = vector.extract_strided_slice %175 {offsets = [5, 0], sizes = [1, 256], strides = [1, 1]} : vector<9x256xf32> to vector<1x256xf32>
    %205 = vector.extract_strided_slice %204 {offsets = [0, 1], sizes = [1, 255], strides = [1, 1]} : vector<1x256xf32> to vector<1x255xf32>
    %206 = vector.extract_strided_slice %204 {offsets = [0, 0], sizes = [1, 1], strides = [1, 1]} : vector<1x256xf32> to vector<1x1xf32>
    %207 = tpu.concatenate %205, %206 in 1 : vector<1x255xf32>, vector<1x1xf32> -> vector<1x256xf32>
    %208 = arith.mulf %207, %104 : vector<1x256xf32>
    %209 = arith.addf %203, %208 : vector<1x256xf32>
    %210 = vector.extract_strided_slice %175 {offsets = [6, 0], sizes = [1, 256], strides = [1, 1]} : vector<9x256xf32> to vector<1x256xf32>
    %211 = vector.extract_strided_slice %210 {offsets = [0, 15], sizes = [1, 241], strides = [1, 1]} : vector<1x256xf32> to vector<1x241xf32>
    %212 = vector.extract_strided_slice %210 {offsets = [0, 0], sizes = [1, 15], strides = [1, 1]} : vector<1x256xf32> to vector<1x15xf32>
    %213 = tpu.concatenate %211, %212 in 1 : vector<1x241xf32>, vector<1x15xf32> -> vector<1x256xf32>
    %214 = arith.mulf %213, %122 : vector<1x256xf32>
    %215 = arith.addf %209, %214 : vector<1x256xf32>
    %216 = vector.extract_strided_slice %175 {offsets = [7, 0], sizes = [1, 256], strides = [1, 1]} : vector<9x256xf32> to vector<1x256xf32>
    %217 = vector.extract_strided_slice %216 {offsets = [0, 16], sizes = [1, 240], strides = [1, 1]} : vector<1x256xf32> to vector<1x240xf32>
    %218 = vector.extract_strided_slice %216 {offsets = [0, 0], sizes = [1, 16], strides = [1, 1]} : vector<1x256xf32> to vector<1x16xf32>
    %219 = tpu.concatenate %217, %218 in 1 : vector<1x240xf32>, vector<1x16xf32> -> vector<1x256xf32>
    %220 = arith.mulf %219, %140 : vector<1x256xf32>
    %221 = arith.addf %215, %220 : vector<1x256xf32>
    %222 = vector.extract_strided_slice %175 {offsets = [8, 0], sizes = [1, 256], strides = [1, 1]} : vector<9x256xf32> to vector<1x256xf32>
    %223 = vector.extract_strided_slice %222 {offsets = [0, 17], sizes = [1, 239], strides = [1, 1]} : vector<1x256xf32> to vector<1x239xf32>
    %224 = vector.extract_strided_slice %222 {offsets = [0, 0], sizes = [1, 17], strides = [1, 1]} : vector<1x256xf32> to vector<1x17xf32>
    %225 = tpu.concatenate %223, %224 in 1 : vector<1x239xf32>, vector<1x17xf32> -> vector<1x256xf32>
    %226 = arith.mulf %225, %158 : vector<1x256xf32>
    %227 = arith.addf %221, %226 : vector<1x256xf32>
    %c0_53 = arith.constant 0 : index
    %c0_54 = arith.constant 0 : index
    %228 = memref.load %arg5[%c0_53, %c0_54] : memref<1x1xf32, #tpu.memory_space<smem>>
    %229 = vector.broadcast %228 : f32 to vector<1x256xf32>
    %230 = arith.addf %227, %229 : vector<1x256xf32>
    %c0_55 = arith.constant 0 : index
    %c0_56 = arith.constant 0 : index
    %c0_57 = arith.constant 0 : index
    %231 = vector.load %arg6[%c0_55, %c0_56, %c0_57] : memref<1x1x256xf32, #tpu.memory_space<vmem>>, vector<1x1x256xf32>
    %232 = vector.shape_cast %231 : vector<1x1x256xf32> to vector<1x256xf32>
    %233 = vector.shape_cast %230 : vector<1x256xf32> to vector<1x1x256xf32>
    tpu.vector_store %arg6[%c0_55, %c0_56, %c0_57], %233 {strides = array<i32>} : memref<1x1x256xf32, #tpu.memory_space<vmem>>, vector<1x1x256xf32>,
    return
  }
  func.func @transform_0(%arg0: i32) -> (i32, i32, i32) {
    %c0_i32 = arith.constant 0 : i32
    %c0_i32_0 = arith.constant 0 : i32
    %c0_i32_1 = arith.constant 0 : i32
    return %arg0, %c0_i32, %c0_i32_0 : i32, i32, i32
  }
  func.func @transform_1(%arg0: i32) -> (i32, i32) {
    %c0_i32 = arith.constant 0 : i32
    %c0_i32_0 = arith.constant 0 : i32
    %c0_i32_1 = arith.constant 0 : i32
    return %c0_i32, %c0_i32_0 : i32, i32
  }
  func.func @transform_2(%arg0: i32) -> (i32, i32) {
    %c0_i32 = arith.constant 0 : i32
    %c0_i32_0 = arith.constant 0 : i32
    %c0_i32_1 = arith.constant 0 : i32
    return %c0_i32, %c0_i32_0 : i32, i32
  }
  func.func @transform_3(%arg0: i32) -> (i32, i32) {
    %c0_i32 = arith.constant 0 : i32
    %c0_i32_0 = arith.constant 0 : i32
    %c0_i32_1 = arith.constant 0 : i32
    return %c0_i32, %c0_i32_0 : i32, i32
  }
  func.func @transform_4(%arg0: i32) -> (i32, i32) {
    %c0_i32 = arith.constant 0 : i32
    %c0_i32_0 = arith.constant 0 : i32
    %c0_i32_1 = arith.constant 0 : i32
    return %c0_i32, %c0_i32_0 : i32, i32
  }
  func.func @transform_5(%arg0: i32) -> (i32, i32, i32) {
    %c0_i32 = arith.constant 0 : i32
    %c0_i32_0 = arith.constant 0 : i32
    %c0_i32_1 = arith.constant 0 : i32
    return %arg0, %c0_i32, %c0_i32_0 : i32, i32, i32
  }
}

module attributes {stable_mosaic.version = 11 : i64} {
  func.func @_map_align_kernel(%arg0: i32, %arg1: memref<2x2048xbf16, #tpu.memory_space<vmem>>, %arg2: memref<2048x640xbf16, #tpu.memory_space<vmem>>, %arg3: memref<1x640xf32, #tpu.memory_space<vmem>>, %arg4: memref<2x640xf32, #tpu.memory_space<vmem>>, %arg5: memref<1x2x1xf32, #tpu.memory_space<vmem>>, %arg6: memref<1x2x1xf32, #tpu.memory_space<vmem>>, %arg7: memref<1x2x1xf32, #tpu.memory_space<vmem>>) attributes {dimension_semantics = [#tpu.dimension_semantics<parallel>], iteration_bounds = array<i64: 2>, scalar_prefetch = 0 : i64, scratch_operands = 0 : i64, tpu.core_type = #tpu.core_type<tc>, window_params = [{pipeline_mode = #tpu.pipeline_mode<synchronous>, transform_indices = @transform_0, window_bounds = array<i64: 2, 2048>}, {transform_indices = @transform_1, window_bounds = array<i64: 2048, 640>}, {transform_indices = @transform_2, window_bounds = array<i64: 1, 640>}, {transform_indices = @transform_3, window_bounds = array<i64: 2, 640>}, {transform_indices = @transform_4, window_bounds = array<i64: 1, 2, 1>}, {transform_indices = @transform_5, window_bounds = array<i64: 1, 2, 1>}, {transform_indices = @transform_6, window_bounds = array<i64: 1, 2, 1>}]} {
    %c0 = arith.constant 0 : index
    %c0_0 = arith.constant 0 : index
    %0 = vector.load %arg1[%c0, %c0_0] : memref<2x2048xbf16, #tpu.memory_space<vmem>>, vector<2x2048xbf16>
    %c0_1 = arith.constant 0 : index
    %c0_2 = arith.constant 0 : index
    %1 = vector.load %arg2[%c0_1, %c0_2] : memref<2048x640xbf16, #tpu.memory_space<vmem>>, vector<2048x640xbf16>
    %cst = arith.constant dense<0.000000e+00> : vector<2x640xf32>
    %2 = tpu.matmul %0, %1, %cst {dimension_numbers = #tpu.dot_dimension_numbers<[1], [0], [0], [1], [0, 0, 1, 1], [], []>} : vector<2x2048xbf16>, vector<2048x640xbf16>, vector<2x640xf32> -> vector<2x640xf32>
    %c0_3 = arith.constant 0 : index
    %c0_4 = arith.constant 0 : index
    %3 = vector.load %arg3[%c0_3, %c0_4] : memref<1x640xf32, #tpu.memory_space<vmem>>, vector<1x640xf32>
    %4 = vector.broadcast %3 : vector<1x640xf32> to vector<2x640xf32>
    %5 = arith.addf %2, %4 : vector<2x640xf32>
    %c0_5 = arith.constant 0 : index
    %c0_6 = arith.constant 0 : index
    %6 = vector.load %arg4[%c0_5, %c0_6] : memref<2x640xf32, #tpu.memory_space<vmem>>, vector<2x640xf32>
    %7 = arith.mulf %5, %6 : vector<2x640xf32>
    %cst_7 = arith.constant dense<0.000000e+00> : vector<2xf32>
    %8 = vector.multi_reduction <add>, %7, %cst_7 [1] : vector<2x640xf32> to vector<2xf32>
    %9 = vector.shape_cast %8 : vector<2xf32> to vector<2x1xf32>
    %c0_8 = arith.constant 0 : index
    %c0_9 = arith.constant 0 : index
    %c0_10 = arith.constant 0 : index
    %10 = vector.load %arg5[%c0_8, %c0_9, %c0_10] : memref<1x2x1xf32, #tpu.memory_space<vmem>>, vector<1x2x1xf32>
    %11 = vector.shape_cast %10 : vector<1x2x1xf32> to vector<2x1xf32>
    %12 = vector.shape_cast %9 : vector<2x1xf32> to vector<1x2x1xf32>
    tpu.vector_store %arg5[%c0_8, %c0_9, %c0_10], %12 {strides = array<i32>} : memref<1x2x1xf32, #tpu.memory_space<vmem>>, vector<1x2x1xf32>,
    %13 = arith.mulf %5, %5 : vector<2x640xf32>
    %cst_11 = arith.constant dense<0.000000e+00> : vector<2xf32>
    %14 = vector.multi_reduction <add>, %13, %cst_11 [1] : vector<2x640xf32> to vector<2xf32>
    %15 = vector.shape_cast %14 : vector<2xf32> to vector<2x1xf32>
    %c0_12 = arith.constant 0 : index
    %c0_13 = arith.constant 0 : index
    %c0_14 = arith.constant 0 : index
    %16 = vector.load %arg6[%c0_12, %c0_13, %c0_14] : memref<1x2x1xf32, #tpu.memory_space<vmem>>, vector<1x2x1xf32>
    %17 = vector.shape_cast %16 : vector<1x2x1xf32> to vector<2x1xf32>
    %18 = vector.shape_cast %15 : vector<2x1xf32> to vector<1x2x1xf32>
    tpu.vector_store %arg6[%c0_12, %c0_13, %c0_14], %18 {strides = array<i32>} : memref<1x2x1xf32, #tpu.memory_space<vmem>>, vector<1x2x1xf32>,
    %19 = arith.mulf %6, %6 : vector<2x640xf32>
    %cst_15 = arith.constant dense<0.000000e+00> : vector<2xf32>
    %20 = vector.multi_reduction <add>, %19, %cst_15 [1] : vector<2x640xf32> to vector<2xf32>
    %21 = vector.shape_cast %20 : vector<2xf32> to vector<2x1xf32>
    %c0_16 = arith.constant 0 : index
    %c0_17 = arith.constant 0 : index
    %c0_18 = arith.constant 0 : index
    %22 = vector.load %arg7[%c0_16, %c0_17, %c0_18] : memref<1x2x1xf32, #tpu.memory_space<vmem>>, vector<1x2x1xf32>
    %23 = vector.shape_cast %22 : vector<1x2x1xf32> to vector<2x1xf32>
    %24 = vector.shape_cast %21 : vector<2x1xf32> to vector<1x2x1xf32>
    tpu.vector_store %arg7[%c0_16, %c0_17, %c0_18], %24 {strides = array<i32>} : memref<1x2x1xf32, #tpu.memory_space<vmem>>, vector<1x2x1xf32>,
    return
  }
  func.func @transform_0(%arg0: i32) -> (i32, i32) {
    %c0_i32 = arith.constant 0 : i32
    %c0_i32_0 = arith.constant 0 : i32
    %c0_i32_1 = arith.constant 0 : i32
    return %c0_i32, %c0_i32_0 : i32, i32
  }
  func.func @transform_1(%arg0: i32) -> (i32, i32) {
    %c0_i32 = arith.constant 0 : i32
    %c0_i32_0 = arith.constant 0 : i32
    return %c0_i32, %arg0 : i32, i32
  }
  func.func @transform_2(%arg0: i32) -> (i32, i32) {
    %c0_i32 = arith.constant 0 : i32
    %c0_i32_0 = arith.constant 0 : i32
    return %c0_i32, %arg0 : i32, i32
  }
  func.func @transform_3(%arg0: i32) -> (i32, i32) {
    %c0_i32 = arith.constant 0 : i32
    %c0_i32_0 = arith.constant 0 : i32
    return %c0_i32, %arg0 : i32, i32
  }
  func.func @transform_4(%arg0: i32) -> (i32, i32, i32) {
    %c0_i32 = arith.constant 0 : i32
    %c0_i32_0 = arith.constant 0 : i32
    %c0_i32_1 = arith.constant 0 : i32
    return %arg0, %c0_i32, %c0_i32_0 : i32, i32, i32
  }
  func.func @transform_5(%arg0: i32) -> (i32, i32, i32) {
    %c0_i32 = arith.constant 0 : i32
    %c0_i32_0 = arith.constant 0 : i32
    %c0_i32_1 = arith.constant 0 : i32
    return %arg0, %c0_i32, %c0_i32_0 : i32, i32, i32
  }
  func.func @transform_6(%arg0: i32) -> (i32, i32, i32) {
    %c0_i32 = arith.constant 0 : i32
    %c0_i32_0 = arith.constant 0 : i32
    %c0_i32_1 = arith.constant 0 : i32
    return %arg0, %c0_i32, %c0_i32_0 : i32, i32, i32
  }
}

module attributes {stable_mosaic.version = 11 : i64} {
  func.func @_linear_kernel(%arg0: i32, %arg1: memref<2x512xbf16, #tpu.memory_space<vmem>>, %arg2: memref<512x384xbf16, #tpu.memory_space<vmem>>, %arg3: memref<1x384xf32, #tpu.memory_space<vmem>>, %arg4: memref<2x384xf32, #tpu.memory_space<vmem>>) attributes {dimension_semantics = [#tpu.dimension_semantics<parallel>], iteration_bounds = array<i64: 2>, scalar_prefetch = 0 : i64, scratch_operands = 0 : i64, tpu.core_type = #tpu.core_type<tc>, window_params = [{pipeline_mode = #tpu.pipeline_mode<synchronous>, transform_indices = @transform_0, window_bounds = array<i64: 2, 512>}, {transform_indices = @transform_1, window_bounds = array<i64: 512, 384>}, {transform_indices = @transform_2, window_bounds = array<i64: 1, 384>}, {transform_indices = @transform_3, window_bounds = array<i64: 2, 384>}]} {
    %c0 = arith.constant 0 : index
    %c0_0 = arith.constant 0 : index
    %0 = vector.load %arg1[%c0, %c0_0] : memref<2x512xbf16, #tpu.memory_space<vmem>>, vector<2x512xbf16>
    %c0_1 = arith.constant 0 : index
    %c0_2 = arith.constant 0 : index
    %1 = vector.load %arg2[%c0_1, %c0_2] : memref<512x384xbf16, #tpu.memory_space<vmem>>, vector<512x384xbf16>
    %cst = arith.constant dense<0.000000e+00> : vector<2x384xf32>
    %2 = tpu.matmul %0, %1, %cst {dimension_numbers = #tpu.dot_dimension_numbers<[1], [0], [0], [1], [0, 0, 1, 1], [], []>} : vector<2x512xbf16>, vector<512x384xbf16>, vector<2x384xf32> -> vector<2x384xf32>
    %c0_3 = arith.constant 0 : index
    %c0_4 = arith.constant 0 : index
    %3 = vector.load %arg3[%c0_3, %c0_4] : memref<1x384xf32, #tpu.memory_space<vmem>>, vector<1x384xf32>
    %4 = vector.broadcast %3 : vector<1x384xf32> to vector<2x384xf32>
    %5 = arith.addf %2, %4 : vector<2x384xf32>
    %c0_5 = arith.constant 0 : index
    %c0_6 = arith.constant 0 : index
    %6 = vector.load %arg4[%c0_5, %c0_6] : memref<2x384xf32, #tpu.memory_space<vmem>>, vector<2x384xf32>
    tpu.vector_store %arg4[%c0_5, %c0_6], %5 {strides = array<i32>} : memref<2x384xf32, #tpu.memory_space<vmem>>, vector<2x384xf32>,
    return
  }
  func.func @transform_0(%arg0: i32) -> (i32, i32) {
    %c0_i32 = arith.constant 0 : i32
    %c0_i32_0 = arith.constant 0 : i32
    %c0_i32_1 = arith.constant 0 : i32
    return %c0_i32, %c0_i32_0 : i32, i32
  }
  func.func @transform_1(%arg0: i32) -> (i32, i32) {
    %c0_i32 = arith.constant 0 : i32
    %c0_i32_0 = arith.constant 0 : i32
    return %c0_i32, %arg0 : i32, i32
  }
  func.func @transform_2(%arg0: i32) -> (i32, i32) {
    %c0_i32 = arith.constant 0 : i32
    %c0_i32_0 = arith.constant 0 : i32
    return %c0_i32, %arg0 : i32, i32
  }
  func.func @transform_3(%arg0: i32) -> (i32, i32) {
    %c0_i32 = arith.constant 0 : i32
    %c0_i32_0 = arith.constant 0 : i32
    return %c0_i32, %arg0 : i32, i32
  }
}

</mosaic_0001>

<llo_original>
// kernel: tpu_custom_call.1
$region0: #{tpu_custom_call.1}
  #allocation0 [shape = 'u32[]', space=smem, size = 0x4, offset = 0x4, fixed_abs, tag = 'smem constant byte address 0x4 - core index']
  #allocation1 [shape = 'u32[144,128]{1,0:T(1,128)}', space=vmem, size = 0x12000, scoped, tag = 'internal scratch']
  %s0 = inlined_call_operand.hbm [shape: f32[8,128], index: 0, kind: input, shape index: {}]
  %s1 = inlined_call_operand.hbm [shape: f32[8,128], index: 1, kind: output, shape index: {}]
  %s2 = sld [smem:[#allocation0]]
  $region18: #{tpu_custom_call.1} parent=0
    _
  %s4 = ssub.s32 1, %s2
  %s5 = scalar_select 0, %s4, %s2
  $region1: #{tpu_custom_call.1} parent=0
    #allocation2 [shape = 'u8[4096]{0}', space=vmem, size = 0x1000, scoped, tag = 'input window, operand 0, single buffered']
    #allocation3 [shape = 's32[1]{0}', space=sflag, size = 0x4, scoped, tag = 'scoped memory for tpu_custom_call.1']
    #allocation4 [shape = 's32[1]{0}', space=sflag, size = 0x4, scoped, tag = 'scoped memory for tpu_custom_call.1']
    #allocation5 [shape = 'u8[4096]{0}', space=vmem, size = 0x1000, scoped, tag = 'output window, operand 0, single buffered']
    %6 = vsyncpa [#allocation3], 0
    %7 = vsyncpa [#allocation4], 0
    // Predicated region
    $region2: #{tpu_custom_call.1} parent=1 // pred_check
      _
    $region3: #{tpu_custom_call.1} parent=1 // pred_check_branch
      %9 = sbr.rel (0) target = $region5
    $region4: #{tpu_custom_call.1} parent=1 // pred_region
      %s11 = ssub.s32 128, 128
      %12 = vsyncadd [#allocation3], %s11
      %s14 = sshll.u32 [#allocation2], 4
      %s15 = int_to_ptr.vmem [resolvable:$true] %s14
      %17 = dma.hbm_to_vmem [thread:$0]  %s0, 128, %s15, [#allocation3]
    $region5: #{tpu_custom_call.1} parent=1 // pred_fallthru
      _
    // Predicated region
    $region6: #{tpu_custom_call.1} parent=1 // pred_check
      _
    $region7: #{tpu_custom_call.1} parent=1 // pred_check_branch
      %19 = sbr.rel (0) target = $region9
    $region8: #{tpu_custom_call.1} parent=1 // pred_region
      %20 = dma.done [#allocation3], 128
    $region9: #{tpu_custom_call.1} parent=1 // pred_fallthru
      _
    %v21 = vld [vmem:[#allocation2] sm:$0xff]
    %22 = vrot.lane.b32.xlu0 %v21, 1
    %v23 = vpop.permute.xlu0 %22
    %24 = vst [vmem:[#allocation5] sm:$0xff] %v23
    // Predicated region
    $region10: #{tpu_custom_call.1} parent=1 // pred_check
      _
    $region11: #{tpu_custom_call.1} parent=1 // pred_check_branch
      %26 = sbr.rel (0) target = $region13
    $region12: #{tpu_custom_call.1} parent=1 // pred_region
      %s28 = ssub.s32 128, 128
      %29 = vsyncadd [#allocation4], %s28
      %s31 = sshll.u32 [#allocation5], 4
      %s32 = int_to_ptr.vmem [resolvable:$true] %s31
      %34 = dma.vmem_to_hbm [thread:$0]  %s32, 128, %s1, [#allocation4]
    $region13: #{tpu_custom_call.1} parent=1 // pred_fallthru
      _
    // Predicated region
    $region14: #{tpu_custom_call.1} parent=1 // pred_check
      _
    $region15: #{tpu_custom_call.1} parent=1 // pred_check_branch
      %36 = sbr.rel (0) target = $region17
    $region16: #{tpu_custom_call.1} parent=1 // pred_region
      %37 = dma.done [#allocation4], 128
    $region17: #{tpu_custom_call.1} parent=1 // pred_fallthru
      _
    %38 = vsyncpa [#allocation3], 1
    %39 = vsyncpa [#allocation4], 1

// kernel: feature_aligned_diffusion_forward.5
$region0: #{feature_aligned_diffusion_forward.5}
  #allocation0 [shape = 'u32[]', space=smem, size = 0x4, offset = 0x4, fixed_abs, tag = 'smem constant byte address 0x4 - core index']
  #allocation1 [shape = 'u32[144,128]{1,0:T(1,128)}', space=vmem, size = 0x12000, scoped, tag = 'internal scratch']
  #allocation2 [shape = 'bf16[320,256]{1,0:T(16,128)(2,1)}', space=vmem, size = 0x28000, scoped, tag = 'scratch operand']
  #allocation3 [shape = 'f32[9,256]{1,0:T(8,128)}', space=vmem, size = 0x4000, scoped, tag = 'scratch operand']
  #allocation4 [shape = 'f32[1,1]{1,0:T(1,128)S(6)}', space=smem, size = 0x200, scoped, tag = 'scoped memory for feature_aligned_diffusion_forward.5']
  %s0 = inlined_call_operand.vmem [shape: f32[2,1,256], index: 0, kind: input, shape index: {}]
  %s1 = inlined_call_operand.vmem [shape: bf16[320,9], index: 1, kind: input, shape index: {}]
  %s2 = inlined_call_operand.vmem [shape: f32[320,1], index: 2, kind: input, shape index: {}]
  %s3 = inlined_call_operand.hbm [shape: bf16[9,320], index: 3, kind: input, shape index: {}]
  %s4 = inlined_call_operand.<no memory space> [shape: f32[1,1], index: 4, kind: input, shape index: {}]
  %s5 = inlined_call_operand.vmem [shape: f32[2,1,256], index: 5, kind: output, shape index: {}]
  %s6 = sld [smem:[#allocation0]]
  $region57: #{feature_aligned_diffusion_forward.5} parent=0
    _
  %s8 = ssub.s32 1, %s6
  %s9 = scalar_select 0, %s8, %s6
  %10 = sst [smem:[#allocation4]] %s4
  $region1: #{feature_aligned_diffusion_forward.5} parent=0
    #allocation5 [shape = 'u8[12288]{0}', space=vmem, size = 0x3000, scoped, tag = 'input window, operand 3, single buffered']
    #allocation6 [shape = 's32[2]{0}', space=sflag, size = 0x8, scoped, tag = 'scoped memory for feature_aligned_diffusion_forward.5']
    %11 = vsyncpa [#allocation6], 0
    loop: start=0, step=1, limit=4
    $region2: #{feature_aligned_diffusion_forward.5} parent=1 // loop_pre_header
      _
    $region3: #{feature_aligned_diffusion_forward.5} parent=1 // loop_header
      %s13 = sphi 0, %s17
      %p14 = scmp.ge.s32.totalorder %s13, 4
      %s23 = sphi 0, %s25
      %s26 = sphi 0, %s23
      %s27 = sphi 0, %s26
      %s43 = sphi 0, %s27
      %s47 = sphi 0, %s47
      %s49 = sphi 0, %s47
      %s50 = sphi 0, %s49
      %s64 = sphi 0, %s50
      %s68 = sphi 0, %s68
      %s70 = sphi 0, %s68
      %s71 = sphi 0, %s70
      %s85 = sphi 0, %s71
      %s89 = sphi 0, %s89
      %s91 = sphi 0, %s89
      %s92 = sphi 0, %s91
      %s106 = sphi 0, %s92
      %s110 = sphi 0, %s110
      %s112 = sphi 0, %s110
      %s113 = sphi 0, %s112
      %s127 = sphi 0, %s113
      %s133 = sphi 0, %s135
      %s136 = sphi 0, %s133
      %s137 = sphi 0, %s136
      %s153 = sphi 0, %s137
    $region4: #{feature_aligned_diffusion_forward.5} parent=1 // loop_header_branch
      %16 = sbr.rel (%p14) target = $region8
    $region5: #{feature_aligned_diffusion_forward.5} parent=1 // loop_body
      %s18 = ssub.s32 %s13, 1
      %s19 = ssub.s32 %s13, 2
      %s20 = sadd.s32 %s13, 1
      %s21 = ssub.s32 %s13, %s20
      %p22 = scmp.eq.s32.totalorder %s21, 0
      %s24 = sadd.s32 %s23, 1
      %s25 = scalar_select %p22, %s23, %s24
      %p28 = pneg %p22
      %p29 = scmp.eq.s32.totalorder %s13, 1
      %p30 = por %p28, %p29
      %p31 = scmp.ne.s32.totalorder %s23, %s26
      %p32 = scmp.eq.s32.totalorder %s13, 0
      %p33 = por %p31, %p32
      %p34 = scmp.ne.s32.totalorder %s23, %s26
      %p35 = scmp.eq.s32.totalorder %s18, 1
      %p36 = por %p34, %p35
      %p37 = scmp.ne.s32.totalorder %s26, %s27
      %p38 = scmp.eq.s32.totalorder %s18, 0
      %p39 = por %p37, %p38
      %p40 = scmp.ne.s32.totalorder %s26, %s27
      %p41 = scmp.eq.s32.totalorder %s19, 1
      %p42 = por %p40, %p41
      %p44 = scmp.ne.s32.totalorder %s27, %s43
      %p45 = scmp.eq.s32.totalorder %s19, 0
      %p46 = por %p44, %p45
      %s48 = sadd.s32 %s47, 1
      %p51 = scmp.eq.s32.totalorder %s13, 1
      %p52 = scmp.ne.s32.totalorder %s47, %s49
      %p53 = scmp.eq.s32.totalorder %s13, 0
      %p54 = por %p52, %p53
      %p55 = scmp.ne.s32.totalorder %s47, %s49
      %p56 = scmp.eq.s32.totalorder %s18, 1
      %p57 = por %p55, %p56
      %p58 = scmp.ne.s32.totalorder %s49, %s50
      %p59 = scmp.eq.s32.totalorder %s18, 0
      %p60 = por %p58, %p59
      %p61 = scmp.ne.s32.totalorder %s49, %s50
      %p62 = scmp.eq.s32.totalorder %s19, 1
      %p63 = por %p61, %p62
      %p65 = scmp.ne.s32.totalorder %s50, %s64
      %p66 = scmp.eq.s32.totalorder %s19, 0
      %p67 = por %p65, %p66
      %s69 = sadd.s32 %s68, 1
      %p72 = scmp.eq.s32.totalorder %s13, 1
      %p73 = scmp.ne.s32.totalorder %s68, %s70
      %p74 = scmp.eq.s32.totalorder %s13, 0
      %p75 = por %p73, %p74
      %p76 = scmp.ne.s32.totalorder %s68, %s70
      %p77 = scmp.eq.s32.totalorder %s18, 1
      %p78 = por %p76, %p77
      %p79 = scmp.ne.s32.totalorder %s70, %s71
      %p80 = scmp.eq.s32.totalorder %s18, 0
      %p81 = por %p79, %p80
      %p82 = scmp.ne.s32.totalorder %s70, %s71
      %p83 = scmp.eq.s32.totalorder %s19, 1
      %p84 = por %p82, %p83
      %p86 = scmp.ne.s32.totalorder %s71, %s85
      %p87 = scmp.eq.s32.totalorder %s19, 0
      %p88 = por %p86, %p87
      %s90 = sadd.s32 %s89, 1
      %p93 = scmp.eq.s32.totalorder %s13, 1
      %p94 = scmp.ne.s32.totalorder %s89, %s91
      %p95 = scmp.eq.s32.totalorder %s13, 0
      %p96 = por %p94, %p95
      %p97 = scmp.ne.s32.totalorder %s89, %s91
      %p98 = scmp.eq.s32.totalorder %s18, 1
      %p99 = por %p97, %p98
      %p100 = scmp.ne.s32.totalorder %s91, %s92
      %p101 = scmp.eq.s32.totalorder %s18, 0
      %p102 = por %p100, %p101
      %p103 = scmp.ne.s32.totalorder %s91, %s92
      %p104 = scmp.eq.s32.totalorder %s19, 1
      %p105 = por %p103, %p104
      %p107 = scmp.ne.s32.totalorder %s92, %s106
      %p108 = scmp.eq.s32.totalorder %s19, 0
      %p109 = por %p107, %p108
      %s111 = sadd.s32 %s110, 1
      %p114 = scmp.eq.s32.totalorder %s13, 1
      %p115 = scmp.ne.s32.totalorder %s110, %s112
      %p116 = scmp.eq.s32.totalorder %s13, 0
      %p117 = por %p115, %p116
      %p118 = scmp.ne.s32.totalorder %s110, %s112
      %p119 = scmp.eq.s32.totalorder %s18, 1
      %p120 = por %p118, %p119
      %p121 = scmp.ne.s32.totalorder %s112, %s113
      %p122 = scmp.eq.s32.totalorder %s18, 0
      %p123 = por %p121, %p122
      %p124 = scmp.ne.s32.totalorder %s112, %s113
      %p125 = scmp.eq.s32.totalorder %s19, 1
      %p126 = por %p124, %p125
      %p128 = scmp.ne.s32.totalorder %s113, %s127
      %p129 = scmp.eq.s32.totalorder %s19, 0
      %p130 = por %p128, %p129
      %s131 = ssub.s32 %s13, %s20
      %p132 = scmp.eq.s32.totalorder %s131, 0
      %s134 = sadd.s32 %s133, 1
      %s135 = scalar_select %p132, %s133, %s134
      %p138 = pneg %p132
      %p139 = scmp.eq.s32.totalorder %s13, 1
      %p140 = por %p138, %p139
      %p141 = scmp.ne.s32.totalorder %s133, %s136
      %p142 = scmp.eq.s32.totalorder %s13, 0
      %p143 = por %p141, %p142
      %p144 = scmp.ne.s32.totalorder %s133, %s136
      %p145 = scmp.eq.s32.totalorder %s18, 1
      %p146 = por %p144, %p145
      %p147 = scmp.ne.s32.totalorder %s136, %s137
      %p148 = scmp.eq.s32.totalorder %s18, 0
      %p149 = por %p147, %p148
      %p150 = scmp.ne.s32.totalorder %s136, %s137
      %p151 = scmp.eq.s32.totalorder %s19, 1
      %p152 = por %p150, %p151
      %p154 = scmp.ne.s32.totalorder %s137, %s153
      %p155 = scmp.eq.s32.totalorder %s19, 0
      %p156 = por %p154, %p155
      %p157 = scmp.le.s32.totalorder 1, %s13
      %p158 = scmp.lt.s32.totalorder %s13, 3
      %p159 = pnand %p157, %p158
      %p160 = pneg %p159
      // Predicated region
      $region9: #{feature_aligned_diffusion_forward.5} parent=5 // pred_check
        _
      $region10: #{feature_aligned_diffusion_forward.5} parent=5 // pred_check_branch
        %162 = sbr.rel (%p159) target = $region12
      $region11: #{feature_aligned_diffusion_forward.5} parent=5 // pred_region
        %s163 = ssub.s32 %s13, 1
        // Predicated region
        $region13: #{feature_aligned_diffusion_forward.5} parent=11 // pred_check
          %p164 = pneg %p60
        $region14: #{feature_aligned_diffusion_forward.5} parent=11 // pred_check_branch
          %166 = sbr.rel (%p164) target = $region16
        $region15: #{feature_aligned_diffusion_forward.5} parent=11 // pred_region
          _
        $region16: #{feature_aligned_diffusion_forward.5} parent=11 // pred_fallthru
          _
        // Predicated region
        $region17: #{feature_aligned_diffusion_forward.5} parent=11 // pred_check
          %p167 = pneg %p81
        $region18: #{feature_aligned_diffusion_forward.5} parent=11 // pred_check_branch
          %169 = sbr.rel (%p167) target = $region20
        $region19: #{feature_aligned_diffusion_forward.5} parent=11 // pred_region
          _
        $region20: #{feature_aligned_diffusion_forward.5} parent=11 // pred_fallthru
          _
        // Predicated region
        $region21: #{feature_aligned_diffusion_forward.5} parent=11 // pred_check
          %p170 = pneg %p102
        $region22: #{feature_aligned_diffusion_forward.5} parent=11 // pred_check_branch
          %172 = sbr.rel (%p170) target = $region24
        $region23: #{feature_aligned_diffusion_forward.5} parent=11 // pred_region
          %s174 = ssub.s32 384, 384
          %175 = vsyncadd [#allocation6], %s174
          %s176 = sshll.u32 [#allocation5], 4
          %s177 = int_to_ptr.vmem [resolvable:$true] %s176
          %182 = dma.hbm_to_vmem [thread:$0]  %s3, 384, %s177, [#allocation6], 192, 192, 12
        $region24: #{feature_aligned_diffusion_forward.5} parent=11 // pred_fallthru
          _
        // Predicated region
        $region25: #{feature_aligned_diffusion_forward.5} parent=11 // pred_check
          %p183 = pneg %p123
        $region26: #{feature_aligned_diffusion_forward.5} parent=11 // pred_check_branch
          %185 = sbr.rel (%p183) target = $region28
        $region27: #{feature_aligned_diffusion_forward.5} parent=11 // pred_region
          _
        $region28: #{feature_aligned_diffusion_forward.5} parent=11 // pred_fallthru
          _
      $region12: #{feature_aligned_diffusion_forward.5} parent=5 // pred_fallthru
        _
      %p186 = scmp.lt.s32.totalorder %s13, 2
      // Predicated region
      $region29: #{feature_aligned_diffusion_forward.5} parent=5 // pred_check
        %p187 = pneg %p186
      $region30: #{feature_aligned_diffusion_forward.5} parent=5 // pred_check_branch
        %189 = sbr.rel (%p187) target = $region32
      $region31: #{feature_aligned_diffusion_forward.5} parent=5 // pred_region
        // Predicated region
        $region33: #{feature_aligned_diffusion_forward.5} parent=31 // pred_check
          %p190 = pneg %p33
        $region34: #{feature_aligned_diffusion_forward.5} parent=31 // pred_check_branch
          %192 = sbr.rel (%p190) target = $region36
        $region35: #{feature_aligned_diffusion_forward.5} parent=31 // pred_region
          %p193 = scmp.lt.s32.totalorder %s13, 1
          %s194 = scalar_select %p193, %s13, 1
          %s195 = smul.addr %s194, 2
          %s196 = scalar_lea.vmem %s0, %s195
        $region36: #{feature_aligned_diffusion_forward.5} parent=31 // pred_fallthru
          _
      $region32: #{feature_aligned_diffusion_forward.5} parent=5 // pred_fallthru
        _
      %p197 = scmp.le.s32.totalorder 1, %s13
      %p198 = scmp.lt.s32.totalorder %s13, 3
      %p199 = pnand %p197, %p198
      %p200 = pneg %p199
      // Predicated region
      $region37: #{feature_aligned_diffusion_forward.5} parent=5 // pred_check
        _
      $region38: #{feature_aligned_diffusion_forward.5} parent=5 // pred_check_branch
        %202 = sbr.rel (%p199) target = $region40
      $region39: #{feature_aligned_diffusion_forward.5} parent=5 // pred_region
        %s203 = ssub.s32 %s13, 1
        // Predicated region
        $region41: #{feature_aligned_diffusion_forward.5} parent=39 // pred_check
          %p204 = pneg %p102
        $region42: #{feature_aligned_diffusion_forward.5} parent=39 // pred_check_branch
          %206 = sbr.rel (%p204) target = $region44
        $region43: #{feature_aligned_diffusion_forward.5} parent=39 // pred_region
          %207 = dma.done [#allocation6], 384
        $region44: #{feature_aligned_diffusion_forward.5} parent=39 // pred_fallthru
          _
        %p208 = scmp.lt.s32.totalorder %s18, 1
        %s209 = scalar_select %p208, %s18, 1
        %s210 = smul.addr %s209, 2
        %s211 = scalar_lea.vmem %s0, %s210
        %p212 = pneg %p39
        %p213 = pneg %p36
        %p214 = pneg %p60
        %p215 = pneg %p57
        %p216 = pneg %p81
        %p217 = pneg %p78
        %p218 = pneg %p102
        %p219 = pneg %p99
        %p220 = pneg %p123
        %p221 = pneg %p120
        %p222 = pneg %p149
        %p223 = pneg %p146
        %p224 = scmp.lt.s32.totalorder %s18, 1
        %s225 = scalar_select %p224, %s18, 1
        %s226 = smul.addr %s225, 2
        %s227 = scalar_lea.vmem %s5, %s226
        %p228 = scmp.lt.s32.totalorder %s18, 1
        %s229 = scalar_select %p228, %s18, 1
        %s230 = smul.addr %s229, 2
        %s231 = scalar_lea.vmem %s0, %s230
        %p232 = scmp.lt.s32.totalorder %s18, 1
        %s233 = scalar_select %p232, %s18, 1
        %s234 = smul.addr %s233, 2
        %s235 = scalar_lea.vmem %s5, %s234
        %v237 = vld [vmem:[%s231] sm:$0x3]
        %v238 = vlaneseq
        %v239 = vand.u32 %v238, 127
        %v240 = vadd.s32 %v239, 128
        %v241 = vand.u32 %v239, 15
        %v242 = vand.u32 %v240, 15
        %vm243 = vcmp.ge.s32.totalorder %v239, 16
        %vm244 = vcmp.ge.s32.totalorder %v240, 16
        %vm245 = vcmp.lt.s32.totalorder %v239, 272
        %vm246 = vcmp.lt.s32.totalorder %v240, 272
        %vm247 = vmand %vm243, %vm245
        %vm248 = vmand %vm244, %vm246
        %vm249 = vcmp.ge.s32.totalorder %v241, 1
        %vm250 = vcmp.ge.s32.totalorder %v242, 1
        %vm251 = vcmp.lt.s32.totalorder %v241, 17
        %vm252 = vcmp.lt.s32.totalorder %v242, 17
        %vm253 = vmand %vm249, %vm251
        %vm254 = vmand %vm250, %vm252
        %vm255 = vmand %vm247, %vm253
        %vm256 = vmand %vm248, %vm254
        %v257 = vsel %vm255, 1, 0
        %v258 = vsel %vm256, 1, 0
        %v259 = vcvt.s32.f32 %v257
        %v260 = vcvt.s32.f32 %v258
        %v262 = vlaneseq
        %v263 = vshrl.u32 %v262, 7
        %v264 = vsub.s32 1, %v263
        %v265 = vrot.slane %v237, %v264
        %266 = vrot.lane.b32.xlu0 %v265, 17
        %v267 = vpop.permute.xlu0 %266
        %v269 = vlaneseq
        %v270 = vshrl.u32 %v269, 7
        %v271 = vsub.s32 0, %v270
        %v272 = vrot.slane %v237, %v271
        %273 = vrot.lane.b32.xlu0 %v272, 17
        %v274 = vpop.permute.xlu0 %273
        %vm275 = vcmask 138240
        %v276 = vsel %vm275, %v274, %v267
        %v279 = vsel %vm275, %v267, %v274
        %v280 = vmul.f32 %v279, %v259
        %v281 = vmul.f32 %v276, %v260
        %v284 = vcombine.low %v280, %v281
        %v286 = vunpack.c.l.s4 1966171168
        %v287 = vunpack.c.0.s8 %v286
        %v288 = vlaneseq
        %v289 = vshrl.u32 %v288, 7
        %v290 = vsub.s32 %v287, %v289
        %v291 = vrot.slane %v284, %v290
        %v293 = vunpack.c.l.s4 1966171168
        %v294 = vunpack.c.0.s8 %v293
        %v295 = vlaneseq
        %v296 = vshrl.u32 %v295, 7
        %v297 = vsub.s32 %v294, %v296
        %v298 = vrot.slane %v291, %v297
        %v300 = vlaneseq
        %vm301 = vcmp.ge.s32.totalorder %v300, 0
        %vm302 = vcmp.lt.s32.totalorder %v300, 256
        %vm303 = vmand %vm301, %vm302
        %304 = vst.msk [vmem:[#allocation3] ss:$8 sm:$0x3] %vm303, %v298
        %305 = vst.msk [vmem:[#allocation3] ss:$8 sm:$0x0] %vm303, %v298
        %vm306 = vcmp.ge.s32.totalorder %v241, 0
        %vm307 = vcmp.ge.s32.totalorder %v242, 0
        %vm308 = vcmp.lt.s32.totalorder %v241, 16
        %vm309 = vcmp.lt.s32.totalorder %v242, 16
        %vm310 = vmand %vm306, %vm308
        %vm311 = vmand %vm307, %vm309
        %vm312 = vmand %vm247, %vm310
        %vm313 = vmand %vm248, %vm311
        %v314 = vsel %vm312, 1, 0
        %v315 = vsel %vm313, 1, 0
        %v316 = vcvt.s32.f32 %v314
        %v317 = vcvt.s32.f32 %v315
        %318 = vrot.lane.b32.xlu0 %v265, 16
        %v319 = vpop.permute.xlu0 %318
        %321 = vrot.lane.b32.xlu0 %v272, 16
        %v322 = vpop.permute.xlu0 %321
        %vm323 = vcmask 130048
        %v324 = vsel %vm323, %v322, %v319
        %v327 = vsel %vm323, %v319, %v322
        %v328 = vmul.f32 %v327, %v316
        %v329 = vmul.f32 %v324, %v317
        %v332 = vcombine.low %v328, %v329
        %v334 = vunpack.c.l.s4 1966171168
        %v335 = vunpack.c.0.s8 %v334
        %v336 = vlaneseq
        %v337 = vshrl.u32 %v336, 7
        %v338 = vsub.s32 %v335, %v337
        %v339 = vrot.slane %v332, %v338
        %v341 = vunpack.c.l.s4 1966171168
        %v342 = vunpack.c.0.s8 %v341
        %v343 = vlaneseq
        %v344 = vshrl.u32 %v343, 7
        %v345 = vsub.s32 %v342, %v344
        %v346 = vrot.slane %v339, %v345
        %s348 = scalar_lea.vmem [#allocation3], 1
        %349 = vst.msk [vmem:[%s348] ss:$8 sm:$0x3] %vm303, %v346
        %350 = vst.msk [vmem:[%s348] ss:$8 sm:$0x0] %vm303, %v346
        %vm351 = vcmp.ge.s32.totalorder %v241, 4294967295
        %vm352 = vcmp.ge.s32.totalorder %v242, 4294967295
        %vm353 = vcmp.lt.s32.totalorder %v241, 15
        %vm354 = vcmp.lt.s32.totalorder %v242, 15
        %vm355 = vmand %vm351, %vm353
        %vm356 = vmand %vm352, %vm354
        %vm357 = vmand %vm247, %vm355
        %vm358 = vmand %vm248, %vm356
        %v359 = vsel %vm357, 1, 0
        %v360 = vsel %vm358, 1, 0
        %v361 = vcvt.s32.f32 %v359
        %v362 = vcvt.s32.f32 %v360
        %363 = vrot.lane.b32.xlu0 %v265, 15
        %v364 = vpop.permute.xlu0 %363
        %366 = vrot.lane.b32.xlu0 %v272, 15
        %v367 = vpop.permute.xlu0 %366
        %vm368 = vcmask 121856
        %v369 = vsel %vm368, %v367, %v364
        %v372 = vsel %vm368, %v364, %v367
        %v373 = vmul.f32 %v372, %v361
        %v374 = vmul.f32 %v369, %v362
        %v377 = vcombine.low %v373, %v374
        %v379 = vunpack.c.l.s4 1966171168
        %v380 = vunpack.c.0.s8 %v379
        %v381 = vlaneseq
        %v382 = vshrl.u32 %v381, 7
        %v383 = vsub.s32 %v380, %v382
        %v384 = vrot.slane %v377, %v383
        %v386 = vunpack.c.l.s4 1966171168
        %v387 = vunpack.c.0.s8 %v386
        %v388 = vlaneseq
        %v389 = vshrl.u32 %v388, 7
        %v390 = vsub.s32 %v387, %v389
        %v391 = vrot.slane %v384, %v390
        %s393 = scalar_lea.vmem [#allocation3], 2
        %394 = vst.msk [vmem:[%s393] ss:$8 sm:$0x3] %vm303, %v391
        %395 = vst.msk [vmem:[%s393] ss:$8 sm:$0x0] %vm303, %v391
        %vm396 = vcmp.ge.s32.totalorder %v239, 0
        %vm397 = vcmp.ge.s32.totalorder %v240, 0
        %vm398 = vcmp.lt.s32.totalorder %v239, 256
        %vm399 = vcmp.lt.s32.totalorder %v240, 256
        %vm400 = vmand %vm396, %vm398
        %vm401 = vmand %vm397, %vm399
        %vm402 = vmand %vm400, %vm253
        %vm403 = vmand %vm401, %vm254
        %v404 = vsel %vm402, 1, 0
        %v405 = vsel %vm403, 1, 0
        %v406 = vcvt.s32.f32 %v404
        %v407 = vcvt.s32.f32 %v405
        %408 = vrot.lane.b32.xlu0 %v265, 1
        %v409 = vpop.permute.xlu0 %408
        %411 = vrot.lane.b32.xlu0 %v272, 1
        %v412 = vpop.permute.xlu0 %411
        %vm413 = vcmask 7168
        %v414 = vsel %vm413, %v412, %v409
        %v417 = vsel %vm413, %v409, %v412
        %v418 = vmul.f32 %v417, %v406
        %v419 = vmul.f32 %v414, %v407
        %v422 = vcombine.low %v418, %v419
        %v424 = vunpack.c.l.s4 1966171168
        %v425 = vunpack.c.0.s8 %v424
        %v426 = vlaneseq
        %v427 = vshrl.u32 %v426, 7
        %v428 = vsub.s32 %v425, %v427
        %v429 = vrot.slane %v422, %v428
        %v431 = vunpack.c.l.s4 1966171168
        %v432 = vunpack.c.0.s8 %v431
        %v433 = vlaneseq
        %v434 = vshrl.u32 %v433, 7
        %v435 = vsub.s32 %v432, %v434
        %v436 = vrot.slane %v429, %v435
        %s438 = scalar_lea.vmem [#allocation3], 3
        %439 = vst.msk [vmem:[%s438] ss:$8 sm:$0x3] %vm303, %v436
        %440 = vst.msk [vmem:[%s438] ss:$8 sm:$0x0] %vm303, %v436
        %vm441 = vmand %vm400, %vm310
        %vm442 = vmand %vm401, %vm311
        %v443 = vsel %vm441, 1, 0
        %v444 = vsel %vm442, 1, 0
        %v445 = vcvt.s32.f32 %v443
        %v446 = vcvt.s32.f32 %v444
        %v449 = vcombine.low %v445, %v446
        %v451 = vunpack.c.l.s4 1966171168
        %v452 = vunpack.c.0.s8 %v451
        %v453 = vlaneseq
        %v454 = vshrl.u32 %v453, 7
        %v455 = vsub.s32 %v452, %v454
        %v456 = vrot.slane %v449, %v455
        %v458 = vunpack.c.l.s4 1966171168
        %v459 = vunpack.c.0.s8 %v458
        %v460 = vlaneseq
        %v461 = vshrl.u32 %v460, 7
        %v462 = vsub.s32 %v459, %v461
        %v463 = vrot.slane %v456, %v462
        %v465 = vmul.f32 %v237, %v463
        %s466 = scalar_lea.vmem [#allocation3], 4
        %467 = vst.msk [vmem:[%s466] ss:$8 sm:$0x3] %vm303, %v465
        %468 = vst.msk [vmem:[%s466] ss:$8 sm:$0x0] %vm303, %v465
        %vm469 = vmand %vm400, %vm355
        %vm470 = vmand %vm401, %vm356
        %v471 = vsel %vm469, 1, 0
        %v472 = vsel %vm470, 1, 0
        %v473 = vcvt.s32.f32 %v471
        %v474 = vcvt.s32.f32 %v472
        %475 = vrot.lane.b32.xlu0 %v272, 127
        %v476 = vpop.permute.xlu0 %475
        %477 = vrot.lane.b32.xlu0 %v265, 127
        %v478 = vpop.permute.xlu0 %477
        %vm479 = vcmask 1039360
        %v480 = vsel %vm479, %v476, %v478
        %v484 = vsel %vm479, %v478, %v476
        %v485 = vmul.f32 %v480, %v473
        %v486 = vmul.f32 %v484, %v474
        %v489 = vcombine.low %v485, %v486
        %v491 = vunpack.c.l.s4 1966171168
        %v492 = vunpack.c.0.s8 %v491
        %v493 = vlaneseq
        %v494 = vshrl.u32 %v493, 7
        %v495 = vsub.s32 %v492, %v494
        %v496 = vrot.slane %v489, %v495
        %v498 = vunpack.c.l.s4 1966171168
        %v499 = vunpack.c.0.s8 %v498
        %v500 = vlaneseq
        %v501 = vshrl.u32 %v500, 7
        %v502 = vsub.s32 %v499, %v501
        %v503 = vrot.slane %v496, %v502
        %s505 = scalar_lea.vmem [#allocation3], 5
        %506 = vst.msk [vmem:[%s505] ss:$8 sm:$0x3] %vm303, %v503
        %507 = vst.msk [vmem:[%s505] ss:$8 sm:$0x0] %vm303, %v503
        %vm508 = vcmp.ge.s32.totalorder %v239, 4294967280
        %vm509 = vcmp.ge.s32.totalorder %v240, 4294967280
        %vm510 = vcmp.lt.s32.totalorder %v239, 240
        %vm511 = vcmp.lt.s32.totalorder %v240, 240
        %vm512 = vmand %vm508, %vm510
        %vm513 = vmand %vm509, %vm511
        %vm514 = vmand %vm512, %vm253
        %vm515 = vmand %vm513, %vm254
        %v516 = vsel %vm514, 1, 0
        %v517 = vsel %vm515, 1, 0
        %v518 = vcvt.s32.f32 %v516
        %v519 = vcvt.s32.f32 %v517
        %520 = vrot.lane.b32.xlu0 %v272, 113
        %v521 = vpop.permute.xlu0 %520
        %522 = vrot.lane.b32.xlu0 %v265, 113
        %v523 = vpop.permute.xlu0 %522
        %vm524 = vcmask 924672
        %v525 = vsel %vm524, %v521, %v523
        %v529 = vsel %vm524, %v523, %v521
        %v530 = vmul.f32 %v525, %v518
        %v531 = vmul.f32 %v529, %v519
        %v534 = vcombine.low %v530, %v531
        %v536 = vunpack.c.l.s4 1966171168
        %v537 = vunpack.c.0.s8 %v536
        %v538 = vlaneseq
        %v539 = vshrl.u32 %v538, 7
        %v540 = vsub.s32 %v537, %v539
        %v541 = vrot.slane %v534, %v540
        %v543 = vunpack.c.l.s4 1966171168
        %v544 = vunpack.c.0.s8 %v543
        %v545 = vlaneseq
        %v546 = vshrl.u32 %v545, 7
        %v547 = vsub.s32 %v544, %v546
        %v548 = vrot.slane %v541, %v547
        %s550 = scalar_lea.vmem [#allocation3], 6
        %551 = vst.msk [vmem:[%s550] ss:$8 sm:$0x3] %vm303, %v548
        %552 = vst.msk [vmem:[%s550] ss:$8 sm:$0x0] %vm303, %v548
        %vm553 = vmand %vm512, %vm310
        %vm554 = vmand %vm513, %vm311
        %v555 = vsel %vm553, 1, 0
        %v556 = vsel %vm554, 1, 0
        %v557 = vcvt.s32.f32 %v555
        %v558 = vcvt.s32.f32 %v556
        %559 = vrot.lane.b32.xlu0 %v272, 112
        %v560 = vpop.permute.xlu0 %559
        %561 = vrot.lane.b32.xlu0 %v265, 112
        %v562 = vpop.permute.xlu0 %561
        %vm563 = vcmask 916480
        %v564 = vsel %vm563, %v560, %v562
        %v568 = vsel %vm563, %v562, %v560
        %v569 = vmul.f32 %v564, %v557
        %v570 = vmul.f32 %v568, %v558
        %v573 = vcombine.low %v569, %v570
        %v575 = vunpack.c.l.s4 1966171168
        %v576 = vunpack.c.0.s8 %v575
        %v577 = vlaneseq
        %v578 = vshrl.u32 %v577, 7
        %v579 = vsub.s32 %v576, %v578
        %v580 = vrot.slane %v573, %v579
        %v582 = vunpack.c.l.s4 1966171168
        %v583 = vunpack.c.0.s8 %v582
        %v584 = vlaneseq
        %v585 = vshrl.u32 %v584, 7
        %v586 = vsub.s32 %v583, %v585
        %v587 = vrot.slane %v580, %v586
        %s589 = scalar_lea.vmem [#allocation3], 7
        %590 = vst.msk [vmem:[%s589] ss:$8 sm:$0x3] %vm303, %v587
        %591 = vst.msk [vmem:[%s589] ss:$8 sm:$0x0] %vm303, %v587
        %vm592 = vmand %vm512, %vm355
        %vm593 = vmand %vm513, %vm356
        %v594 = vsel %vm592, 1, 0
        %v595 = vsel %vm593, 1, 0
        %v596 = vcvt.s32.f32 %v594
        %v597 = vcvt.s32.f32 %v595
        %598 = vrot.lane.b32.xlu0 %v272, 111
        %v599 = vpop.permute.xlu0 %598
        %600 = vrot.lane.b32.xlu0 %v265, 111
        %v601 = vpop.permute.xlu0 %600
        %vm602 = vcmask 908288
        %v603 = vsel %vm602, %v599, %v601
        %v607 = vsel %vm602, %v601, %v599
        %v608 = vmul.f32 %v603, %v596
        %v609 = vmul.f32 %v607, %v597
        %v612 = vcombine.low %v608, %v609
        %v614 = vunpack.c.l.s4 1966171168
        %v615 = vunpack.c.0.s8 %v614
        %v616 = vlaneseq
        %v617 = vshrl.u32 %v616, 7
        %v618 = vsub.s32 %v615, %v617
        %v619 = vrot.slane %v612, %v618
        %v621 = vunpack.c.l.s4 1966171168
        %v622 = vunpack.c.0.s8 %v621
        %v623 = vlaneseq
        %v624 = vshrl.u32 %v623, 7
        %v625 = vsub.s32 %v622, %v624
        %v626 = vrot.slane %v619, %v625
        %s628 = scalar_lea.vmem [#allocation3], 16
        %629 = vst.msk [vmem:[%s628] ss:$8 sm:$0x3] %vm303, %v626
        %630 = vst.msk [vmem:[%s628] ss:$8 sm:$0x0] %vm303, %v626
        %v631 = vld [vmem:[%s1] sm:$0xf]
        %v632 = vld [vmem:[%s1 + $0x4] sm:$0xf]
        %v633 = vld [vmem:[%s1 + $0x8] sm:$0xf]
        %v634 = vld [vmem:[%s1 + $0xc] sm:$0xf]
        %v635 = vld [vmem:[%s1 + $0x10] sm:$0xf]
        %v636 = vld [vmem:[%s1 + $0x14] sm:$0xf]
        %v637 = vld [vmem:[%s1 + $0x18] sm:$0xf]
        %v638 = vld [vmem:[%s1 + $0x1c] sm:$0xf]
        %v639 = vld [vmem:[%s1 + $0x20] sm:$0xf]
        %v640 = vld [vmem:[%s1 + $0x24] sm:$0xf]
        %v641 = vld [vmem:[%s1 + $0x28] sm:$0xf]
        %v642 = vld [vmem:[%s1 + $0x2c] sm:$0xf]
        %v643 = vld [vmem:[%s1 + $0x30] sm:$0xf]
        %v644 = vld [vmem:[%s1 + $0x34] sm:$0xf]
        %v645 = vld [vmem:[%s1 + $0x38] sm:$0xf]
        %v646 = vld [vmem:[%s1 + $0x3c] sm:$0xf]
        %v647 = vld [vmem:[%s1 + $0x40] sm:$0xf]
        %v648 = vld [vmem:[%s1 + $0x44] sm:$0xf]
        %v649 = vld [vmem:[%s1 + $0x48] sm:$0xf]
        %v650 = vld [vmem:[%s1 + $0x4c] sm:$0xf]
        %v651 = vld [vmem:[%s1 + $0x50] sm:$0xf]
        %v652 = vld [vmem:[%s1 + $0x54] sm:$0xf]
        %v653 = vld [vmem:[%s1 + $0x58] sm:$0xf]
        %v654 = vld [vmem:[%s1 + $0x5c] sm:$0xf]
        %v655 = vld [vmem:[%s1 + $0x60] sm:$0xf]
        %v656 = vld [vmem:[%s1 + $0x64] sm:$0xf]
        %v657 = vld [vmem:[%s1 + $0x68] sm:$0xf]
        %v658 = vld [vmem:[%s1 + $0x6c] sm:$0xf]
        %v659 = vld [vmem:[%s1 + $0x70] sm:$0xf]
        %v660 = vld [vmem:[%s1 + $0x74] sm:$0xf]
        %v661 = vld [vmem:[%s1 + $0x78] sm:$0xf]
        %v662 = vld [vmem:[%s1 + $0x7c] sm:$0xf]
        %v663 = vld [vmem:[%s1 + $0x80] sm:$0xf]
        %v664 = vld [vmem:[%s1 + $0x84] sm:$0xf]
        %v665 = vld [vmem:[%s1 + $0x88] sm:$0xf]
        %v666 = vld [vmem:[%s1 + $0x8c] sm:$0xf]
        %v667 = vld [vmem:[%s1 + $0x90] sm:$0xf]
        %v668 = vld [vmem:[%s1 + $0x94] sm:$0xf]
        %v669 = vld [vmem:[%s1 + $0x98] sm:$0xf]
        %v670 = vld [vmem:[%s1 + $0x9c] sm:$0xf]
        %v671 = vld [vmem:[#allocation3] sm:$0xff]
        %v672 = vld [vmem:[#allocation3 + $0x8] sm:$0xff]
        %v673 = vld [vmem:[#allocation3 + $0x10] sm:$0x1]
        %v674 = vld [vmem:[#allocation3 + $0x18] sm:$0x1]
        %v675 = vpack.c.bf16 %v673, %v671
        %v676 = vpack.c.bf16 %v674, %v672
        %v677 = vld [vmem:[%s2] sm:$0xff]
        %v678 = vld [vmem:[%s2 + $0x8] sm:$0xff]
        %v679 = vld [vmem:[%s2 + $0x10] sm:$0xff]
        %v680 = vld [vmem:[%s2 + $0x18] sm:$0xff]
        %v681 = vld [vmem:[%s2 + $0x20] sm:$0xff]
        %v682 = vld [vmem:[%s2 + $0x28] sm:$0xff]
        %v683 = vld [vmem:[%s2 + $0x30] sm:$0xff]
        %v684 = vld [vmem:[%s2 + $0x38] sm:$0xff]
        %v685 = vld [vmem:[%s2 + $0x40] sm:$0xff]
        %v686 = vld [vmem:[%s2 + $0x48] sm:$0xff]
        %v687 = vld [vmem:[%s2 + $0x50] sm:$0xff]
        %v688 = vld [vmem:[%s2 + $0x58] sm:$0xff]
        %v689 = vld [vmem:[%s2 + $0x60] sm:$0xff]
        %v690 = vld [vmem:[%s2 + $0x68] sm:$0xff]
        %v691 = vld [vmem:[%s2 + $0x70] sm:$0xff]
        %v692 = vld [vmem:[%s2 + $0x78] sm:$0xff]
        %v693 = vld [vmem:[%s2 + $0x80] sm:$0xff]
        %v694 = vld [vmem:[%s2 + $0x88] sm:$0xff]
        %v695 = vld [vmem:[%s2 + $0x90] sm:$0xff]
        %v696 = vld [vmem:[%s2 + $0x98] sm:$0xff]
        %v697 = vld [vmem:[%s2 + $0xa0] sm:$0xff]
        %v698 = vld [vmem:[%s2 + $0xa8] sm:$0xff]
        %v699 = vld [vmem:[%s2 + $0xb0] sm:$0xff]
        %v700 = vld [vmem:[%s2 + $0xb8] sm:$0xff]
        %v701 = vld [vmem:[%s2 + $0xc0] sm:$0xff]
        %v702 = vld [vmem:[%s2 + $0xc8] sm:$0xff]
        %v703 = vld [vmem:[%s2 + $0xd0] sm:$0xff]
        %v704 = vld [vmem:[%s2 + $0xd8] sm:$0xff]
        %v705 = vld [vmem:[%s2 + $0xe0] sm:$0xff]
        %v706 = vld [vmem:[%s2 + $0xe8] sm:$0xff]
        %v707 = vld [vmem:[%s2 + $0xf0] sm:$0xff]
        %v708 = vld [vmem:[%s2 + $0xf8] sm:$0xff]
        %v709 = vld [vmem:[%s2 + $0x100] sm:$0xff]
        %v710 = vld [vmem:[%s2 + $0x108] sm:$0xff]
        %v711 = vld [vmem:[%s2 + $0x110] sm:$0xff]
        %v712 = vld [vmem:[%s2 + $0x118] sm:$0xff]
        %v713 = vld [vmem:[%s2 + $0x120] sm:$0xff]
        %v714 = vld [vmem:[%s2 + $0x128] sm:$0xff]
        %v715 = vld [vmem:[%s2 + $0x130] sm:$0xff]
        %v716 = vld [vmem:[%s2 + $0x138] sm:$0xff]
        %718 = vset.pattern.permute.xlu0 0
        %719 = vperm.xlu0 %718, %v677
        %v720 = vpop.permute.xlu0 %719
        %723 = vset.pattern.permute.xlu0 0
        %724 = vperm.xlu0 %723, %v678
        %v725 = vpop.permute.xlu0 %724
        %728 = vset.pattern.permute.xlu0 0
        %729 = vperm.xlu0 %728, %v679
        %v730 = vpop.permute.xlu0 %729
        %733 = vset.pattern.permute.xlu0 0
        %734 = vperm.xlu0 %733, %v680
        %v735 = vpop.permute.xlu0 %734
        %738 = vset.pattern.permute.xlu0 0
        %739 = vperm.xlu0 %738, %v681
        %v740 = vpop.permute.xlu0 %739
        %743 = vset.pattern.permute.xlu0 0
        %744 = vperm.xlu0 %743, %v682
        %v745 = vpop.permute.xlu0 %744
        %748 = vset.pattern.permute.xlu0 0
        %749 = vperm.xlu0 %748, %v683
        %v750 = vpop.permute.xlu0 %749
        %753 = vset.pattern.permute.xlu0 0
        %754 = vperm.xlu0 %753, %v684
        %v755 = vpop.permute.xlu0 %754
        %758 = vset.pattern.permute.xlu0 0
        %759 = vperm.xlu0 %758, %v685
        %v760 = vpop.permute.xlu0 %759
        %763 = vset.pattern.permute.xlu0 0
        %764 = vperm.xlu0 %763, %v686
        %v765 = vpop.permute.xlu0 %764
        %768 = vset.pattern.permute.xlu0 0
        %769 = vperm.xlu0 %768, %v687
        %v770 = vpop.permute.xlu0 %769
        %773 = vset.pattern.permute.xlu0 0
        %774 = vperm.xlu0 %773, %v688
        %v775 = vpop.permute.xlu0 %774
        %778 = vset.pattern.permute.xlu0 0
        %779 = vperm.xlu0 %778, %v689
        %v780 = vpop.permute.xlu0 %779
        %783 = vset.pattern.permute.xlu0 0
        %784 = vperm.xlu0 %783, %v690
        %v785 = vpop.permute.xlu0 %784
        %788 = vset.pattern.permute.xlu0 0
        %789 = vperm.xlu0 %788, %v691
        %v790 = vpop.permute.xlu0 %789
        %793 = vset.pattern.permute.xlu0 0
        %794 = vperm.xlu0 %793, %v692
        %v795 = vpop.permute.xlu0 %794
        %798 = vset.pattern.permute.xlu0 0
        %799 = vperm.xlu0 %798, %v693
        %v800 = vpop.permute.xlu0 %799
        %803 = vset.pattern.permute.xlu0 0
        %804 = vperm.xlu0 %803, %v694
        %v805 = vpop.permute.xlu0 %804
        %808 = vset.pattern.permute.xlu0 0
        %809 = vperm.xlu0 %808, %v695
        %v810 = vpop.permute.xlu0 %809
        %813 = vset.pattern.permute.xlu0 0
        %814 = vperm.xlu0 %813, %v696
        %v815 = vpop.permute.xlu0 %814
        %818 = vset.pattern.permute.xlu0 0
        %819 = vperm.xlu0 %818, %v697
        %v820 = vpop.permute.xlu0 %819
        %823 = vset.pattern.permute.xlu0 0
        %824 = vperm.xlu0 %823, %v698
        %v825 = vpop.permute.xlu0 %824
        %828 = vset.pattern.permute.xlu0 0
        %829 = vperm.xlu0 %828, %v699
        %v830 = vpop.permute.xlu0 %829
        %833 = vset.pattern.permute.xlu0 0
        %834 = vperm.xlu0 %833, %v700
        %v835 = vpop.permute.xlu0 %834
        %838 = vset.pattern.permute.xlu0 0
        %839 = vperm.xlu0 %838, %v701
        %v840 = vpop.permute.xlu0 %839
        %843 = vset.pattern.permute.xlu0 0
        %844 = vperm.xlu0 %843, %v702
        %v845 = vpop.permute.xlu0 %844
        %848 = vset.pattern.permute.xlu0 0
        %849 = vperm.xlu0 %848, %v703
        %v850 = vpop.permute.xlu0 %849
        %853 = vset.pattern.permute.xlu0 0
        %854 = vperm.xlu0 %853, %v704
        %v855 = vpop.permute.xlu0 %854
        %858 = vset.pattern.permute.xlu0 0
        %859 = vperm.xlu0 %858, %v705
        %v860 = vpop.permute.xlu0 %859
        %863 = vset.pattern.permute.xlu0 0
        %864 = vperm.xlu0 %863, %v706
        %v865 = vpop.permute.xlu0 %864
        %868 = vset.pattern.permute.xlu0 0
        %869 = vperm.xlu0 %868, %v707
        %v870 = vpop.permute.xlu0 %869
        %873 = vset.pattern.permute.xlu0 0
        %874 = vperm.xlu0 %873, %v708
        %v875 = vpop.permute.xlu0 %874
        %878 = vset.pattern.permute.xlu0 0
        %879 = vperm.xlu0 %878, %v709
        %v880 = vpop.permute.xlu0 %879
        %883 = vset.pattern.permute.xlu0 0
        %884 = vperm.xlu0 %883, %v710
        %v885 = vpop.permute.xlu0 %884
        %888 = vset.pattern.permute.xlu0 0
        %889 = vperm.xlu0 %888, %v711
        %v890 = vpop.permute.xlu0 %889
        %893 = vset.pattern.permute.xlu0 0
        %894 = vperm.xlu0 %893, %v712
        %v895 = vpop.permute.xlu0 %894
        %898 = vset.pattern.permute.xlu0 0
        %899 = vperm.xlu0 %898, %v713
        %v900 = vpop.permute.xlu0 %899
        %903 = vset.pattern.permute.xlu0 0
        %904 = vperm.xlu0 %903, %v714
        %v905 = vpop.permute.xlu0 %904
        %908 = vset.pattern.permute.xlu0 0
        %909 = vperm.xlu0 %908, %v715
        %v910 = vpop.permute.xlu0 %909
        %913 = vset.pattern.permute.xlu0 0
        %914 = vperm.xlu0 %913, %v716
        %v915 = vpop.permute.xlu0 %914
        %v957 = vunpack.c.l.b16 %v631
        %v958 = vunpack.c.l.b16 %v632
        %v959 = vunpack.c.l.b16 %v633
        %v960 = vunpack.c.l.b16 %v634
        %v961 = vunpack.c.l.b16 %v635
        %v962 = vunpack.c.l.b16 %v636
        %v963 = vunpack.c.l.b16 %v637
        %v964 = vunpack.c.l.b16 %v638
        %v965 = vunpack.c.l.b16 %v639
        %v966 = vunpack.c.l.b16 %v640
        %v967 = vunpack.c.l.b16 %v641
        %v968 = vunpack.c.l.b16 %v642
        %v969 = vunpack.c.l.b16 %v643
        %v970 = vunpack.c.l.b16 %v644
        %v971 = vunpack.c.l.b16 %v645
        %v972 = vunpack.c.l.b16 %v646
        %v973 = vunpack.c.l.b16 %v647
        %v974 = vunpack.c.l.b16 %v648
        %v975 = vunpack.c.l.b16 %v649
        %v976 = vunpack.c.l.b16 %v650
        %v977 = vunpack.c.l.b16 %v651
        %v978 = vunpack.c.l.b16 %v652
        %v979 = vunpack.c.l.b16 %v653
        %v980 = vunpack.c.l.b16 %v654
        %v981 = vunpack.c.l.b16 %v655
        %v982 = vunpack.c.l.b16 %v656
        %v983 = vunpack.c.l.b16 %v657
        %v984 = vunpack.c.l.b16 %v658
        %v985 = vunpack.c.l.b16 %v659
        %v986 = vunpack.c.l.b16 %v660
        %v987 = vunpack.c.l.b16 %v661
        %v988 = vunpack.c.l.b16 %v662
        %v989 = vunpack.c.l.b16 %v663
        %v990 = vunpack.c.l.b16 %v664
        %v991 = vunpack.c.l.b16 %v665
        %v992 = vunpack.c.l.b16 %v666
        %v993 = vunpack.c.l.b16 %v667
        %v994 = vunpack.c.l.b16 %v668
        %v995 = vunpack.c.l.b16 %v669
        %v996 = vunpack.c.l.b16 %v670
        %v997 = vpack.c.b16 %v958, %v957
        %v998 = vpack.c.b16 %v960, %v959
        %v999 = vpack.c.b16 %v962, %v961
        %v1000 = vpack.c.b16 %v964, %v963
        %v1001 = vpack.c.b16 %v966, %v965
        %v1002 = vpack.c.b16 %v968, %v967
        %v1003 = vpack.c.b16 %v970, %v969
        %v1004 = vpack.c.b16 %v972, %v971
        %v1005 = vpack.c.b16 %v974, %v973
        %v1006 = vpack.c.b16 %v976, %v975
        %v1007 = vpack.c.b16 %v978, %v977
        %v1008 = vpack.c.b16 %v980, %v979
        %v1009 = vpack.c.b16 %v982, %v981
        %v1010 = vpack.c.b16 %v984, %v983
        %v1011 = vpack.c.b16 %v986, %v985
        %v1012 = vpack.c.b16 %v988, %v987
        %v1013 = vpack.c.b16 %v990, %v989
        %v1014 = vpack.c.b16 %v992, %v991
        %v1015 = vpack.c.b16 %v994, %v993
        %v1016 = vpack.c.b16 %v996, %v995
        %vm1017 = vcmask 72704
        %v1019 = vsel %vm1017, %v997, 0
        %v1022 = vsel %vm1017, %v998, 0
        %v1025 = vsel %vm1017, %v999, 0
        %v1028 = vsel %vm1017, %v1000, 0
        %v1031 = vsel %vm1017, %v1001, 0
        %v1034 = vsel %vm1017, %v1002, 0
        %v1037 = vsel %vm1017, %v1003, 0
        %v1040 = vsel %vm1017, %v1004, 0
        %v1043 = vsel %vm1017, %v1005, 0
        %v1046 = vsel %vm1017, %v1006, 0
        %v1049 = vsel %vm1017, %v1007, 0
        %v1052 = vsel %vm1017, %v1008, 0
        %v1055 = vsel %vm1017, %v1009, 0
        %v1058 = vsel %vm1017, %v1010, 0
        %v1061 = vsel %vm1017, %v1011, 0
        %v1064 = vsel %vm1017, %v1012, 0
        %v1067 = vsel %vm1017, %v1013, 0
        %v1070 = vsel %vm1017, %v1014, 0
        %v1073 = vsel %vm1017, %v1015, 0
        %v1076 = vsel %vm1017, %v1016, 0
        %vm1078 = vcmask 1043456
        %vm1079 = vcmask 1044480
        %v1080 = vsel %vm1078, 4294967295, 65535
        %v1081 = vsel %vm1079, %v1080, 0
        %v1083 = vand.u32 %v675, %v1081
        %v1086 = vand.u32 %v676, %v1081
        %1088 = vmatprep.subr.bf16.mxu0 %v1086
        %1089 = vmatpush1.bf16.msra.mxu0 %v1083
        %1090 = vmatprep.subr.bf16.mxu0 0
        %1091 = vmatpush1.bf16.msra.mxu0 0
        %1092 = vmatprep.subr.bf16.mxu0 0
        %1093 = vmatpush1.bf16.msra.mxu0 0
        %1094 = vmatprep.subr.bf16.mxu0 0
        %1095 = vmatpush1.bf16.msra.mxu0 0
        %1096 = vmatprep.subr.bf16.mxu0 0
        %1097 = vmatpush1.bf16.msra.mxu0 0
        %1098 = vmatprep.subr.bf16.mxu0 0
        %1099 = vmatpush1.bf16.msra.mxu0 0
        %1100 = vmatprep.subr.bf16.mxu0 0
        %1101 = vmatpush1.bf16.msra.mxu0 0
        %1102 = vmatprep.subr.bf16.mxu0 0
        %1103 = vmatpush1.bf16.msra.mxu0 0
        %1104 = vmatprep.subr.bf16.mxu0 0
        %1105 = vmatpush1.bf16.msra.mxu0 0
        %1106 = vmatprep.subr.bf16.mxu0 0
        %1107 = vmatpush1.bf16.msra.mxu0 0
        %1108 = vmatprep.subr.bf16.mxu0 0
        %1109 = vmatpush1.bf16.msra.mxu0 0
        %1110 = vmatprep.subr.bf16.mxu0 0
        %1111 = vmatpush1.bf16.msra.mxu0 0
        %1112 = vmatprep.subr.bf16.mxu0 0
        %1113 = vmatpush1.bf16.msra.mxu0 0
        %1114 = vmatprep.subr.bf16.mxu0 0
        %1115 = vmatpush1.bf16.msra.mxu0 0
        %1116 = vmatprep.subr.bf16.mxu0 0
        %1117 = vmatpush1.bf16.msra.mxu0 0
        %1118 = vmatprep.subr.bf16.mxu0 0
        %1119 = vmatpush1.bf16.msra.mxu0 0
        %1120 = vmatprep.mubr.bf16.mxu0 0
        %1121 = vmatmul.mubr.bf16.gmra.mrb[0].mxu0 %v1019
        %v1122 = vpop.f32.mrb[0].mxu0
        %v1123 = vadd.f32 %v720, %v1122
        %v1124 = vpop.f32.mrb[0].mxu0
        %v1125 = vadd.f32 %v720, %v1124
        %v1126 = vpop.f32.mrb[0].mxu0
        %v1127 = vadd.f32 %v725, %v1126
        %v1128 = vpop.f32.mrb[0].mxu0
        %v1129 = vadd.f32 %v725, %v1128
        %1130 = vmatprep.mubr.bf16.mxu0 0
        %1131 = vmatmul.mubr.bf16.gmra.mrb[0].mxu0 %v1022
        %v1132 = vpop.f32.mrb[0].mxu0
        %v1133 = vadd.f32 %v730, %v1132
        %v1134 = vpop.f32.mrb[0].mxu0
        %v1135 = vadd.f32 %v730, %v1134
        %v1136 = vpop.f32.mrb[0].mxu0
        %v1137 = vadd.f32 %v735, %v1136
        %v1138 = vpop.f32.mrb[0].mxu0
        %v1139 = vadd.f32 %v735, %v1138
        %1140 = vmatprep.mubr.bf16.mxu0 0
        %1141 = vmatmul.mubr.bf16.gmra.mrb[0].mxu0 %v1025
        %v1142 = vpop.f32.mrb[0].mxu0
        %v1143 = vadd.f32 %v740, %v1142
        %v1144 = vpop.f32.mrb[0].mxu0
        %v1145 = vadd.f32 %v740, %v1144
        %v1146 = vpop.f32.mrb[0].mxu0
        %v1147 = vadd.f32 %v745, %v1146
        %v1148 = vpop.f32.mrb[0].mxu0
        %v1149 = vadd.f32 %v745, %v1148
        %1150 = vmatprep.mubr.bf16.mxu0 0
        %1151 = vmatmul.mubr.bf16.gmra.mrb[0].mxu0 %v1028
        %v1152 = vpop.f32.mrb[0].mxu0
        %v1153 = vadd.f32 %v750, %v1152
        %v1154 = vpop.f32.mrb[0].mxu0
        %v1155 = vadd.f32 %v750, %v1154
        %v1156 = vpop.f32.mrb[0].mxu0
        %v1157 = vadd.f32 %v755, %v1156
        %v1158 = vpop.f32.mrb[0].mxu0
        %v1159 = vadd.f32 %v755, %v1158
        %1160 = vmatprep.mubr.bf16.mxu0 0
        %1161 = vmatmul.mubr.bf16.gmra.mrb[0].mxu0 %v1031
        %v1162 = vpop.f32.mrb[0].mxu0
        %v1163 = vadd.f32 %v760, %v1162
        %v1164 = vpop.f32.mrb[0].mxu0
        %v1165 = vadd.f32 %v760, %v1164
        %v1166 = vpop.f32.mrb[0].mxu0
        %v1167 = vadd.f32 %v765, %v1166
        %v1168 = vpop.f32.mrb[0].mxu0
        %v1169 = vadd.f32 %v765, %v1168
        %1170 = vmatprep.mubr.bf16.mxu0 0
        %1171 = vmatmul.mubr.bf16.gmra.mrb[0].mxu0 %v1034
        %v1172 = vpop.f32.mrb[0].mxu0
        %v1173 = vadd.f32 %v770, %v1172
        %v1174 = vpop.f32.mrb[0].mxu0
        %v1175 = vadd.f32 %v770, %v1174
        %v1176 = vpop.f32.mrb[0].mxu0
        %v1177 = vadd.f32 %v775, %v1176
        %v1178 = vpop.f32.mrb[0].mxu0
        %v1179 = vadd.f32 %v775, %v1178
        %1180 = vmatprep.mubr.bf16.mxu0 0
        %1181 = vmatmul.mubr.bf16.gmra.mrb[0].mxu0 %v1037
        %v1182 = vpop.f32.mrb[0].mxu0
        %v1183 = vadd.f32 %v780, %v1182
        %v1184 = vpop.f32.mrb[0].mxu0
        %v1185 = vadd.f32 %v780, %v1184
        %v1186 = vpop.f32.mrb[0].mxu0
        %v1187 = vadd.f32 %v785, %v1186
        %v1188 = vpop.f32.mrb[0].mxu0
        %v1189 = vadd.f32 %v785, %v1188
        %1190 = vmatprep.mubr.bf16.mxu0 0
        %1191 = vmatmul.mubr.bf16.gmra.mrb[0].mxu0 %v1040
        %v1192 = vpop.f32.mrb[0].mxu0
        %v1193 = vadd.f32 %v790, %v1192
        %v1194 = vpop.f32.mrb[0].mxu0
        %v1195 = vadd.f32 %v790, %v1194
        %v1196 = vpop.f32.mrb[0].mxu0
        %v1197 = vadd.f32 %v795, %v1196
        %v1198 = vpop.f32.mrb[0].mxu0
        %v1199 = vadd.f32 %v795, %v1198
        %1200 = vmatprep.mubr.bf16.mxu0 0
        %1201 = vmatmul.mubr.bf16.gmra.mrb[0].mxu0 %v1043
        %v1202 = vpop.f32.mrb[0].mxu0
        %v1203 = vadd.f32 %v800, %v1202
        %v1204 = vpop.f32.mrb[0].mxu0
        %v1205 = vadd.f32 %v800, %v1204
        %v1206 = vpop.f32.mrb[0].mxu0
        %v1207 = vadd.f32 %v805, %v1206
        %v1208 = vpop.f32.mrb[0].mxu0
        %v1209 = vadd.f32 %v805, %v1208
        %1210 = vmatprep.mubr.bf16.mxu0 0
        %1211 = vmatmul.mubr.bf16.gmra.mrb[0].mxu0 %v1046
        %v1212 = vpop.f32.mrb[0].mxu0
        %v1213 = vadd.f32 %v810, %v1212
        %v1214 = vpop.f32.mrb[0].mxu0
        %v1215 = vadd.f32 %v810, %v1214
        %v1216 = vpop.f32.mrb[0].mxu0
        %v1217 = vadd.f32 %v815, %v1216
        %v1218 = vpop.f32.mrb[0].mxu0
        %v1219 = vadd.f32 %v815, %v1218
        %1220 = vmatprep.mubr.bf16.mxu0 0
        %1221 = vmatmul.mubr.bf16.gmra.mrb[0].mxu0 %v1049
        %v1222 = vpop.f32.mrb[0].mxu0
        %v1223 = vadd.f32 %v820, %v1222
        %v1224 = vpop.f32.mrb[0].mxu0
        %v1225 = vadd.f32 %v820, %v1224
        %v1226 = vpop.f32.mrb[0].mxu0
        %v1227 = vadd.f32 %v825, %v1226
        %v1228 = vpop.f32.mrb[0].mxu0
        %v1229 = vadd.f32 %v825, %v1228
        %1230 = vmatprep.mubr.bf16.mxu0 0
        %1231 = vmatmul.mubr.bf16.gmra.mrb[0].mxu0 %v1052
        %v1232 = vpop.f32.mrb[0].mxu0
        %v1233 = vadd.f32 %v830, %v1232
        %v1234 = vpop.f32.mrb[0].mxu0
        %v1235 = vadd.f32 %v830, %v1234
        %v1236 = vpop.f32.mrb[0].mxu0
        %v1237 = vadd.f32 %v835, %v1236
        %v1238 = vpop.f32.mrb[0].mxu0
        %v1239 = vadd.f32 %v835, %v1238
        %1240 = vmatprep.mubr.bf16.mxu0 0
        %1241 = vmatmul.mubr.bf16.gmra.mrb[0].mxu0 %v1055
        %v1242 = vpop.f32.mrb[0].mxu0
        %v1243 = vadd.f32 %v840, %v1242
        %v1244 = vpop.f32.mrb[0].mxu0
        %v1245 = vadd.f32 %v840, %v1244
        %v1246 = vpop.f32.mrb[0].mxu0
        %v1247 = vadd.f32 %v845, %v1246
        %v1248 = vpop.f32.mrb[0].mxu0
        %v1249 = vadd.f32 %v845, %v1248
        %1250 = vmatprep.mubr.bf16.mxu0 0
        %1251 = vmatmul.mubr.bf16.gmra.mrb[0].mxu0 %v1058
        %v1252 = vpop.f32.mrb[0].mxu0
        %v1253 = vadd.f32 %v850, %v1252
        %v1254 = vpop.f32.mrb[0].mxu0
        %v1255 = vadd.f32 %v850, %v1254
        %v1256 = vpop.f32.mrb[0].mxu0
        %v1257 = vadd.f32 %v855, %v1256
        %v1258 = vpop.f32.mrb[0].mxu0
        %v1259 = vadd.f32 %v855, %v1258
        %1260 = vmatprep.mubr.bf16.mxu0 0
        %1261 = vmatmul.mubr.bf16.gmra.mrb[0].mxu0 %v1061
        %v1262 = vpop.f32.mrb[0].mxu0
        %v1263 = vadd.f32 %v860, %v1262
        %v1264 = vpop.f32.mrb[0].mxu0
        %v1265 = vadd.f32 %v860, %v1264
        %v1266 = vpop.f32.mrb[0].mxu0
        %v1267 = vadd.f32 %v865, %v1266
        %v1268 = vpop.f32.mrb[0].mxu0
        %v1269 = vadd.f32 %v865, %v1268
        %1270 = vmatprep.mubr.bf16.mxu0 0
        %1271 = vmatmul.mubr.bf16.gmra.mrb[0].mxu0 %v1064
        %v1272 = vpop.f32.mrb[0].mxu0
        %v1273 = vadd.f32 %v870, %v1272
        %v1274 = vpop.f32.mrb[0].mxu0
        %v1275 = vadd.f32 %v870, %v1274
        %v1276 = vpop.f32.mrb[0].mxu0
        %v1277 = vadd.f32 %v875, %v1276
        %v1278 = vpop.f32.mrb[0].mxu0
        %v1279 = vadd.f32 %v875, %v1278
        %1280 = vmatprep.mubr.bf16.mxu0 0
        %1281 = vmatmul.mubr.bf16.gmra.mrb[0].mxu0 %v1067
        %v1282 = vpop.f32.mrb[0].mxu0
        %v1283 = vadd.f32 %v880, %v1282
        %v1284 = vpop.f32.mrb[0].mxu0
        %v1285 = vadd.f32 %v880, %v1284
        %v1286 = vpop.f32.mrb[0].mxu0
        %v1287 = vadd.f32 %v885, %v1286
        %v1288 = vpop.f32.mrb[0].mxu0
        %v1289 = vadd.f32 %v885, %v1288
        %1290 = vmatprep.mubr.bf16.mxu0 0
        %1291 = vmatmul.mubr.bf16.gmra.mrb[0].mxu0 %v1070
        %v1292 = vpop.f32.mrb[0].mxu0
        %v1293 = vadd.f32 %v890, %v1292
        %v1294 = vpop.f32.mrb[0].mxu0
        %v1295 = vadd.f32 %v890, %v1294
        %v1296 = vpop.f32.mrb[0].mxu0
        %v1297 = vadd.f32 %v895, %v1296
        %v1298 = vpop.f32.mrb[0].mxu0
        %v1299 = vadd.f32 %v895, %v1298
        %1300 = vmatprep.mubr.bf16.mxu0 0
        %1301 = vmatmul.mubr.bf16.gmra.mrb[0].mxu0 %v1073
        %v1302 = vpop.f32.mrb[0].mxu0
        %v1303 = vadd.f32 %v900, %v1302
        %v1304 = vpop.f32.mrb[0].mxu0
        %v1305 = vadd.f32 %v900, %v1304
        %v1306 = vpop.f32.mrb[0].mxu0
        %v1307 = vadd.f32 %v905, %v1306
        %v1308 = vpop.f32.mrb[0].mxu0
        %v1309 = vadd.f32 %v905, %v1308
        %1310 = vmatprep.mubr.bf16.mxu0 0
        %1311 = vmatmul.mubr.bf16.gmra.mrb[0].mxu0 %v1076
        %v1312 = vpop.f32.mrb[0].mxu0
        %v1313 = vadd.f32 %v910, %v1312
        %v1314 = vpop.f32.mrb[0].mxu0
        %v1315 = vadd.f32 %v910, %v1314
        %v1316 = vpop.f32.mrb[0].mxu0
        %v1317 = vadd.f32 %v915, %v1316
        %v1318 = vpop.f32.mrb[0].mxu0
        %v1319 = vadd.f32 %v915, %v1318
        %1320 = vdwg.mxu0
        %v1321 = vpack.c.bf16 %v1127, %v1123
        %v1322 = vpack.c.bf16 %v1129, %v1125
        %v1323 = vpack.c.bf16 %v1137, %v1133
        %v1324 = vpack.c.bf16 %v1139, %v1135
        %v1325 = vpack.c.bf16 %v1147, %v1143
        %v1326 = vpack.c.bf16 %v1149, %v1145
        %v1327 = vpack.c.bf16 %v1157, %v1153
        %v1328 = vpack.c.bf16 %v1159, %v1155
        %v1329 = vpack.c.bf16 %v1167, %v1163
        %v1330 = vpack.c.bf16 %v1169, %v1165
        %v1331 = vpack.c.bf16 %v1177, %v1173
        %v1332 = vpack.c.bf16 %v1179, %v1175
        %v1333 = vpack.c.bf16 %v1187, %v1183
        %v1334 = vpack.c.bf16 %v1189, %v1185
        %v1335 = vpack.c.bf16 %v1197, %v1193
        %v1336 = vpack.c.bf16 %v1199, %v1195
        %v1337 = vpack.c.bf16 %v1207, %v1203
        %v1338 = vpack.c.bf16 %v1209, %v1205
        %v1339 = vpack.c.bf16 %v1217, %v1213
        %v1340 = vpack.c.bf16 %v1219, %v1215
        %v1341 = vpack.c.bf16 %v1227, %v1223
        %v1342 = vpack.c.bf16 %v1229, %v1225
        %v1343 = vpack.c.bf16 %v1237, %v1233
        %v1344 = vpack.c.bf16 %v1239, %v1235
        %v1345 = vpack.c.bf16 %v1247, %v1243
        %v1346 = vpack.c.bf16 %v1249, %v1245
        %v1347 = vpack.c.bf16 %v1257, %v1253
        %v1348 = vpack.c.bf16 %v1259, %v1255
        %v1349 = vpack.c.bf16 %v1267, %v1263
        %v1350 = vpack.c.bf16 %v1269, %v1265
        %v1351 = vpack.c.bf16 %v1277, %v1273
        %v1352 = vpack.c.bf16 %v1279, %v1275
        %v1353 = vpack.c.bf16 %v1287, %v1283
        %v1354 = vpack.c.bf16 %v1289, %v1285
        %v1355 = vpack.c.bf16 %v1297, %v1293
        %v1356 = vpack.c.bf16 %v1299, %v1295
        %v1357 = vpack.c.bf16 %v1307, %v1303
        %v1358 = vpack.c.bf16 %v1309, %v1305
        %v1359 = vpack.c.bf16 %v1317, %v1313
        %v1360 = vpack.c.bf16 %v1319, %v1315
        %1361 = vst [vmem:[#allocation2] sm:$0xff] %v1321
        %1362 = vst [vmem:[#allocation2 + $0x8] sm:$0xff] %v1322
        %1363 = vst [vmem:[#allocation2 + $0x10] sm:$0xff] %v1323
        %1364 = vst [vmem:[#allocation2 + $0x18] sm:$0xff] %v1324
        %1365 = vst [vmem:[#allocation2 + $0x20] sm:$0xff] %v1325
        %1366 = vst [vmem:[#allocation2 + $0x28] sm:$0xff] %v1326
        %1367 = vst [vmem:[#allocation2 + $0x30] sm:$0xff] %v1327
        %1368 = vst [vmem:[#allocation2 + $0x38] sm:$0xff] %v1328
        %1369 = vst [vmem:[#allocation2 + $0x40] sm:$0xff] %v1329
        %1370 = vst [vmem:[#allocation2 + $0x48] sm:$0xff] %v1330
        %1371 = vst [vmem:[#allocation2 + $0x50] sm:$0xff] %v1331
        %1372 = vst [vmem:[#allocation2 + $0x58] sm:$0xff] %v1332
        %1373 = vst [vmem:[#allocation2 + $0x60] sm:$0xff] %v1333
        %1374 = vst [vmem:[#allocation2 + $0x68] sm:$0xff] %v1334
        %1375 = vst [vmem:[#allocation2 + $0x70] sm:$0xff] %v1335
        %1376 = vst [vmem:[#allocation2 + $0x78] sm:$0xff] %v1336
        %1377 = vst [vmem:[#allocation2 + $0x80] sm:$0xff] %v1337
        %1378 = vst [vmem:[#allocation2 + $0x88] sm:$0xff] %v1338
        %1379 = vst [vmem:[#allocation2 + $0x90] sm:$0xff] %v1339
        %1380 = vst [vmem:[#allocation2 + $0x98] sm:$0xff] %v1340
        %1381 = vst [vmem:[#allocation2 + $0xa0] sm:$0xff] %v1341
        %1382 = vst [vmem:[#allocation2 + $0xa8] sm:$0xff] %v1342
        %1383 = vst [vmem:[#allocation2 + $0xb0] sm:$0xff] %v1343
        %1384 = vst [vmem:[#allocation2 + $0xb8] sm:$0xff] %v1344
        %1385 = vst [vmem:[#allocation2 + $0xc0] sm:$0xff] %v1345
        %1386 = vst [vmem:[#allocation2 + $0xc8] sm:$0xff] %v1346
        %1387 = vst [vmem:[#allocation2 + $0xd0] sm:$0xff] %v1347
        %1388 = vst [vmem:[#allocation2 + $0xd8] sm:$0xff] %v1348
        %1389 = vst [vmem:[#allocation2 + $0xe0] sm:$0xff] %v1349
        %1390 = vst [vmem:[#allocation2 + $0xe8] sm:$0xff] %v1350
        %1391 = vst [vmem:[#allocation2 + $0xf0] sm:$0xff] %v1351
        %1392 = vst [vmem:[#allocation2 + $0xf8] sm:$0xff] %v1352
        %1393 = vst [vmem:[#allocation2 + $0x100] sm:$0xff] %v1353
        %1394 = vst [vmem:[#allocation2 + $0x108] sm:$0xff] %v1354
        %1395 = vst [vmem:[#allocation2 + $0x110] sm:$0xff] %v1355
        %1396 = vst [vmem:[#allocation2 + $0x118] sm:$0xff] %v1356
        %1397 = vst [vmem:[#allocation2 + $0x120] sm:$0xff] %v1357
        %1398 = vst [vmem:[#allocation2 + $0x128] sm:$0xff] %v1358
        %1399 = vst [vmem:[#allocation2 + $0x130] sm:$0xff] %v1359
        %1400 = vst [vmem:[#allocation2 + $0x138] sm:$0xff] %v1360
        %v1401 = vld [vmem:[#allocation5] sm:$0xff]
        %v1402 = vld [vmem:[#allocation5 + $0x8] sm:$0xf]
        %v1403 = vld [vmem:[#allocation5 + $0xc] sm:$0x11]
        %v1404 = vld [vmem:[#allocation5 + $0x14] sm:$0x1]
        %v1405 = vld [vmem:[#allocation2] sm:$0xff]
        %v1406 = vld [vmem:[#allocation2 + $0x8] sm:$0xff]
        %v1407 = vld [vmem:[#allocation2 + $0x10] sm:$0xff]
        %v1408 = vld [vmem:[#allocation2 + $0x18] sm:$0xff]
        %v1409 = vld [vmem:[#allocation2 + $0x20] sm:$0xff]
        %v1410 = vld [vmem:[#allocation2 + $0x28] sm:$0xff]
        %v1411 = vld [vmem:[#allocation2 + $0x30] sm:$0xff]
        %v1412 = vld [vmem:[#allocation2 + $0x38] sm:$0xff]
        %v1413 = vld [vmem:[#allocation2 + $0x40] sm:$0xff]
        %v1414 = vld [vmem:[#allocation2 + $0x48] sm:$0xff]
        %v1415 = vld [vmem:[#allocation2 + $0x50] sm:$0xff]
        %v1416 = vld [vmem:[#allocation2 + $0x58] sm:$0xff]
        %v1417 = vld [vmem:[#allocation2 + $0x60] sm:$0xff]
        %v1418 = vld [vmem:[#allocation2 + $0x68] sm:$0xff]
        %v1419 = vld [vmem:[#allocation2 + $0x70] sm:$0xff]
        %v1420 = vld [vmem:[#allocation2 + $0x78] sm:$0xff]
        %v1421 = vld [vmem:[#allocation2 + $0x80] sm:$0xff]
        %v1422 = vld [vmem:[#allocation2 + $0x88] sm:$0xff]
        %v1423 = vld [vmem:[#allocation2 + $0x90] sm:$0xff]
        %v1424 = vld [vmem:[#allocation2 + $0x98] sm:$0xff]
        %v1425 = vld [vmem:[#allocation2 + $0xa0] sm:$0xff]
        %v1426 = vld [vmem:[#allocation2 + $0xa8] sm:$0xff]
        %v1427 = vld [vmem:[#allocation2 + $0xb0] sm:$0xff]
        %v1428 = vld [vmem:[#allocation2 + $0xb8] sm:$0xff]
        %v1429 = vld [vmem:[#allocation2 + $0xc0] sm:$0xff]
        %v1430 = vld [vmem:[#allocation2 + $0xc8] sm:$0xff]
        %v1431 = vld [vmem:[#allocation2 + $0xd0] sm:$0xff]
        %v1432 = vld [vmem:[#allocation2 + $0xd8] sm:$0xff]
        %v1433 = vld [vmem:[#allocation2 + $0xe0] sm:$0xff]
        %v1434 = vld [vmem:[#allocation2 + $0xe8] sm:$0xff]
        %v1435 = vld [vmem:[#allocation2 + $0xf0] sm:$0xff]
        %v1436 = vld [vmem:[#allocation2 + $0xf8] sm:$0xff]
        %v1437 = vld [vmem:[#allocation2 + $0x100] sm:$0xff]
        %v1438 = vld [vmem:[#allocation2 + $0x108] sm:$0xff]
        %v1439 = vld [vmem:[#allocation2 + $0x110] sm:$0xff]
        %v1440 = vld [vmem:[#allocation2 + $0x118] sm:$0xff]
        %v1441 = vld [vmem:[#allocation2 + $0x120] sm:$0xff]
        %v1442 = vld [vmem:[#allocation2 + $0x128] sm:$0xff]
        %v1443 = vld [vmem:[#allocation2 + $0x130] sm:$0xff]
        %v1444 = vld [vmem:[#allocation2 + $0x138] sm:$0xff]
        %v1449 = vunpack.c.l.b16 %v1401
        %v1450 = vunpack.c.h.b16 %v1401
        %v1451 = vunpack.c.l.b16 %v1402
        %v1452 = vunpack.c.l.b16 %v1403
        %v1453 = vunpack.c.h.b16 %v1403
        %v1454 = vunpack.c.l.b16 %v1404
        %v1455 = vpack.c.b16 %v1452, %v1449
        %v1456 = vpack.c.b16 %v1453, %v1450
        %v1457 = vpack.c.b16 %v1454, %v1451
        %vm1460 = vcmask 523264
        %v1462 = vsel %vm1460, %v1457, 0
        %1464 = vmatprep.subr.bf16.mxu0 %v1406
        %1465 = vmatpush1.bf16.msra.mxu0 %v1405
        %1466 = vmatprep.subr.bf16.mxu0 %v1408
        %1467 = vmatpush1.bf16.msra.mxu0 %v1407
        %1468 = vmatprep.subr.bf16.mxu0 %v1410
        %1469 = vmatpush1.bf16.msra.mxu0 %v1409
        %1470 = vmatprep.subr.bf16.mxu0 %v1412
        %1471 = vmatpush1.bf16.msra.mxu0 %v1411
        %1472 = vmatprep.subr.bf16.mxu0 %v1414
        %1473 = vmatpush1.bf16.msra.mxu0 %v1413
        %1474 = vmatprep.subr.bf16.mxu0 %v1416
        %1475 = vmatpush1.bf16.msra.mxu0 %v1415
        %1476 = vmatprep.subr.bf16.mxu0 %v1418
        %1477 = vmatpush1.bf16.msra.mxu0 %v1417
        %1478 = vmatprep.subr.bf16.mxu0 %v1420
        %1479 = vmatpush1.bf16.msra.mxu0 %v1419
        %1480 = vmatprep.subr.bf16.mxu0 %v1422
        %1481 = vmatpush1.bf16.msra.mxu0 %v1421
        %1482 = vmatprep.subr.bf16.mxu0 %v1424
        %1483 = vmatpush1.bf16.msra.mxu0 %v1423
        %1484 = vmatprep.subr.bf16.mxu0 %v1426
        %1485 = vmatpush1.bf16.msra.mxu0 %v1425
        %1486 = vmatprep.subr.bf16.mxu0 %v1428
        %1487 = vmatpush1.bf16.msra.mxu0 %v1427
        %1488 = vmatprep.subr.bf16.mxu0 %v1430
        %1489 = vmatpush1.bf16.msra.mxu0 %v1429
        %1490 = vmatprep.subr.bf16.mxu0 %v1432
        %1491 = vmatpush1.bf16.msra.mxu0 %v1431
        %1492 = vmatprep.subr.bf16.mxu0 %v1434
        %1493 = vmatpush1.bf16.msra.mxu0 %v1433
        %1494 = vmatprep.subr.bf16.mxu0 %v1436
        %1495 = vmatpush1.bf16.msra.mxu0 %v1435
        %1496 = vmatprep.mubr.bf16.mxu0 %v1456
        %1497 = vmatmul.mubr.bf16.gmra.mrb[0].mxu0 %v1455
        %v1498 = vpop.f32.mrb[0].mxu0
        %v1499 = vadd.f32 0.0, %v1498
        %v1500 = vpop.f32.mrb[0].mxu0
        %v1501 = vadd.f32 0.0, %v1500
        %v1502 = vpop.f32.mrb[0].mxu0
        %v1503 = vadd.f32 0.0, %v1502
        %v1504 = vpop.f32.mrb[0].mxu0
        %v1505 = vadd.f32 0.0, %v1504
        %1506 = vdwg.mxu0
        %1507 = vmatprep.subr.bf16.mxu0 %v1438
        %1508 = vmatpush1.bf16.msra.mxu0 %v1437
        %1509 = vmatprep.subr.bf16.mxu0 %v1440
        %1510 = vmatpush1.bf16.msra.mxu0 %v1439
        %1511 = vmatprep.subr.bf16.mxu0 %v1442
        %1512 = vmatpush1.bf16.msra.mxu0 %v1441
        %1513 = vmatprep.subr.bf16.mxu0 %v1444
        %1514 = vmatpush1.bf16.msra.mxu0 %v1443
        %1515 = vmatprep.subr.bf16.mxu0 0
        %1516 = vmatpush1.bf16.msra.mxu0 0
        %1517 = vmatprep.subr.bf16.mxu0 0
        %1518 = vmatpush1.bf16.msra.mxu0 0
        %1519 = vmatprep.subr.bf16.mxu0 0
        %1520 = vmatpush1.bf16.msra.mxu0 0
        %1521 = vmatprep.subr.bf16.mxu0 0
        %1522 = vmatpush1.bf16.msra.mxu0 0
        %1523 = vmatprep.subr.bf16.mxu0 0
        %1524 = vmatpush1.bf16.msra.mxu0 0
        %1525 = vmatprep.subr.bf16.mxu0 0
        %1526 = vmatpush1.bf16.msra.mxu0 0
        %1527 = vmatprep.subr.bf16.mxu0 0
        %1528 = vmatpush1.bf16.msra.mxu0 0
        %1529 = vmatprep.subr.bf16.mxu0 0
        %1530 = vmatpush1.bf16.msra.mxu0 0
        %1531 = vmatprep.subr.bf16.mxu0 0
        %1532 = vmatpush1.bf16.msra.mxu0 0
        %1533 = vmatprep.subr.bf16.mxu0 0
        %1534 = vmatpush1.bf16.msra.mxu0 0
        %1535 = vmatprep.subr.bf16.mxu0 0
        %1536 = vmatpush1.bf16.msra.mxu0 0
        %1537 = vmatprep.subr.bf16.mxu0 0
        %1538 = vmatpush1.bf16.msra.mxu0 0
        %1539 = vmatprep.mubr.bf16.mxu0 0
        %1540 = vmatmul.mubr.bf16.gmra.mrb[0].mxu0 %v1462
        %v1541 = vpop.f32.mrb[0].mxu0
        %v1542 = vadd.f32 %v1499, %v1541
        %v1543 = vpop.f32.mrb[0].mxu0
        %v1544 = vadd.f32 %v1501, %v1543
        %v1545 = vpop.f32.mrb[0].mxu0
        %v1546 = vadd.f32 %v1503, %v1545
        %v1547 = vpop.f32.mrb[0].mxu0
        %v1548 = vadd.f32 %v1505, %v1547
        %1549 = vdwg.mxu0
        %1551 = vrot.lane.b32.xlu0 %v1544, 17
        %v1552 = vpop.permute.xlu0 %1551
        %1555 = vrot.lane.b32.xlu0 %v1542, 17
        %v1556 = vpop.permute.xlu0 %1555
        %v1557 = vsel %vm275, %v1556, %v1552
        %v1560 = vsel %vm275, %v1552, %v1556
        %v1561 = vmul.f32 %v1560, %v259
        %v1562 = vmul.f32 %v1557, %v260
        %v1563 = vadd.f32 %v1561, 0.0
        %v1564 = vadd.f32 %v1562, 0.0
        %1565 = vrot.lane.b32.xlu0 %v1544, 16
        %v1566 = vpop.permute.xlu0 %1565
        %1568 = vrot.lane.b32.xlu0 %v1542, 16
        %v1569 = vpop.permute.xlu0 %1568
        %v1570 = vsel %vm323, %v1569, %v1566
        %v1573 = vsel %vm323, %v1566, %v1569
        %v1574 = vmul.f32 %v1573, %v316
        %v1575 = vmul.f32 %v1570, %v317
        %v1578 = vrot.slane %v1574, 1
        %v1579 = vrot.slane %v1575, 1
        %v1582 = vadd.f32 %v1563, %v1578
        %v1583 = vadd.f32 %v1564, %v1579
        %1584 = vrot.lane.b32.xlu0 %v1544, 15
        %v1585 = vpop.permute.xlu0 %1584
        %1587 = vrot.lane.b32.xlu0 %v1542, 15
        %v1588 = vpop.permute.xlu0 %1587
        %v1589 = vsel %vm368, %v1588, %v1585
        %v1592 = vsel %vm368, %v1585, %v1588
        %v1593 = vmul.f32 %v1592, %v361
        %v1594 = vmul.f32 %v1589, %v362
        %v1597 = vrot.slane %v1593, 2
        %v1598 = vrot.slane %v1594, 2
        %v1601 = vadd.f32 %v1582, %v1597
        %v1602 = vadd.f32 %v1583, %v1598
        %1603 = vrot.lane.b32.xlu0 %v1544, 1
        %v1604 = vpop.permute.xlu0 %1603
        %1606 = vrot.lane.b32.xlu0 %v1542, 1
        %v1607 = vpop.permute.xlu0 %1606
        %v1608 = vsel %vm413, %v1607, %v1604
        %v1611 = vsel %vm413, %v1604, %v1607
        %v1612 = vmul.f32 %v1611, %v406
        %v1613 = vmul.f32 %v1608, %v407
        %v1616 = vrot.slane %v1612, 3
        %v1617 = vrot.slane %v1613, 3
        %v1620 = vadd.f32 %v1601, %v1616
        %v1621 = vadd.f32 %v1602, %v1617
        %v1622 = vmul.f32 %v1542, %v445
        %v1623 = vmul.f32 %v1544, %v446
        %v1626 = vrot.slane %v1622, 4
        %v1627 = vrot.slane %v1623, 4
        %v1630 = vadd.f32 %v1620, %v1626
        %v1631 = vadd.f32 %v1621, %v1627
        %1632 = vrot.lane.b32.xlu0 %v1542, 127
        %v1633 = vpop.permute.xlu0 %1632
        %1634 = vrot.lane.b32.xlu0 %v1544, 127
        %v1635 = vpop.permute.xlu0 %1634
        %v1636 = vsel %vm479, %v1633, %v1635
        %v1640 = vsel %vm479, %v1635, %v1633
        %v1641 = vmul.f32 %v1636, %v473
        %v1642 = vmul.f32 %v1640, %v474
        %v1645 = vrot.slane %v1641, 5
        %v1646 = vrot.slane %v1642, 5
        %v1649 = vadd.f32 %v1630, %v1645
        %v1650 = vadd.f32 %v1631, %v1646
        %1651 = vrot.lane.b32.xlu0 %v1542, 113
        %v1652 = vpop.permute.xlu0 %1651
        %1653 = vrot.lane.b32.xlu0 %v1544, 113
        %v1654 = vpop.permute.xlu0 %1653
        %v1655 = vsel %vm524, %v1652, %v1654
        %v1659 = vsel %vm524, %v1654, %v1652
        %v1660 = vmul.f32 %v1655, %v518
        %v1661 = vmul.f32 %v1659, %v519
        %v1664 = vrot.slane %v1660, 6
        %v1665 = vrot.slane %v1661, 6
        %v1668 = vadd.f32 %v1649, %v1664
        %v1669 = vadd.f32 %v1650, %v1665
        %1670 = vrot.lane.b32.xlu0 %v1542, 112
        %v1671 = vpop.permute.xlu0 %1670
        %1672 = vrot.lane.b32.xlu0 %v1544, 112
        %v1673 = vpop.permute.xlu0 %1672
        %v1674 = vsel %vm563, %v1671, %v1673
        %v1678 = vsel %vm563, %v1673, %v1671
        %v1679 = vmul.f32 %v1674, %v557
        %v1680 = vmul.f32 %v1678, %v558
        %v1683 = vrot.slane %v1679, 7
        %v1684 = vrot.slane %v1680, 7
        %v1687 = vadd.f32 %v1668, %v1683
        %v1688 = vadd.f32 %v1669, %v1684
        %1691 = vrot.lane.b32.xlu0 %v1546, 111
        %v1692 = vpop.permute.xlu0 %1691
        %1693 = vrot.lane.b32.xlu0 %v1548, 111
        %v1694 = vpop.permute.xlu0 %1693
        %v1695 = vsel %vm602, %v1692, %v1694
        %v1699 = vsel %vm602, %v1694, %v1692
        %v1700 = vmul.f32 %v1695, %v596
        %v1701 = vmul.f32 %v1699, %v597
        %v1702 = vadd.f32 %v1687, %v1700
        %v1703 = vadd.f32 %v1688, %v1701
        %s1704 = sld [smem:[#allocation4]]
        %v1705 = vstv %s1704
        %v1706 = vadd.f32 %v1702, %v1705
        %v1707 = vadd.f32 %v1703, %v1705
        %v1710 = vcombine.low %v1706, %v1707
        %v1712 = vunpack.c.l.s4 1966171168
        %v1713 = vunpack.c.0.s8 %v1712
        %v1714 = vlaneseq
        %v1715 = vshrl.u32 %v1714, 7
        %v1716 = vsub.s32 %v1713, %v1715
        %v1717 = vrot.slane %v1710, %v1716
        %v1719 = vunpack.c.l.s4 1966171168
        %v1720 = vunpack.c.0.s8 %v1719
        %v1721 = vlaneseq
        %v1722 = vshrl.u32 %v1721, 7
        %v1723 = vsub.s32 %v1720, %v1722
        %v1724 = vrot.slane %v1717, %v1723
        %1726 = vst.msk [vmem:[%s235] sm:$0x3] %vm303, %v1724
        %p1727 = scmp.lt.s32.totalorder %s18, 1
        %s1728 = scalar_select %p1727, %s18, 1
        %s1729 = smul.addr %s1728, 2
        %s1730 = scalar_lea.vmem %s5, %s1729
        // Predicated region
        $region45: #{feature_aligned_diffusion_forward.5} parent=39 // pred_check
          %p1731 = pneg %p146
        $region46: #{feature_aligned_diffusion_forward.5} parent=39 // pred_check_branch
          %1733 = sbr.rel (%p1731) target = $region48
        $region47: #{feature_aligned_diffusion_forward.5} parent=39 // pred_region
          _
        $region48: #{feature_aligned_diffusion_forward.5} parent=39 // pred_fallthru
          _
      $region40: #{feature_aligned_diffusion_forward.5} parent=5 // pred_fallthru
        _
      %p1734 = scmp.le.s32.totalorder 2, %s13
      // Predicated region
      $region49: #{feature_aligned_diffusion_forward.5} parent=5 // pred_check
        %p1735 = pneg %p1734
      $region50: #{feature_aligned_diffusion_forward.5} parent=5 // pred_check_branch
        %1737 = sbr.rel (%p1735) target = $region52
      $region51: #{feature_aligned_diffusion_forward.5} parent=5 // pred_region
        %s1738 = ssub.s32 %s13, 2
        // Predicated region
        $region53: #{feature_aligned_diffusion_forward.5} parent=51 // pred_check
          %p1739 = pneg %p152
        $region54: #{feature_aligned_diffusion_forward.5} parent=51 // pred_check_branch
          %1741 = sbr.rel (%p1739) target = $region56
        $region55: #{feature_aligned_diffusion_forward.5} parent=51 // pred_region
          %p1742 = scmp.lt.s32.totalorder %s19, 1
          %s1743 = scalar_select %p1742, %s19, 1
          %s1744 = smul.addr %s1743, 2
          %s1745 = scalar_lea.vmem %s5, %s1744
        $region56: #{feature_aligned_diffusion_forward.5} parent=51 // pred_fallthru
          _
      $region52: #{feature_aligned_diffusion_forward.5} parent=5 // pred_fallthru
        _
    $region6: #{feature_aligned_diffusion_forward.5} parent=1 // loop_footer
      %s17 = sadd.s32 1, %s13
    $region7: #{feature_aligned_diffusion_forward.5} parent=1 // loop_footer_branch
      %12 = sbr.rel target = $region3
    $region8: #{feature_aligned_diffusion_forward.5} parent=1 // loop_exit
      _
    %1746 = vsyncpa [#allocation6], 1
    %s1747 = scalar_lea.sflag [#allocation6], 1
    %1748 = vsyncpa %s1747, 1

// kernel: feature_aligned_diffusion_forward.3
$region0: #{feature_aligned_diffusion_forward.3}
  #allocation0 [shape = 'u32[]', space=smem, size = 0x4, offset = 0x4, fixed_abs, tag = 'smem constant byte address 0x4 - core index']
  #allocation1 [shape = 'u32[144,128]{1,0:T(1,128)}', space=vmem, size = 0x12000, scoped, tag = 'internal scratch']
  %s0 = inlined_call_operand.vmem [shape: bf16[2,512], index: 0, kind: input, shape index: {}]
  %s1 = inlined_call_operand.vmem [shape: bf16[512,768], index: 1, kind: input, shape index: {}]
  %s2 = inlined_call_operand.vmem [shape: f32[1,768], index: 2, kind: input, shape index: {}]
  %s3 = inlined_call_operand.vmem [shape: f32[2,768], index: 3, kind: output, shape index: {}]
  %s4 = sld [smem:[#allocation0]]
  $region71: #{feature_aligned_diffusion_forward.3} parent=0
    _
  %s6 = ssub.s32 1, %s4
  %s7 = scalar_select 0, %s6, %s4
  $region1: #{feature_aligned_diffusion_forward.3} parent=0
    #allocation2 [shape = 'u8[786432]{0}', space=vmem, size = 0xc0000, scoped, tag = 'input window, operand 1']
    loop: start=0, step=1, limit=4
    $region2: #{feature_aligned_diffusion_forward.3} parent=1 // loop_pre_header
      _
    $region3: #{feature_aligned_diffusion_forward.3} parent=1 // loop_header
      %s9 = sphi 0, %s13
      %p10 = scmp.ge.s32.totalorder %s9, 4
      %s17 = sphi 0, %s17
      %s19 = sphi 0, %s17
      %s20 = sphi 0, %s19
      %s34 = sphi 0, %s20
      %s40 = sphi 0, %s42
      %s43 = sphi 0, %s40
      %s44 = sphi 0, %s43
      %s60 = sphi 0, %s44
      %s66 = sphi 0, %s68
      %s69 = sphi 0, %s66
      %s70 = sphi 0, %s69
      %s86 = sphi 0, %s70
      %s92 = sphi 0, %s94
      %s95 = sphi 0, %s92
      %s96 = sphi 0, %s95
      %s112 = sphi 0, %s96
    $region4: #{feature_aligned_diffusion_forward.3} parent=1 // loop_header_branch
      %12 = sbr.rel (%p10) target = $region8
    $region5: #{feature_aligned_diffusion_forward.3} parent=1 // loop_body
      %s14 = ssub.s32 %s9, 1
      %s15 = ssub.s32 %s9, 2
      %s16 = sadd.s32 %s9, 1
      %s18 = sadd.s32 %s17, 1
      %p21 = scmp.eq.s32.totalorder %s9, 1
      %p22 = scmp.ne.s32.totalorder %s17, %s19
      %p23 = scmp.eq.s32.totalorder %s9, 0
      %p24 = por %p22, %p23
      %p25 = scmp.ne.s32.totalorder %s17, %s19
      %p26 = scmp.eq.s32.totalorder %s14, 1
      %p27 = por %p25, %p26
      %p28 = scmp.ne.s32.totalorder %s19, %s20
      %p29 = scmp.eq.s32.totalorder %s14, 0
      %p30 = por %p28, %p29
      %p31 = scmp.ne.s32.totalorder %s19, %s20
      %p32 = scmp.eq.s32.totalorder %s15, 1
      %p33 = por %p31, %p32
      %p35 = scmp.ne.s32.totalorder %s20, %s34
      %p36 = scmp.eq.s32.totalorder %s15, 0
      %p37 = por %p35, %p36
      %s38 = ssub.s32 %s9, %s16
      %p39 = scmp.eq.s32.totalorder %s38, 0
      %s41 = sadd.s32 %s40, 1
      %s42 = scalar_select %p39, %s40, %s41
      %p45 = pneg %p39
      %p46 = scmp.eq.s32.totalorder %s9, 1
      %p47 = por %p45, %p46
      %p48 = scmp.ne.s32.totalorder %s40, %s43
      %p49 = scmp.eq.s32.totalorder %s9, 0
      %p50 = por %p48, %p49
      %p51 = scmp.ne.s32.totalorder %s40, %s43
      %p52 = scmp.eq.s32.totalorder %s14, 1
      %p53 = por %p51, %p52
      %p54 = scmp.ne.s32.totalorder %s43, %s44
      %p55 = scmp.eq.s32.totalorder %s14, 0
      %p56 = por %p54, %p55
      %p57 = scmp.ne.s32.totalorder %s43, %s44
      %p58 = scmp.eq.s32.totalorder %s15, 1
      %p59 = por %p57, %p58
      %p61 = scmp.ne.s32.totalorder %s44, %s60
      %p62 = scmp.eq.s32.totalorder %s15, 0
      %p63 = por %p61, %p62
      %s64 = ssub.s32 %s9, %s16
      %p65 = scmp.eq.s32.totalorder %s64, 0
      %s67 = sadd.s32 %s66, 1
      %s68 = scalar_select %p65, %s66, %s67
      %p71 = pneg %p65
      %p72 = scmp.eq.s32.totalorder %s9, 1
      %p73 = por %p71, %p72
      %p74 = scmp.ne.s32.totalorder %s66, %s69
      %p75 = scmp.eq.s32.totalorder %s9, 0
      %p76 = por %p74, %p75
      %p77 = scmp.ne.s32.totalorder %s66, %s69
      %p78 = scmp.eq.s32.totalorder %s14, 1
      %p79 = por %p77, %p78
      %p80 = scmp.ne.s32.totalorder %s69, %s70
      %p81 = scmp.eq.s32.totalorder %s14, 0
      %p82 = por %p80, %p81
      %p83 = scmp.ne.s32.totalorder %s69, %s70
      %p84 = scmp.eq.s32.totalorder %s15, 1
      %p85 = por %p83, %p84
      %p87 = scmp.ne.s32.totalorder %s70, %s86
      %p88 = scmp.eq.s32.totalorder %s15, 0
      %p89 = por %p87, %p88
      %s90 = ssub.s32 %s9, %s16
      %p91 = scmp.eq.s32.totalorder %s90, 0
      %s93 = sadd.s32 %s92, 1
      %s94 = scalar_select %p91, %s92, %s93
      %p97 = pneg %p91
      %p98 = scmp.eq.s32.totalorder %s9, 1
      %p99 = por %p97, %p98
      %p100 = scmp.ne.s32.totalorder %s92, %s95
      %p101 = scmp.eq.s32.totalorder %s9, 0
      %p102 = por %p100, %p101
      %p103 = scmp.ne.s32.totalorder %s92, %s95
      %p104 = scmp.eq.s32.totalorder %s14, 1
      %p105 = por %p103, %p104
      %p106 = scmp.ne.s32.totalorder %s95, %s96
      %p107 = scmp.eq.s32.totalorder %s14, 0
      %p108 = por %p106, %p107
      %p109 = scmp.ne.s32.totalorder %s95, %s96
      %p110 = scmp.eq.s32.totalorder %s15, 1
      %p111 = por %p109, %p110
      %p113 = scmp.ne.s32.totalorder %s96, %s112
      %p114 = scmp.eq.s32.totalorder %s15, 0
      %p115 = por %p113, %p114
      %p116 = scmp.le.s32.totalorder 1, %s9
      %p117 = scmp.lt.s32.totalorder %s9, 3
      %p118 = pnand %p116, %p117
      %p119 = pneg %p118
      // Predicated region
      $region9: #{feature_aligned_diffusion_forward.3} parent=5 // pred_check
        _
      $region10: #{feature_aligned_diffusion_forward.3} parent=5 // pred_check_branch
        %121 = sbr.rel (%p118) target = $region12
      $region11: #{feature_aligned_diffusion_forward.3} parent=5 // pred_region
        %s122 = ssub.s32 %s9, 1
        // Predicated region
        $region13: #{feature_aligned_diffusion_forward.3} parent=11 // pred_check
          %p123 = pneg %p30
        $region14: #{feature_aligned_diffusion_forward.3} parent=11 // pred_check_branch
          %125 = sbr.rel (%p123) target = $region16
        $region15: #{feature_aligned_diffusion_forward.3} parent=11 // pred_region
          _
        $region16: #{feature_aligned_diffusion_forward.3} parent=11 // pred_fallthru
          _
      $region12: #{feature_aligned_diffusion_forward.3} parent=5 // pred_fallthru
        _
      %p126 = scmp.lt.s32.totalorder %s9, 2
      // Predicated region
      $region17: #{feature_aligned_diffusion_forward.3} parent=5 // pred_check
        %p127 = pneg %p126
      $region18: #{feature_aligned_diffusion_forward.3} parent=5 // pred_check_branch
        %129 = sbr.rel (%p127) target = $region20
      $region19: #{feature_aligned_diffusion_forward.3} parent=5 // pred_region
        // Predicated region
        $region21: #{feature_aligned_diffusion_forward.3} parent=19 // pred_check
          %p130 = pneg %p50
        $region22: #{feature_aligned_diffusion_forward.3} parent=19 // pred_check_branch
          %132 = sbr.rel (%p130) target = $region24
        $region23: #{feature_aligned_diffusion_forward.3} parent=19 // pred_region
          %s133 = sand.u32 %s40, 1
          %s134 = sand.u32 %s40, 1
          %s135 = smul.addr %s134, 768
          %s136 = scalar_lea.vmem [#allocation2], %s135
          %s137 = smul.u32 3, %s9
          %s138 = smul.addr %s137, 4
          %s139 = scalar_lea.vmem %s1, %s138
          // Predicated region
          $region25: #{feature_aligned_diffusion_forward.3} parent=23 // pred_check
            _
          $region26: #{feature_aligned_diffusion_forward.3} parent=23 // pred_check_branch
            %141 = sbr.rel (0) target = $region28
          $region27: #{feature_aligned_diffusion_forward.3} parent=23 // pred_region
            // Predicated region
            $region29: #{feature_aligned_diffusion_forward.3} parent=27 // pred_check
              _
            $region30: #{feature_aligned_diffusion_forward.3} parent=27 // pred_check_branch
              %143 = sbr.rel (0) target = $region32
            $region31: #{feature_aligned_diffusion_forward.3} parent=27 // pred_region
              %s144 = scalar_lea.vmem %s139, 8
              %s145 = scalar_lea.vmem %s136, 8 [#allocation2]
              loop: start=0, step=1, limit=1
              $region33: #{feature_aligned_diffusion_forward.3} parent=31 // loop_pre_header
                _
              $region34: #{feature_aligned_diffusion_forward.3} parent=31 // loop_header
                %s147 = sphi 0, %s151
                %p148 = scmp.ge.s32.totalorder %s147, 1
                %s152 = sphi %s139, %s139
                %s153 = sphi %s136, %s136
              $region35: #{feature_aligned_diffusion_forward.3} parent=31 // loop_header_branch
                %150 = sbr.rel (%p148) target = $region39
              $region36: #{feature_aligned_diffusion_forward.3} parent=31 // loop_body
                %v154 = vld [vmem:[%s152] sm:$0xff]
                %155 = vst [vmem:[%s153] sm:$0xff] %v154
                %v156 = vld [vmem:[%s152 + $0x18] sm:$0xff]
                %157 = vst [vmem:[%s153 + $0xc] sm:$0xff] %v156
                %v158 = vld [vmem:[%s152 + $0x30] sm:$0xff]
                %159 = vst [vmem:[%s153 + $0x18] sm:$0xff] %v158
                %v160 = vld [vmem:[%s152 + $0x48] sm:$0xff]
                %161 = vst [vmem:[%s153 + $0x24] sm:$0xff] %v160
                %v162 = vld [vmem:[%s152 + $0x60] sm:$0xff]
                %163 = vst [vmem:[%s153 + $0x30] sm:$0xff] %v162
                %v164 = vld [vmem:[%s152 + $0x78] sm:$0xff]
                %165 = vst [vmem:[%s153 + $0x3c] sm:$0xff] %v164
                %v166 = vld [vmem:[%s152 + $0x90] sm:$0xff]
                %167 = vst [vmem:[%s153 + $0x48] sm:$0xff] %v166
                %v168 = vld [vmem:[%s152 + $0xa8] sm:$0xff]
                %169 = vst [vmem:[%s153 + $0x54] sm:$0xff] %v168
                %v170 = vld [vmem:[%s152 + $0xc0] sm:$0xff]
                %171 = vst [vmem:[%s153 + $0x60] sm:$0xff] %v170
                %v172 = vld [vmem:[%s152 + $0xd8] sm:$0xff]
                %173 = vst [vmem:[%s153 + $0x6c] sm:$0xff] %v172
                %v174 = vld [vmem:[%s152 + $0xf0] sm:$0xff]
                %175 = vst [vmem:[%s153 + $0x78] sm:$0xff] %v174
                %v176 = vld [vmem:[%s152 + $0x108] sm:$0xff]
                %177 = vst [vmem:[%s153 + $0x84] sm:$0xff] %v176
                %v178 = vld [vmem:[%s152 + $0x120] sm:$0xff]
                %179 = vst [vmem:[%s153 + $0x90] sm:$0xff] %v178
                %v180 = vld [vmem:[%s152 + $0x138] sm:$0xff]
                %181 = vst [vmem:[%s153 + $0x9c] sm:$0xff] %v180
                %v182 = vld [vmem:[%s152 + $0x150] sm:$0xff]
                %183 = vst [vmem:[%s153 + $0xa8] sm:$0xff] %v182
                %v184 = vld [vmem:[%s152 + $0x168] sm:$0xff]
                %185 = vst [vmem:[%s153 + $0xb4] sm:$0xff] %v184
                %v186 = vld [vmem:[%s152 + $0x180] sm:$0xff]
                %187 = vst [vmem:[%s153 + $0xc0] sm:$0xff] %v186
                %v188 = vld [vmem:[%s152 + $0x198] sm:$0xff]
                %189 = vst [vmem:[%s153 + $0xcc] sm:$0xff] %v188
                %v190 = vld [vmem:[%s152 + $0x1b0] sm:$0xff]
                %191 = vst [vmem:[%s153 + $0xd8] sm:$0xff] %v190
                %v192 = vld [vmem:[%s152 + $0x1c8] sm:$0xff]
                %193 = vst [vmem:[%s153 + $0xe4] sm:$0xff] %v192
                %v194 = vld [vmem:[%s152 + $0x1e0] sm:$0xff]
                %195 = vst [vmem:[%s153 + $0xf0] sm:$0xff] %v194
                %v196 = vld [vmem:[%s152 + $0x1f8] sm:$0xff]
                %197 = vst [vmem:[%s153 + $0xfc] sm:$0xff] %v196
                %v198 = vld [vmem:[%s152 + $0x210] sm:$0xff]
                %199 = vst [vmem:[%s153 + $0x108] sm:$0xff] %v198
                %v200 = vld [vmem:[%s152 + $0x228] sm:$0xff]
                %201 = vst [vmem:[%s153 + $0x114] sm:$0xff] %v200
                %v202 = vld [vmem:[%s152 + $0x240] sm:$0xff]
                %203 = vst [vmem:[%s153 + $0x120] sm:$0xff] %v202
                %v204 = vld [vmem:[%s152 + $0x258] sm:$0xff]
                %205 = vst [vmem:[%s153 + $0x12c] sm:$0xff] %v204
                %v206 = vld [vmem:[%s152 + $0x270] sm:$0xff]
                %207 = vst [vmem:[%s153 + $0x138] sm:$0xff] %v206
                %v208 = vld [vmem:[%s152 + $0x288] sm:$0xff]
                %209 = vst [vmem:[%s153 + $0x144] sm:$0xff] %v208
                %v210 = vld [vmem:[%s152 + $0x2a0] sm:$0xff]
                %211 = vst [vmem:[%s153 + $0x150] sm:$0xff] %v210
                %v212 = vld [vmem:[%s152 + $0x2b8] sm:$0xff]
                %213 = vst [vmem:[%s153 + $0x15c] sm:$0xff] %v212
                %v214 = vld [vmem:[%s152 + $0x2d0] sm:$0xff]
                %215 = vst [vmem:[%s153 + $0x168] sm:$0xff] %v214
                %v216 = vld [vmem:[%s152 + $0x2e8] sm:$0xff]
                %217 = vst [vmem:[%s153 + $0x174] sm:$0xff] %v216
                %v218 = vld [vmem:[%s152 + $0x300] sm:$0xff]
                %219 = vst [vmem:[%s153 + $0x180] sm:$0xff] %v218
                %v220 = vld [vmem:[%s152 + $0x318] sm:$0xff]
                %221 = vst [vmem:[%s153 + $0x18c] sm:$0xff] %v220
                %v222 = vld [vmem:[%s152 + $0x330] sm:$0xff]
                %223 = vst [vmem:[%s153 + $0x198] sm:$0xff] %v222
                %v224 = vld [vmem:[%s152 + $0x348] sm:$0xff]
                %225 = vst [vmem:[%s153 + $0x1a4] sm:$0xff] %v224
                %v226 = vld [vmem:[%s152 + $0x360] sm:$0xff]
                %227 = vst [vmem:[%s153 + $0x1b0] sm:$0xff] %v226
                %v228 = vld [vmem:[%s152 + $0x378] sm:$0xff]
                %229 = vst [vmem:[%s153 + $0x1bc] sm:$0xff] %v228
                %v230 = vld [vmem:[%s152 + $0x390] sm:$0xff]
                %231 = vst [vmem:[%s153 + $0x1c8] sm:$0xff] %v230
                %v232 = vld [vmem:[%s152 + $0x3a8] sm:$0xff]
                %233 = vst [vmem:[%s153 + $0x1d4] sm:$0xff] %v232
                %v234 = vld [vmem:[%s152 + $0x3c0] sm:$0xff]
                %235 = vst [vmem:[%s153 + $0x1e0] sm:$0xff] %v234
                %v236 = vld [vmem:[%s152 + $0x3d8] sm:$0xff]
                %237 = vst [vmem:[%s153 + $0x1ec] sm:$0xff] %v236
                %v238 = vld [vmem:[%s152 + $0x3f0] sm:$0xff]
                %239 = vst [vmem:[%s153 + $0x1f8] sm:$0xff] %v238
                %v240 = vld [vmem:[%s152 + $0x408] sm:$0xff]
                %241 = vst [vmem:[%s153 + $0x204] sm:$0xff] %v240
                %v242 = vld [vmem:[%s152 + $0x420] sm:$0xff]
                %243 = vst [vmem:[%s153 + $0x210] sm:$0xff] %v242
                %v244 = vld [vmem:[%s152 + $0x438] sm:$0xff]
                %245 = vst [vmem:[%s153 + $0x21c] sm:$0xff] %v244
                %v246 = vld [vmem:[%s152 + $0x450] sm:$0xff]
                %247 = vst [vmem:[%s153 + $0x228] sm:$0xff] %v246
                %v248 = vld [vmem:[%s152 + $0x468] sm:$0xff]
                %249 = vst [vmem:[%s153 + $0x234] sm:$0xff] %v248
                %v250 = vld [vmem:[%s152 + $0x480] sm:$0xff]
                %251 = vst [vmem:[%s153 + $0x240] sm:$0xff] %v250
                %v252 = vld [vmem:[%s152 + $0x498] sm:$0xff]
                %253 = vst [vmem:[%s153 + $0x24c] sm:$0xff] %v252
                %v254 = vld [vmem:[%s152 + $0x4b0] sm:$0xff]
                %255 = vst [vmem:[%s153 + $0x258] sm:$0xff] %v254
                %v256 = vld [vmem:[%s152 + $0x4c8] sm:$0xff]
                %257 = vst [vmem:[%s153 + $0x264] sm:$0xff] %v256
                %v258 = vld [vmem:[%s152 + $0x4e0] sm:$0xff]
                %259 = vst [vmem:[%s153 + $0x270] sm:$0xff] %v258
                %v260 = vld [vmem:[%s152 + $0x4f8] sm:$0xff]
                %261 = vst [vmem:[%s153 + $0x27c] sm:$0xff] %v260
                %v262 = vld [vmem:[%s152 + $0x510] sm:$0xff]
                %263 = vst [vmem:[%s153 + $0x288] sm:$0xff] %v262
                %v264 = vld [vmem:[%s152 + $0x528] sm:$0xff]
                %265 = vst [vmem:[%s153 + $0x294] sm:$0xff] %v264
                %v266 = vld [vmem:[%s152 + $0x540] sm:$0xff]
                %267 = vst [vmem:[%s153 + $0x2a0] sm:$0xff] %v266
                %v268 = vld [vmem:[%s152 + $0x558] sm:$0xff]
                %269 = vst [vmem:[%s153 + $0x2ac] sm:$0xff] %v268
                %v270 = vld [vmem:[%s152 + $0x570] sm:$0xff]
                %271 = vst [vmem:[%s153 + $0x2b8] sm:$0xff] %v270
                %v272 = vld [vmem:[%s152 + $0x588] sm:$0xff]
                %273 = vst [vmem:[%s153 + $0x2c4] sm:$0xff] %v272
                %v274 = vld [vmem:[%s152 + $0x5a0] sm:$0xff]
                %275 = vst [vmem:[%s153 + $0x2d0] sm:$0xff] %v274
                %v276 = vld [vmem:[%s152 + $0x5b8] sm:$0xff]
                %277 = vst [vmem:[%s153 + $0x2dc] sm:$0xff] %v276
                %v278 = vld [vmem:[%s152 + $0x5d0] sm:$0xff]
                %279 = vst [vmem:[%s153 + $0x2e8] sm:$0xff] %v278
                %v280 = vld [vmem:[%s152 + $0x5e8] sm:$0xff]
                %281 = vst [vmem:[%s153 + $0x2f4] sm:$0xff] %v280
              $region37: #{feature_aligned_diffusion_forward.3} parent=31 // loop_footer
                %s151 = sadd.s32 1, %s147
              $region38: #{feature_aligned_diffusion_forward.3} parent=31 // loop_footer_branch
                %146 = sbr.rel target = $region34
              $region39: #{feature_aligned_diffusion_forward.3} parent=31 // loop_exit
                _
              loop: start=0, step=1, limit=1
              $region40: #{feature_aligned_diffusion_forward.3} parent=31 // loop_pre_header
                _
              $region41: #{feature_aligned_diffusion_forward.3} parent=31 // loop_header
                %s284 = sphi 0, %s288
                %p285 = scmp.ge.s32.totalorder %s284, 1
                %s289 = sphi %s144, %s144
                %s290 = sphi %s145, %s145
              $region42: #{feature_aligned_diffusion_forward.3} parent=31 // loop_header_branch
                %287 = sbr.rel (%p285) target = $region46
              $region43: #{feature_aligned_diffusion_forward.3} parent=31 // loop_body
                %v291 = vld [vmem:[%s289] sm:$0xf]
                %292 = vst [vmem:[%s290] sm:$0xf] %v291
                %v293 = vld [vmem:[%s289 + $0x18] sm:$0xf]
                %294 = vst [vmem:[%s290 + $0xc] sm:$0xf] %v293
                %v295 = vld [vmem:[%s289 + $0x30] sm:$0xf]
                %296 = vst [vmem:[%s290 + $0x18] sm:$0xf] %v295
                %v297 = vld [vmem:[%s289 + $0x48] sm:$0xf]
                %298 = vst [vmem:[%s290 + $0x24] sm:$0xf] %v297
                %v299 = vld [vmem:[%s289 + $0x60] sm:$0xf]
                %300 = vst [vmem:[%s290 + $0x30] sm:$0xf] %v299
                %v301 = vld [vmem:[%s289 + $0x78] sm:$0xf]
                %302 = vst [vmem:[%s290 + $0x3c] sm:$0xf] %v301
                %v303 = vld [vmem:[%s289 + $0x90] sm:$0xf]
                %304 = vst [vmem:[%s290 + $0x48] sm:$0xf] %v303
                %v305 = vld [vmem:[%s289 + $0xa8] sm:$0xf]
                %306 = vst [vmem:[%s290 + $0x54] sm:$0xf] %v305
                %v307 = vld [vmem:[%s289 + $0xc0] sm:$0xf]
                %308 = vst [vmem:[%s290 + $0x60] sm:$0xf] %v307
                %v309 = vld [vmem:[%s289 + $0xd8] sm:$0xf]
                %310 = vst [vmem:[%s290 + $0x6c] sm:$0xf] %v309
                %v311 = vld [vmem:[%s289 + $0xf0] sm:$0xf]
                %312 = vst [vmem:[%s290 + $0x78] sm:$0xf] %v311
                %v313 = vld [vmem:[%s289 + $0x108] sm:$0xf]
                %314 = vst [vmem:[%s290 + $0x84] sm:$0xf] %v313
                %v315 = vld [vmem:[%s289 + $0x120] sm:$0xf]
                %316 = vst [vmem:[%s290 + $0x90] sm:$0xf] %v315
                %v317 = vld [vmem:[%s289 + $0x138] sm:$0xf]
                %318 = vst [vmem:[%s290 + $0x9c] sm:$0xf] %v317
                %v319 = vld [vmem:[%s289 + $0x150] sm:$0xf]
                %320 = vst [vmem:[%s290 + $0xa8] sm:$0xf] %v319
                %v321 = vld [vmem:[%s289 + $0x168] sm:$0xf]
                %322 = vst [vmem:[%s290 + $0xb4] sm:$0xf] %v321
                %v323 = vld [vmem:[%s289 + $0x180] sm:$0xf]
                %324 = vst [vmem:[%s290 + $0xc0] sm:$0xf] %v323
                %v325 = vld [vmem:[%s289 + $0x198] sm:$0xf]
                %326 = vst [vmem:[%s290 + $0xcc] sm:$0xf] %v325
                %v327 = vld [vmem:[%s289 + $0x1b0] sm:$0xf]
                %328 = vst [vmem:[%s290 + $0xd8] sm:$0xf] %v327
                %v329 = vld [vmem:[%s289 + $0x1c8] sm:$0xf]
                %330 = vst [vmem:[%s290 + $0xe4] sm:$0xf] %v329
                %v331 = vld [vmem:[%s289 + $0x1e0] sm:$0xf]
                %332 = vst [vmem:[%s290 + $0xf0] sm:$0xf] %v331
                %v333 = vld [vmem:[%s289 + $0x1f8] sm:$0xf]
                %334 = vst [vmem:[%s290 + $0xfc] sm:$0xf] %v333
                %v335 = vld [vmem:[%s289 + $0x210] sm:$0xf]
                %336 = vst [vmem:[%s290 + $0x108] sm:$0xf] %v335
                %v337 = vld [vmem:[%s289 + $0x228] sm:$0xf]
                %338 = vst [vmem:[%s290 + $0x114] sm:$0xf] %v337
                %v339 = vld [vmem:[%s289 + $0x240] sm:$0xf]
                %340 = vst [vmem:[%s290 + $0x120] sm:$0xf] %v339
                %v341 = vld [vmem:[%s289 + $0x258] sm:$0xf]
                %342 = vst [vmem:[%s290 + $0x12c] sm:$0xf] %v341
                %v343 = vld [vmem:[%s289 + $0x270] sm:$0xf]
                %344 = vst [vmem:[%s290 + $0x138] sm:$0xf] %v343
                %v345 = vld [vmem:[%s289 + $0x288] sm:$0xf]
                %346 = vst [vmem:[%s290 + $0x144] sm:$0xf] %v345
                %v347 = vld [vmem:[%s289 + $0x2a0] sm:$0xf]
                %348 = vst [vmem:[%s290 + $0x150] sm:$0xf] %v347
                %v349 = vld [vmem:[%s289 + $0x2b8] sm:$0xf]
                %350 = vst [vmem:[%s290 + $0x15c] sm:$0xf] %v349
                %v351 = vld [vmem:[%s289 + $0x2d0] sm:$0xf]
                %352 = vst [vmem:[%s290 + $0x168] sm:$0xf] %v351
                %v353 = vld [vmem:[%s289 + $0x2e8] sm:$0xf]
                %354 = vst [vmem:[%s290 + $0x174] sm:$0xf] %v353
                %v355 = vld [vmem:[%s289 + $0x300] sm:$0xf]
                %356 = vst [vmem:[%s290 + $0x180] sm:$0xf] %v355
                %v357 = vld [vmem:[%s289 + $0x318] sm:$0xf]
                %358 = vst [vmem:[%s290 + $0x18c] sm:$0xf] %v357
                %v359 = vld [vmem:[%s289 + $0x330] sm:$0xf]
                %360 = vst [vmem:[%s290 + $0x198] sm:$0xf] %v359
                %v361 = vld [vmem:[%s289 + $0x348] sm:$0xf]
                %362 = vst [vmem:[%s290 + $0x1a4] sm:$0xf] %v361
                %v363 = vld [vmem:[%s289 + $0x360] sm:$0xf]
                %364 = vst [vmem:[%s290 + $0x1b0] sm:$0xf] %v363
                %v365 = vld [vmem:[%s289 + $0x378] sm:$0xf]
                %366 = vst [vmem:[%s290 + $0x1bc] sm:$0xf] %v365
                %v367 = vld [vmem:[%s289 + $0x390] sm:$0xf]
                %368 = vst [vmem:[%s290 + $0x1c8] sm:$0xf] %v367
                %v369 = vld [vmem:[%s289 + $0x3a8] sm:$0xf]
                %370 = vst [vmem:[%s290 + $0x1d4] sm:$0xf] %v369
                %v371 = vld [vmem:[%s289 + $0x3c0] sm:$0xf]
                %372 = vst [vmem:[%s290 + $0x1e0] sm:$0xf] %v371
                %v373 = vld [vmem:[%s289 + $0x3d8] sm:$0xf]
                %374 = vst [vmem:[%s290 + $0x1ec] sm:$0xf] %v373
                %v375 = vld [vmem:[%s289 + $0x3f0] sm:$0xf]
                %376 = vst [vmem:[%s290 + $0x1f8] sm:$0xf] %v375
                %v377 = vld [vmem:[%s289 + $0x408] sm:$0xf]
                %378 = vst [vmem:[%s290 + $0x204] sm:$0xf] %v377
                %v379 = vld [vmem:[%s289 + $0x420] sm:$0xf]
                %380 = vst [vmem:[%s290 + $0x210] sm:$0xf] %v379
                %v381 = vld [vmem:[%s289 + $0x438] sm:$0xf]
                %382 = vst [vmem:[%s290 + $0x21c] sm:$0xf] %v381
                %v383 = vld [vmem:[%s289 + $0x450] sm:$0xf]
                %384 = vst [vmem:[%s290 + $0x228] sm:$0xf] %v383
                %v385 = vld [vmem:[%s289 + $0x468] sm:$0xf]
                %386 = vst [vmem:[%s290 + $0x234] sm:$0xf] %v385
                %v387 = vld [vmem:[%s289 + $0x480] sm:$0xf]
                %388 = vst [vmem:[%s290 + $0x240] sm:$0xf] %v387
                %v389 = vld [vmem:[%s289 + $0x498] sm:$0xf]
                %390 = vst [vmem:[%s290 + $0x24c] sm:$0xf] %v389
                %v391 = vld [vmem:[%s289 + $0x4b0] sm:$0xf]
                %392 = vst [vmem:[%s290 + $0x258] sm:$0xf] %v391
                %v393 = vld [vmem:[%s289 + $0x4c8] sm:$0xf]
                %394 = vst [vmem:[%s290 + $0x264] sm:$0xf] %v393
                %v395 = vld [vmem:[%s289 + $0x4e0] sm:$0xf]
                %396 = vst [vmem:[%s290 + $0x270] sm:$0xf] %v395
                %v397 = vld [vmem:[%s289 + $0x4f8] sm:$0xf]
                %398 = vst [vmem:[%s290 + $0x27c] sm:$0xf] %v397
                %v399 = vld [vmem:[%s289 + $0x510] sm:$0xf]
                %400 = vst [vmem:[%s290 + $0x288] sm:$0xf] %v399
                %v401 = vld [vmem:[%s289 + $0x528] sm:$0xf]
                %402 = vst [vmem:[%s290 + $0x294] sm:$0xf] %v401
                %v403 = vld [vmem:[%s289 + $0x540] sm:$0xf]
                %404 = vst [vmem:[%s290 + $0x2a0] sm:$0xf] %v403
                %v405 = vld [vmem:[%s289 + $0x558] sm:$0xf]
                %406 = vst [vmem:[%s290 + $0x2ac] sm:$0xf] %v405
                %v407 = vld [vmem:[%s289 + $0x570] sm:$0xf]
                %408 = vst [vmem:[%s290 + $0x2b8] sm:$0xf] %v407
                %v409 = vld [vmem:[%s289 + $0x588] sm:$0xf]
                %410 = vst [vmem:[%s290 + $0x2c4] sm:$0xf] %v409
                %v411 = vld [vmem:[%s289 + $0x5a0] sm:$0xf]
                %412 = vst [vmem:[%s290 + $0x2d0] sm:$0xf] %v411
                %v413 = vld [vmem:[%s289 + $0x5b8] sm:$0xf]
                %414 = vst [vmem:[%s290 + $0x2dc] sm:$0xf] %v413
                %v415 = vld [vmem:[%s289 + $0x5d0] sm:$0xf]
                %416 = vst [vmem:[%s290 + $0x2e8] sm:$0xf] %v415
                %v417 = vld [vmem:[%s289 + $0x5e8] sm:$0xf]
                %418 = vst [vmem:[%s290 + $0x2f4] sm:$0xf] %v417
              $region44: #{feature_aligned_diffusion_forward.3} parent=31 // loop_footer
                %s288 = sadd.s32 1, %s284
              $region45: #{feature_aligned_diffusion_forward.3} parent=31 // loop_footer_branch
                %283 = sbr.rel target = $region41
              $region46: #{feature_aligned_diffusion_forward.3} parent=31 // loop_exit
                _
            $region32: #{feature_aligned_diffusion_forward.3} parent=27 // pred_fallthru
              _
          $region28: #{feature_aligned_diffusion_forward.3} parent=23 // pred_fallthru
            _
          %419 = vnop
        $region24: #{feature_aligned_diffusion_forward.3} parent=19 // pred_fallthru
          _
        // Predicated region
        $region47: #{feature_aligned_diffusion_forward.3} parent=19 // pred_check
          %p420 = pneg %p76
        $region48: #{feature_aligned_diffusion_forward.3} parent=19 // pred_check_branch
          %422 = sbr.rel (%p420) target = $region50
        $region49: #{feature_aligned_diffusion_forward.3} parent=19 // pred_region
          %s423 = smul.u32 3, %s9
          %p424 = scmp.lt.s32.totalorder %s423, 5
          %s425 = scalar_select %p424, %s423, 5
          %s426 = scalar_lea.vmem %s2, %s425
          %s427 = smul.u32 3, %s9
        $region50: #{feature_aligned_diffusion_forward.3} parent=19 // pred_fallthru
          _
      $region20: #{feature_aligned_diffusion_forward.3} parent=5 // pred_fallthru
        _
      %p428 = scmp.le.s32.totalorder 1, %s9
      %p429 = scmp.lt.s32.totalorder %s9, 3
      %p430 = pnand %p428, %p429
      %p431 = pneg %p430
      // Predicated region
      $region51: #{feature_aligned_diffusion_forward.3} parent=5 // pred_check
        _
      $region52: #{feature_aligned_diffusion_forward.3} parent=5 // pred_check_branch
        %433 = sbr.rel (%p430) target = $region54
      $region53: #{feature_aligned_diffusion_forward.3} parent=5 // pred_region
        %s434 = ssub.s32 %s9, 1
        %s435 = sand.u32 %s43, 1
        %s436 = sand.u32 %s43, 1
        %s437 = smul.addr %s436, 768
        %s438 = scalar_lea.vmem [#allocation2], %s437
        // Predicated region
        $region55: #{feature_aligned_diffusion_forward.3} parent=53 // pred_check
          %p439 = pneg %p56
        $region56: #{feature_aligned_diffusion_forward.3} parent=53 // pred_check_branch
          %441 = sbr.rel (%p439) target = $region58
        $region57: #{feature_aligned_diffusion_forward.3} parent=53 // pred_region
          _
        $region58: #{feature_aligned_diffusion_forward.3} parent=53 // pred_fallthru
          _
        %p442 = pneg %p30
        %p443 = pneg %p27
        %s444 = sand.u32 %s43, 1
        %s445 = sand.u32 %s43, 1
        %s446 = smul.addr %s445, 768
        %s447 = scalar_lea.vmem [#allocation2], %s446
        %p448 = pneg %p56
        %p449 = pneg %p53
        %s450 = smul.u32 3, %s14
        %p451 = scmp.lt.s32.totalorder %s450, 5
        %s452 = scalar_select %p451, %s450, 5
        %s453 = scalar_lea.vmem %s2, %s452
        %p454 = pneg %p82
        %p455 = pneg %p79
        %p456 = pneg %p108
        %p457 = pneg %p105
        %s458 = smul.u32 3, %s14
        %p459 = scmp.lt.s32.totalorder %s458, 5
        %s460 = scalar_select %p459, %s458, 5
        %s461 = smul.addr %s460, 2
        %s462 = scalar_lea.vmem %s3, %s461
        %s463 = smul.u32 3, %s14
        %s464 = smul.u32 3, %s14
        %p465 = scmp.lt.s32.totalorder %s464, 5
        %s466 = scalar_select %p465, %s464, 5
        %s467 = scalar_lea.vmem %s2, %s466
        %s468 = smul.u32 3, %s14
        %s469 = smul.u32 3, %s14
        %p470 = scmp.lt.s32.totalorder %s469, 5
        %s471 = scalar_select %p470, %s469, 5
        %s472 = smul.addr %s471, 2
        %s473 = scalar_lea.vmem %s3, %s472
        %s474 = smul.u32 3, %s14
        %v476 = vld [vmem:[%s0] sm:$0xf]
        %v477 = vld [vmem:[%s438] sm:$0xff]
        %v478 = vld [vmem:[%s438 + $0x8] sm:$0xf]
        %v479 = vld [vmem:[%s438 + $0xc] sm:$0xff]
        %v480 = vld [vmem:[%s438 + $0x14] sm:$0xf]
        %v481 = vld [vmem:[%s438 + $0x18] sm:$0xff]
        %v482 = vld [vmem:[%s438 + $0x20] sm:$0xf]
        %v483 = vld [vmem:[%s438 + $0x24] sm:$0xff]
        %v484 = vld [vmem:[%s438 + $0x2c] sm:$0xf]
        %v485 = vld [vmem:[%s438 + $0x30] sm:$0xff]
        %v486 = vld [vmem:[%s438 + $0x38] sm:$0xf]
        %v487 = vld [vmem:[%s438 + $0x3c] sm:$0xff]
        %v488 = vld [vmem:[%s438 + $0x44] sm:$0xf]
        %v489 = vld [vmem:[%s438 + $0x48] sm:$0xff]
        %v490 = vld [vmem:[%s438 + $0x50] sm:$0xf]
        %v491 = vld [vmem:[%s438 + $0x54] sm:$0xff]
        %v492 = vld [vmem:[%s438 + $0x5c] sm:$0xf]
        %v493 = vld [vmem:[%s438 + $0x60] sm:$0xff]
        %v494 = vld [vmem:[%s438 + $0x68] sm:$0xf]
        %v495 = vld [vmem:[%s438 + $0x6c] sm:$0xff]
        %v496 = vld [vmem:[%s438 + $0x74] sm:$0xf]
        %v497 = vld [vmem:[%s438 + $0x78] sm:$0xff]
        %v498 = vld [vmem:[%s438 + $0x80] sm:$0xf]
        %v499 = vld [vmem:[%s438 + $0x84] sm:$0xff]
        %v500 = vld [vmem:[%s438 + $0x8c] sm:$0xf]
        %v501 = vld [vmem:[%s438 + $0x90] sm:$0xff]
        %v502 = vld [vmem:[%s438 + $0x98] sm:$0xf]
        %v503 = vld [vmem:[%s438 + $0x9c] sm:$0xff]
        %v504 = vld [vmem:[%s438 + $0xa4] sm:$0xf]
        %v505 = vld [vmem:[%s438 + $0xa8] sm:$0xff]
        %v506 = vld [vmem:[%s438 + $0xb0] sm:$0xf]
        %v507 = vld [vmem:[%s438 + $0xb4] sm:$0xff]
        %v508 = vld [vmem:[%s438 + $0xbc] sm:$0xf]
        %v509 = vld [vmem:[%s438 + $0xc0] sm:$0xff]
        %v510 = vld [vmem:[%s438 + $0xc8] sm:$0xf]
        %v511 = vld [vmem:[%s438 + $0xcc] sm:$0xff]
        %v512 = vld [vmem:[%s438 + $0xd4] sm:$0xf]
        %v513 = vld [vmem:[%s438 + $0xd8] sm:$0xff]
        %v514 = vld [vmem:[%s438 + $0xe0] sm:$0xf]
        %v515 = vld [vmem:[%s438 + $0xe4] sm:$0xff]
        %v516 = vld [vmem:[%s438 + $0xec] sm:$0xf]
        %v517 = vld [vmem:[%s438 + $0xf0] sm:$0xff]
        %v518 = vld [vmem:[%s438 + $0xf8] sm:$0xf]
        %v519 = vld [vmem:[%s438 + $0xfc] sm:$0xff]
        %v520 = vld [vmem:[%s438 + $0x104] sm:$0xf]
        %v521 = vld [vmem:[%s438 + $0x108] sm:$0xff]
        %v522 = vld [vmem:[%s438 + $0x110] sm:$0xf]
        %v523 = vld [vmem:[%s438 + $0x114] sm:$0xff]
        %v524 = vld [vmem:[%s438 + $0x11c] sm:$0xf]
        %v525 = vld [vmem:[%s438 + $0x120] sm:$0xff]
        %v526 = vld [vmem:[%s438 + $0x128] sm:$0xf]
        %v527 = vld [vmem:[%s438 + $0x12c] sm:$0xff]
        %v528 = vld [vmem:[%s438 + $0x134] sm:$0xf]
        %v529 = vld [vmem:[%s438 + $0x138] sm:$0xff]
        %v530 = vld [vmem:[%s438 + $0x140] sm:$0xf]
        %v531 = vld [vmem:[%s438 + $0x144] sm:$0xff]
        %v532 = vld [vmem:[%s438 + $0x14c] sm:$0xf]
        %v533 = vld [vmem:[%s438 + $0x150] sm:$0xff]
        %v534 = vld [vmem:[%s438 + $0x158] sm:$0xf]
        %v535 = vld [vmem:[%s438 + $0x15c] sm:$0xff]
        %v536 = vld [vmem:[%s438 + $0x164] sm:$0xf]
        %v537 = vld [vmem:[%s438 + $0x168] sm:$0xff]
        %v538 = vld [vmem:[%s438 + $0x170] sm:$0xf]
        %v539 = vld [vmem:[%s438 + $0x174] sm:$0xff]
        %v540 = vld [vmem:[%s438 + $0x17c] sm:$0xf]
        %v541 = vld [vmem:[%s438 + $0x180] sm:$0xff]
        %v542 = vld [vmem:[%s438 + $0x188] sm:$0xf]
        %v543 = vld [vmem:[%s438 + $0x18c] sm:$0xff]
        %v544 = vld [vmem:[%s438 + $0x194] sm:$0xf]
        %v545 = vld [vmem:[%s438 + $0x198] sm:$0xff]
        %v546 = vld [vmem:[%s438 + $0x1a0] sm:$0xf]
        %v547 = vld [vmem:[%s438 + $0x1a4] sm:$0xff]
        %v548 = vld [vmem:[%s438 + $0x1ac] sm:$0xf]
        %v549 = vld [vmem:[%s438 + $0x1b0] sm:$0xff]
        %v550 = vld [vmem:[%s438 + $0x1b8] sm:$0xf]
        %v551 = vld [vmem:[%s438 + $0x1bc] sm:$0xff]
        %v552 = vld [vmem:[%s438 + $0x1c4] sm:$0xf]
        %v553 = vld [vmem:[%s438 + $0x1c8] sm:$0xff]
        %v554 = vld [vmem:[%s438 + $0x1d0] sm:$0xf]
        %v555 = vld [vmem:[%s438 + $0x1d4] sm:$0xff]
        %v556 = vld [vmem:[%s438 + $0x1dc] sm:$0xf]
        %v557 = vld [vmem:[%s438 + $0x1e0] sm:$0xff]
        %v558 = vld [vmem:[%s438 + $0x1e8] sm:$0xf]
        %v559 = vld [vmem:[%s438 + $0x1ec] sm:$0xff]
        %v560 = vld [vmem:[%s438 + $0x1f4] sm:$0xf]
        %v561 = vld [vmem:[%s438 + $0x1f8] sm:$0xff]
        %v562 = vld [vmem:[%s438 + $0x200] sm:$0xf]
        %v563 = vld [vmem:[%s438 + $0x204] sm:$0xff]
        %v564 = vld [vmem:[%s438 + $0x20c] sm:$0xf]
        %v565 = vld [vmem:[%s438 + $0x210] sm:$0xff]
        %v566 = vld [vmem:[%s438 + $0x218] sm:$0xf]
        %v567 = vld [vmem:[%s438 + $0x21c] sm:$0xff]
        %v568 = vld [vmem:[%s438 + $0x224] sm:$0xf]
        %v569 = vld [vmem:[%s438 + $0x228] sm:$0xff]
        %v570 = vld [vmem:[%s438 + $0x230] sm:$0xf]
        %v571 = vld [vmem:[%s438 + $0x234] sm:$0xff]
        %v572 = vld [vmem:[%s438 + $0x23c] sm:$0xf]
        %v573 = vld [vmem:[%s438 + $0x240] sm:$0xff]
        %v574 = vld [vmem:[%s438 + $0x248] sm:$0xf]
        %v575 = vld [vmem:[%s438 + $0x24c] sm:$0xff]
        %v576 = vld [vmem:[%s438 + $0x254] sm:$0xf]
        %v577 = vld [vmem:[%s438 + $0x258] sm:$0xff]
        %v578 = vld [vmem:[%s438 + $0x260] sm:$0xf]
        %v579 = vld [vmem:[%s438 + $0x264] sm:$0xff]
        %v580 = vld [vmem:[%s438 + $0x26c] sm:$0xf]
        %v581 = vld [vmem:[%s438 + $0x270] sm:$0xff]
        %v582 = vld [vmem:[%s438 + $0x278] sm:$0xf]
        %v583 = vld [vmem:[%s438 + $0x27c] sm:$0xff]
        %v584 = vld [vmem:[%s438 + $0x284] sm:$0xf]
        %v585 = vld [vmem:[%s438 + $0x288] sm:$0xff]
        %v586 = vld [vmem:[%s438 + $0x290] sm:$0xf]
        %v587 = vld [vmem:[%s438 + $0x294] sm:$0xff]
        %v588 = vld [vmem:[%s438 + $0x29c] sm:$0xf]
        %v589 = vld [vmem:[%s438 + $0x2a0] sm:$0xff]
        %v590 = vld [vmem:[%s438 + $0x2a8] sm:$0xf]
        %v591 = vld [vmem:[%s438 + $0x2ac] sm:$0xff]
        %v592 = vld [vmem:[%s438 + $0x2b4] sm:$0xf]
        %v593 = vld [vmem:[%s438 + $0x2b8] sm:$0xff]
        %v594 = vld [vmem:[%s438 + $0x2c0] sm:$0xf]
        %v595 = vld [vmem:[%s438 + $0x2c4] sm:$0xff]
        %v596 = vld [vmem:[%s438 + $0x2cc] sm:$0xf]
        %v597 = vld [vmem:[%s438 + $0x2d0] sm:$0xff]
        %v598 = vld [vmem:[%s438 + $0x2d8] sm:$0xf]
        %v599 = vld [vmem:[%s438 + $0x2dc] sm:$0xff]
        %v600 = vld [vmem:[%s438 + $0x2e4] sm:$0xf]
        %v601 = vld [vmem:[%s438 + $0x2e8] sm:$0xff]
        %v602 = vld [vmem:[%s438 + $0x2f0] sm:$0xf]
        %v603 = vld [vmem:[%s438 + $0x2f4] sm:$0xff]
        %v604 = vld [vmem:[%s438 + $0x2fc] sm:$0xf]
        %v605 = vld [vmem:[%s467] sm:$0x7]
        %v607 = vlaneseq
        %v608 = vshrl.u32 %v607, 7
        %v609 = vsub.s32 0, %v608
        %v610 = vrot.slane %v605, %v609
        %v611 = vlaneseq
        %v612 = vshrl.u32 %v611, 7
        %v613 = vsub.s32 1, %v612
        %v614 = vrot.slane %v605, %v613
        %v615 = vlaneseq
        %v616 = vshrl.u32 %v615, 7
        %v617 = vsub.s32 2, %v616
        %v618 = vrot.slane %v605, %v617
        %v624 = vunpack.c.l.s4 1966171168
        %v625 = vunpack.c.0.s8 %v624
        %v626 = vlaneseq
        %v627 = vshrl.u32 %v626, 7
        %v628 = vsub.s32 %v625, %v627
        %v629 = vrot.slane %v476, %v628
        %v630 = vcombine.high %v629, %v629
        %v632 = vunpack.c.l.s4 1966171168
        %v633 = vunpack.c.0.s8 %v632
        %v634 = vlaneseq
        %v635 = vshrl.u32 %v634, 7
        %v636 = vsub.s32 %v633, %v635
        %v637 = vrot.slane %v629, %v636
        %v639 = vunpack.c.l.s4 1966171168
        %v640 = vunpack.c.0.s8 %v639
        %v641 = vlaneseq
        %v642 = vshrl.u32 %v641, 7
        %v643 = vsub.s32 %v640, %v642
        %v644 = vrot.slane %v630, %v643
        %v645 = vcombine.high %v637, %v637
        %v646 = vcombine.high %v644, %v644
        %v779 = vunpack.c.l.b16 %v477
        %v780 = vunpack.c.h.b16 %v477
        %v781 = vunpack.c.l.b16 %v478
        %v782 = vunpack.c.l.b16 %v479
        %v783 = vunpack.c.h.b16 %v479
        %v784 = vunpack.c.l.b16 %v480
        %v785 = vunpack.c.l.b16 %v481
        %v786 = vunpack.c.h.b16 %v481
        %v787 = vunpack.c.l.b16 %v482
        %v788 = vunpack.c.l.b16 %v483
        %v789 = vunpack.c.h.b16 %v483
        %v790 = vunpack.c.l.b16 %v484
        %v791 = vunpack.c.l.b16 %v485
        %v792 = vunpack.c.h.b16 %v485
        %v793 = vunpack.c.l.b16 %v486
        %v794 = vunpack.c.l.b16 %v487
        %v795 = vunpack.c.h.b16 %v487
        %v796 = vunpack.c.l.b16 %v488
        %v797 = vunpack.c.l.b16 %v489
        %v798 = vunpack.c.h.b16 %v489
        %v799 = vunpack.c.l.b16 %v490
        %v800 = vunpack.c.l.b16 %v491
        %v801 = vunpack.c.h.b16 %v491
        %v802 = vunpack.c.l.b16 %v492
        %v803 = vunpack.c.l.b16 %v493
        %v804 = vunpack.c.h.b16 %v493
        %v805 = vunpack.c.l.b16 %v494
        %v806 = vunpack.c.l.b16 %v495
        %v807 = vunpack.c.h.b16 %v495
        %v808 = vunpack.c.l.b16 %v496
        %v809 = vunpack.c.l.b16 %v497
        %v810 = vunpack.c.h.b16 %v497
        %v811 = vunpack.c.l.b16 %v498
        %v812 = vunpack.c.l.b16 %v499
        %v813 = vunpack.c.h.b16 %v499
        %v814 = vunpack.c.l.b16 %v500
        %v815 = vunpack.c.l.b16 %v501
        %v816 = vunpack.c.h.b16 %v501
        %v817 = vunpack.c.l.b16 %v502
        %v818 = vunpack.c.l.b16 %v503
        %v819 = vunpack.c.h.b16 %v503
        %v820 = vunpack.c.l.b16 %v504
        %v821 = vunpack.c.l.b16 %v505
        %v822 = vunpack.c.h.b16 %v505
        %v823 = vunpack.c.l.b16 %v506
        %v824 = vunpack.c.l.b16 %v507
        %v825 = vunpack.c.h.b16 %v507
        %v826 = vunpack.c.l.b16 %v508
        %v827 = vunpack.c.l.b16 %v509
        %v828 = vunpack.c.h.b16 %v509
        %v829 = vunpack.c.l.b16 %v510
        %v830 = vunpack.c.l.b16 %v511
        %v831 = vunpack.c.h.b16 %v511
        %v832 = vunpack.c.l.b16 %v512
        %v833 = vunpack.c.l.b16 %v513
        %v834 = vunpack.c.h.b16 %v513
        %v835 = vunpack.c.l.b16 %v514
        %v836 = vunpack.c.l.b16 %v515
        %v837 = vunpack.c.h.b16 %v515
        %v838 = vunpack.c.l.b16 %v516
        %v839 = vunpack.c.l.b16 %v517
        %v840 = vunpack.c.h.b16 %v517
        %v841 = vunpack.c.l.b16 %v518
        %v842 = vunpack.c.l.b16 %v519
        %v843 = vunpack.c.h.b16 %v519
        %v844 = vunpack.c.l.b16 %v520
        %v845 = vunpack.c.l.b16 %v521
        %v846 = vunpack.c.h.b16 %v521
        %v847 = vunpack.c.l.b16 %v522
        %v848 = vunpack.c.l.b16 %v523
        %v849 = vunpack.c.h.b16 %v523
        %v850 = vunpack.c.l.b16 %v524
        %v851 = vunpack.c.l.b16 %v525
        %v852 = vunpack.c.h.b16 %v525
        %v853 = vunpack.c.l.b16 %v526
        %v854 = vunpack.c.l.b16 %v527
        %v855 = vunpack.c.h.b16 %v527
        %v856 = vunpack.c.l.b16 %v528
        %v857 = vunpack.c.l.b16 %v529
        %v858 = vunpack.c.h.b16 %v529
        %v859 = vunpack.c.l.b16 %v530
        %v860 = vunpack.c.l.b16 %v531
        %v861 = vunpack.c.h.b16 %v531
        %v862 = vunpack.c.l.b16 %v532
        %v863 = vunpack.c.l.b16 %v533
        %v864 = vunpack.c.h.b16 %v533
        %v865 = vunpack.c.l.b16 %v534
        %v866 = vunpack.c.l.b16 %v535
        %v867 = vunpack.c.h.b16 %v535
        %v868 = vunpack.c.l.b16 %v536
        %v869 = vunpack.c.l.b16 %v537
        %v870 = vunpack.c.h.b16 %v537
        %v871 = vunpack.c.l.b16 %v538
        %v872 = vunpack.c.l.b16 %v539
        %v873 = vunpack.c.h.b16 %v539
        %v874 = vunpack.c.l.b16 %v540
        %v875 = vunpack.c.l.b16 %v541
        %v876 = vunpack.c.h.b16 %v541
        %v877 = vunpack.c.l.b16 %v542
        %v878 = vunpack.c.l.b16 %v543
        %v879 = vunpack.c.h.b16 %v543
        %v880 = vunpack.c.l.b16 %v544
        %v881 = vunpack.c.l.b16 %v545
        %v882 = vunpack.c.h.b16 %v545
        %v883 = vunpack.c.l.b16 %v546
        %v884 = vunpack.c.l.b16 %v547
        %v885 = vunpack.c.h.b16 %v547
        %v886 = vunpack.c.l.b16 %v548
        %v887 = vunpack.c.l.b16 %v549
        %v888 = vunpack.c.h.b16 %v549
        %v889 = vunpack.c.l.b16 %v550
        %v890 = vunpack.c.l.b16 %v551
        %v891 = vunpack.c.h.b16 %v551
        %v892 = vunpack.c.l.b16 %v552
        %v893 = vunpack.c.l.b16 %v553
        %v894 = vunpack.c.h.b16 %v553
        %v895 = vunpack.c.l.b16 %v554
        %v896 = vunpack.c.l.b16 %v555
        %v897 = vunpack.c.h.b16 %v555
        %v898 = vunpack.c.l.b16 %v556
        %v899 = vunpack.c.l.b16 %v557
        %v900 = vunpack.c.h.b16 %v557
        %v901 = vunpack.c.l.b16 %v558
        %v902 = vunpack.c.l.b16 %v559
        %v903 = vunpack.c.h.b16 %v559
        %v904 = vunpack.c.l.b16 %v560
        %v905 = vunpack.c.l.b16 %v561
        %v906 = vunpack.c.h.b16 %v561
        %v907 = vunpack.c.l.b16 %v562
        %v908 = vunpack.c.l.b16 %v563
        %v909 = vunpack.c.h.b16 %v563
        %v910 = vunpack.c.l.b16 %v564
        %v911 = vunpack.c.l.b16 %v565
        %v912 = vunpack.c.h.b16 %v565
        %v913 = vunpack.c.l.b16 %v566
        %v914 = vunpack.c.l.b16 %v567
        %v915 = vunpack.c.h.b16 %v567
        %v916 = vunpack.c.l.b16 %v568
        %v917 = vunpack.c.l.b16 %v569
        %v918 = vunpack.c.h.b16 %v569
        %v919 = vunpack.c.l.b16 %v570
        %v920 = vunpack.c.l.b16 %v571
        %v921 = vunpack.c.h.b16 %v571
        %v922 = vunpack.c.l.b16 %v572
        %v923 = vunpack.c.l.b16 %v573
        %v924 = vunpack.c.h.b16 %v573
        %v925 = vunpack.c.l.b16 %v574
        %v926 = vunpack.c.l.b16 %v575
        %v927 = vunpack.c.h.b16 %v575
        %v928 = vunpack.c.l.b16 %v576
        %v929 = vunpack.c.l.b16 %v577
        %v930 = vunpack.c.h.b16 %v577
        %v931 = vunpack.c.l.b16 %v578
        %v932 = vunpack.c.l.b16 %v579
        %v933 = vunpack.c.h.b16 %v579
        %v934 = vunpack.c.l.b16 %v580
        %v935 = vunpack.c.l.b16 %v581
        %v936 = vunpack.c.h.b16 %v581
        %v937 = vunpack.c.l.b16 %v582
        %v938 = vunpack.c.l.b16 %v583
        %v939 = vunpack.c.h.b16 %v583
        %v940 = vunpack.c.l.b16 %v584
        %v941 = vunpack.c.l.b16 %v585
        %v942 = vunpack.c.h.b16 %v585
        %v943 = vunpack.c.l.b16 %v586
        %v944 = vunpack.c.l.b16 %v587
        %v945 = vunpack.c.h.b16 %v587
        %v946 = vunpack.c.l.b16 %v588
        %v947 = vunpack.c.l.b16 %v589
        %v948 = vunpack.c.h.b16 %v589
        %v949 = vunpack.c.l.b16 %v590
        %v950 = vunpack.c.l.b16 %v591
        %v951 = vunpack.c.h.b16 %v591
        %v952 = vunpack.c.l.b16 %v592
        %v953 = vunpack.c.l.b16 %v593
        %v954 = vunpack.c.h.b16 %v593
        %v955 = vunpack.c.l.b16 %v594
        %v956 = vunpack.c.l.b16 %v595
        %v957 = vunpack.c.h.b16 %v595
        %v958 = vunpack.c.l.b16 %v596
        %v959 = vunpack.c.l.b16 %v597
        %v960 = vunpack.c.h.b16 %v597
        %v961 = vunpack.c.l.b16 %v598
        %v962 = vunpack.c.l.b16 %v599
        %v963 = vunpack.c.h.b16 %v599
        %v964 = vunpack.c.l.b16 %v600
        %v965 = vunpack.c.l.b16 %v601
        %v966 = vunpack.c.h.b16 %v601
        %v967 = vunpack.c.l.b16 %v602
        %v968 = vunpack.c.l.b16 %v603
        %v969 = vunpack.c.h.b16 %v603
        %v970 = vunpack.c.l.b16 %v604
        %v971 = vpack.c.b16 %v782, %v779
        %v972 = vpack.c.b16 %v783, %v780
        %v973 = vpack.c.b16 %v784, %v781
        %v974 = vpack.c.b16 %v788, %v785
        %v975 = vpack.c.b16 %v789, %v786
        %v976 = vpack.c.b16 %v790, %v787
        %v977 = vpack.c.b16 %v794, %v791
        %v978 = vpack.c.b16 %v795, %v792
        %v979 = vpack.c.b16 %v796, %v793
        %v980 = vpack.c.b16 %v800, %v797
        %v981 = vpack.c.b16 %v801, %v798
        %v982 = vpack.c.b16 %v802, %v799
        %v983 = vpack.c.b16 %v806, %v803
        %v984 = vpack.c.b16 %v807, %v804
        %v985 = vpack.c.b16 %v808, %v805
        %v986 = vpack.c.b16 %v812, %v809
        %v987 = vpack.c.b16 %v813, %v810
        %v988 = vpack.c.b16 %v814, %v811
        %v989 = vpack.c.b16 %v818, %v815
        %v990 = vpack.c.b16 %v819, %v816
        %v991 = vpack.c.b16 %v820, %v817
        %v992 = vpack.c.b16 %v824, %v821
        %v993 = vpack.c.b16 %v825, %v822
        %v994 = vpack.c.b16 %v826, %v823
        %v995 = vpack.c.b16 %v830, %v827
        %v996 = vpack.c.b16 %v831, %v828
        %v997 = vpack.c.b16 %v832, %v829
        %v998 = vpack.c.b16 %v836, %v833
        %v999 = vpack.c.b16 %v837, %v834
        %v1000 = vpack.c.b16 %v838, %v835
        %v1001 = vpack.c.b16 %v842, %v839
        %v1002 = vpack.c.b16 %v843, %v840
        %v1003 = vpack.c.b16 %v844, %v841
        %v1004 = vpack.c.b16 %v848, %v845
        %v1005 = vpack.c.b16 %v849, %v846
        %v1006 = vpack.c.b16 %v850, %v847
        %v1007 = vpack.c.b16 %v854, %v851
        %v1008 = vpack.c.b16 %v855, %v852
        %v1009 = vpack.c.b16 %v856, %v853
        %v1010 = vpack.c.b16 %v860, %v857
        %v1011 = vpack.c.b16 %v861, %v858
        %v1012 = vpack.c.b16 %v862, %v859
        %v1013 = vpack.c.b16 %v866, %v863
        %v1014 = vpack.c.b16 %v867, %v864
        %v1015 = vpack.c.b16 %v868, %v865
        %v1016 = vpack.c.b16 %v872, %v869
        %v1017 = vpack.c.b16 %v873, %v870
        %v1018 = vpack.c.b16 %v874, %v871
        %v1019 = vpack.c.b16 %v878, %v875
        %v1020 = vpack.c.b16 %v879, %v876
        %v1021 = vpack.c.b16 %v880, %v877
        %v1022 = vpack.c.b16 %v884, %v881
        %v1023 = vpack.c.b16 %v885, %v882
        %v1024 = vpack.c.b16 %v886, %v883
        %v1025 = vpack.c.b16 %v890, %v887
        %v1026 = vpack.c.b16 %v891, %v888
        %v1027 = vpack.c.b16 %v892, %v889
        %v1028 = vpack.c.b16 %v896, %v893
        %v1029 = vpack.c.b16 %v897, %v894
        %v1030 = vpack.c.b16 %v898, %v895
        %v1031 = vpack.c.b16 %v902, %v899
        %v1032 = vpack.c.b16 %v903, %v900
        %v1033 = vpack.c.b16 %v904, %v901
        %v1034 = vpack.c.b16 %v908, %v905
        %v1035 = vpack.c.b16 %v909, %v906
        %v1036 = vpack.c.b16 %v910, %v907
        %v1037 = vpack.c.b16 %v914, %v911
        %v1038 = vpack.c.b16 %v915, %v912
        %v1039 = vpack.c.b16 %v916, %v913
        %v1040 = vpack.c.b16 %v920, %v917
        %v1041 = vpack.c.b16 %v921, %v918
        %v1042 = vpack.c.b16 %v922, %v919
        %v1043 = vpack.c.b16 %v926, %v923
        %v1044 = vpack.c.b16 %v927, %v924
        %v1045 = vpack.c.b16 %v928, %v925
        %v1046 = vpack.c.b16 %v932, %v929
        %v1047 = vpack.c.b16 %v933, %v930
        %v1048 = vpack.c.b16 %v934, %v931
        %v1049 = vpack.c.b16 %v938, %v935
        %v1050 = vpack.c.b16 %v939, %v936
        %v1051 = vpack.c.b16 %v940, %v937
        %v1052 = vpack.c.b16 %v944, %v941
        %v1053 = vpack.c.b16 %v945, %v942
        %v1054 = vpack.c.b16 %v946, %v943
        %v1055 = vpack.c.b16 %v950, %v947
        %v1056 = vpack.c.b16 %v951, %v948
        %v1057 = vpack.c.b16 %v952, %v949
        %v1058 = vpack.c.b16 %v956, %v953
        %v1059 = vpack.c.b16 %v957, %v954
        %v1060 = vpack.c.b16 %v958, %v955
        %v1061 = vpack.c.b16 %v962, %v959
        %v1062 = vpack.c.b16 %v963, %v960
        %v1063 = vpack.c.b16 %v964, %v961
        %v1064 = vpack.c.b16 %v968, %v965
        %v1065 = vpack.c.b16 %v969, %v966
        %v1066 = vpack.c.b16 %v970, %v967
        %1163 = vmatprep.subr.bf16.mxu0 %v972
        %1164 = vmatpush1.bf16.msra.mxu0 %v971
        %1165 = vmatprep.subr.bf16.mxu0 %v975
        %1166 = vmatpush1.bf16.msra.mxu0 %v974
        %1167 = vmatprep.subr.bf16.mxu0 %v978
        %1168 = vmatpush1.bf16.msra.mxu0 %v977
        %1169 = vmatprep.subr.bf16.mxu0 %v981
        %1170 = vmatpush1.bf16.msra.mxu0 %v980
        %1171 = vmatprep.subr.bf16.mxu0 %v984
        %1172 = vmatpush1.bf16.msra.mxu0 %v983
        %1173 = vmatprep.subr.bf16.mxu0 %v987
        %1174 = vmatpush1.bf16.msra.mxu0 %v986
        %1175 = vmatprep.subr.bf16.mxu0 %v990
        %1176 = vmatpush1.bf16.msra.mxu0 %v989
        %1177 = vmatprep.subr.bf16.mxu0 %v993
        %1178 = vmatpush1.bf16.msra.mxu0 %v992
        %1179 = vmatprep.subr.bf16.mxu0 %v996
        %1180 = vmatpush1.bf16.msra.mxu0 %v995
        %1181 = vmatprep.subr.bf16.mxu0 %v999
        %1182 = vmatpush1.bf16.msra.mxu0 %v998
        %1183 = vmatprep.subr.bf16.mxu0 %v1002
        %1184 = vmatpush1.bf16.msra.mxu0 %v1001
        %1185 = vmatprep.subr.bf16.mxu0 %v1005
        %1186 = vmatpush1.bf16.msra.mxu0 %v1004
        %1187 = vmatprep.subr.bf16.mxu0 %v1008
        %1188 = vmatpush1.bf16.msra.mxu0 %v1007
        %1189 = vmatprep.subr.bf16.mxu0 %v1011
        %1190 = vmatpush1.bf16.msra.mxu0 %v1010
        %1191 = vmatprep.subr.bf16.mxu0 %v1014
        %1192 = vmatpush1.bf16.msra.mxu0 %v1013
        %1193 = vmatprep.subr.bf16.mxu0 %v1017
        %1194 = vmatpush1.bf16.msra.mxu0 %v1016
        %1195 = vmatprep.mubr.bf16.mxu0 %v644
        %1196 = vmatmul.mubr.bf16.gmra.mrb[0].mxu0 %v637
        %v1197 = vpop.f32.mrb[0].mxu0
        %v1198 = vadd.f32 %v610, %v1197
        %v1199 = vpop.f32.mrb[0].mxu0
        %v1200 = vadd.f32 %v614, %v1199
        %v1201 = vpop.f32.mrb[0].mxu0
        %v1202 = vpop.f32.mrb[0].mxu0
        %1203 = vdwg.mxu0
        %1204 = vmatprep.subr.bf16.mxu0 %v1020
        %1205 = vmatpush1.bf16.msra.mxu0 %v1019
        %1206 = vmatprep.subr.bf16.mxu0 %v1023
        %1207 = vmatpush1.bf16.msra.mxu0 %v1022
        %1208 = vmatprep.subr.bf16.mxu0 %v1026
        %1209 = vmatpush1.bf16.msra.mxu0 %v1025
        %1210 = vmatprep.subr.bf16.mxu0 %v1029
        %1211 = vmatpush1.bf16.msra.mxu0 %v1028
        %1212 = vmatprep.subr.bf16.mxu0 %v1032
        %1213 = vmatpush1.bf16.msra.mxu0 %v1031
        %1214 = vmatprep.subr.bf16.mxu0 %v1035
        %1215 = vmatpush1.bf16.msra.mxu0 %v1034
        %1216 = vmatprep.subr.bf16.mxu0 %v1038
        %1217 = vmatpush1.bf16.msra.mxu0 %v1037
        %1218 = vmatprep.subr.bf16.mxu0 %v1041
        %1219 = vmatpush1.bf16.msra.mxu0 %v1040
        %1220 = vmatprep.subr.bf16.mxu0 %v1044
        %1221 = vmatpush1.bf16.msra.mxu0 %v1043
        %1222 = vmatprep.subr.bf16.mxu0 %v1047
        %1223 = vmatpush1.bf16.msra.mxu0 %v1046
        %1224 = vmatprep.subr.bf16.mxu0 %v1050
        %1225 = vmatpush1.bf16.msra.mxu0 %v1049
        %1226 = vmatprep.subr.bf16.mxu0 %v1053
        %1227 = vmatpush1.bf16.msra.mxu0 %v1052
        %1228 = vmatprep.subr.bf16.mxu0 %v1056
        %1229 = vmatpush1.bf16.msra.mxu0 %v1055
        %1230 = vmatprep.subr.bf16.mxu0 %v1059
        %1231 = vmatpush1.bf16.msra.mxu0 %v1058
        %1232 = vmatprep.subr.bf16.mxu0 %v1062
        %1233 = vmatpush1.bf16.msra.mxu0 %v1061
        %1234 = vmatprep.subr.bf16.mxu0 %v1065
        %1235 = vmatpush1.bf16.msra.mxu0 %v1064
        %1236 = vmatprep.mubr.bf16.mxu0 %v646
        %1237 = vmatmul.mubr.bf16.gmra.mrb[0].mxu0 %v645
        %v1238 = vpop.f32.mrb[0].mxu0
        %v1239 = vadd.f32 %v1198, %v1238
        %v1240 = vpop.f32.mrb[0].mxu0
        %v1241 = vadd.f32 %v1200, %v1240
        %v1242 = vpop.f32.mrb[0].mxu0
        %v1243 = vpop.f32.mrb[0].mxu0
        %1244 = vdwg.mxu0
        %1245 = vmatprep.subr.bf16.mxu0 0
        %1246 = vmatpush1.bf16.msra.mxu0 %v973
        %1247 = vmatprep.subr.bf16.mxu0 0
        %1248 = vmatpush1.bf16.msra.mxu0 %v976
        %1249 = vmatprep.subr.bf16.mxu0 0
        %1250 = vmatpush1.bf16.msra.mxu0 %v979
        %1251 = vmatprep.subr.bf16.mxu0 0
        %1252 = vmatpush1.bf16.msra.mxu0 %v982
        %1253 = vmatprep.subr.bf16.mxu0 0
        %1254 = vmatpush1.bf16.msra.mxu0 %v985
        %1255 = vmatprep.subr.bf16.mxu0 0
        %1256 = vmatpush1.bf16.msra.mxu0 %v988
        %1257 = vmatprep.subr.bf16.mxu0 0
        %1258 = vmatpush1.bf16.msra.mxu0 %v991
        %1259 = vmatprep.subr.bf16.mxu0 0
        %1260 = vmatpush1.bf16.msra.mxu0 %v994
        %1261 = vmatprep.subr.bf16.mxu0 0
        %1262 = vmatpush1.bf16.msra.mxu0 %v997
        %1263 = vmatprep.subr.bf16.mxu0 0
        %1264 = vmatpush1.bf16.msra.mxu0 %v1000
        %1265 = vmatprep.subr.bf16.mxu0 0
        %1266 = vmatpush1.bf16.msra.mxu0 %v1003
        %1267 = vmatprep.subr.bf16.mxu0 0
        %1268 = vmatpush1.bf16.msra.mxu0 %v1006
        %1269 = vmatprep.subr.bf16.mxu0 0
        %1270 = vmatpush1.bf16.msra.mxu0 %v1009
        %1271 = vmatprep.subr.bf16.mxu0 0
        %1272 = vmatpush1.bf16.msra.mxu0 %v1012
        %1273 = vmatprep.subr.bf16.mxu0 0
        %1274 = vmatpush1.bf16.msra.mxu0 %v1015
        %1275 = vmatprep.subr.bf16.mxu0 0
        %1276 = vmatpush1.bf16.msra.mxu0 %v1018
        %1277 = vmatprep.mubr.bf16.mxu0 %v644
        %1278 = vmatmul.mubr.bf16.gmra.mrb[0].mxu0 %v637
        %v1279 = vpop.f32.mrb[0].mxu0
        %v1280 = vadd.f32 %v618, %v1279
        %v1281 = vpop.f32.mrb[0].mxu0
        %v1282 = vpop.f32.mrb[0].mxu0
        %v1283 = vpop.f32.mrb[0].mxu0
        %1284 = vdwg.mxu0
        %1285 = vmatprep.subr.bf16.mxu0 0
        %1286 = vmatpush1.bf16.msra.mxu0 %v1021
        %1287 = vmatprep.subr.bf16.mxu0 0
        %1288 = vmatpush1.bf16.msra.mxu0 %v1024
        %1289 = vmatprep.subr.bf16.mxu0 0
        %1290 = vmatpush1.bf16.msra.mxu0 %v1027
        %1291 = vmatprep.subr.bf16.mxu0 0
        %1292 = vmatpush1.bf16.msra.mxu0 %v1030
        %1293 = vmatprep.subr.bf16.mxu0 0
        %1294 = vmatpush1.bf16.msra.mxu0 %v1033
        %1295 = vmatprep.subr.bf16.mxu0 0
        %1296 = vmatpush1.bf16.msra.mxu0 %v1036
        %1297 = vmatprep.subr.bf16.mxu0 0
        %1298 = vmatpush1.bf16.msra.mxu0 %v1039
        %1299 = vmatprep.subr.bf16.mxu0 0
        %1300 = vmatpush1.bf16.msra.mxu0 %v1042
        %1301 = vmatprep.subr.bf16.mxu0 0
        %1302 = vmatpush1.bf16.msra.mxu0 %v1045
        %1303 = vmatprep.subr.bf16.mxu0 0
        %1304 = vmatpush1.bf16.msra.mxu0 %v1048
        %1305 = vmatprep.subr.bf16.mxu0 0
        %1306 = vmatpush1.bf16.msra.mxu0 %v1051
        %1307 = vmatprep.subr.bf16.mxu0 0
        %1308 = vmatpush1.bf16.msra.mxu0 %v1054
        %1309 = vmatprep.subr.bf16.mxu0 0
        %1310 = vmatpush1.bf16.msra.mxu0 %v1057
        %1311 = vmatprep.subr.bf16.mxu0 0
        %1312 = vmatpush1.bf16.msra.mxu0 %v1060
        %1313 = vmatprep.subr.bf16.mxu0 0
        %1314 = vmatpush1.bf16.msra.mxu0 %v1063
        %1315 = vmatprep.subr.bf16.mxu0 0
        %1316 = vmatpush1.bf16.msra.mxu0 %v1066
        %1317 = vmatprep.mubr.bf16.mxu0 %v646
        %1318 = vmatmul.mubr.bf16.gmra.mrb[0].mxu0 %v645
        %v1319 = vpop.f32.mrb[0].mxu0
        %v1320 = vadd.f32 %v1280, %v1319
        %v1321 = vpop.f32.mrb[0].mxu0
        %v1322 = vpop.f32.mrb[0].mxu0
        %v1323 = vpop.f32.mrb[0].mxu0
        %1324 = vdwg.mxu0
        %v1328 = vcombine.low %v1239, %v1241
        %v1330 = vunpack.c.l.s4 1983009808
        %v1331 = vunpack.c.0.s8 %v1330
        %v1332 = vlaneseq
        %v1333 = vshrl.u32 %v1332, 7
        %v1334 = vsub.s32 %v1331, %v1333
        %v1335 = vrot.slane %v1328, %v1334
        %v1337 = vunpack.c.l.s4 1983009808
        %v1338 = vunpack.c.0.s8 %v1337
        %v1339 = vlaneseq
        %v1340 = vshrl.u32 %v1339, 7
        %v1341 = vsub.s32 %v1338, %v1340
        %v1342 = vrot.slane %v1320, %v1341
        %v1343 = vcombine.low %v1335, %v1342
        %1345 = vst [vmem:[%s473] sm:$0x3f] %v1343
        %s1346 = smul.u32 3, %s14
        %p1347 = scmp.lt.s32.totalorder %s1346, 5
        %s1348 = scalar_select %p1347, %s1346, 5
        %s1349 = smul.addr %s1348, 2
        %s1350 = scalar_lea.vmem %s3, %s1349
        // Predicated region
        $region59: #{feature_aligned_diffusion_forward.3} parent=53 // pred_check
          %p1351 = pneg %p105
        $region60: #{feature_aligned_diffusion_forward.3} parent=53 // pred_check_branch
          %1353 = sbr.rel (%p1351) target = $region62
        $region61: #{feature_aligned_diffusion_forward.3} parent=53 // pred_region
          %s1354 = smul.u32 3, %s14
        $region62: #{feature_aligned_diffusion_forward.3} parent=53 // pred_fallthru
          _
      $region54: #{feature_aligned_diffusion_forward.3} parent=5 // pred_fallthru
        _
      %p1355 = scmp.le.s32.totalorder 2, %s9
      // Predicated region
      $region63: #{feature_aligned_diffusion_forward.3} parent=5 // pred_check
        %p1356 = pneg %p1355
      $region64: #{feature_aligned_diffusion_forward.3} parent=5 // pred_check_branch
        %1358 = sbr.rel (%p1356) target = $region66
      $region65: #{feature_aligned_diffusion_forward.3} parent=5 // pred_region
        %s1359 = ssub.s32 %s9, 2
        // Predicated region
        $region67: #{feature_aligned_diffusion_forward.3} parent=65 // pred_check
          %p1360 = pneg %p111
        $region68: #{feature_aligned_diffusion_forward.3} parent=65 // pred_check_branch
          %1362 = sbr.rel (%p1360) target = $region70
        $region69: #{feature_aligned_diffusion_forward.3} parent=65 // pred_region
          %s1363 = smul.u32 3, %s15
          %p1364 = scmp.lt.s32.totalorder %s1363, 5
          %s1365 = scalar_select %p1364, %s1363, 5
          %s1366 = smul.addr %s1365, 2
          %s1367 = scalar_lea.vmem %s3, %s1366
        $region70: #{feature_aligned_diffusion_forward.3} parent=65 // pred_fallthru
          _
      $region66: #{feature_aligned_diffusion_forward.3} parent=5 // pred_fallthru
        _
    $region6: #{feature_aligned_diffusion_forward.3} parent=1 // loop_footer
      %s13 = sadd.s32 1, %s9
    $region7: #{feature_aligned_diffusion_forward.3} parent=1 // loop_footer_branch
      %8 = sbr.rel target = $region3
    $region8: #{feature_aligned_diffusion_forward.3} parent=1 // loop_exit
      _

// kernel: feature_aligned_diffusion_forward.4
$region0: #{feature_aligned_diffusion_forward.4}
  #allocation0 [shape = 'u32[]', space=smem, size = 0x4, offset = 0x4, fixed_abs, tag = 'smem constant byte address 0x4 - core index']
  #allocation1 [shape = 'u32[144,128]{1,0:T(1,128)}', space=vmem, size = 0x12000, scoped, tag = 'internal scratch']
  %s0 = inlined_call_operand.vmem [shape: bf16[2,2048], index: 0, kind: input, shape index: {}]
  %s1 = inlined_call_operand.hbm [shape: bf16[2048,1280], index: 1, kind: input, shape index: {}]
  %s2 = inlined_call_operand.vmem [shape: f32[1,1280], index: 2, kind: input, shape index: {}]
  %s3 = inlined_call_operand.vmem [shape: f32[2,1280], index: 3, kind: input, shape index: {}]
  %s4 = inlined_call_operand.vmem [shape: f32[2,2,1], index: 4, kind: output, shape index: {0}]
  %s5 = inlined_call_operand.vmem [shape: f32[2,2,1], index: 5, kind: output, shape index: {1}]
  %s6 = inlined_call_operand.vmem [shape: f32[2,2,1], index: 6, kind: output, shape index: {2}]
  %7 = xla_tuple %s4, %s5, %s6
  %s8 = sld [smem:[#allocation0]]
  $region69: #{feature_aligned_diffusion_forward.4} parent=0
    _
  %s10 = ssub.s32 1, %s8
  %s11 = scalar_select 0, %s10, %s8
  $region1: #{feature_aligned_diffusion_forward.4} parent=0
    #allocation2 [shape = 'u8[5242880]{0}', space=vmem, size = 0x500000, scoped, tag = 'input window, operand 1']
    #allocation3 [shape = 's32[2]{0}', space=sflag, size = 0x8, scoped, tag = 'scoped memory for feature_aligned_diffusion_forward.4']
    %12 = vsyncpa [#allocation3], 0
    %s13 = scalar_lea.sflag [#allocation3], 1
    %14 = vsyncpa %s13, 0
    loop: start=0, step=1, limit=4
    $region2: #{feature_aligned_diffusion_forward.4} parent=1 // loop_pre_header
      _
    $region3: #{feature_aligned_diffusion_forward.4} parent=1 // loop_header
      %s16 = sphi 0, %s20
      %p17 = scmp.ge.s32.totalorder %s16, 4
      %s24 = sphi 0, %s24
      %s26 = sphi 0, %s24
      %s27 = sphi 0, %s26
      %s41 = sphi 0, %s27
      %s47 = sphi 0, %s49
      %s50 = sphi 0, %s47
      %s51 = sphi 0, %s50
      %s67 = sphi 0, %s51
      %s73 = sphi 0, %s75
      %s76 = sphi 0, %s73
      %s77 = sphi 0, %s76
      %s93 = sphi 0, %s77
      %s99 = sphi 0, %s101
      %s102 = sphi 0, %s99
      %s103 = sphi 0, %s102
      %s119 = sphi 0, %s103
      %s125 = sphi 0, %s127
      %s128 = sphi 0, %s125
      %s129 = sphi 0, %s128
      %s145 = sphi 0, %s129
      %s151 = sphi 0, %s153
      %s154 = sphi 0, %s151
      %s155 = sphi 0, %s154
      %s171 = sphi 0, %s155
      %s177 = sphi 0, %s179
      %s180 = sphi 0, %s177
      %s181 = sphi 0, %s180
      %s197 = sphi 0, %s181
    $region4: #{feature_aligned_diffusion_forward.4} parent=1 // loop_header_branch
      %19 = sbr.rel (%p17) target = $region8
    $region5: #{feature_aligned_diffusion_forward.4} parent=1 // loop_body
      %s21 = ssub.s32 %s16, 1
      %s22 = ssub.s32 %s16, 2
      %s23 = sadd.s32 %s16, 1
      %s25 = sadd.s32 %s24, 1
      %p28 = scmp.eq.s32.totalorder %s16, 1
      %p29 = scmp.ne.s32.totalorder %s24, %s26
      %p30 = scmp.eq.s32.totalorder %s16, 0
      %p31 = por %p29, %p30
      %p32 = scmp.ne.s32.totalorder %s24, %s26
      %p33 = scmp.eq.s32.totalorder %s21, 1
      %p34 = por %p32, %p33
      %p35 = scmp.ne.s32.totalorder %s26, %s27
      %p36 = scmp.eq.s32.totalorder %s21, 0
      %p37 = por %p35, %p36
      %p38 = scmp.ne.s32.totalorder %s26, %s27
      %p39 = scmp.eq.s32.totalorder %s22, 1
      %p40 = por %p38, %p39
      %p42 = scmp.ne.s32.totalorder %s27, %s41
      %p43 = scmp.eq.s32.totalorder %s22, 0
      %p44 = por %p42, %p43
      %s45 = ssub.s32 %s16, %s23
      %p46 = scmp.eq.s32.totalorder %s45, 0
      %s48 = sadd.s32 %s47, 1
      %s49 = scalar_select %p46, %s47, %s48
      %p52 = pneg %p46
      %p53 = scmp.eq.s32.totalorder %s16, 1
      %p54 = por %p52, %p53
      %p55 = scmp.ne.s32.totalorder %s47, %s50
      %p56 = scmp.eq.s32.totalorder %s16, 0
      %p57 = por %p55, %p56
      %p58 = scmp.ne.s32.totalorder %s47, %s50
      %p59 = scmp.eq.s32.totalorder %s21, 1
      %p60 = por %p58, %p59
      %p61 = scmp.ne.s32.totalorder %s50, %s51
      %p62 = scmp.eq.s32.totalorder %s21, 0
      %p63 = por %p61, %p62
      %p64 = scmp.ne.s32.totalorder %s50, %s51
      %p65 = scmp.eq.s32.totalorder %s22, 1
      %p66 = por %p64, %p65
      %p68 = scmp.ne.s32.totalorder %s51, %s67
      %p69 = scmp.eq.s32.totalorder %s22, 0
      %p70 = por %p68, %p69
      %s71 = ssub.s32 %s16, %s23
      %p72 = scmp.eq.s32.totalorder %s71, 0
      %s74 = sadd.s32 %s73, 1
      %s75 = scalar_select %p72, %s73, %s74
      %p78 = pneg %p72
      %p79 = scmp.eq.s32.totalorder %s16, 1
      %p80 = por %p78, %p79
      %p81 = scmp.ne.s32.totalorder %s73, %s76
      %p82 = scmp.eq.s32.totalorder %s16, 0
      %p83 = por %p81, %p82
      %p84 = scmp.ne.s32.totalorder %s73, %s76
      %p85 = scmp.eq.s32.totalorder %s21, 1
      %p86 = por %p84, %p85
      %p87 = scmp.ne.s32.totalorder %s76, %s77
      %p88 = scmp.eq.s32.totalorder %s21, 0
      %p89 = por %p87, %p88
      %p90 = scmp.ne.s32.totalorder %s76, %s77
      %p91 = scmp.eq.s32.totalorder %s22, 1
      %p92 = por %p90, %p91
      %p94 = scmp.ne.s32.totalorder %s77, %s93
      %p95 = scmp.eq.s32.totalorder %s22, 0
      %p96 = por %p94, %p95
      %s97 = ssub.s32 %s16, %s23
      %p98 = scmp.eq.s32.totalorder %s97, 0
      %s100 = sadd.s32 %s99, 1
      %s101 = scalar_select %p98, %s99, %s100
      %p104 = pneg %p98
      %p105 = scmp.eq.s32.totalorder %s16, 1
      %p106 = por %p104, %p105
      %p107 = scmp.ne.s32.totalorder %s99, %s102
      %p108 = scmp.eq.s32.totalorder %s16, 0
      %p109 = por %p107, %p108
      %p110 = scmp.ne.s32.totalorder %s99, %s102
      %p111 = scmp.eq.s32.totalorder %s21, 1
      %p112 = por %p110, %p111
      %p113 = scmp.ne.s32.totalorder %s102, %s103
      %p114 = scmp.eq.s32.totalorder %s21, 0
      %p115 = por %p113, %p114
      %p116 = scmp.ne.s32.totalorder %s102, %s103
      %p117 = scmp.eq.s32.totalorder %s22, 1
      %p118 = por %p116, %p117
      %p120 = scmp.ne.s32.totalorder %s103, %s119
      %p121 = scmp.eq.s32.totalorder %s22, 0
      %p122 = por %p120, %p121
      %s123 = ssub.s32 %s16, %s23
      %p124 = scmp.eq.s32.totalorder %s123, 0
      %s126 = sadd.s32 %s125, 1
      %s127 = scalar_select %p124, %s125, %s126
      %p130 = pneg %p124
      %p131 = scmp.eq.s32.totalorder %s16, 1
      %p132 = por %p130, %p131
      %p133 = scmp.ne.s32.totalorder %s125, %s128
      %p134 = scmp.eq.s32.totalorder %s16, 0
      %p135 = por %p133, %p134
      %p136 = scmp.ne.s32.totalorder %s125, %s128
      %p137 = scmp.eq.s32.totalorder %s21, 1
      %p138 = por %p136, %p137
      %p139 = scmp.ne.s32.totalorder %s128, %s129
      %p140 = scmp.eq.s32.totalorder %s21, 0
      %p141 = por %p139, %p140
      %p142 = scmp.ne.s32.totalorder %s128, %s129
      %p143 = scmp.eq.s32.totalorder %s22, 1
      %p144 = por %p142, %p143
      %p146 = scmp.ne.s32.totalorder %s129, %s145
      %p147 = scmp.eq.s32.totalorder %s22, 0
      %p148 = por %p146, %p147
      %s149 = ssub.s32 %s16, %s23
      %p150 = scmp.eq.s32.totalorder %s149, 0
      %s152 = sadd.s32 %s151, 1
      %s153 = scalar_select %p150, %s151, %s152
      %p156 = pneg %p150
      %p157 = scmp.eq.s32.totalorder %s16, 1
      %p158 = por %p156, %p157
      %p159 = scmp.ne.s32.totalorder %s151, %s154
      %p160 = scmp.eq.s32.totalorder %s16, 0
      %p161 = por %p159, %p160
      %p162 = scmp.ne.s32.totalorder %s151, %s154
      %p163 = scmp.eq.s32.totalorder %s21, 1
      %p164 = por %p162, %p163
      %p165 = scmp.ne.s32.totalorder %s154, %s155
      %p166 = scmp.eq.s32.totalorder %s21, 0
      %p167 = por %p165, %p166
      %p168 = scmp.ne.s32.totalorder %s154, %s155
      %p169 = scmp.eq.s32.totalorder %s22, 1
      %p170 = por %p168, %p169
      %p172 = scmp.ne.s32.totalorder %s155, %s171
      %p173 = scmp.eq.s32.totalorder %s22, 0
      %p174 = por %p172, %p173
      %s175 = ssub.s32 %s16, %s23
      %p176 = scmp.eq.s32.totalorder %s175, 0
      %s178 = sadd.s32 %s177, 1
      %s179 = scalar_select %p176, %s177, %s178
      %p182 = pneg %p176
      %p183 = scmp.eq.s32.totalorder %s16, 1
      %p184 = por %p182, %p183
      %p185 = scmp.ne.s32.totalorder %s177, %s180
      %p186 = scmp.eq.s32.totalorder %s16, 0
      %p187 = por %p185, %p186
      %p188 = scmp.ne.s32.totalorder %s177, %s180
      %p189 = scmp.eq.s32.totalorder %s21, 1
      %p190 = por %p188, %p189
      %p191 = scmp.ne.s32.totalorder %s180, %s181
      %p192 = scmp.eq.s32.totalorder %s21, 0
      %p193 = por %p191, %p192
      %p194 = scmp.ne.s32.totalorder %s180, %s181
      %p195 = scmp.eq.s32.totalorder %s22, 1
      %p196 = por %p194, %p195
      %p198 = scmp.ne.s32.totalorder %s181, %s197
      %p199 = scmp.eq.s32.totalorder %s22, 0
      %p200 = por %p198, %p199
      %p201 = scmp.le.s32.totalorder 1, %s16
      %p202 = scmp.lt.s32.totalorder %s16, 3
      %p203 = pnand %p201, %p202
      %p204 = pneg %p203
      // Predicated region
      $region9: #{feature_aligned_diffusion_forward.4} parent=5 // pred_check
        _
      $region10: #{feature_aligned_diffusion_forward.4} parent=5 // pred_check_branch
        %206 = sbr.rel (%p203) target = $region12
      $region11: #{feature_aligned_diffusion_forward.4} parent=5 // pred_region
        %s207 = ssub.s32 %s16, 1
        // Predicated region
        $region13: #{feature_aligned_diffusion_forward.4} parent=11 // pred_check
          %p208 = pneg %p37
        $region14: #{feature_aligned_diffusion_forward.4} parent=11 // pred_check_branch
          %210 = sbr.rel (%p208) target = $region16
        $region15: #{feature_aligned_diffusion_forward.4} parent=11 // pred_region
          _
        $region16: #{feature_aligned_diffusion_forward.4} parent=11 // pred_fallthru
          _
      $region12: #{feature_aligned_diffusion_forward.4} parent=5 // pred_fallthru
        _
      %p211 = scmp.lt.s32.totalorder %s16, 2
      // Predicated region
      $region17: #{feature_aligned_diffusion_forward.4} parent=5 // pred_check
        %p212 = pneg %p211
      $region18: #{feature_aligned_diffusion_forward.4} parent=5 // pred_check_branch
        %214 = sbr.rel (%p212) target = $region20
      $region19: #{feature_aligned_diffusion_forward.4} parent=5 // pred_region
        // Predicated region
        $region21: #{feature_aligned_diffusion_forward.4} parent=19 // pred_check
          %p215 = pneg %p57
        $region22: #{feature_aligned_diffusion_forward.4} parent=19 // pred_check_branch
          %217 = sbr.rel (%p215) target = $region24
        $region23: #{feature_aligned_diffusion_forward.4} parent=19 // pred_region
          %s218 = sand.u32 %s47, 1
          %s219 = scalar_lea.sflag [#allocation3], %s218
          %s220 = sand.u32 %s47, 1
          %s221 = smul.addr %s220, 5120
          %s222 = scalar_lea.vmem [#allocation2], %s221
          %s223 = smul.u32 5, %s16
          %s225 = ssub.s32 81920, 81920
          %226 = vsyncadd %s219, %s225
          %s227 = smul.addr %s223, 64
          %s228 = scalar_lea.hbm %s1, %s227
          %s229 = sshll.u32 %s222, 4
          %s230 = int_to_ptr.vmem [resolvable:$true] %s229
          %235 = dma.hbm_to_vmem [thread:$0]  %s228, 81920, %s230, %s219, 640, 320, 20
        $region24: #{feature_aligned_diffusion_forward.4} parent=19 // pred_fallthru
          _
        // Predicated region
        $region25: #{feature_aligned_diffusion_forward.4} parent=19 // pred_check
          %p236 = pneg %p83
        $region26: #{feature_aligned_diffusion_forward.4} parent=19 // pred_check_branch
          %238 = sbr.rel (%p236) target = $region28
        $region27: #{feature_aligned_diffusion_forward.4} parent=19 // pred_region
          %s239 = smul.u32 5, %s16
          %p240 = scmp.lt.s32.totalorder %s239, 9
          %s241 = scalar_select %p240, %s239, 9
          %s242 = scalar_lea.vmem %s2, %s241
          %s243 = smul.u32 5, %s16
        $region28: #{feature_aligned_diffusion_forward.4} parent=19 // pred_fallthru
          _
        // Predicated region
        $region29: #{feature_aligned_diffusion_forward.4} parent=19 // pred_check
          %p244 = pneg %p109
        $region30: #{feature_aligned_diffusion_forward.4} parent=19 // pred_check_branch
          %246 = sbr.rel (%p244) target = $region32
        $region31: #{feature_aligned_diffusion_forward.4} parent=19 // pred_region
          %s247 = smul.u32 5, %s16
          %p248 = scmp.lt.s32.totalorder %s247, 9
          %s249 = scalar_select %p248, %s247, 9
          %s250 = smul.addr %s249, 2
          %s251 = scalar_lea.vmem %s3, %s250
          %s252 = smul.u32 5, %s16
        $region32: #{feature_aligned_diffusion_forward.4} parent=19 // pred_fallthru
          _
      $region20: #{feature_aligned_diffusion_forward.4} parent=5 // pred_fallthru
        _
      %p253 = scmp.le.s32.totalorder 1, %s16
      %p254 = scmp.lt.s32.totalorder %s16, 3
      %p255 = pnand %p253, %p254
      %p256 = pneg %p255
      // Predicated region
      $region33: #{feature_aligned_diffusion_forward.4} parent=5 // pred_check
        _
      $region34: #{feature_aligned_diffusion_forward.4} parent=5 // pred_check_branch
        %258 = sbr.rel (%p255) target = $region36
      $region35: #{feature_aligned_diffusion_forward.4} parent=5 // pred_region
        %s259 = ssub.s32 %s16, 1
        %s260 = sand.u32 %s50, 1
        %s261 = scalar_lea.sflag [#allocation3], %s260
        %s262 = sand.u32 %s50, 1
        %s263 = smul.addr %s262, 5120
        %s264 = scalar_lea.vmem [#allocation2], %s263
        // Predicated region
        $region37: #{feature_aligned_diffusion_forward.4} parent=35 // pred_check
          %p265 = pneg %p63
        $region38: #{feature_aligned_diffusion_forward.4} parent=35 // pred_check_branch
          %267 = sbr.rel (%p265) target = $region40
        $region39: #{feature_aligned_diffusion_forward.4} parent=35 // pred_region
          %268 = dma.done %s261, 81920
        $region40: #{feature_aligned_diffusion_forward.4} parent=35 // pred_fallthru
          _
        %p269 = pneg %p37
        %p270 = pneg %p34
        %s271 = sand.u32 %s50, 1
        %s272 = scalar_lea.sflag [#allocation3], %s271
        %s273 = sand.u32 %s50, 1
        %s274 = smul.addr %s273, 5120
        %s275 = scalar_lea.vmem [#allocation2], %s274
        %p276 = pneg %p63
        %p277 = pneg %p60
        %s278 = smul.u32 5, %s21
        %p279 = scmp.lt.s32.totalorder %s278, 9
        %s280 = scalar_select %p279, %s278, 9
        %s281 = scalar_lea.vmem %s2, %s280
        %p282 = pneg %p89
        %p283 = pneg %p86
        %s284 = smul.u32 5, %s21
        %p285 = scmp.lt.s32.totalorder %s284, 9
        %s286 = scalar_select %p285, %s284, 9
        %s287 = smul.addr %s286, 2
        %s288 = scalar_lea.vmem %s3, %s287
        %p289 = pneg %p115
        %p290 = pneg %p112
        %p291 = pneg %p141
        %p292 = pneg %p138
        %p293 = scmp.lt.s32.totalorder %s21, 1
        %s294 = scalar_select %p293, %s21, 1
        %s295 = smul.addr %s294, 2
        %s296 = scalar_lea.vmem %s4, %s295
        %p297 = pneg %p167
        %p298 = pneg %p164
        %p299 = scmp.lt.s32.totalorder %s21, 1
        %s300 = scalar_select %p299, %s21, 1
        %s301 = smul.addr %s300, 2
        %s302 = scalar_lea.vmem %s5, %s301
        %p303 = pneg %p193
        %p304 = pneg %p190
        %p305 = scmp.lt.s32.totalorder %s21, 1
        %s306 = scalar_select %p305, %s21, 1
        %s307 = smul.addr %s306, 2
        %s308 = scalar_lea.vmem %s6, %s307
        %s309 = smul.u32 5, %s21
        %s310 = smul.u32 5, %s21
        %p311 = scmp.lt.s32.totalorder %s310, 9
        %s312 = scalar_select %p311, %s310, 9
        %s313 = scalar_lea.vmem %s2, %s312
        %s314 = smul.u32 5, %s21
        %s315 = smul.u32 5, %s21
        %p316 = scmp.lt.s32.totalorder %s315, 9
        %s317 = scalar_select %p316, %s315, 9
        %s318 = smul.addr %s317, 2
        %s319 = scalar_lea.vmem %s3, %s318
        %s320 = smul.u32 5, %s21
        %p321 = scmp.lt.s32.totalorder %s21, 1
        %s322 = scalar_select %p321, %s21, 1
        %s323 = smul.addr %s322, 2
        %s324 = scalar_lea.vmem %s4, %s323
        %p325 = scmp.lt.s32.totalorder %s21, 1
        %s326 = scalar_select %p325, %s21, 1
        %s327 = smul.addr %s326, 2
        %s328 = scalar_lea.vmem %s5, %s327
        %p329 = scmp.lt.s32.totalorder %s21, 1
        %s330 = scalar_select %p329, %s21, 1
        %s331 = smul.addr %s330, 2
        %s332 = scalar_lea.vmem %s6, %s331
        %v334 = vld [vmem:[%s0] sm:$0xff]
        %v335 = vld [vmem:[%s0 + $0x8] sm:$0xff]
        %v336 = vld [vmem:[%s264] sm:$0xff]
        %v337 = vld [vmem:[%s264 + $0x8] sm:$0xff]
        %v338 = vld [vmem:[%s264 + $0x10] sm:$0xf]
        %v339 = vld [vmem:[%s264 + $0x14] sm:$0xff]
        %v340 = vld [vmem:[%s264 + $0x1c] sm:$0xff]
        %v341 = vld [vmem:[%s264 + $0x24] sm:$0xf]
        %v342 = vld [vmem:[%s264 + $0x28] sm:$0xff]
        %v343 = vld [vmem:[%s264 + $0x30] sm:$0xff]
        %v344 = vld [vmem:[%s264 + $0x38] sm:$0xf]
        %v345 = vld [vmem:[%s264 + $0x3c] sm:$0xff]
        %v346 = vld [vmem:[%s264 + $0x44] sm:$0xff]
        %v347 = vld [vmem:[%s264 + $0x4c] sm:$0xf]
        %v348 = vld [vmem:[%s264 + $0x50] sm:$0xff]
        %v349 = vld [vmem:[%s264 + $0x58] sm:$0xff]
        %v350 = vld [vmem:[%s264 + $0x60] sm:$0xf]
        %v351 = vld [vmem:[%s264 + $0x64] sm:$0xff]
        %v352 = vld [vmem:[%s264 + $0x6c] sm:$0xff]
        %v353 = vld [vmem:[%s264 + $0x74] sm:$0xf]
        %v354 = vld [vmem:[%s264 + $0x78] sm:$0xff]
        %v355 = vld [vmem:[%s264 + $0x80] sm:$0xff]
        %v356 = vld [vmem:[%s264 + $0x88] sm:$0xf]
        %v357 = vld [vmem:[%s264 + $0x8c] sm:$0xff]
        %v358 = vld [vmem:[%s264 + $0x94] sm:$0xff]
        %v359 = vld [vmem:[%s264 + $0x9c] sm:$0xf]
        %v360 = vld [vmem:[%s264 + $0xa0] sm:$0xff]
        %v361 = vld [vmem:[%s264 + $0xa8] sm:$0xff]
        %v362 = vld [vmem:[%s264 + $0xb0] sm:$0xf]
        %v363 = vld [vmem:[%s264 + $0xb4] sm:$0xff]
        %v364 = vld [vmem:[%s264 + $0xbc] sm:$0xff]
        %v365 = vld [vmem:[%s264 + $0xc4] sm:$0xf]
        %v366 = vld [vmem:[%s264 + $0xc8] sm:$0xff]
        %v367 = vld [vmem:[%s264 + $0xd0] sm:$0xff]
        %v368 = vld [vmem:[%s264 + $0xd8] sm:$0xf]
        %v369 = vld [vmem:[%s264 + $0xdc] sm:$0xff]
        %v370 = vld [vmem:[%s264 + $0xe4] sm:$0xff]
        %v371 = vld [vmem:[%s264 + $0xec] sm:$0xf]
        %v372 = vld [vmem:[%s264 + $0xf0] sm:$0xff]
        %v373 = vld [vmem:[%s264 + $0xf8] sm:$0xff]
        %v374 = vld [vmem:[%s264 + $0x100] sm:$0xf]
        %v375 = vld [vmem:[%s264 + $0x104] sm:$0xff]
        %v376 = vld [vmem:[%s264 + $0x10c] sm:$0xff]
        %v377 = vld [vmem:[%s264 + $0x114] sm:$0xf]
        %v378 = vld [vmem:[%s264 + $0x118] sm:$0xff]
        %v379 = vld [vmem:[%s264 + $0x120] sm:$0xff]
        %v380 = vld [vmem:[%s264 + $0x128] sm:$0xf]
        %v381 = vld [vmem:[%s264 + $0x12c] sm:$0xff]
        %v382 = vld [vmem:[%s264 + $0x134] sm:$0xff]
        %v383 = vld [vmem:[%s264 + $0x13c] sm:$0xf]
        %v384 = vld [vmem:[%s264 + $0x140] sm:$0xff]
        %v385 = vld [vmem:[%s264 + $0x148] sm:$0xff]
        %v386 = vld [vmem:[%s264 + $0x150] sm:$0xf]
        %v387 = vld [vmem:[%s264 + $0x154] sm:$0xff]
        %v388 = vld [vmem:[%s264 + $0x15c] sm:$0xff]
        %v389 = vld [vmem:[%s264 + $0x164] sm:$0xf]
        %v390 = vld [vmem:[%s264 + $0x168] sm:$0xff]
        %v391 = vld [vmem:[%s264 + $0x170] sm:$0xff]
        %v392 = vld [vmem:[%s264 + $0x178] sm:$0xf]
        %v393 = vld [vmem:[%s264 + $0x17c] sm:$0xff]
        %v394 = vld [vmem:[%s264 + $0x184] sm:$0xff]
        %v395 = vld [vmem:[%s264 + $0x18c] sm:$0xf]
        %v396 = vld [vmem:[%s264 + $0x190] sm:$0xff]
        %v397 = vld [vmem:[%s264 + $0x198] sm:$0xff]
        %v398 = vld [vmem:[%s264 + $0x1a0] sm:$0xf]
        %v399 = vld [vmem:[%s264 + $0x1a4] sm:$0xff]
        %v400 = vld [vmem:[%s264 + $0x1ac] sm:$0xff]
        %v401 = vld [vmem:[%s264 + $0x1b4] sm:$0xf]
        %v402 = vld [vmem:[%s264 + $0x1b8] sm:$0xff]
        %v403 = vld [vmem:[%s264 + $0x1c0] sm:$0xff]
        %v404 = vld [vmem:[%s264 + $0x1c8] sm:$0xf]
        %v405 = vld [vmem:[%s264 + $0x1cc] sm:$0xff]
        %v406 = vld [vmem:[%s264 + $0x1d4] sm:$0xff]
        %v407 = vld [vmem:[%s264 + $0x1dc] sm:$0xf]
        %v408 = vld [vmem:[%s264 + $0x1e0] sm:$0xff]
        %v409 = vld [vmem:[%s264 + $0x1e8] sm:$0xff]
        %v410 = vld [vmem:[%s264 + $0x1f0] sm:$0xf]
        %v411 = vld [vmem:[%s264 + $0x1f4] sm:$0xff]
        %v412 = vld [vmem:[%s264 + $0x1fc] sm:$0xff]
        %v413 = vld [vmem:[%s264 + $0x204] sm:$0xf]
        %v414 = vld [vmem:[%s264 + $0x208] sm:$0xff]
        %v415 = vld [vmem:[%s264 + $0x210] sm:$0xff]
        %v416 = vld [vmem:[%s264 + $0x218] sm:$0xf]
        %v417 = vld [vmem:[%s264 + $0x21c] sm:$0xff]
        %v418 = vld [vmem:[%s264 + $0x224] sm:$0xff]
        %v419 = vld [vmem:[%s264 + $0x22c] sm:$0xf]
        %v420 = vld [vmem:[%s264 + $0x230] sm:$0xff]
        %v421 = vld [vmem:[%s264 + $0x238] sm:$0xff]
        %v422 = vld [vmem:[%s264 + $0x240] sm:$0xf]
        %v423 = vld [vmem:[%s264 + $0x244] sm:$0xff]
        %v424 = vld [vmem:[%s264 + $0x24c] sm:$0xff]
        %v425 = vld [vmem:[%s264 + $0x254] sm:$0xf]
        %v426 = vld [vmem:[%s264 + $0x258] sm:$0xff]
        %v427 = vld [vmem:[%s264 + $0x260] sm:$0xff]
        %v428 = vld [vmem:[%s264 + $0x268] sm:$0xf]
        %v429 = vld [vmem:[%s264 + $0x26c] sm:$0xff]
        %v430 = vld [vmem:[%s264 + $0x274] sm:$0xff]
        %v431 = vld [vmem:[%s264 + $0x27c] sm:$0xf]
        %v432 = vld [vmem:[%s264 + $0x280] sm:$0xff]
        %v433 = vld [vmem:[%s264 + $0x288] sm:$0xff]
        %v434 = vld [vmem:[%s264 + $0x290] sm:$0xf]
        %v435 = vld [vmem:[%s264 + $0x294] sm:$0xff]
        %v436 = vld [vmem:[%s264 + $0x29c] sm:$0xff]
        %v437 = vld [vmem:[%s264 + $0x2a4] sm:$0xf]
        %v438 = vld [vmem:[%s264 + $0x2a8] sm:$0xff]
        %v439 = vld [vmem:[%s264 + $0x2b0] sm:$0xff]
        %v440 = vld [vmem:[%s264 + $0x2b8] sm:$0xf]
        %v441 = vld [vmem:[%s264 + $0x2bc] sm:$0xff]
        %v442 = vld [vmem:[%s264 + $0x2c4] sm:$0xff]
        %v443 = vld [vmem:[%s264 + $0x2cc] sm:$0xf]
        %v444 = vld [vmem:[%s264 + $0x2d0] sm:$0xff]
        %v445 = vld [vmem:[%s264 + $0x2d8] sm:$0xff]
        %v446 = vld [vmem:[%s264 + $0x2e0] sm:$0xf]
        %v447 = vld [vmem:[%s264 + $0x2e4] sm:$0xff]
        %v448 = vld [vmem:[%s264 + $0x2ec] sm:$0xff]
        %v449 = vld [vmem:[%s264 + $0x2f4] sm:$0xf]
        %v450 = vld [vmem:[%s264 + $0x2f8] sm:$0xff]
        %v451 = vld [vmem:[%s264 + $0x300] sm:$0xff]
        %v452 = vld [vmem:[%s264 + $0x308] sm:$0xf]
        %v453 = vld [vmem:[%s264 + $0x30c] sm:$0xff]
        %v454 = vld [vmem:[%s264 + $0x314] sm:$0xff]
        %v455 = vld [vmem:[%s264 + $0x31c] sm:$0xf]
        %v456 = vld [vmem:[%s264 + $0x320] sm:$0xff]
        %v457 = vld [vmem:[%s264 + $0x328] sm:$0xff]
        %v458 = vld [vmem:[%s264 + $0x330] sm:$0xf]
        %v459 = vld [vmem:[%s264 + $0x334] sm:$0xff]
        %v460 = vld [vmem:[%s264 + $0x33c] sm:$0xff]
        %v461 = vld [vmem:[%s264 + $0x344] sm:$0xf]
        %v462 = vld [vmem:[%s264 + $0x348] sm:$0xff]
        %v463 = vld [vmem:[%s264 + $0x350] sm:$0xff]
        %v464 = vld [vmem:[%s264 + $0x358] sm:$0xf]
        %v465 = vld [vmem:[%s264 + $0x35c] sm:$0xff]
        %v466 = vld [vmem:[%s264 + $0x364] sm:$0xff]
        %v467 = vld [vmem:[%s264 + $0x36c] sm:$0xf]
        %v468 = vld [vmem:[%s264 + $0x370] sm:$0xff]
        %v469 = vld [vmem:[%s264 + $0x378] sm:$0xff]
        %v470 = vld [vmem:[%s264 + $0x380] sm:$0xf]
        %v471 = vld [vmem:[%s264 + $0x384] sm:$0xff]
        %v472 = vld [vmem:[%s264 + $0x38c] sm:$0xff]
        %v473 = vld [vmem:[%s264 + $0x394] sm:$0xf]
        %v474 = vld [vmem:[%s264 + $0x398] sm:$0xff]
        %v475 = vld [vmem:[%s264 + $0x3a0] sm:$0xff]
        %v476 = vld [vmem:[%s264 + $0x3a8] sm:$0xf]
        %v477 = vld [vmem:[%s264 + $0x3ac] sm:$0xff]
        %v478 = vld [vmem:[%s264 + $0x3b4] sm:$0xff]
        %v479 = vld [vmem:[%s264 + $0x3bc] sm:$0xf]
        %v480 = vld [vmem:[%s264 + $0x3c0] sm:$0xff]
        %v481 = vld [vmem:[%s264 + $0x3c8] sm:$0xff]
        %v482 = vld [vmem:[%s264 + $0x3d0] sm:$0xf]
        %v483 = vld [vmem:[%s264 + $0x3d4] sm:$0xff]
        %v484 = vld [vmem:[%s264 + $0x3dc] sm:$0xff]
        %v485 = vld [vmem:[%s264 + $0x3e4] sm:$0xf]
        %v486 = vld [vmem:[%s264 + $0x3e8] sm:$0xff]
        %v487 = vld [vmem:[%s264 + $0x3f0] sm:$0xff]
        %v488 = vld [vmem:[%s264 + $0x3f8] sm:$0xf]
        %v489 = vld [vmem:[%s264 + $0x3fc] sm:$0xff]
        %v490 = vld [vmem:[%s264 + $0x404] sm:$0xff]
        %v491 = vld [vmem:[%s264 + $0x40c] sm:$0xf]
        %v492 = vld [vmem:[%s264 + $0x410] sm:$0xff]
        %v493 = vld [vmem:[%s264 + $0x418] sm:$0xff]
        %v494 = vld [vmem:[%s264 + $0x420] sm:$0xf]
        %v495 = vld [vmem:[%s264 + $0x424] sm:$0xff]
        %v496 = vld [vmem:[%s264 + $0x42c] sm:$0xff]
        %v497 = vld [vmem:[%s264 + $0x434] sm:$0xf]
        %v498 = vld [vmem:[%s264 + $0x438] sm:$0xff]
        %v499 = vld [vmem:[%s264 + $0x440] sm:$0xff]
        %v500 = vld [vmem:[%s264 + $0x448] sm:$0xf]
        %v501 = vld [vmem:[%s264 + $0x44c] sm:$0xff]
        %v502 = vld [vmem:[%s264 + $0x454] sm:$0xff]
        %v503 = vld [vmem:[%s264 + $0x45c] sm:$0xf]
        %v504 = vld [vmem:[%s264 + $0x460] sm:$0xff]
        %v505 = vld [vmem:[%s264 + $0x468] sm:$0xff]
        %v506 = vld [vmem:[%s264 + $0x470] sm:$0xf]
        %v507 = vld [vmem:[%s264 + $0x474] sm:$0xff]
        %v508 = vld [vmem:[%s264 + $0x47c] sm:$0xff]
        %v509 = vld [vmem:[%s264 + $0x484] sm:$0xf]
        %v510 = vld [vmem:[%s264 + $0x488] sm:$0xff]
        %v511 = vld [vmem:[%s264 + $0x490] sm:$0xff]
        %v512 = vld [vmem:[%s264 + $0x498] sm:$0xf]
        %v513 = vld [vmem:[%s264 + $0x49c] sm:$0xff]
        %v514 = vld [vmem:[%s264 + $0x4a4] sm:$0xff]
        %v515 = vld [vmem:[%s264 + $0x4ac] sm:$0xf]
        %v516 = vld [vmem:[%s264 + $0x4b0] sm:$0xff]
        %v517 = vld [vmem:[%s264 + $0x4b8] sm:$0xff]
        %v518 = vld [vmem:[%s264 + $0x4c0] sm:$0xf]
        %v519 = vld [vmem:[%s264 + $0x4c4] sm:$0xff]
        %v520 = vld [vmem:[%s264 + $0x4cc] sm:$0xff]
        %v521 = vld [vmem:[%s264 + $0x4d4] sm:$0xf]
        %v522 = vld [vmem:[%s264 + $0x4d8] sm:$0xff]
        %v523 = vld [vmem:[%s264 + $0x4e0] sm:$0xff]
        %v524 = vld [vmem:[%s264 + $0x4e8] sm:$0xf]
        %v525 = vld [vmem:[%s264 + $0x4ec] sm:$0xff]
        %v526 = vld [vmem:[%s264 + $0x4f4] sm:$0xff]
        %v527 = vld [vmem:[%s264 + $0x4fc] sm:$0xf]
        %v528 = vld [vmem:[%s264 + $0x500] sm:$0xff]
        %v529 = vld [vmem:[%s264 + $0x508] sm:$0xff]
        %v530 = vld [vmem:[%s264 + $0x510] sm:$0xf]
        %v531 = vld [vmem:[%s264 + $0x514] sm:$0xff]
        %v532 = vld [vmem:[%s264 + $0x51c] sm:$0xff]
        %v533 = vld [vmem:[%s264 + $0x524] sm:$0xf]
        %v534 = vld [vmem:[%s264 + $0x528] sm:$0xff]
        %v535 = vld [vmem:[%s264 + $0x530] sm:$0xff]
        %v536 = vld [vmem:[%s264 + $0x538] sm:$0xf]
        %v537 = vld [vmem:[%s264 + $0x53c] sm:$0xff]
        %v538 = vld [vmem:[%s264 + $0x544] sm:$0xff]
        %v539 = vld [vmem:[%s264 + $0x54c] sm:$0xf]
        %v540 = vld [vmem:[%s264 + $0x550] sm:$0xff]
        %v541 = vld [vmem:[%s264 + $0x558] sm:$0xff]
        %v542 = vld [vmem:[%s264 + $0x560] sm:$0xf]
        %v543 = vld [vmem:[%s264 + $0x564] sm:$0xff]
        %v544 = vld [vmem:[%s264 + $0x56c] sm:$0xff]
        %v545 = vld [vmem:[%s264 + $0x574] sm:$0xf]
        %v546 = vld [vmem:[%s264 + $0x578] sm:$0xff]
        %v547 = vld [vmem:[%s264 + $0x580] sm:$0xff]
        %v548 = vld [vmem:[%s264 + $0x588] sm:$0xf]
        %v549 = vld [vmem:[%s264 + $0x58c] sm:$0xff]
        %v550 = vld [vmem:[%s264 + $0x594] sm:$0xff]
        %v551 = vld [vmem:[%s264 + $0x59c] sm:$0xf]
        %v552 = vld [vmem:[%s264 + $0x5a0] sm:$0xff]
        %v553 = vld [vmem:[%s264 + $0x5a8] sm:$0xff]
        %v554 = vld [vmem:[%s264 + $0x5b0] sm:$0xf]
        %v555 = vld [vmem:[%s264 + $0x5b4] sm:$0xff]
        %v556 = vld [vmem:[%s264 + $0x5bc] sm:$0xff]
        %v557 = vld [vmem:[%s264 + $0x5c4] sm:$0xf]
        %v558 = vld [vmem:[%s264 + $0x5c8] sm:$0xff]
        %v559 = vld [vmem:[%s264 + $0x5d0] sm:$0xff]
        %v560 = vld [vmem:[%s264 + $0x5d8] sm:$0xf]
        %v561 = vld [vmem:[%s264 + $0x5dc] sm:$0xff]
        %v562 = vld [vmem:[%s264 + $0x5e4] sm:$0xff]
        %v563 = vld [vmem:[%s264 + $0x5ec] sm:$0xf]
        %v564 = vld [vmem:[%s264 + $0x5f0] sm:$0xff]
        %v565 = vld [vmem:[%s264 + $0x5f8] sm:$0xff]
        %v566 = vld [vmem:[%s264 + $0x600] sm:$0xf]
        %v567 = vld [vmem:[%s264 + $0x604] sm:$0xff]
        %v568 = vld [vmem:[%s264 + $0x60c] sm:$0xff]
        %v569 = vld [vmem:[%s264 + $0x614] sm:$0xf]
        %v570 = vld [vmem:[%s264 + $0x618] sm:$0xff]
        %v571 = vld [vmem:[%s264 + $0x620] sm:$0xff]
        %v572 = vld [vmem:[%s264 + $0x628] sm:$0xf]
        %v573 = vld [vmem:[%s264 + $0x62c] sm:$0xff]
        %v574 = vld [vmem:[%s264 + $0x634] sm:$0xff]
        %v575 = vld [vmem:[%s264 + $0x63c] sm:$0xf]
        %v576 = vld [vmem:[%s264 + $0x640] sm:$0xff]
        %v577 = vld [vmem:[%s264 + $0x648] sm:$0xff]
        %v578 = vld [vmem:[%s264 + $0x650] sm:$0xf]
        %v579 = vld [vmem:[%s264 + $0x654] sm:$0xff]
        %v580 = vld [vmem:[%s264 + $0x65c] sm:$0xff]
        %v581 = vld [vmem:[%s264 + $0x664] sm:$0xf]
        %v582 = vld [vmem:[%s264 + $0x668] sm:$0xff]
        %v583 = vld [vmem:[%s264 + $0x670] sm:$0xff]
        %v584 = vld [vmem:[%s264 + $0x678] sm:$0xf]
        %v585 = vld [vmem:[%s264 + $0x67c] sm:$0xff]
        %v586 = vld [vmem:[%s264 + $0x684] sm:$0xff]
        %v587 = vld [vmem:[%s264 + $0x68c] sm:$0xf]
        %v588 = vld [vmem:[%s264 + $0x690] sm:$0xff]
        %v589 = vld [vmem:[%s264 + $0x698] sm:$0xff]
        %v590 = vld [vmem:[%s264 + $0x6a0] sm:$0xf]
        %v591 = vld [vmem:[%s264 + $0x6a4] sm:$0xff]
        %v592 = vld [vmem:[%s264 + $0x6ac] sm:$0xff]
        %v593 = vld [vmem:[%s264 + $0x6b4] sm:$0xf]
        %v594 = vld [vmem:[%s264 + $0x6b8] sm:$0xff]
        %v595 = vld [vmem:[%s264 + $0x6c0] sm:$0xff]
        %v596 = vld [vmem:[%s264 + $0x6c8] sm:$0xf]
        %v597 = vld [vmem:[%s264 + $0x6cc] sm:$0xff]
        %v598 = vld [vmem:[%s264 + $0x6d4] sm:$0xff]
        %v599 = vld [vmem:[%s264 + $0x6dc] sm:$0xf]
        %v600 = vld [vmem:[%s264 + $0x6e0] sm:$0xff]
        %v601 = vld [vmem:[%s264 + $0x6e8] sm:$0xff]
        %v602 = vld [vmem:[%s264 + $0x6f0] sm:$0xf]
        %v603 = vld [vmem:[%s264 + $0x6f4] sm:$0xff]
        %v604 = vld [vmem:[%s264 + $0x6fc] sm:$0xff]
        %v605 = vld [vmem:[%s264 + $0x704] sm:$0xf]
        %v606 = vld [vmem:[%s264 + $0x708] sm:$0xff]
        %v607 = vld [vmem:[%s264 + $0x710] sm:$0xff]
        %v608 = vld [vmem:[%s264 + $0x718] sm:$0xf]
        %v609 = vld [vmem:[%s264 + $0x71c] sm:$0xff]
        %v610 = vld [vmem:[%s264 + $0x724] sm:$0xff]
        %v611 = vld [vmem:[%s264 + $0x72c] sm:$0xf]
        %v612 = vld [vmem:[%s264 + $0x730] sm:$0xff]
        %v613 = vld [vmem:[%s264 + $0x738] sm:$0xff]
        %v614 = vld [vmem:[%s264 + $0x740] sm:$0xf]
        %v615 = vld [vmem:[%s264 + $0x744] sm:$0xff]
        %v616 = vld [vmem:[%s264 + $0x74c] sm:$0xff]
        %v617 = vld [vmem:[%s264 + $0x754] sm:$0xf]
        %v618 = vld [vmem:[%s264 + $0x758] sm:$0xff]
        %v619 = vld [vmem:[%s264 + $0x760] sm:$0xff]
        %v620 = vld [vmem:[%s264 + $0x768] sm:$0xf]
        %v621 = vld [vmem:[%s264 + $0x76c] sm:$0xff]
        %v622 = vld [vmem:[%s264 + $0x774] sm:$0xff]
        %v623 = vld [vmem:[%s264 + $0x77c] sm:$0xf]
        %v624 = vld [vmem:[%s264 + $0x780] sm:$0xff]
        %v625 = vld [vmem:[%s264 + $0x788] sm:$0xff]
        %v626 = vld [vmem:[%s264 + $0x790] sm:$0xf]
        %v627 = vld [vmem:[%s264 + $0x794] sm:$0xff]
        %v628 = vld [vmem:[%s264 + $0x79c] sm:$0xff]
        %v629 = vld [vmem:[%s264 + $0x7a4] sm:$0xf]
        %v630 = vld [vmem:[%s264 + $0x7a8] sm:$0xff]
        %v631 = vld [vmem:[%s264 + $0x7b0] sm:$0xff]
        %v632 = vld [vmem:[%s264 + $0x7b8] sm:$0xf]
        %v633 = vld [vmem:[%s264 + $0x7bc] sm:$0xff]
        %v634 = vld [vmem:[%s264 + $0x7c4] sm:$0xff]
        %v635 = vld [vmem:[%s264 + $0x7cc] sm:$0xf]
        %v636 = vld [vmem:[%s264 + $0x7d0] sm:$0xff]
        %v637 = vld [vmem:[%s264 + $0x7d8] sm:$0xff]
        %v638 = vld [vmem:[%s264 + $0x7e0] sm:$0xf]
        %v639 = vld [vmem:[%s264 + $0x7e4] sm:$0xff]
        %v640 = vld [vmem:[%s264 + $0x7ec] sm:$0xff]
        %v641 = vld [vmem:[%s264 + $0x7f4] sm:$0xf]
        %v642 = vld [vmem:[%s264 + $0x7f8] sm:$0xff]
        %v643 = vld [vmem:[%s264 + $0x800] sm:$0xff]
        %v644 = vld [vmem:[%s264 + $0x808] sm:$0xf]
        %v645 = vld [vmem:[%s264 + $0x80c] sm:$0xff]
        %v646 = vld [vmem:[%s264 + $0x814] sm:$0xff]
        %v647 = vld [vmem:[%s264 + $0x81c] sm:$0xf]
        %v648 = vld [vmem:[%s264 + $0x820] sm:$0xff]
        %v649 = vld [vmem:[%s264 + $0x828] sm:$0xff]
        %v650 = vld [vmem:[%s264 + $0x830] sm:$0xf]
        %v651 = vld [vmem:[%s264 + $0x834] sm:$0xff]
        %v652 = vld [vmem:[%s264 + $0x83c] sm:$0xff]
        %v653 = vld [vmem:[%s264 + $0x844] sm:$0xf]
        %v654 = vld [vmem:[%s264 + $0x848] sm:$0xff]
        %v655 = vld [vmem:[%s264 + $0x850] sm:$0xff]
        %v656 = vld [vmem:[%s264 + $0x858] sm:$0xf]
        %v657 = vld [vmem:[%s264 + $0x85c] sm:$0xff]
        %v658 = vld [vmem:[%s264 + $0x864] sm:$0xff]
        %v659 = vld [vmem:[%s264 + $0x86c] sm:$0xf]
        %v660 = vld [vmem:[%s264 + $0x870] sm:$0xff]
        %v661 = vld [vmem:[%s264 + $0x878] sm:$0xff]
        %v662 = vld [vmem:[%s264 + $0x880] sm:$0xf]
        %v663 = vld [vmem:[%s264 + $0x884] sm:$0xff]
        %v664 = vld [vmem:[%s264 + $0x88c] sm:$0xff]
        %v665 = vld [vmem:[%s264 + $0x894] sm:$0xf]
        %v666 = vld [vmem:[%s264 + $0x898] sm:$0xff]
        %v667 = vld [vmem:[%s264 + $0x8a0] sm:$0xff]
        %v668 = vld [vmem:[%s264 + $0x8a8] sm:$0xf]
        %v669 = vld [vmem:[%s264 + $0x8ac] sm:$0xff]
        %v670 = vld [vmem:[%s264 + $0x8b4] sm:$0xff]
        %v671 = vld [vmem:[%s264 + $0x8bc] sm:$0xf]
        %v672 = vld [vmem:[%s264 + $0x8c0] sm:$0xff]
        %v673 = vld [vmem:[%s264 + $0x8c8] sm:$0xff]
        %v674 = vld [vmem:[%s264 + $0x8d0] sm:$0xf]
        %v675 = vld [vmem:[%s264 + $0x8d4] sm:$0xff]
        %v676 = vld [vmem:[%s264 + $0x8dc] sm:$0xff]
        %v677 = vld [vmem:[%s264 + $0x8e4] sm:$0xf]
        %v678 = vld [vmem:[%s264 + $0x8e8] sm:$0xff]
        %v679 = vld [vmem:[%s264 + $0x8f0] sm:$0xff]
        %v680 = vld [vmem:[%s264 + $0x8f8] sm:$0xf]
        %v681 = vld [vmem:[%s264 + $0x8fc] sm:$0xff]
        %v682 = vld [vmem:[%s264 + $0x904] sm:$0xff]
        %v683 = vld [vmem:[%s264 + $0x90c] sm:$0xf]
        %v684 = vld [vmem:[%s264 + $0x910] sm:$0xff]
        %v685 = vld [vmem:[%s264 + $0x918] sm:$0xff]
        %v686 = vld [vmem:[%s264 + $0x920] sm:$0xf]
        %v687 = vld [vmem:[%s264 + $0x924] sm:$0xff]
        %v688 = vld [vmem:[%s264 + $0x92c] sm:$0xff]
        %v689 = vld [vmem:[%s264 + $0x934] sm:$0xf]
        %v690 = vld [vmem:[%s264 + $0x938] sm:$0xff]
        %v691 = vld [vmem:[%s264 + $0x940] sm:$0xff]
        %v692 = vld [vmem:[%s264 + $0x948] sm:$0xf]
        %v693 = vld [vmem:[%s264 + $0x94c] sm:$0xff]
        %v694 = vld [vmem:[%s264 + $0x954] sm:$0xff]
        %v695 = vld [vmem:[%s264 + $0x95c] sm:$0xf]
        %v696 = vld [vmem:[%s264 + $0x960] sm:$0xff]
        %v697 = vld [vmem:[%s264 + $0x968] sm:$0xff]
        %v698 = vld [vmem:[%s264 + $0x970] sm:$0xf]
        %v699 = vld [vmem:[%s264 + $0x974] sm:$0xff]
        %v700 = vld [vmem:[%s264 + $0x97c] sm:$0xff]
        %v701 = vld [vmem:[%s264 + $0x984] sm:$0xf]
        %v702 = vld [vmem:[%s264 + $0x988] sm:$0xff]
        %v703 = vld [vmem:[%s264 + $0x990] sm:$0xff]
        %v704 = vld [vmem:[%s264 + $0x998] sm:$0xf]
        %v705 = vld [vmem:[%s264 + $0x99c] sm:$0xff]
        %v706 = vld [vmem:[%s264 + $0x9a4] sm:$0xff]
        %v707 = vld [vmem:[%s264 + $0x9ac] sm:$0xf]
        %v708 = vld [vmem:[%s264 + $0x9b0] sm:$0xff]
        %v709 = vld [vmem:[%s264 + $0x9b8] sm:$0xff]
        %v710 = vld [vmem:[%s264 + $0x9c0] sm:$0xf]
        %v711 = vld [vmem:[%s264 + $0x9c4] sm:$0xff]
        %v712 = vld [vmem:[%s264 + $0x9cc] sm:$0xff]
        %v713 = vld [vmem:[%s264 + $0x9d4] sm:$0xf]
        %v714 = vld [vmem:[%s264 + $0x9d8] sm:$0xff]
        %v715 = vld [vmem:[%s264 + $0x9e0] sm:$0xff]
        %v716 = vld [vmem:[%s264 + $0x9e8] sm:$0xf]
        %v717 = vld [vmem:[%s264 + $0x9ec] sm:$0xff]
        %v718 = vld [vmem:[%s264 + $0x9f4] sm:$0xff]
        %v719 = vld [vmem:[%s264 + $0x9fc] sm:$0xf]
        %v720 = vld [vmem:[%s264 + $0xa00] sm:$0xff]
        %v721 = vld [vmem:[%s264 + $0xa08] sm:$0xff]
        %v722 = vld [vmem:[%s264 + $0xa10] sm:$0xf]
        %v723 = vld [vmem:[%s264 + $0xa14] sm:$0xff]
        %v724 = vld [vmem:[%s264 + $0xa1c] sm:$0xff]
        %v725 = vld [vmem:[%s264 + $0xa24] sm:$0xf]
        %v726 = vld [vmem:[%s264 + $0xa28] sm:$0xff]
        %v727 = vld [vmem:[%s264 + $0xa30] sm:$0xff]
        %v728 = vld [vmem:[%s264 + $0xa38] sm:$0xf]
        %v729 = vld [vmem:[%s264 + $0xa3c] sm:$0xff]
        %v730 = vld [vmem:[%s264 + $0xa44] sm:$0xff]
        %v731 = vld [vmem:[%s264 + $0xa4c] sm:$0xf]
        %v732 = vld [vmem:[%s264 + $0xa50] sm:$0xff]
        %v733 = vld [vmem:[%s264 + $0xa58] sm:$0xff]
        %v734 = vld [vmem:[%s264 + $0xa60] sm:$0xf]
        %v735 = vld [vmem:[%s264 + $0xa64] sm:$0xff]
        %v736 = vld [vmem:[%s264 + $0xa6c] sm:$0xff]
        %v737 = vld [vmem:[%s264 + $0xa74] sm:$0xf]
        %v738 = vld [vmem:[%s264 + $0xa78] sm:$0xff]
        %v739 = vld [vmem:[%s264 + $0xa80] sm:$0xff]
        %v740 = vld [vmem:[%s264 + $0xa88] sm:$0xf]
        %v741 = vld [vmem:[%s264 + $0xa8c] sm:$0xff]
        %v742 = vld [vmem:[%s264 + $0xa94] sm:$0xff]
        %v743 = vld [vmem:[%s264 + $0xa9c] sm:$0xf]
        %v744 = vld [vmem:[%s264 + $0xaa0] sm:$0xff]
        %v745 = vld [vmem:[%s264 + $0xaa8] sm:$0xff]
        %v746 = vld [vmem:[%s264 + $0xab0] sm:$0xf]
        %v747 = vld [vmem:[%s264 + $0xab4] sm:$0xff]
        %v748 = vld [vmem:[%s264 + $0xabc] sm:$0xff]
        %v749 = vld [vmem:[%s264 + $0xac4] sm:$0xf]
        %v750 = vld [vmem:[%s264 + $0xac8] sm:$0xff]
        %v751 = vld [vmem:[%s264 + $0xad0] sm:$0xff]
        %v752 = vld [vmem:[%s264 + $0xad8] sm:$0xf]
        %v753 = vld [vmem:[%s264 + $0xadc] sm:$0xff]
        %v754 = vld [vmem:[%s264 + $0xae4] sm:$0xff]
        %v755 = vld [vmem:[%s264 + $0xaec] sm:$0xf]
        %v756 = vld [vmem:[%s264 + $0xaf0] sm:$0xff]
        %v757 = vld [vmem:[%s264 + $0xaf8] sm:$0xff]
        %v758 = vld [vmem:[%s264 + $0xb00] sm:$0xf]
        %v759 = vld [vmem:[%s264 + $0xb04] sm:$0xff]
        %v760 = vld [vmem:[%s264 + $0xb0c] sm:$0xff]
        %v761 = vld [vmem:[%s264 + $0xb14] sm:$0xf]
        %v762 = vld [vmem:[%s264 + $0xb18] sm:$0xff]
        %v763 = vld [vmem:[%s264 + $0xb20] sm:$0xff]
        %v764 = vld [vmem:[%s264 + $0xb28] sm:$0xf]
        %v765 = vld [vmem:[%s264 + $0xb2c] sm:$0xff]
        %v766 = vld [vmem:[%s264 + $0xb34] sm:$0xff]
        %v767 = vld [vmem:[%s264 + $0xb3c] sm:$0xf]
        %v768 = vld [vmem:[%s264 + $0xb40] sm:$0xff]
        %v769 = vld [vmem:[%s264 + $0xb48] sm:$0xff]
        %v770 = vld [vmem:[%s264 + $0xb50] sm:$0xf]
        %v771 = vld [vmem:[%s264 + $0xb54] sm:$0xff]
        %v772 = vld [vmem:[%s264 + $0xb5c] sm:$0xff]
        %v773 = vld [vmem:[%s264 + $0xb64] sm:$0xf]
        %v774 = vld [vmem:[%s264 + $0xb68] sm:$0xff]
        %v775 = vld [vmem:[%s264 + $0xb70] sm:$0xff]
        %v776 = vld [vmem:[%s264 + $0xb78] sm:$0xf]
        %v777 = vld [vmem:[%s264 + $0xb7c] sm:$0xff]
        %v778 = vld [vmem:[%s264 + $0xb84] sm:$0xff]
        %v779 = vld [vmem:[%s264 + $0xb8c] sm:$0xf]
        %v780 = vld [vmem:[%s264 + $0xb90] sm:$0xff]
        %v781 = vld [vmem:[%s264 + $0xb98] sm:$0xff]
        %v782 = vld [vmem:[%s264 + $0xba0] sm:$0xf]
        %v783 = vld [vmem:[%s264 + $0xba4] sm:$0xff]
        %v784 = vld [vmem:[%s264 + $0xbac] sm:$0xff]
        %v785 = vld [vmem:[%s264 + $0xbb4] sm:$0xf]
        %v786 = vld [vmem:[%s264 + $0xbb8] sm:$0xff]
        %v787 = vld [vmem:[%s264 + $0xbc0] sm:$0xff]
        %v788 = vld [vmem:[%s264 + $0xbc8] sm:$0xf]
        %v789 = vld [vmem:[%s264 + $0xbcc] sm:$0xff]
        %v790 = vld [vmem:[%s264 + $0xbd4] sm:$0xff]
        %v791 = vld [vmem:[%s264 + $0xbdc] sm:$0xf]
        %v792 = vld [vmem:[%s264 + $0xbe0] sm:$0xff]
        %v793 = vld [vmem:[%s264 + $0xbe8] sm:$0xff]
        %v794 = vld [vmem:[%s264 + $0xbf0] sm:$0xf]
        %v795 = vld [vmem:[%s264 + $0xbf4] sm:$0xff]
        %v796 = vld [vmem:[%s264 + $0xbfc] sm:$0xff]
        %v797 = vld [vmem:[%s264 + $0xc04] sm:$0xf]
        %v798 = vld [vmem:[%s264 + $0xc08] sm:$0xff]
        %v799 = vld [vmem:[%s264 + $0xc10] sm:$0xff]
        %v800 = vld [vmem:[%s264 + $0xc18] sm:$0xf]
        %v801 = vld [vmem:[%s264 + $0xc1c] sm:$0xff]
        %v802 = vld [vmem:[%s264 + $0xc24] sm:$0xff]
        %v803 = vld [vmem:[%s264 + $0xc2c] sm:$0xf]
        %v804 = vld [vmem:[%s264 + $0xc30] sm:$0xff]
        %v805 = vld [vmem:[%s264 + $0xc38] sm:$0xff]
        %v806 = vld [vmem:[%s264 + $0xc40] sm:$0xf]
        %v807 = vld [vmem:[%s264 + $0xc44] sm:$0xff]
        %v808 = vld [vmem:[%s264 + $0xc4c] sm:$0xff]
        %v809 = vld [vmem:[%s264 + $0xc54] sm:$0xf]
        %v810 = vld [vmem:[%s264 + $0xc58] sm:$0xff]
        %v811 = vld [vmem:[%s264 + $0xc60] sm:$0xff]
        %v812 = vld [vmem:[%s264 + $0xc68] sm:$0xf]
        %v813 = vld [vmem:[%s264 + $0xc6c] sm:$0xff]
        %v814 = vld [vmem:[%s264 + $0xc74] sm:$0xff]
        %v815 = vld [vmem:[%s264 + $0xc7c] sm:$0xf]
        %v816 = vld [vmem:[%s264 + $0xc80] sm:$0xff]
        %v817 = vld [vmem:[%s264 + $0xc88] sm:$0xff]
        %v818 = vld [vmem:[%s264 + $0xc90] sm:$0xf]
        %v819 = vld [vmem:[%s264 + $0xc94] sm:$0xff]
        %v820 = vld [vmem:[%s264 + $0xc9c] sm:$0xff]
        %v821 = vld [vmem:[%s264 + $0xca4] sm:$0xf]
        %v822 = vld [vmem:[%s264 + $0xca8] sm:$0xff]
        %v823 = vld [vmem:[%s264 + $0xcb0] sm:$0xff]
        %v824 = vld [vmem:[%s264 + $0xcb8] sm:$0xf]
        %v825 = vld [vmem:[%s264 + $0xcbc] sm:$0xff]
        %v826 = vld [vmem:[%s264 + $0xcc4] sm:$0xff]
        %v827 = vld [vmem:[%s264 + $0xccc] sm:$0xf]
        %v828 = vld [vmem:[%s264 + $0xcd0] sm:$0xff]
        %v829 = vld [vmem:[%s264 + $0xcd8] sm:$0xff]
        %v830 = vld [vmem:[%s264 + $0xce0] sm:$0xf]
        %v831 = vld [vmem:[%s264 + $0xce4] sm:$0xff]
        %v832 = vld [vmem:[%s264 + $0xcec] sm:$0xff]
        %v833 = vld [vmem:[%s264 + $0xcf4] sm:$0xf]
        %v834 = vld [vmem:[%s264 + $0xcf8] sm:$0xff]
        %v835 = vld [vmem:[%s264 + $0xd00] sm:$0xff]
        %v836 = vld [vmem:[%s264 + $0xd08] sm:$0xf]
        %v837 = vld [vmem:[%s264 + $0xd0c] sm:$0xff]
        %v838 = vld [vmem:[%s264 + $0xd14] sm:$0xff]
        %v839 = vld [vmem:[%s264 + $0xd1c] sm:$0xf]
        %v840 = vld [vmem:[%s264 + $0xd20] sm:$0xff]
        %v841 = vld [vmem:[%s264 + $0xd28] sm:$0xff]
        %v842 = vld [vmem:[%s264 + $0xd30] sm:$0xf]
        %v843 = vld [vmem:[%s264 + $0xd34] sm:$0xff]
        %v844 = vld [vmem:[%s264 + $0xd3c] sm:$0xff]
        %v845 = vld [vmem:[%s264 + $0xd44] sm:$0xf]
        %v846 = vld [vmem:[%s264 + $0xd48] sm:$0xff]
        %v847 = vld [vmem:[%s264 + $0xd50] sm:$0xff]
        %v848 = vld [vmem:[%s264 + $0xd58] sm:$0xf]
        %v849 = vld [vmem:[%s264 + $0xd5c] sm:$0xff]
        %v850 = vld [vmem:[%s264 + $0xd64] sm:$0xff]
        %v851 = vld [vmem:[%s264 + $0xd6c] sm:$0xf]
        %v852 = vld [vmem:[%s264 + $0xd70] sm:$0xff]
        %v853 = vld [vmem:[%s264 + $0xd78] sm:$0xff]
        %v854 = vld [vmem:[%s264 + $0xd80] sm:$0xf]
        %v855 = vld [vmem:[%s264 + $0xd84] sm:$0xff]
        %v856 = vld [vmem:[%s264 + $0xd8c] sm:$0xff]
        %v857 = vld [vmem:[%s264 + $0xd94] sm:$0xf]
        %v858 = vld [vmem:[%s264 + $0xd98] sm:$0xff]
        %v859 = vld [vmem:[%s264 + $0xda0] sm:$0xff]
        %v860 = vld [vmem:[%s264 + $0xda8] sm:$0xf]
        %v861 = vld [vmem:[%s264 + $0xdac] sm:$0xff]
        %v862 = vld [vmem:[%s264 + $0xdb4] sm:$0xff]
        %v863 = vld [vmem:[%s264 + $0xdbc] sm:$0xf]
        %v864 = vld [vmem:[%s264 + $0xdc0] sm:$0xff]
        %v865 = vld [vmem:[%s264 + $0xdc8] sm:$0xff]
        %v866 = vld [vmem:[%s264 + $0xdd0] sm:$0xf]
        %v867 = vld [vmem:[%s264 + $0xdd4] sm:$0xff]
        %v868 = vld [vmem:[%s264 + $0xddc] sm:$0xff]
        %v869 = vld [vmem:[%s264 + $0xde4] sm:$0xf]
        %v870 = vld [vmem:[%s264 + $0xde8] sm:$0xff]
        %v871 = vld [vmem:[%s264 + $0xdf0] sm:$0xff]
        %v872 = vld [vmem:[%s264 + $0xdf8] sm:$0xf]
        %v873 = vld [vmem:[%s264 + $0xdfc] sm:$0xff]
        %v874 = vld [vmem:[%s264 + $0xe04] sm:$0xff]
        %v875 = vld [vmem:[%s264 + $0xe0c] sm:$0xf]
        %v876 = vld [vmem:[%s264 + $0xe10] sm:$0xff]
        %v877 = vld [vmem:[%s264 + $0xe18] sm:$0xff]
        %v878 = vld [vmem:[%s264 + $0xe20] sm:$0xf]
        %v879 = vld [vmem:[%s264 + $0xe24] sm:$0xff]
        %v880 = vld [vmem:[%s264 + $0xe2c] sm:$0xff]
        %v881 = vld [vmem:[%s264 + $0xe34] sm:$0xf]
        %v882 = vld [vmem:[%s264 + $0xe38] sm:$0xff]
        %v883 = vld [vmem:[%s264 + $0xe40] sm:$0xff]
        %v884 = vld [vmem:[%s264 + $0xe48] sm:$0xf]
        %v885 = vld [vmem:[%s264 + $0xe4c] sm:$0xff]
        %v886 = vld [vmem:[%s264 + $0xe54] sm:$0xff]
        %v887 = vld [vmem:[%s264 + $0xe5c] sm:$0xf]
        %v888 = vld [vmem:[%s264 + $0xe60] sm:$0xff]
        %v889 = vld [vmem:[%s264 + $0xe68] sm:$0xff]
        %v890 = vld [vmem:[%s264 + $0xe70] sm:$0xf]
        %v891 = vld [vmem:[%s264 + $0xe74] sm:$0xff]
        %v892 = vld [vmem:[%s264 + $0xe7c] sm:$0xff]
        %v893 = vld [vmem:[%s264 + $0xe84] sm:$0xf]
        %v894 = vld [vmem:[%s264 + $0xe88] sm:$0xff]
        %v895 = vld [vmem:[%s264 + $0xe90] sm:$0xff]
        %v896 = vld [vmem:[%s264 + $0xe98] sm:$0xf]
        %v897 = vld [vmem:[%s264 + $0xe9c] sm:$0xff]
        %v898 = vld [vmem:[%s264 + $0xea4] sm:$0xff]
        %v899 = vld [vmem:[%s264 + $0xeac] sm:$0xf]
        %v900 = vld [vmem:[%s264 + $0xeb0] sm:$0xff]
        %v901 = vld [vmem:[%s264 + $0xeb8] sm:$0xff]
        %v902 = vld [vmem:[%s264 + $0xec0] sm:$0xf]
        %v903 = vld [vmem:[%s264 + $0xec4] sm:$0xff]
        %v904 = vld [vmem:[%s264 + $0xecc] sm:$0xff]
        %v905 = vld [vmem:[%s264 + $0xed4] sm:$0xf]
        %v906 = vld [vmem:[%s264 + $0xed8] sm:$0xff]
        %v907 = vld [vmem:[%s264 + $0xee0] sm:$0xff]
        %v908 = vld [vmem:[%s264 + $0xee8] sm:$0xf]
        %v909 = vld [vmem:[%s264 + $0xeec] sm:$0xff]
        %v910 = vld [vmem:[%s264 + $0xef4] sm:$0xff]
        %v911 = vld [vmem:[%s264 + $0xefc] sm:$0xf]
        %v912 = vld [vmem:[%s264 + $0xf00] sm:$0xff]
        %v913 = vld [vmem:[%s264 + $0xf08] sm:$0xff]
        %v914 = vld [vmem:[%s264 + $0xf10] sm:$0xf]
        %v915 = vld [vmem:[%s264 + $0xf14] sm:$0xff]
        %v916 = vld [vmem:[%s264 + $0xf1c] sm:$0xff]
        %v917 = vld [vmem:[%s264 + $0xf24] sm:$0xf]
        %v918 = vld [vmem:[%s264 + $0xf28] sm:$0xff]
        %v919 = vld [vmem:[%s264 + $0xf30] sm:$0xff]
        %v920 = vld [vmem:[%s264 + $0xf38] sm:$0xf]
        %v921 = vld [vmem:[%s264 + $0xf3c] sm:$0xff]
        %v922 = vld [vmem:[%s264 + $0xf44] sm:$0xff]
        %v923 = vld [vmem:[%s264 + $0xf4c] sm:$0xf]
        %v924 = vld [vmem:[%s264 + $0xf50] sm:$0xff]
        %v925 = vld [vmem:[%s264 + $0xf58] sm:$0xff]
        %v926 = vld [vmem:[%s264 + $0xf60] sm:$0xf]
        %v927 = vld [vmem:[%s264 + $0xf64] sm:$0xff]
        %v928 = vld [vmem:[%s264 + $0xf6c] sm:$0xff]
        %v929 = vld [vmem:[%s264 + $0xf74] sm:$0xf]
        %v930 = vld [vmem:[%s264 + $0xf78] sm:$0xff]
        %v931 = vld [vmem:[%s264 + $0xf80] sm:$0xff]
        %v932 = vld [vmem:[%s264 + $0xf88] sm:$0xf]
        %v933 = vld [vmem:[%s264 + $0xf8c] sm:$0xff]
        %v934 = vld [vmem:[%s264 + $0xf94] sm:$0xff]
        %v935 = vld [vmem:[%s264 + $0xf9c] sm:$0xf]
        %v936 = vld [vmem:[%s264 + $0xfa0] sm:$0xff]
        %v937 = vld [vmem:[%s264 + $0xfa8] sm:$0xff]
        %v938 = vld [vmem:[%s264 + $0xfb0] sm:$0xf]
        %v939 = vld [vmem:[%s264 + $0xfb4] sm:$0xff]
        %v940 = vld [vmem:[%s264 + $0xfbc] sm:$0xff]
        %v941 = vld [vmem:[%s264 + $0xfc4] sm:$0xf]
        %v942 = vld [vmem:[%s264 + $0xfc8] sm:$0xff]
        %v943 = vld [vmem:[%s264 + $0xfd0] sm:$0xff]
        %v944 = vld [vmem:[%s264 + $0xfd8] sm:$0xf]
        %v945 = vld [vmem:[%s264 + $0xfdc] sm:$0xff]
        %v946 = vld [vmem:[%s264 + $0xfe4] sm:$0xff]
        %v947 = vld [vmem:[%s264 + $0xfec] sm:$0xf]
        %v948 = vld [vmem:[%s264 + $0xff0] sm:$0xff]
        %v949 = vld [vmem:[%s264 + $0xff8] sm:$0xff]
        %v950 = vld [vmem:[%s264 + $0x1000] sm:$0xf]
        %v951 = vld [vmem:[%s264 + $0x1004] sm:$0xff]
        %v952 = vld [vmem:[%s264 + $0x100c] sm:$0xff]
        %v953 = vld [vmem:[%s264 + $0x1014] sm:$0xf]
        %v954 = vld [vmem:[%s264 + $0x1018] sm:$0xff]
        %v955 = vld [vmem:[%s264 + $0x1020] sm:$0xff]
        %v956 = vld [vmem:[%s264 + $0x1028] sm:$0xf]
        %v957 = vld [vmem:[%s264 + $0x102c] sm:$0xff]
        %v958 = vld [vmem:[%s264 + $0x1034] sm:$0xff]
        %v959 = vld [vmem:[%s264 + $0x103c] sm:$0xf]
        %v960 = vld [vmem:[%s264 + $0x1040] sm:$0xff]
        %v961 = vld [vmem:[%s264 + $0x1048] sm:$0xff]
        %v962 = vld [vmem:[%s264 + $0x1050] sm:$0xf]
        %v963 = vld [vmem:[%s264 + $0x1054] sm:$0xff]
        %v964 = vld [vmem:[%s264 + $0x105c] sm:$0xff]
        %v965 = vld [vmem:[%s264 + $0x1064] sm:$0xf]
        %v966 = vld [vmem:[%s264 + $0x1068] sm:$0xff]
        %v967 = vld [vmem:[%s264 + $0x1070] sm:$0xff]
        %v968 = vld [vmem:[%s264 + $0x1078] sm:$0xf]
        %v969 = vld [vmem:[%s264 + $0x107c] sm:$0xff]
        %v970 = vld [vmem:[%s264 + $0x1084] sm:$0xff]
        %v971 = vld [vmem:[%s264 + $0x108c] sm:$0xf]
        %v972 = vld [vmem:[%s264 + $0x1090] sm:$0xff]
        %v973 = vld [vmem:[%s264 + $0x1098] sm:$0xff]
        %v974 = vld [vmem:[%s264 + $0x10a0] sm:$0xf]
        %v975 = vld [vmem:[%s264 + $0x10a4] sm:$0xff]
        %v976 = vld [vmem:[%s264 + $0x10ac] sm:$0xff]
        %v977 = vld [vmem:[%s264 + $0x10b4] sm:$0xf]
        %v978 = vld [vmem:[%s264 + $0x10b8] sm:$0xff]
        %v979 = vld [vmem:[%s264 + $0x10c0] sm:$0xff]
        %v980 = vld [vmem:[%s264 + $0x10c8] sm:$0xf]
        %v981 = vld [vmem:[%s264 + $0x10cc] sm:$0xff]
        %v982 = vld [vmem:[%s264 + $0x10d4] sm:$0xff]
        %v983 = vld [vmem:[%s264 + $0x10dc] sm:$0xf]
        %v984 = vld [vmem:[%s264 + $0x10e0] sm:$0xff]
        %v985 = vld [vmem:[%s264 + $0x10e8] sm:$0xff]
        %v986 = vld [vmem:[%s264 + $0x10f0] sm:$0xf]
        %v987 = vld [vmem:[%s264 + $0x10f4] sm:$0xff]
        %v988 = vld [vmem:[%s264 + $0x10fc] sm:$0xff]
        %v989 = vld [vmem:[%s264 + $0x1104] sm:$0xf]
        %v990 = vld [vmem:[%s264 + $0x1108] sm:$0xff]
        %v991 = vld [vmem:[%s264 + $0x1110] sm:$0xff]
        %v992 = vld [vmem:[%s264 + $0x1118] sm:$0xf]
        %v993 = vld [vmem:[%s264 + $0x111c] sm:$0xff]
        %v994 = vld [vmem:[%s264 + $0x1124] sm:$0xff]
        %v995 = vld [vmem:[%s264 + $0x112c] sm:$0xf]
        %v996 = vld [vmem:[%s264 + $0x1130] sm:$0xff]
        %v997 = vld [vmem:[%s264 + $0x1138] sm:$0xff]
        %v998 = vld [vmem:[%s264 + $0x1140] sm:$0xf]
        %v999 = vld [vmem:[%s264 + $0x1144] sm:$0xff]
        %v1000 = vld [vmem:[%s264 + $0x114c] sm:$0xff]
        %v1001 = vld [vmem:[%s264 + $0x1154] sm:$0xf]
        %v1002 = vld [vmem:[%s264 + $0x1158] sm:$0xff]
        %v1003 = vld [vmem:[%s264 + $0x1160] sm:$0xff]
        %v1004 = vld [vmem:[%s264 + $0x1168] sm:$0xf]
        %v1005 = vld [vmem:[%s264 + $0x116c] sm:$0xff]
        %v1006 = vld [vmem:[%s264 + $0x1174] sm:$0xff]
        %v1007 = vld [vmem:[%s264 + $0x117c] sm:$0xf]
        %v1008 = vld [vmem:[%s264 + $0x1180] sm:$0xff]
        %v1009 = vld [vmem:[%s264 + $0x1188] sm:$0xff]
        %v1010 = vld [vmem:[%s264 + $0x1190] sm:$0xf]
        %v1011 = vld [vmem:[%s264 + $0x1194] sm:$0xff]
        %v1012 = vld [vmem:[%s264 + $0x119c] sm:$0xff]
        %v1013 = vld [vmem:[%s264 + $0x11a4] sm:$0xf]
        %v1014 = vld [vmem:[%s264 + $0x11a8] sm:$0xff]
        %v1015 = vld [vmem:[%s264 + $0x11b0] sm:$0xff]
        %v1016 = vld [vmem:[%s264 + $0x11b8] sm:$0xf]
        %v1017 = vld [vmem:[%s264 + $0x11bc] sm:$0xff]
        %v1018 = vld [vmem:[%s264 + $0x11c4] sm:$0xff]
        %v1019 = vld [vmem:[%s264 + $0x11cc] sm:$0xf]
        %v1020 = vld [vmem:[%s264 + $0x11d0] sm:$0xff]
        %v1021 = vld [vmem:[%s264 + $0x11d8] sm:$0xff]
        %v1022 = vld [vmem:[%s264 + $0x11e0] sm:$0xf]
        %v1023 = vld [vmem:[%s264 + $0x11e4] sm:$0xff]
        %v1024 = vld [vmem:[%s264 + $0x11ec] sm:$0xff]
        %v1025 = vld [vmem:[%s264 + $0x11f4] sm:$0xf]
        %v1026 = vld [vmem:[%s264 + $0x11f8] sm:$0xff]
        %v1027 = vld [vmem:[%s264 + $0x1200] sm:$0xff]
        %v1028 = vld [vmem:[%s264 + $0x1208] sm:$0xf]
        %v1029 = vld [vmem:[%s264 + $0x120c] sm:$0xff]
        %v1030 = vld [vmem:[%s264 + $0x1214] sm:$0xff]
        %v1031 = vld [vmem:[%s264 + $0x121c] sm:$0xf]
        %v1032 = vld [vmem:[%s264 + $0x1220] sm:$0xff]
        %v1033 = vld [vmem:[%s264 + $0x1228] sm:$0xff]
        %v1034 = vld [vmem:[%s264 + $0x1230] sm:$0xf]
        %v1035 = vld [vmem:[%s264 + $0x1234] sm:$0xff]
        %v1036 = vld [vmem:[%s264 + $0x123c] sm:$0xff]
        %v1037 = vld [vmem:[%s264 + $0x1244] sm:$0xf]
        %v1038 = vld [vmem:[%s264 + $0x1248] sm:$0xff]
        %v1039 = vld [vmem:[%s264 + $0x1250] sm:$0xff]
        %v1040 = vld [vmem:[%s264 + $0x1258] sm:$0xf]
        %v1041 = vld [vmem:[%s264 + $0x125c] sm:$0xff]
        %v1042 = vld [vmem:[%s264 + $0x1264] sm:$0xff]
        %v1043 = vld [vmem:[%s264 + $0x126c] sm:$0xf]
        %v1044 = vld [vmem:[%s264 + $0x1270] sm:$0xff]
        %v1045 = vld [vmem:[%s264 + $0x1278] sm:$0xff]
        %v1046 = vld [vmem:[%s264 + $0x1280] sm:$0xf]
        %v1047 = vld [vmem:[%s264 + $0x1284] sm:$0xff]
        %v1048 = vld [vmem:[%s264 + $0x128c] sm:$0xff]
        %v1049 = vld [vmem:[%s264 + $0x1294] sm:$0xf]
        %v1050 = vld [vmem:[%s264 + $0x1298] sm:$0xff]
        %v1051 = vld [vmem:[%s264 + $0x12a0] sm:$0xff]
        %v1052 = vld [vmem:[%s264 + $0x12a8] sm:$0xf]
        %v1053 = vld [vmem:[%s264 + $0x12ac] sm:$0xff]
        %v1054 = vld [vmem:[%s264 + $0x12b4] sm:$0xff]
        %v1055 = vld [vmem:[%s264 + $0x12bc] sm:$0xf]
        %v1056 = vld [vmem:[%s264 + $0x12c0] sm:$0xff]
        %v1057 = vld [vmem:[%s264 + $0x12c8] sm:$0xff]
        %v1058 = vld [vmem:[%s264 + $0x12d0] sm:$0xf]
        %v1059 = vld [vmem:[%s264 + $0x12d4] sm:$0xff]
        %v1060 = vld [vmem:[%s264 + $0x12dc] sm:$0xff]
        %v1061 = vld [vmem:[%s264 + $0x12e4] sm:$0xf]
        %v1062 = vld [vmem:[%s264 + $0x12e8] sm:$0xff]
        %v1063 = vld [vmem:[%s264 + $0x12f0] sm:$0xff]
        %v1064 = vld [vmem:[%s264 + $0x12f8] sm:$0xf]
        %v1065 = vld [vmem:[%s264 + $0x12fc] sm:$0xff]
        %v1066 = vld [vmem:[%s264 + $0x1304] sm:$0xff]
        %v1067 = vld [vmem:[%s264 + $0x130c] sm:$0xf]
        %v1068 = vld [vmem:[%s264 + $0x1310] sm:$0xff]
        %v1069 = vld [vmem:[%s264 + $0x1318] sm:$0xff]
        %v1070 = vld [vmem:[%s264 + $0x1320] sm:$0xf]
        %v1071 = vld [vmem:[%s264 + $0x1324] sm:$0xff]
        %v1072 = vld [vmem:[%s264 + $0x132c] sm:$0xff]
        %v1073 = vld [vmem:[%s264 + $0x1334] sm:$0xf]
        %v1074 = vld [vmem:[%s264 + $0x1338] sm:$0xff]
        %v1075 = vld [vmem:[%s264 + $0x1340] sm:$0xff]
        %v1076 = vld [vmem:[%s264 + $0x1348] sm:$0xf]
        %v1077 = vld [vmem:[%s264 + $0x134c] sm:$0xff]
        %v1078 = vld [vmem:[%s264 + $0x1354] sm:$0xff]
        %v1079 = vld [vmem:[%s264 + $0x135c] sm:$0xf]
        %v1080 = vld [vmem:[%s264 + $0x1360] sm:$0xff]
        %v1081 = vld [vmem:[%s264 + $0x1368] sm:$0xff]
        %v1082 = vld [vmem:[%s264 + $0x1370] sm:$0xf]
        %v1083 = vld [vmem:[%s264 + $0x1374] sm:$0xff]
        %v1084 = vld [vmem:[%s264 + $0x137c] sm:$0xff]
        %v1085 = vld [vmem:[%s264 + $0x1384] sm:$0xf]
        %v1086 = vld [vmem:[%s264 + $0x1388] sm:$0xff]
        %v1087 = vld [vmem:[%s264 + $0x1390] sm:$0xff]
        %v1088 = vld [vmem:[%s264 + $0x1398] sm:$0xf]
        %v1089 = vld [vmem:[%s264 + $0x139c] sm:$0xff]
        %v1090 = vld [vmem:[%s264 + $0x13a4] sm:$0xff]
        %v1091 = vld [vmem:[%s264 + $0x13ac] sm:$0xf]
        %v1092 = vld [vmem:[%s264 + $0x13b0] sm:$0xff]
        %v1093 = vld [vmem:[%s264 + $0x13b8] sm:$0xff]
        %v1094 = vld [vmem:[%s264 + $0x13c0] sm:$0xf]
        %v1095 = vld [vmem:[%s264 + $0x13c4] sm:$0xff]
        %v1096 = vld [vmem:[%s264 + $0x13cc] sm:$0xff]
        %v1097 = vld [vmem:[%s264 + $0x13d4] sm:$0xf]
        %v1098 = vld [vmem:[%s264 + $0x13d8] sm:$0xff]
        %v1099 = vld [vmem:[%s264 + $0x13e0] sm:$0xff]
        %v1100 = vld [vmem:[%s264 + $0x13e8] sm:$0xf]
        %v1101 = vld [vmem:[%s264 + $0x13ec] sm:$0xff]
        %v1102 = vld [vmem:[%s264 + $0x13f4] sm:$0xff]
        %v1103 = vld [vmem:[%s264 + $0x13fc] sm:$0xf]
        %v1104 = vld [vmem:[%s313] sm:$0x1f]
        %v1106 = vlaneseq
        %v1107 = vshrl.u32 %v1106, 7
        %v1108 = vsub.s32 0, %v1107
        %v1109 = vrot.slane %v1104, %v1108
        %v1110 = vlaneseq
        %v1111 = vshrl.u32 %v1110, 7
        %v1112 = vsub.s32 1, %v1111
        %v1113 = vrot.slane %v1104, %v1112
        %v1114 = vlaneseq
        %v1115 = vshrl.u32 %v1114, 7
        %v1116 = vsub.s32 2, %v1115
        %v1117 = vrot.slane %v1104, %v1116
        %v1118 = vlaneseq
        %v1119 = vshrl.u32 %v1118, 7
        %v1120 = vsub.s32 3, %v1119
        %v1121 = vrot.slane %v1104, %v1120
        %v1122 = vlaneseq
        %v1123 = vshrl.u32 %v1122, 7
        %v1124 = vsub.s32 4, %v1123
        %v1125 = vrot.slane %v1104, %v1124
        %v1133 = vcombine.high %v334, %v334
        %v1135 = vunpack.c.l.s4 1966171168
        %v1136 = vunpack.c.0.s8 %v1135
        %v1137 = vlaneseq
        %v1138 = vshrl.u32 %v1137, 7
        %v1139 = vsub.s32 %v1136, %v1138
        %v1140 = vrot.slane %v334, %v1139
        %v1142 = vunpack.c.l.s4 1966171168
        %v1143 = vunpack.c.0.s8 %v1142
        %v1144 = vlaneseq
        %v1145 = vshrl.u32 %v1144, 7
        %v1146 = vsub.s32 %v1143, %v1145
        %v1147 = vrot.slane %v1133, %v1146
        %v1148 = vcombine.high %v1140, %v1140
        %v1149 = vcombine.high %v1147, %v1147
        %v1151 = vunpack.c.l.s4 1966171168
        %v1152 = vunpack.c.0.s8 %v1151
        %v1153 = vlaneseq
        %v1154 = vshrl.u32 %v1153, 7
        %v1155 = vsub.s32 %v1152, %v1154
        %v1156 = vrot.slane %v1140, %v1155
        %v1158 = vunpack.c.l.s4 1966171168
        %v1159 = vunpack.c.0.s8 %v1158
        %v1160 = vlaneseq
        %v1161 = vshrl.u32 %v1160, 7
        %v1162 = vsub.s32 %v1159, %v1161
        %v1163 = vrot.slane %v1147, %v1162
        %v1165 = vunpack.c.l.s4 1966171168
        %v1166 = vunpack.c.0.s8 %v1165
        %v1167 = vlaneseq
        %v1168 = vshrl.u32 %v1167, 7
        %v1169 = vsub.s32 %v1166, %v1168
        %v1170 = vrot.slane %v1148, %v1169
        %v1172 = vunpack.c.l.s4 1966171168
        %v1173 = vunpack.c.0.s8 %v1172
        %v1174 = vlaneseq
        %v1175 = vshrl.u32 %v1174, 7
        %v1176 = vsub.s32 %v1173, %v1175
        %v1177 = vrot.slane %v1149, %v1176
        %v1178 = vcombine.high %v1156, %v1156
        %v1179 = vcombine.high %v1163, %v1163
        %v1180 = vcombine.high %v1170, %v1170
        %v1181 = vcombine.high %v1177, %v1177
        %v1182 = vcombine.high %v335, %v335
        %v1184 = vunpack.c.l.s4 1966171168
        %v1185 = vunpack.c.0.s8 %v1184
        %v1186 = vlaneseq
        %v1187 = vshrl.u32 %v1186, 7
        %v1188 = vsub.s32 %v1185, %v1187
        %v1189 = vrot.slane %v335, %v1188
        %v1191 = vunpack.c.l.s4 1966171168
        %v1192 = vunpack.c.0.s8 %v1191
        %v1193 = vlaneseq
        %v1194 = vshrl.u32 %v1193, 7
        %v1195 = vsub.s32 %v1192, %v1194
        %v1196 = vrot.slane %v1182, %v1195
        %v1197 = vcombine.high %v1189, %v1189
        %v1198 = vcombine.high %v1196, %v1196
        %v1200 = vunpack.c.l.s4 1966171168
        %v1201 = vunpack.c.0.s8 %v1200
        %v1202 = vlaneseq
        %v1203 = vshrl.u32 %v1202, 7
        %v1204 = vsub.s32 %v1201, %v1203
        %v1205 = vrot.slane %v1189, %v1204
        %v1207 = vunpack.c.l.s4 1966171168
        %v1208 = vunpack.c.0.s8 %v1207
        %v1209 = vlaneseq
        %v1210 = vshrl.u32 %v1209, 7
        %v1211 = vsub.s32 %v1208, %v1210
        %v1212 = vrot.slane %v1196, %v1211
        %v1214 = vunpack.c.l.s4 1966171168
        %v1215 = vunpack.c.0.s8 %v1214
        %v1216 = vlaneseq
        %v1217 = vshrl.u32 %v1216, 7
        %v1218 = vsub.s32 %v1215, %v1217
        %v1219 = vrot.slane %v1197, %v1218
        %v1221 = vunpack.c.l.s4 1966171168
        %v1222 = vunpack.c.0.s8 %v1221
        %v1223 = vlaneseq
        %v1224 = vshrl.u32 %v1223, 7
        %v1225 = vsub.s32 %v1222, %v1224
        %v1226 = vrot.slane %v1198, %v1225
        %v1227 = vcombine.high %v1205, %v1205
        %v1228 = vcombine.high %v1212, %v1212
        %v1229 = vcombine.high %v1219, %v1219
        %v1230 = vcombine.high %v1226, %v1226
        %v2015 = vunpack.c.l.b16 %v336
        %v2016 = vunpack.c.h.b16 %v336
        %v2017 = vunpack.c.l.b16 %v337
        %v2018 = vunpack.c.h.b16 %v337
        %v2019 = vunpack.c.l.b16 %v338
        %v2020 = vunpack.c.l.b16 %v339
        %v2021 = vunpack.c.h.b16 %v339
        %v2022 = vunpack.c.l.b16 %v340
        %v2023 = vunpack.c.h.b16 %v340
        %v2024 = vunpack.c.l.b16 %v341
        %v2025 = vunpack.c.l.b16 %v342
        %v2026 = vunpack.c.h.b16 %v342
        %v2027 = vunpack.c.l.b16 %v343
        %v2028 = vunpack.c.h.b16 %v343
        %v2029 = vunpack.c.l.b16 %v344
        %v2030 = vunpack.c.l.b16 %v345
        %v2031 = vunpack.c.h.b16 %v345
        %v2032 = vunpack.c.l.b16 %v346
        %v2033 = vunpack.c.h.b16 %v346
        %v2034 = vunpack.c.l.b16 %v347
        %v2035 = vunpack.c.l.b16 %v348
        %v2036 = vunpack.c.h.b16 %v348
        %v2037 = vunpack.c.l.b16 %v349
        %v2038 = vunpack.c.h.b16 %v349
        %v2039 = vunpack.c.l.b16 %v350
        %v2040 = vunpack.c.l.b16 %v351
        %v2041 = vunpack.c.h.b16 %v351
        %v2042 = vunpack.c.l.b16 %v352
        %v2043 = vunpack.c.h.b16 %v352
        %v2044 = vunpack.c.l.b16 %v353
        %v2045 = vunpack.c.l.b16 %v354
        %v2046 = vunpack.c.h.b16 %v354
        %v2047 = vunpack.c.l.b16 %v355
        %v2048 = vunpack.c.h.b16 %v355
        %v2049 = vunpack.c.l.b16 %v356
        %v2050 = vunpack.c.l.b16 %v357
        %v2051 = vunpack.c.h.b16 %v357
        %v2052 = vunpack.c.l.b16 %v358
        %v2053 = vunpack.c.h.b16 %v358
        %v2054 = vunpack.c.l.b16 %v359
        %v2055 = vunpack.c.l.b16 %v360
        %v2056 = vunpack.c.h.b16 %v360
        %v2057 = vunpack.c.l.b16 %v361
        %v2058 = vunpack.c.h.b16 %v361
        %v2059 = vunpack.c.l.b16 %v362
        %v2060 = vunpack.c.l.b16 %v363
        %v2061 = vunpack.c.h.b16 %v363
        %v2062 = vunpack.c.l.b16 %v364
        %v2063 = vunpack.c.h.b16 %v364
        %v2064 = vunpack.c.l.b16 %v365
        %v2065 = vunpack.c.l.b16 %v366
        %v2066 = vunpack.c.h.b16 %v366
        %v2067 = vunpack.c.l.b16 %v367
        %v2068 = vunpack.c.h.b16 %v367
        %v2069 = vunpack.c.l.b16 %v368
        %v2070 = vunpack.c.l.b16 %v369
        %v2071 = vunpack.c.h.b16 %v369
        %v2072 = vunpack.c.l.b16 %v370
        %v2073 = vunpack.c.h.b16 %v370
        %v2074 = vunpack.c.l.b16 %v371
        %v2075 = vunpack.c.l.b16 %v372
        %v2076 = vunpack.c.h.b16 %v372
        %v2077 = vunpack.c.l.b16 %v373
        %v2078 = vunpack.c.h.b16 %v373
        %v2079 = vunpack.c.l.b16 %v374
        %v2080 = vunpack.c.l.b16 %v375
        %v2081 = vunpack.c.h.b16 %v375
        %v2082 = vunpack.c.l.b16 %v376
        %v2083 = vunpack.c.h.b16 %v376
        %v2084 = vunpack.c.l.b16 %v377
        %v2085 = vunpack.c.l.b16 %v378
        %v2086 = vunpack.c.h.b16 %v378
        %v2087 = vunpack.c.l.b16 %v379
        %v2088 = vunpack.c.h.b16 %v379
        %v2089 = vunpack.c.l.b16 %v380
        %v2090 = vunpack.c.l.b16 %v381
        %v2091 = vunpack.c.h.b16 %v381
        %v2092 = vunpack.c.l.b16 %v382
        %v2093 = vunpack.c.h.b16 %v382
        %v2094 = vunpack.c.l.b16 %v383
        %v2095 = vunpack.c.l.b16 %v384
        %v2096 = vunpack.c.h.b16 %v384
        %v2097 = vunpack.c.l.b16 %v385
        %v2098 = vunpack.c.h.b16 %v385
        %v2099 = vunpack.c.l.b16 %v386
        %v2100 = vunpack.c.l.b16 %v387
        %v2101 = vunpack.c.h.b16 %v387
        %v2102 = vunpack.c.l.b16 %v388
        %v2103 = vunpack.c.h.b16 %v388
        %v2104 = vunpack.c.l.b16 %v389
        %v2105 = vunpack.c.l.b16 %v390
        %v2106 = vunpack.c.h.b16 %v390
        %v2107 = vunpack.c.l.b16 %v391
        %v2108 = vunpack.c.h.b16 %v391
        %v2109 = vunpack.c.l.b16 %v392
        %v2110 = vunpack.c.l.b16 %v393
        %v2111 = vunpack.c.h.b16 %v393
        %v2112 = vunpack.c.l.b16 %v394
        %v2113 = vunpack.c.h.b16 %v394
        %v2114 = vunpack.c.l.b16 %v395
        %v2115 = vunpack.c.l.b16 %v396
        %v2116 = vunpack.c.h.b16 %v396
        %v2117 = vunpack.c.l.b16 %v397
        %v2118 = vunpack.c.h.b16 %v397
        %v2119 = vunpack.c.l.b16 %v398
        %v2120 = vunpack.c.l.b16 %v399
        %v2121 = vunpack.c.h.b16 %v399
        %v2122 = vunpack.c.l.b16 %v400
        %v2123 = vunpack.c.h.b16 %v400
        %v2124 = vunpack.c.l.b16 %v401
        %v2125 = vunpack.c.l.b16 %v402
        %v2126 = vunpack.c.h.b16 %v402
        %v2127 = vunpack.c.l.b16 %v403
        %v2128 = vunpack.c.h.b16 %v403
        %v2129 = vunpack.c.l.b16 %v404
        %v2130 = vunpack.c.l.b16 %v405
        %v2131 = vunpack.c.h.b16 %v405
        %v2132 = vunpack.c.l.b16 %v406
        %v2133 = vunpack.c.h.b16 %v406
        %v2134 = vunpack.c.l.b16 %v407
        %v2135 = vunpack.c.l.b16 %v408
        %v2136 = vunpack.c.h.b16 %v408
        %v2137 = vunpack.c.l.b16 %v409
        %v2138 = vunpack.c.h.b16 %v409
        %v2139 = vunpack.c.l.b16 %v410
        %v2140 = vunpack.c.l.b16 %v411
        %v2141 = vunpack.c.h.b16 %v411
        %v2142 = vunpack.c.l.b16 %v412
        %v2143 = vunpack.c.h.b16 %v412
        %v2144 = vunpack.c.l.b16 %v413
        %v2145 = vunpack.c.l.b16 %v414
        %v2146 = vunpack.c.h.b16 %v414
        %v2147 = vunpack.c.l.b16 %v415
        %v2148 = vunpack.c.h.b16 %v415
        %v2149 = vunpack.c.l.b16 %v416
        %v2150 = vunpack.c.l.b16 %v417
        %v2151 = vunpack.c.h.b16 %v417
        %v2152 = vunpack.c.l.b16 %v418
        %v2153 = vunpack.c.h.b16 %v418
        %v2154 = vunpack.c.l.b16 %v419
        %v2155 = vunpack.c.l.b16 %v420
        %v2156 = vunpack.c.h.b16 %v420
        %v2157 = vunpack.c.l.b16 %v421
        %v2158 = vunpack.c.h.b16 %v421
        %v2159 = vunpack.c.l.b16 %v422
        %v2160 = vunpack.c.l.b16 %v423
        %v2161 = vunpack.c.h.b16 %v423
        %v2162 = vunpack.c.l.b16 %v424
        %v2163 = vunpack.c.h.b16 %v424
        %v2164 = vunpack.c.l.b16 %v425
        %v2165 = vunpack.c.l.b16 %v426
        %v2166 = vunpack.c.h.b16 %v426
        %v2167 = vunpack.c.l.b16 %v427
        %v2168 = vunpack.c.h.b16 %v427
        %v2169 = vunpack.c.l.b16 %v428
        %v2170 = vunpack.c.l.b16 %v429
        %v2171 = vunpack.c.h.b16 %v429
        %v2172 = vunpack.c.l.b16 %v430
        %v2173 = vunpack.c.h.b16 %v430
        %v2174 = vunpack.c.l.b16 %v431
        %v2175 = vunpack.c.l.b16 %v432
        %v2176 = vunpack.c.h.b16 %v432
        %v2177 = vunpack.c.l.b16 %v433
        %v2178 = vunpack.c.h.b16 %v433
        %v2179 = vunpack.c.l.b16 %v434
        %v2180 = vunpack.c.l.b16 %v435
        %v2181 = vunpack.c.h.b16 %v435
        %v2182 = vunpack.c.l.b16 %v436
        %v2183 = vunpack.c.h.b16 %v436
        %v2184 = vunpack.c.l.b16 %v437
        %v2185 = vunpack.c.l.b16 %v438
        %v2186 = vunpack.c.h.b16 %v438
        %v2187 = vunpack.c.l.b16 %v439
        %v2188 = vunpack.c.h.b16 %v439
        %v2189 = vunpack.c.l.b16 %v440
        %v2190 = vunpack.c.l.b16 %v441
        %v2191 = vunpack.c.h.b16 %v441
        %v2192 = vunpack.c.l.b16 %v442
        %v2193 = vunpack.c.h.b16 %v442
        %v2194 = vunpack.c.l.b16 %v443
        %v2195 = vunpack.c.l.b16 %v444
        %v2196 = vunpack.c.h.b16 %v444
        %v2197 = vunpack.c.l.b16 %v445
        %v2198 = vunpack.c.h.b16 %v445
        %v2199 = vunpack.c.l.b16 %v446
        %v2200 = vunpack.c.l.b16 %v447
        %v2201 = vunpack.c.h.b16 %v447
        %v2202 = vunpack.c.l.b16 %v448
        %v2203 = vunpack.c.h.b16 %v448
        %v2204 = vunpack.c.l.b16 %v449
        %v2205 = vunpack.c.l.b16 %v450
        %v2206 = vunpack.c.h.b16 %v450
        %v2207 = vunpack.c.l.b16 %v451
        %v2208 = vunpack.c.h.b16 %v451
        %v2209 = vunpack.c.l.b16 %v452
        %v2210 = vunpack.c.l.b16 %v453
        %v2211 = vunpack.c.h.b16 %v453
        %v2212 = vunpack.c.l.b16 %v454
        %v2213 = vunpack.c.h.b16 %v454
        %v2214 = vunpack.c.l.b16 %v455
        %v2215 = vunpack.c.l.b16 %v456
        %v2216 = vunpack.c.h.b16 %v456
        %v2217 = vunpack.c.l.b16 %v457
        %v2218 = vunpack.c.h.b16 %v457
        %v2219 = vunpack.c.l.b16 %v458
        %v2220 = vunpack.c.l.b16 %v459
        %v2221 = vunpack.c.h.b16 %v459
        %v2222 = vunpack.c.l.b16 %v460
        %v2223 = vunpack.c.h.b16 %v460
        %v2224 = vunpack.c.l.b16 %v461
        %v2225 = vunpack.c.l.b16 %v462
        %v2226 = vunpack.c.h.b16 %v462
        %v2227 = vunpack.c.l.b16 %v463
        %v2228 = vunpack.c.h.b16 %v463
        %v2229 = vunpack.c.l.b16 %v464
        %v2230 = vunpack.c.l.b16 %v465
        %v2231 = vunpack.c.h.b16 %v465
        %v2232 = vunpack.c.l.b16 %v466
        %v2233 = vunpack.c.h.b16 %v466
        %v2234 = vunpack.c.l.b16 %v467
        %v2235 = vunpack.c.l.b16 %v468
        %v2236 = vunpack.c.h.b16 %v468
        %v2237 = vunpack.c.l.b16 %v469
        %v2238 = vunpack.c.h.b16 %v469
        %v2239 = vunpack.c.l.b16 %v470
        %v2240 = vunpack.c.l.b16 %v471
        %v2241 = vunpack.c.h.b16 %v471
        %v2242 = vunpack.c.l.b16 %v472
        %v2243 = vunpack.c.h.b16 %v472
        %v2244 = vunpack.c.l.b16 %v473
        %v2245 = vunpack.c.l.b16 %v474
        %v2246 = vunpack.c.h.b16 %v474
        %v2247 = vunpack.c.l.b16 %v475
        %v2248 = vunpack.c.h.b16 %v475
        %v2249 = vunpack.c.l.b16 %v476
        %v2250 = vunpack.c.l.b16 %v477
        %v2251 = vunpack.c.h.b16 %v477
        %v2252 = vunpack.c.l.b16 %v478
        %v2253 = vunpack.c.h.b16 %v478
        %v2254 = vunpack.c.l.b16 %v479
        %v2255 = vunpack.c.l.b16 %v480
        %v2256 = vunpack.c.h.b16 %v480
        %v2257 = vunpack.c.l.b16 %v481
        %v2258 = vunpack.c.h.b16 %v481
        %v2259 = vunpack.c.l.b16 %v482
        %v2260 = vunpack.c.l.b16 %v483
        %v2261 = vunpack.c.h.b16 %v483
        %v2262 = vunpack.c.l.b16 %v484
        %v2263 = vunpack.c.h.b16 %v484
        %v2264 = vunpack.c.l.b16 %v485
        %v2265 = vunpack.c.l.b16 %v486
        %v2266 = vunpack.c.h.b16 %v486
        %v2267 = vunpack.c.l.b16 %v487
        %v2268 = vunpack.c.h.b16 %v487
        %v2269 = vunpack.c.l.b16 %v488
        %v2270 = vunpack.c.l.b16 %v489
        %v2271 = vunpack.c.h.b16 %v489
        %v2272 = vunpack.c.l.b16 %v490
        %v2273 = vunpack.c.h.b16 %v490
        %v2274 = vunpack.c.l.b16 %v491
        %v2275 = vunpack.c.l.b16 %v492
        %v2276 = vunpack.c.h.b16 %v492
        %v2277 = vunpack.c.l.b16 %v493
        %v2278 = vunpack.c.h.b16 %v493
        %v2279 = vunpack.c.l.b16 %v494
        %v2280 = vunpack.c.l.b16 %v495
        %v2281 = vunpack.c.h.b16 %v495
        %v2282 = vunpack.c.l.b16 %v496
        %v2283 = vunpack.c.h.b16 %v496
        %v2284 = vunpack.c.l.b16 %v497
        %v2285 = vunpack.c.l.b16 %v498
        %v2286 = vunpack.c.h.b16 %v498
        %v2287 = vunpack.c.l.b16 %v499
        %v2288 = vunpack.c.h.b16 %v499
        %v2289 = vunpack.c.l.b16 %v500
        %v2290 = vunpack.c.l.b16 %v501
        %v2291 = vunpack.c.h.b16 %v501
        %v2292 = vunpack.c.l.b16 %v502
        %v2293 = vunpack.c.h.b16 %v502
        %v2294 = vunpack.c.l.b16 %v503
        %v2295 = vunpack.c.l.b16 %v504
        %v2296 = vunpack.c.h.b16 %v504
        %v2297 = vunpack.c.l.b16 %v505
        %v2298 = vunpack.c.h.b16 %v505
        %v2299 = vunpack.c.l.b16 %v506
        %v2300 = vunpack.c.l.b16 %v507
        %v2301 = vunpack.c.h.b16 %v507
        %v2302 = vunpack.c.l.b16 %v508
        %v2303 = vunpack.c.h.b16 %v508
        %v2304 = vunpack.c.l.b16 %v509
        %v2305 = vunpack.c.l.b16 %v510
        %v2306 = vunpack.c.h.b16 %v510
        %v2307 = vunpack.c.l.b16 %v511
        %v2308 = vunpack.c.h.b16 %v511
        %v2309 = vunpack.c.l.b16 %v512
        %v2310 = vunpack.c.l.b16 %v513
        %v2311 = vunpack.c.h.b16 %v513
        %v2312 = vunpack.c.l.b16 %v514
        %v2313 = vunpack.c.h.b16 %v514
        %v2314 = vunpack.c.l.b16 %v515
        %v2315 = vunpack.c.l.b16 %v516
        %v2316 = vunpack.c.h.b16 %v516
        %v2317 = vunpack.c.l.b16 %v517
        %v2318 = vunpack.c.h.b16 %v517
        %v2319 = vunpack.c.l.b16 %v518
        %v2320 = vunpack.c.l.b16 %v519
        %v2321 = vunpack.c.h.b16 %v519
        %v2322 = vunpack.c.l.b16 %v520
        %v2323 = vunpack.c.h.b16 %v520
        %v2324 = vunpack.c.l.b16 %v521
        %v2325 = vunpack.c.l.b16 %v522
        %v2326 = vunpack.c.h.b16 %v522
        %v2327 = vunpack.c.l.b16 %v523
        %v2328 = vunpack.c.h.b16 %v523
        %v2329 = vunpack.c.l.b16 %v524
        %v2330 = vunpack.c.l.b16 %v525
        %v2331 = vunpack.c.h.b16 %v525
        %v2332 = vunpack.c.l.b16 %v526
        %v2333 = vunpack.c.h.b16 %v526
        %v2334 = vunpack.c.l.b16 %v527
        %v2335 = vunpack.c.l.b16 %v528
        %v2336 = vunpack.c.h.b16 %v528
        %v2337 = vunpack.c.l.b16 %v529
        %v2338 = vunpack.c.h.b16 %v529
        %v2339 = vunpack.c.l.b16 %v530
        %v2340 = vunpack.c.l.b16 %v531
        %v2341 = vunpack.c.h.b16 %v531
        %v2342 = vunpack.c.l.b16 %v532
        %v2343 = vunpack.c.h.b16 %v532
        %v2344 = vunpack.c.l.b16 %v533
        %v2345 = vunpack.c.l.b16 %v534
        %v2346 = vunpack.c.h.b16 %v534
        %v2347 = vunpack.c.l.b16 %v535
        %v2348 = vunpack.c.h.b16 %v535
        %v2349 = vunpack.c.l.b16 %v536
        %v2350 = vunpack.c.l.b16 %v537
        %v2351 = vunpack.c.h.b16 %v537
        %v2352 = vunpack.c.l.b16 %v538
        %v2353 = vunpack.c.h.b16 %v538
        %v2354 = vunpack.c.l.b16 %v539
        %v2355 = vunpack.c.l.b16 %v540
        %v2356 = vunpack.c.h.b16 %v540
        %v2357 = vunpack.c.l.b16 %v541
        %v2358 = vunpack.c.h.b16 %v541
        %v2359 = vunpack.c.l.b16 %v542
        %v2360 = vunpack.c.l.b16 %v543
        %v2361 = vunpack.c.h.b16 %v543
        %v2362 = vunpack.c.l.b16 %v544
        %v2363 = vunpack.c.h.b16 %v544
        %v2364 = vunpack.c.l.b16 %v545
        %v2365 = vunpack.c.l.b16 %v546
        %v2366 = vunpack.c.h.b16 %v546
        %v2367 = vunpack.c.l.b16 %v547
        %v2368 = vunpack.c.h.b16 %v547
        %v2369 = vunpack.c.l.b16 %v548
        %v2370 = vunpack.c.l.b16 %v549
        %v2371 = vunpack.c.h.b16 %v549
        %v2372 = vunpack.c.l.b16 %v550
        %v2373 = vunpack.c.h.b16 %v550
        %v2374 = vunpack.c.l.b16 %v551
        %v2375 = vunpack.c.l.b16 %v552
        %v2376 = vunpack.c.h.b16 %v552
        %v2377 = vunpack.c.l.b16 %v553
        %v2378 = vunpack.c.h.b16 %v553
        %v2379 = vunpack.c.l.b16 %v554
        %v2380 = vunpack.c.l.b16 %v555
        %v2381 = vunpack.c.h.b16 %v555
        %v2382 = vunpack.c.l.b16 %v556
        %v2383 = vunpack.c.h.b16 %v556
        %v2384 = vunpack.c.l.b16 %v557
        %v2385 = vunpack.c.l.b16 %v558
        %v2386 = vunpack.c.h.b16 %v558
        %v2387 = vunpack.c.l.b16 %v559
        %v2388 = vunpack.c.h.b16 %v559
        %v2389 = vunpack.c.l.b16 %v560
        %v2390 = vunpack.c.l.b16 %v561
        %v2391 = vunpack.c.h.b16 %v561
        %v2392 = vunpack.c.l.b16 %v562
        %v2393 = vunpack.c.h.b16 %v562
        %v2394 = vunpack.c.l.b16 %v563
        %v2395 = vunpack.c.l.b16 %v564
        %v2396 = vunpack.c.h.b16 %v564
        %v2397 = vunpack.c.l.b16 %v565
        %v2398 = vunpack.c.h.b16 %v565
        %v2399 = vunpack.c.l.b16 %v566
        %v2400 = vunpack.c.l.b16 %v567
        %v2401 = vunpack.c.h.b16 %v567
        %v2402 = vunpack.c.l.b16 %v568
        %v2403 = vunpack.c.h.b16 %v568
        %v2404 = vunpack.c.l.b16 %v569
        %v2405 = vunpack.c.l.b16 %v570
        %v2406 = vunpack.c.h.b16 %v570
        %v2407 = vunpack.c.l.b16 %v571
        %v2408 = vunpack.c.h.b16 %v571
        %v2409 = vunpack.c.l.b16 %v572
        %v2410 = vunpack.c.l.b16 %v573
        %v2411 = vunpack.c.h.b16 %v573
        %v2412 = vunpack.c.l.b16 %v574
        %v2413 = vunpack.c.h.b16 %v574
        %v2414 = vunpack.c.l.b16 %v575
        %v2415 = vunpack.c.l.b16 %v576
        %v2416 = vunpack.c.h.b16 %v576
        %v2417 = vunpack.c.l.b16 %v577
        %v2418 = vunpack.c.h.b16 %v577
        %v2419 = vunpack.c.l.b16 %v578
        %v2420 = vunpack.c.l.b16 %v579
        %v2421 = vunpack.c.h.b16 %v579
        %v2422 = vunpack.c.l.b16 %v580
        %v2423 = vunpack.c.h.b16 %v580
        %v2424 = vunpack.c.l.b16 %v581
        %v2425 = vunpack.c.l.b16 %v582
        %v2426 = vunpack.c.h.b16 %v582
        %v2427 = vunpack.c.l.b16 %v583
        %v2428 = vunpack.c.h.b16 %v583
        %v2429 = vunpack.c.l.b16 %v584
        %v2430 = vunpack.c.l.b16 %v585
        %v2431 = vunpack.c.h.b16 %v585
        %v2432 = vunpack.c.l.b16 %v586
        %v2433 = vunpack.c.h.b16 %v586
        %v2434 = vunpack.c.l.b16 %v587
        %v2435 = vunpack.c.l.b16 %v588
        %v2436 = vunpack.c.h.b16 %v588
        %v2437 = vunpack.c.l.b16 %v589
        %v2438 = vunpack.c.h.b16 %v589
        %v2439 = vunpack.c.l.b16 %v590
        %v2440 = vunpack.c.l.b16 %v591
        %v2441 = vunpack.c.h.b16 %v591
        %v2442 = vunpack.c.l.b16 %v592
        %v2443 = vunpack.c.h.b16 %v592
        %v2444 = vunpack.c.l.b16 %v593
        %v2445 = vunpack.c.l.b16 %v594
        %v2446 = vunpack.c.h.b16 %v594
        %v2447 = vunpack.c.l.b16 %v595
        %v2448 = vunpack.c.h.b16 %v595
        %v2449 = vunpack.c.l.b16 %v596
        %v2450 = vunpack.c.l.b16 %v597
        %v2451 = vunpack.c.h.b16 %v597
        %v2452 = vunpack.c.l.b16 %v598
        %v2453 = vunpack.c.h.b16 %v598
        %v2454 = vunpack.c.l.b16 %v599
        %v2455 = vunpack.c.l.b16 %v600
        %v2456 = vunpack.c.h.b16 %v600
        %v2457 = vunpack.c.l.b16 %v601
        %v2458 = vunpack.c.h.b16 %v601
        %v2459 = vunpack.c.l.b16 %v602
        %v2460 = vunpack.c.l.b16 %v603
        %v2461 = vunpack.c.h.b16 %v603
        %v2462 = vunpack.c.l.b16 %v604
        %v2463 = vunpack.c.h.b16 %v604
        %v2464 = vunpack.c.l.b16 %v605
        %v2465 = vunpack.c.l.b16 %v606
        %v2466 = vunpack.c.h.b16 %v606
        %v2467 = vunpack.c.l.b16 %v607
        %v2468 = vunpack.c.h.b16 %v607
        %v2469 = vunpack.c.l.b16 %v608
        %v2470 = vunpack.c.l.b16 %v609
        %v2471 = vunpack.c.h.b16 %v609
        %v2472 = vunpack.c.l.b16 %v610
        %v2473 = vunpack.c.h.b16 %v610
        %v2474 = vunpack.c.l.b16 %v611
        %v2475 = vunpack.c.l.b16 %v612
        %v2476 = vunpack.c.h.b16 %v612
        %v2477 = vunpack.c.l.b16 %v613
        %v2478 = vunpack.c.h.b16 %v613
        %v2479 = vunpack.c.l.b16 %v614
        %v2480 = vunpack.c.l.b16 %v615
        %v2481 = vunpack.c.h.b16 %v615
        %v2482 = vunpack.c.l.b16 %v616
        %v2483 = vunpack.c.h.b16 %v616
        %v2484 = vunpack.c.l.b16 %v617
        %v2485 = vunpack.c.l.b16 %v618
        %v2486 = vunpack.c.h.b16 %v618
        %v2487 = vunpack.c.l.b16 %v619
        %v2488 = vunpack.c.h.b16 %v619
        %v2489 = vunpack.c.l.b16 %v620
        %v2490 = vunpack.c.l.b16 %v621
        %v2491 = vunpack.c.h.b16 %v621
        %v2492 = vunpack.c.l.b16 %v622
        %v2493 = vunpack.c.h.b16 %v622
        %v2494 = vunpack.c.l.b16 %v623
        %v2495 = vunpack.c.l.b16 %v624
        %v2496 = vunpack.c.h.b16 %v624
        %v2497 = vunpack.c.l.b16 %v625
        %v2498 = vunpack.c.h.b16 %v625
        %v2499 = vunpack.c.l.b16 %v626
        %v2500 = vunpack.c.l.b16 %v627
        %v2501 = vunpack.c.h.b16 %v627
        %v2502 = vunpack.c.l.b16 %v628
        %v2503 = vunpack.c.h.b16 %v628
        %v2504 = vunpack.c.l.b16 %v629
        %v2505 = vunpack.c.l.b16 %v630
        %v2506 = vunpack.c.h.b16 %v630
        %v2507 = vunpack.c.l.b16 %v631
        %v2508 = vunpack.c.h.b16 %v631
        %v2509 = vunpack.c.l.b16 %v632
        %v2510 = vunpack.c.l.b16 %v633
        %v2511 = vunpack.c.h.b16 %v633
        %v2512 = vunpack.c.l.b16 %v634
        %v2513 = vunpack.c.h.b16 %v634
        %v2514 = vunpack.c.l.b16 %v635
        %v2515 = vunpack.c.l.b16 %v636
        %v2516 = vunpack.c.h.b16 %v636
        %v2517 = vunpack.c.l.b16 %v637
        %v2518 = vunpack.c.h.b16 %v637
        %v2519 = vunpack.c.l.b16 %v638
        %v2520 = vunpack.c.l.b16 %v639
        %v2521 = vunpack.c.h.b16 %v639
        %v2522 = vunpack.c.l.b16 %v640
        %v2523 = vunpack.c.h.b16 %v640
        %v2524 = vunpack.c.l.b16 %v641
        %v2525 = vunpack.c.l.b16 %v642
        %v2526 = vunpack.c.h.b16 %v642
        %v2527 = vunpack.c.l.b16 %v643
        %v2528 = vunpack.c.h.b16 %v643
        %v2529 = vunpack.c.l.b16 %v644
        %v2530 = vunpack.c.l.b16 %v645
        %v2531 = vunpack.c.h.b16 %v645
        %v2532 = vunpack.c.l.b16 %v646
        %v2533 = vunpack.c.h.b16 %v646
        %v2534 = vunpack.c.l.b16 %v647
        %v2535 = vunpack.c.l.b16 %v648
        %v2536 = vunpack.c.h.b16 %v648
        %v2537 = vunpack.c.l.b16 %v649
        %v2538 = vunpack.c.h.b16 %v649
        %v2539 = vunpack.c.l.b16 %v650
        %v2540 = vunpack.c.l.b16 %v651
        %v2541 = vunpack.c.h.b16 %v651
        %v2542 = vunpack.c.l.b16 %v652
        %v2543 = vunpack.c.h.b16 %v652
        %v2544 = vunpack.c.l.b16 %v653
        %v2545 = vunpack.c.l.b16 %v654
        %v2546 = vunpack.c.h.b16 %v654
        %v2547 = vunpack.c.l.b16 %v655
        %v2548 = vunpack.c.h.b16 %v655
        %v2549 = vunpack.c.l.b16 %v656
        %v2550 = vunpack.c.l.b16 %v657
        %v2551 = vunpack.c.h.b16 %v657
        %v2552 = vunpack.c.l.b16 %v658
        %v2553 = vunpack.c.h.b16 %v658
        %v2554 = vunpack.c.l.b16 %v659
        %v2555 = vunpack.c.l.b16 %v660
        %v2556 = vunpack.c.h.b16 %v660
        %v2557 = vunpack.c.l.b16 %v661
        %v2558 = vunpack.c.h.b16 %v661
        %v2559 = vunpack.c.l.b16 %v662
        %v2560 = vunpack.c.l.b16 %v663
        %v2561 = vunpack.c.h.b16 %v663
        %v2562 = vunpack.c.l.b16 %v664
        %v2563 = vunpack.c.h.b16 %v664
        %v2564 = vunpack.c.l.b16 %v665
        %v2565 = vunpack.c.l.b16 %v666
        %v2566 = vunpack.c.h.b16 %v666
        %v2567 = vunpack.c.l.b16 %v667
        %v2568 = vunpack.c.h.b16 %v667
        %v2569 = vunpack.c.l.b16 %v668
        %v2570 = vunpack.c.l.b16 %v669
        %v2571 = vunpack.c.h.b16 %v669
        %v2572 = vunpack.c.l.b16 %v670
        %v2573 = vunpack.c.h.b16 %v670
        %v2574 = vunpack.c.l.b16 %v671
        %v2575 = vunpack.c.l.b16 %v672
        %v2576 = vunpack.c.h.b16 %v672
        %v2577 = vunpack.c.l.b16 %v673
        %v2578 = vunpack.c.h.b16 %v673
        %v2579 = vunpack.c.l.b16 %v674
        %v2580 = vunpack.c.l.b16 %v675
        %v2581 = vunpack.c.h.b16 %v675
        %v2582 = vunpack.c.l.b16 %v676
        %v2583 = vunpack.c.h.b16 %v676
        %v2584 = vunpack.c.l.b16 %v677
        %v2585 = vunpack.c.l.b16 %v678
        %v2586 = vunpack.c.h.b16 %v678
        %v2587 = vunpack.c.l.b16 %v679
        %v2588 = vunpack.c.h.b16 %v679
        %v2589 = vunpack.c.l.b16 %v680
        %v2590 = vunpack.c.l.b16 %v681
        %v2591 = vunpack.c.h.b16 %v681
        %v2592 = vunpack.c.l.b16 %v682
        %v2593 = vunpack.c.h.b16 %v682
        %v2594 = vunpack.c.l.b16 %v683
        %v2595 = vunpack.c.l.b16 %v684
        %v2596 = vunpack.c.h.b16 %v684
        %v2597 = vunpack.c.l.b16 %v685
        %v2598 = vunpack.c.h.b16 %v685
        %v2599 = vunpack.c.l.b16 %v686
        %v2600 = vunpack.c.l.b16 %v687
        %v2601 = vunpack.c.h.b16 %v687
        %v2602 = vunpack.c.l.b16 %v688
        %v2603 = vunpack.c.h.b16 %v688
        %v2604 = vunpack.c.l.b16 %v689
        %v2605 = vunpack.c.l.b16 %v690
        %v2606 = vunpack.c.h.b16 %v690
        %v2607 = vunpack.c.l.b16 %v691
        %v2608 = vunpack.c.h.b16 %v691
        %v2609 = vunpack.c.l.b16 %v692
        %v2610 = vunpack.c.l.b16 %v693
        %v2611 = vunpack.c.h.b16 %v693
        %v2612 = vunpack.c.l.b16 %v694
        %v2613 = vunpack.c.h.b16 %v694
        %v2614 = vunpack.c.l.b16 %v695
        %v2615 = vunpack.c.l.b16 %v696
        %v2616 = vunpack.c.h.b16 %v696
        %v2617 = vunpack.c.l.b16 %v697
        %v2618 = vunpack.c.h.b16 %v697
        %v2619 = vunpack.c.l.b16 %v698
        %v2620 = vunpack.c.l.b16 %v699
        %v2621 = vunpack.c.h.b16 %v699
        %v2622 = vunpack.c.l.b16 %v700
        %v2623 = vunpack.c.h.b16 %v700
        %v2624 = vunpack.c.l.b16 %v701
        %v2625 = vunpack.c.l.b16 %v702
        %v2626 = vunpack.c.h.b16 %v702
        %v2627 = vunpack.c.l.b16 %v703
        %v2628 = vunpack.c.h.b16 %v703
        %v2629 = vunpack.c.l.b16 %v704
        %v2630 = vunpack.c.l.b16 %v705
        %v2631 = vunpack.c.h.b16 %v705
        %v2632 = vunpack.c.l.b16 %v706
        %v2633 = vunpack.c.h.b16 %v706
        %v2634 = vunpack.c.l.b16 %v707
        %v2635 = vunpack.c.l.b16 %v708
        %v2636 = vunpack.c.h.b16 %v708
        %v2637 = vunpack.c.l.b16 %v709
        %v2638 = vunpack.c.h.b16 %v709
        %v2639 = vunpack.c.l.b16 %v710
        %v2640 = vunpack.c.l.b16 %v711
        %v2641 = vunpack.c.h.b16 %v711
        %v2642 = vunpack.c.l.b16 %v712
        %v2643 = vunpack.c.h.b16 %v712
        %v2644 = vunpack.c.l.b16 %v713
        %v2645 = vunpack.c.l.b16 %v714
        %v2646 = vunpack.c.h.b16 %v714
        %v2647 = vunpack.c.l.b16 %v715
        %v2648 = vunpack.c.h.b16 %v715
        %v2649 = vunpack.c.l.b16 %v716
        %v2650 = vunpack.c.l.b16 %v717
        %v2651 = vunpack.c.h.b16 %v717
        %v2652 = vunpack.c.l.b16 %v718
        %v2653 = vunpack.c.h.b16 %v718
        %v2654 = vunpack.c.l.b16 %v719
        %v2655 = vunpack.c.l.b16 %v720
        %v2656 = vunpack.c.h.b16 %v720
        %v2657 = vunpack.c.l.b16 %v721
        %v2658 = vunpack.c.h.b16 %v721
        %v2659 = vunpack.c.l.b16 %v722
        %v2660 = vunpack.c.l.b16 %v723
        %v2661 = vunpack.c.h.b16 %v723
        %v2662 = vunpack.c.l.b16 %v724
        %v2663 = vunpack.c.h.b16 %v724
        %v2664 = vunpack.c.l.b16 %v725
        %v2665 = vunpack.c.l.b16 %v726
        %v2666 = vunpack.c.h.b16 %v726
        %v2667 = vunpack.c.l.b16 %v727
        %v2668 = vunpack.c.h.b16 %v727
        %v2669 = vunpack.c.l.b16 %v728
        %v2670 = vunpack.c.l.b16 %v729
        %v2671 = vunpack.c.h.b16 %v729
        %v2672 = vunpack.c.l.b16 %v730
        %v2673 = vunpack.c.h.b16 %v730
        %v2674 = vunpack.c.l.b16 %v731
        %v2675 = vunpack.c.l.b16 %v732
        %v2676 = vunpack.c.h.b16 %v732
        %v2677 = vunpack.c.l.b16 %v733
        %v2678 = vunpack.c.h.b16 %v733
        %v2679 = vunpack.c.l.b16 %v734
        %v2680 = vunpack.c.l.b16 %v735
        %v2681 = vunpack.c.h.b16 %v735
        %v2682 = vunpack.c.l.b16 %v736
        %v2683 = vunpack.c.h.b16 %v736
        %v2684 = vunpack.c.l.b16 %v737
        %v2685 = vunpack.c.l.b16 %v738
        %v2686 = vunpack.c.h.b16 %v738
        %v2687 = vunpack.c.l.b16 %v739
        %v2688 = vunpack.c.h.b16 %v739
        %v2689 = vunpack.c.l.b16 %v740
        %v2690 = vunpack.c.l.b16 %v741
        %v2691 = vunpack.c.h.b16 %v741
        %v2692 = vunpack.c.l.b16 %v742
        %v2693 = vunpack.c.h.b16 %v742
        %v2694 = vunpack.c.l.b16 %v743
        %v2695 = vunpack.c.l.b16 %v744
        %v2696 = vunpack.c.h.b16 %v744
        %v2697 = vunpack.c.l.b16 %v745
        %v2698 = vunpack.c.h.b16 %v745
        %v2699 = vunpack.c.l.b16 %v746
        %v2700 = vunpack.c.l.b16 %v747
        %v2701 = vunpack.c.h.b16 %v747
        %v2702 = vunpack.c.l.b16 %v748
        %v2703 = vunpack.c.h.b16 %v748
        %v2704 = vunpack.c.l.b16 %v749
        %v2705 = vunpack.c.l.b16 %v750
        %v2706 = vunpack.c.h.b16 %v750
        %v2707 = vunpack.c.l.b16 %v751
        %v2708 = vunpack.c.h.b16 %v751
        %v2709 = vunpack.c.l.b16 %v752
        %v2710 = vunpack.c.l.b16 %v753
        %v2711 = vunpack.c.h.b16 %v753
        %v2712 = vunpack.c.l.b16 %v754
        %v2713 = vunpack.c.h.b16 %v754
        %v2714 = vunpack.c.l.b16 %v755
        %v2715 = vunpack.c.l.b16 %v756
        %v2716 = vunpack.c.h.b16 %v756
        %v2717 = vunpack.c.l.b16 %v757
        %v2718 = vunpack.c.h.b16 %v757
        %v2719 = vunpack.c.l.b16 %v758
        %v2720 = vunpack.c.l.b16 %v759
        %v2721 = vunpack.c.h.b16 %v759
        %v2722 = vunpack.c.l.b16 %v760
        %v2723 = vunpack.c.h.b16 %v760
        %v2724 = vunpack.c.l.b16 %v761
        %v2725 = vunpack.c.l.b16 %v762
        %v2726 = vunpack.c.h.b16 %v762
        %v2727 = vunpack.c.l.b16 %v763
        %v2728 = vunpack.c.h.b16 %v763
        %v2729 = vunpack.c.l.b16 %v764
        %v2730 = vunpack.c.l.b16 %v765
        %v2731 = vunpack.c.h.b16 %v765
        %v2732 = vunpack.c.l.b16 %v766
        %v2733 = vunpack.c.h.b16 %v766
        %v2734 = vunpack.c.l.b16 %v767
        %v2735 = vunpack.c.l.b16 %v768
        %v2736 = vunpack.c.h.b16 %v768
        %v2737 = vunpack.c.l.b16 %v769
        %v2738 = vunpack.c.h.b16 %v769
        %v2739 = vunpack.c.l.b16 %v770
        %v2740 = vunpack.c.l.b16 %v771
        %v2741 = vunpack.c.h.b16 %v771
        %v2742 = vunpack.c.l.b16 %v772
        %v2743 = vunpack.c.h.b16 %v772
        %v2744 = vunpack.c.l.b16 %v773
        %v2745 = vunpack.c.l.b16 %v774
        %v2746 = vunpack.c.h.b16 %v774
        %v2747 = vunpack.c.l.b16 %v775
        %v2748 = vunpack.c.h.b16 %v775
        %v2749 = vunpack.c.l.b16 %v776
        %v2750 = vunpack.c.l.b16 %v777
        %v2751 = vunpack.c.h.b16 %v777
        %v2752 = vunpack.c.l.b16 %v778
        %v2753 = vunpack.c.h.b16 %v778
        %v2754 = vunpack.c.l.b16 %v779
        %v2755 = vunpack.c.l.b16 %v780
        %v2756 = vunpack.c.h.b16 %v780
        %v2757 = vunpack.c.l.b16 %v781
        %v2758 = vunpack.c.h.b16 %v781
        %v2759 = vunpack.c.l.b16 %v782
        %v2760 = vunpack.c.l.b16 %v783
        %v2761 = vunpack.c.h.b16 %v783
        %v2762 = vunpack.c.l.b16 %v784
        %v2763 = vunpack.c.h.b16 %v784
        %v2764 = vunpack.c.l.b16 %v785
        %v2765 = vunpack.c.l.b16 %v786
        %v2766 = vunpack.c.h.b16 %v786
        %v2767 = vunpack.c.l.b16 %v787
        %v2768 = vunpack.c.h.b16 %v787
        %v2769 = vunpack.c.l.b16 %v788
        %v2770 = vunpack.c.l.b16 %v789
        %v2771 = vunpack.c.h.b16 %v789
        %v2772 = vunpack.c.l.b16 %v790
        %v2773 = vunpack.c.h.b16 %v790
        %v2774 = vunpack.c.l.b16 %v791
        %v2775 = vunpack.c.l.b16 %v792
        %v2776 = vunpack.c.h.b16 %v792
        %v2777 = vunpack.c.l.b16 %v793
        %v2778 = vunpack.c.h.b16 %v793
        %v2779 = vunpack.c.l.b16 %v794
        %v2780 = vunpack.c.l.b16 %v795
        %v2781 = vunpack.c.h.b16 %v795
        %v2782 = vunpack.c.l.b16 %v796
        %v2783 = vunpack.c.h.b16 %v796
        %v2784 = vunpack.c.l.b16 %v797
        %v2785 = vunpack.c.l.b16 %v798
        %v2786 = vunpack.c.h.b16 %v798
        %v2787 = vunpack.c.l.b16 %v799
        %v2788 = vunpack.c.h.b16 %v799
        %v2789 = vunpack.c.l.b16 %v800
        %v2790 = vunpack.c.l.b16 %v801
        %v2791 = vunpack.c.h.b16 %v801
        %v2792 = vunpack.c.l.b16 %v802
        %v2793 = vunpack.c.h.b16 %v802
        %v2794 = vunpack.c.l.b16 %v803
        %v2795 = vunpack.c.l.b16 %v804
        %v2796 = vunpack.c.h.b16 %v804
        %v2797 = vunpack.c.l.b16 %v805
        %v2798 = vunpack.c.h.b16 %v805
        %v2799 = vunpack.c.l.b16 %v806
        %v2800 = vunpack.c.l.b16 %v807
        %v2801 = vunpack.c.h.b16 %v807
        %v2802 = vunpack.c.l.b16 %v808
        %v2803 = vunpack.c.h.b16 %v808
        %v2804 = vunpack.c.l.b16 %v809
        %v2805 = vunpack.c.l.b16 %v810
        %v2806 = vunpack.c.h.b16 %v810
        %v2807 = vunpack.c.l.b16 %v811
        %v2808 = vunpack.c.h.b16 %v811
        %v2809 = vunpack.c.l.b16 %v812
        %v2810 = vunpack.c.l.b16 %v813
        %v2811 = vunpack.c.h.b16 %v813
        %v2812 = vunpack.c.l.b16 %v814
        %v2813 = vunpack.c.h.b16 %v814
        %v2814 = vunpack.c.l.b16 %v815
        %v2815 = vunpack.c.l.b16 %v816
        %v2816 = vunpack.c.h.b16 %v816
        %v2817 = vunpack.c.l.b16 %v817
        %v2818 = vunpack.c.h.b16 %v817
        %v2819 = vunpack.c.l.b16 %v818
        %v2820 = vunpack.c.l.b16 %v819
        %v2821 = vunpack.c.h.b16 %v819
        %v2822 = vunpack.c.l.b16 %v820
        %v2823 = vunpack.c.h.b16 %v820
        %v2824 = vunpack.c.l.b16 %v821
        %v2825 = vunpack.c.l.b16 %v822
        %v2826 = vunpack.c.h.b16 %v822
        %v2827 = vunpack.c.l.b16 %v823
        %v2828 = vunpack.c.h.b16 %v823
        %v2829 = vunpack.c.l.b16 %v824
        %v2830 = vunpack.c.l.b16 %v825
        %v2831 = vunpack.c.h.b16 %v825
        %v2832 = vunpack.c.l.b16 %v826
        %v2833 = vunpack.c.h.b16 %v826
        %v2834 = vunpack.c.l.b16 %v827
        %v2835 = vunpack.c.l.b16 %v828
        %v2836 = vunpack.c.h.b16 %v828
        %v2837 = vunpack.c.l.b16 %v829
        %v2838 = vunpack.c.h.b16 %v829
        %v2839 = vunpack.c.l.b16 %v830
        %v2840 = vunpack.c.l.b16 %v831
        %v2841 = vunpack.c.h.b16 %v831
        %v2842 = vunpack.c.l.b16 %v832
        %v2843 = vunpack.c.h.b16 %v832
        %v2844 = vunpack.c.l.b16 %v833
        %v2845 = vunpack.c.l.b16 %v834
        %v2846 = vunpack.c.h.b16 %v834
        %v2847 = vunpack.c.l.b16 %v835
        %v2848 = vunpack.c.h.b16 %v835
        %v2849 = vunpack.c.l.b16 %v836
        %v2850 = vunpack.c.l.b16 %v837
        %v2851 = vunpack.c.h.b16 %v837
        %v2852 = vunpack.c.l.b16 %v838
        %v2853 = vunpack.c.h.b16 %v838
        %v2854 = vunpack.c.l.b16 %v839
        %v2855 = vunpack.c.l.b16 %v840
        %v2856 = vunpack.c.h.b16 %v840
        %v2857 = vunpack.c.l.b16 %v841
        %v2858 = vunpack.c.h.b16 %v841
        %v2859 = vunpack.c.l.b16 %v842
        %v2860 = vunpack.c.l.b16 %v843
        %v2861 = vunpack.c.h.b16 %v843
        %v2862 = vunpack.c.l.b16 %v844
        %v2863 = vunpack.c.h.b16 %v844
        %v2864 = vunpack.c.l.b16 %v845
        %v2865 = vunpack.c.l.b16 %v846
        %v2866 = vunpack.c.h.b16 %v846
        %v2867 = vunpack.c.l.b16 %v847
        %v2868 = vunpack.c.h.b16 %v847
        %v2869 = vunpack.c.l.b16 %v848
        %v2870 = vunpack.c.l.b16 %v849
        %v2871 = vunpack.c.h.b16 %v849
        %v2872 = vunpack.c.l.b16 %v850
        %v2873 = vunpack.c.h.b16 %v850
        %v2874 = vunpack.c.l.b16 %v851
        %v2875 = vunpack.c.l.b16 %v852
        %v2876 = vunpack.c.h.b16 %v852
        %v2877 = vunpack.c.l.b16 %v853
        %v2878 = vunpack.c.h.b16 %v853
        %v2879 = vunpack.c.l.b16 %v854
        %v2880 = vunpack.c.l.b16 %v855
        %v2881 = vunpack.c.h.b16 %v855
        %v2882 = vunpack.c.l.b16 %v856
        %v2883 = vunpack.c.h.b16 %v856
        %v2884 = vunpack.c.l.b16 %v857
        %v2885 = vunpack.c.l.b16 %v858
        %v2886 = vunpack.c.h.b16 %v858
        %v2887 = vunpack.c.l.b16 %v859
        %v2888 = vunpack.c.h.b16 %v859
        %v2889 = vunpack.c.l.b16 %v860
        %v2890 = vunpack.c.l.b16 %v861
        %v2891 = vunpack.c.h.b16 %v861
        %v2892 = vunpack.c.l.b16 %v862
        %v2893 = vunpack.c.h.b16 %v862
        %v2894 = vunpack.c.l.b16 %v863
        %v2895 = vunpack.c.l.b16 %v864
        %v2896 = vunpack.c.h.b16 %v864
        %v2897 = vunpack.c.l.b16 %v865
        %v2898 = vunpack.c.h.b16 %v865
        %v2899 = vunpack.c.l.b16 %v866
        %v2900 = vunpack.c.l.b16 %v867
        %v2901 = vunpack.c.h.b16 %v867
        %v2902 = vunpack.c.l.b16 %v868
        %v2903 = vunpack.c.h.b16 %v868
        %v2904 = vunpack.c.l.b16 %v869
        %v2905 = vunpack.c.l.b16 %v870
        %v2906 = vunpack.c.h.b16 %v870
        %v2907 = vunpack.c.l.b16 %v871
        %v2908 = vunpack.c.h.b16 %v871
        %v2909 = vunpack.c.l.b16 %v872
        %v2910 = vunpack.c.l.b16 %v873
        %v2911 = vunpack.c.h.b16 %v873
        %v2912 = vunpack.c.l.b16 %v874
        %v2913 = vunpack.c.h.b16 %v874
        %v2914 = vunpack.c.l.b16 %v875
        %v2915 = vunpack.c.l.b16 %v876
        %v2916 = vunpack.c.h.b16 %v876
        %v2917 = vunpack.c.l.b16 %v877
        %v2918 = vunpack.c.h.b16 %v877
        %v2919 = vunpack.c.l.b16 %v878
        %v2920 = vunpack.c.l.b16 %v879
        %v2921 = vunpack.c.h.b16 %v879
        %v2922 = vunpack.c.l.b16 %v880
        %v2923 = vunpack.c.h.b16 %v880
        %v2924 = vunpack.c.l.b16 %v881
        %v2925 = vunpack.c.l.b16 %v882
        %v2926 = vunpack.c.h.b16 %v882
        %v2927 = vunpack.c.l.b16 %v883
        %v2928 = vunpack.c.h.b16 %v883
        %v2929 = vunpack.c.l.b16 %v884
        %v2930 = vunpack.c.l.b16 %v885
        %v2931 = vunpack.c.h.b16 %v885
        %v2932 = vunpack.c.l.b16 %v886
        %v2933 = vunpack.c.h.b16 %v886
        %v2934 = vunpack.c.l.b16 %v887
        %v2935 = vunpack.c.l.b16 %v888
        %v2936 = vunpack.c.h.b16 %v888
        %v2937 = vunpack.c.l.b16 %v889
        %v2938 = vunpack.c.h.b16 %v889
        %v2939 = vunpack.c.l.b16 %v890
        %v2940 = vunpack.c.l.b16 %v891
        %v2941 = vunpack.c.h.b16 %v891
        %v2942 = vunpack.c.l.b16 %v892
        %v2943 = vunpack.c.h.b16 %v892
        %v2944 = vunpack.c.l.b16 %v893
        %v2945 = vunpack.c.l.b16 %v894
        %v2946 = vunpack.c.h.b16 %v894
        %v2947 = vunpack.c.l.b16 %v895
        %v2948 = vunpack.c.h.b16 %v895
        %v2949 = vunpack.c.l.b16 %v896
        %v2950 = vunpack.c.l.b16 %v897
        %v2951 = vunpack.c.h.b16 %v897
        %v2952 = vunpack.c.l.b16 %v898
        %v2953 = vunpack.c.h.b16 %v898
        %v2954 = vunpack.c.l.b16 %v899
        %v2955 = vunpack.c.l.b16 %v900
        %v2956 = vunpack.c.h.b16 %v900
        %v2957 = vunpack.c.l.b16 %v901
        %v2958 = vunpack.c.h.b16 %v901
        %v2959 = vunpack.c.l.b16 %v902
        %v2960 = vunpack.c.l.b16 %v903
        %v2961 = vunpack.c.h.b16 %v903
        %v2962 = vunpack.c.l.b16 %v904
        %v2963 = vunpack.c.h.b16 %v904
        %v2964 = vunpack.c.l.b16 %v905
        %v2965 = vunpack.c.l.b16 %v906
        %v2966 = vunpack.c.h.b16 %v906
        %v2967 = vunpack.c.l.b16 %v907
        %v2968 = vunpack.c.h.b16 %v907
        %v2969 = vunpack.c.l.b16 %v908
        %v2970 = vunpack.c.l.b16 %v909
        %v2971 = vunpack.c.h.b16 %v909
        %v2972 = vunpack.c.l.b16 %v910
        %v2973 = vunpack.c.h.b16 %v910
        %v2974 = vunpack.c.l.b16 %v911
        %v2975 = vunpack.c.l.b16 %v912
        %v2976 = vunpack.c.h.b16 %v912
        %v2977 = vunpack.c.l.b16 %v913
        %v2978 = vunpack.c.h.b16 %v913
        %v2979 = vunpack.c.l.b16 %v914
        %v2980 = vunpack.c.l.b16 %v915
        %v2981 = vunpack.c.h.b16 %v915
        %v2982 = vunpack.c.l.b16 %v916
        %v2983 = vunpack.c.h.b16 %v916
        %v2984 = vunpack.c.l.b16 %v917
        %v2985 = vunpack.c.l.b16 %v918
        %v2986 = vunpack.c.h.b16 %v918
        %v2987 = vunpack.c.l.b16 %v919
        %v2988 = vunpack.c.h.b16 %v919
        %v2989 = vunpack.c.l.b16 %v920
        %v2990 = vunpack.c.l.b16 %v921
        %v2991 = vunpack.c.h.b16 %v921
        %v2992 = vunpack.c.l.b16 %v922
        %v2993 = vunpack.c.h.b16 %v922
        %v2994 = vunpack.c.l.b16 %v923
        %v2995 = vunpack.c.l.b16 %v924
        %v2996 = vunpack.c.h.b16 %v924
        %v2997 = vunpack.c.l.b16 %v925
        %v2998 = vunpack.c.h.b16 %v925
        %v2999 = vunpack.c.l.b16 %v926
        %v3000 = vunpack.c.l.b16 %v927
        %v3001 = vunpack.c.h.b16 %v927
        %v3002 = vunpack.c.l.b16 %v928
        %v3003 = vunpack.c.h.b16 %v928
        %v3004 = vunpack.c.l.b16 %v929
        %v3005 = vunpack.c.l.b16 %v930
        %v3006 = vunpack.c.h.b16 %v930
        %v3007 = vunpack.c.l.b16 %v931
        %v3008 = vunpack.c.h.b16 %v931
        %v3009 = vunpack.c.l.b16 %v932
        %v3010 = vunpack.c.l.b16 %v933
        %v3011 = vunpack.c.h.b16 %v933
        %v3012 = vunpack.c.l.b16 %v934
        %v3013 = vunpack.c.h.b16 %v934
        %v3014 = vunpack.c.l.b16 %v935
        %v3015 = vunpack.c.l.b16 %v936
        %v3016 = vunpack.c.h.b16 %v936
        %v3017 = vunpack.c.l.b16 %v937
        %v3018 = vunpack.c.h.b16 %v937
        %v3019 = vunpack.c.l.b16 %v938
        %v3020 = vunpack.c.l.b16 %v939
        %v3021 = vunpack.c.h.b16 %v939
        %v3022 = vunpack.c.l.b16 %v940
        %v3023 = vunpack.c.h.b16 %v940
        %v3024 = vunpack.c.l.b16 %v941
        %v3025 = vunpack.c.l.b16 %v942
        %v3026 = vunpack.c.h.b16 %v942
        %v3027 = vunpack.c.l.b16 %v943
        %v3028 = vunpack.c.h.b16 %v943
        %v3029 = vunpack.c.l.b16 %v944
        %v3030 = vunpack.c.l.b16 %v945
        %v3031 = vunpack.c.h.b16 %v945
        %v3032 = vunpack.c.l.b16 %v946
        %v3033 = vunpack.c.h.b16 %v946
        %v3034 = vunpack.c.l.b16 %v947
        %v3035 = vunpack.c.l.b16 %v948
        %v3036 = vunpack.c.h.b16 %v948
        %v3037 = vunpack.c.l.b16 %v949
        %v3038 = vunpack.c.h.b16 %v949
        %v3039 = vunpack.c.l.b16 %v950
        %v3040 = vunpack.c.l.b16 %v951
        %v3041 = vunpack.c.h.b16 %v951
        %v3042 = vunpack.c.l.b16 %v952
        %v3043 = vunpack.c.h.b16 %v952
        %v3044 = vunpack.c.l.b16 %v953
        %v3045 = vunpack.c.l.b16 %v954
        %v3046 = vunpack.c.h.b16 %v954
        %v3047 = vunpack.c.l.b16 %v955
        %v3048 = vunpack.c.h.b16 %v955
        %v3049 = vunpack.c.l.b16 %v956
        %v3050 = vunpack.c.l.b16 %v957
        %v3051 = vunpack.c.h.b16 %v957
        %v3052 = vunpack.c.l.b16 %v958
        %v3053 = vunpack.c.h.b16 %v958
        %v3054 = vunpack.c.l.b16 %v959
        %v3055 = vunpack.c.l.b16 %v960
        %v3056 = vunpack.c.h.b16 %v960
        %v3057 = vunpack.c.l.b16 %v961
        %v3058 = vunpack.c.h.b16 %v961
        %v3059 = vunpack.c.l.b16 %v962
        %v3060 = vunpack.c.l.b16 %v963
        %v3061 = vunpack.c.h.b16 %v963
        %v3062 = vunpack.c.l.b16 %v964
        %v3063 = vunpack.c.h.b16 %v964
        %v3064 = vunpack.c.l.b16 %v965
        %v3065 = vunpack.c.l.b16 %v966
        %v3066 = vunpack.c.h.b16 %v966
        %v3067 = vunpack.c.l.b16 %v967
        %v3068 = vunpack.c.h.b16 %v967
        %v3069 = vunpack.c.l.b16 %v968
        %v3070 = vunpack.c.l.b16 %v969
        %v3071 = vunpack.c.h.b16 %v969
        %v3072 = vunpack.c.l.b16 %v970
        %v3073 = vunpack.c.h.b16 %v970
        %v3074 = vunpack.c.l.b16 %v971
        %v3075 = vunpack.c.l.b16 %v972
        %v3076 = vunpack.c.h.b16 %v972
        %v3077 = vunpack.c.l.b16 %v973
        %v3078 = vunpack.c.h.b16 %v973
        %v3079 = vunpack.c.l.b16 %v974
        %v3080 = vunpack.c.l.b16 %v975
        %v3081 = vunpack.c.h.b16 %v975
        %v3082 = vunpack.c.l.b16 %v976
        %v3083 = vunpack.c.h.b16 %v976
        %v3084 = vunpack.c.l.b16 %v977
        %v3085 = vunpack.c.l.b16 %v978
        %v3086 = vunpack.c.h.b16 %v978
        %v3087 = vunpack.c.l.b16 %v979
        %v3088 = vunpack.c.h.b16 %v979
        %v3089 = vunpack.c.l.b16 %v980
        %v3090 = vunpack.c.l.b16 %v981
        %v3091 = vunpack.c.h.b16 %v981
        %v3092 = vunpack.c.l.b16 %v982
        %v3093 = vunpack.c.h.b16 %v982
        %v3094 = vunpack.c.l.b16 %v983
        %v3095 = vunpack.c.l.b16 %v984
        %v3096 = vunpack.c.h.b16 %v984
        %v3097 = vunpack.c.l.b16 %v985
        %v3098 = vunpack.c.h.b16 %v985
        %v3099 = vunpack.c.l.b16 %v986
        %v3100 = vunpack.c.l.b16 %v987
        %v3101 = vunpack.c.h.b16 %v987
        %v3102 = vunpack.c.l.b16 %v988
        %v3103 = vunpack.c.h.b16 %v988
        %v3104 = vunpack.c.l.b16 %v989
        %v3105 = vunpack.c.l.b16 %v990
        %v3106 = vunpack.c.h.b16 %v990
        %v3107 = vunpack.c.l.b16 %v991
        %v3108 = vunpack.c.h.b16 %v991
        %v3109 = vunpack.c.l.b16 %v992
        %v3110 = vunpack.c.l.b16 %v993
        %v3111 = vunpack.c.h.b16 %v993
        %v3112 = vunpack.c.l.b16 %v994
        %v3113 = vunpack.c.h.b16 %v994
        %v3114 = vunpack.c.l.b16 %v995
        %v3115 = vunpack.c.l.b16 %v996
        %v3116 = vunpack.c.h.b16 %v996
        %v3117 = vunpack.c.l.b16 %v997
        %v3118 = vunpack.c.h.b16 %v997
        %v3119 = vunpack.c.l.b16 %v998
        %v3120 = vunpack.c.l.b16 %v999
        %v3121 = vunpack.c.h.b16 %v999
        %v3122 = vunpack.c.l.b16 %v1000
        %v3123 = vunpack.c.h.b16 %v1000
        %v3124 = vunpack.c.l.b16 %v1001
        %v3125 = vunpack.c.l.b16 %v1002
        %v3126 = vunpack.c.h.b16 %v1002
        %v3127 = vunpack.c.l.b16 %v1003
        %v3128 = vunpack.c.h.b16 %v1003
        %v3129 = vunpack.c.l.b16 %v1004
        %v3130 = vunpack.c.l.b16 %v1005
        %v3131 = vunpack.c.h.b16 %v1005
        %v3132 = vunpack.c.l.b16 %v1006
        %v3133 = vunpack.c.h.b16 %v1006
        %v3134 = vunpack.c.l.b16 %v1007
        %v3135 = vunpack.c.l.b16 %v1008
        %v3136 = vunpack.c.h.b16 %v1008
        %v3137 = vunpack.c.l.b16 %v1009
        %v3138 = vunpack.c.h.b16 %v1009
        %v3139 = vunpack.c.l.b16 %v1010
        %v3140 = vunpack.c.l.b16 %v1011
        %v3141 = vunpack.c.h.b16 %v1011
        %v3142 = vunpack.c.l.b16 %v1012
        %v3143 = vunpack.c.h.b16 %v1012
        %v3144 = vunpack.c.l.b16 %v1013
        %v3145 = vunpack.c.l.b16 %v1014
        %v3146 = vunpack.c.h.b16 %v1014
        %v3147 = vunpack.c.l.b16 %v1015
        %v3148 = vunpack.c.h.b16 %v1015
        %v3149 = vunpack.c.l.b16 %v1016
        %v3150 = vunpack.c.l.b16 %v1017
        %v3151 = vunpack.c.h.b16 %v1017
        %v3152 = vunpack.c.l.b16 %v1018
        %v3153 = vunpack.c.h.b16 %v1018
        %v3154 = vunpack.c.l.b16 %v1019
        %v3155 = vunpack.c.l.b16 %v1020
        %v3156 = vunpack.c.h.b16 %v1020
        %v3157 = vunpack.c.l.b16 %v1021
        %v3158 = vunpack.c.h.b16 %v1021
        %v3159 = vunpack.c.l.b16 %v1022
        %v3160 = vunpack.c.l.b16 %v1023
        %v3161 = vunpack.c.h.b16 %v1023
        %v3162 = vunpack.c.l.b16 %v1024
        %v3163 = vunpack.c.h.b16 %v1024
        %v3164 = vunpack.c.l.b16 %v1025
        %v3165 = vunpack.c.l.b16 %v1026
        %v3166 = vunpack.c.h.b16 %v1026
        %v3167 = vunpack.c.l.b16 %v1027
        %v3168 = vunpack.c.h.b16 %v1027
        %v3169 = vunpack.c.l.b16 %v1028
        %v3170 = vunpack.c.l.b16 %v1029
        %v3171 = vunpack.c.h.b16 %v1029
        %v3172 = vunpack.c.l.b16 %v1030
        %v3173 = vunpack.c.h.b16 %v1030
        %v3174 = vunpack.c.l.b16 %v1031
        %v3175 = vunpack.c.l.b16 %v1032
        %v3176 = vunpack.c.h.b16 %v1032
        %v3177 = vunpack.c.l.b16 %v1033
        %v3178 = vunpack.c.h.b16 %v1033
        %v3179 = vunpack.c.l.b16 %v1034
        %v3180 = vunpack.c.l.b16 %v1035
        %v3181 = vunpack.c.h.b16 %v1035
        %v3182 = vunpack.c.l.b16 %v1036
        %v3183 = vunpack.c.h.b16 %v1036
        %v3184 = vunpack.c.l.b16 %v1037
        %v3185 = vunpack.c.l.b16 %v1038
        %v3186 = vunpack.c.h.b16 %v1038
        %v3187 = vunpack.c.l.b16 %v1039
        %v3188 = vunpack.c.h.b16 %v1039
        %v3189 = vunpack.c.l.b16 %v1040
        %v3190 = vunpack.c.l.b16 %v1041
        %v3191 = vunpack.c.h.b16 %v1041
        %v3192 = vunpack.c.l.b16 %v1042
        %v3193 = vunpack.c.h.b16 %v1042
        %v3194 = vunpack.c.l.b16 %v1043
        %v3195 = vunpack.c.l.b16 %v1044
        %v3196 = vunpack.c.h.b16 %v1044
        %v3197 = vunpack.c.l.b16 %v1045
        %v3198 = vunpack.c.h.b16 %v1045
        %v3199 = vunpack.c.l.b16 %v1046
        %v3200 = vunpack.c.l.b16 %v1047
        %v3201 = vunpack.c.h.b16 %v1047
        %v3202 = vunpack.c.l.b16 %v1048
        %v3203 = vunpack.c.h.b16 %v1048
        %v3204 = vunpack.c.l.b16 %v1049
        %v3205 = vunpack.c.l.b16 %v1050
        %v3206 = vunpack.c.h.b16 %v1050
        %v3207 = vunpack.c.l.b16 %v1051
        %v3208 = vunpack.c.h.b16 %v1051
        %v3209 = vunpack.c.l.b16 %v1052
        %v3210 = vunpack.c.l.b16 %v1053
        %v3211 = vunpack.c.h.b16 %v1053
        %v3212 = vunpack.c.l.b16 %v1054
        %v3213 = vunpack.c.h.b16 %v1054
        %v3214 = vunpack.c.l.b16 %v1055
        %v3215 = vunpack.c.l.b16 %v1056
        %v3216 = vunpack.c.h.b16 %v1056
        %v3217 = vunpack.c.l.b16 %v1057
        %v3218 = vunpack.c.h.b16 %v1057
        %v3219 = vunpack.c.l.b16 %v1058
        %v3220 = vunpack.c.l.b16 %v1059
        %v3221 = vunpack.c.h.b16 %v1059
        %v3222 = vunpack.c.l.b16 %v1060
        %v3223 = vunpack.c.h.b16 %v1060
        %v3224 = vunpack.c.l.b16 %v1061
        %v3225 = vunpack.c.l.b16 %v1062
        %v3226 = vunpack.c.h.b16 %v1062
        %v3227 = vunpack.c.l.b16 %v1063
        %v3228 = vunpack.c.h.b16 %v1063
        %v3229 = vunpack.c.l.b16 %v1064
        %v3230 = vunpack.c.l.b16 %v1065
        %v3231 = vunpack.c.h.b16 %v1065
        %v3232 = vunpack.c.l.b16 %v1066
        %v3233 = vunpack.c.h.b16 %v1066
        %v3234 = vunpack.c.l.b16 %v1067
        %v3235 = vunpack.c.l.b16 %v1068
        %v3236 = vunpack.c.h.b16 %v1068
        %v3237 = vunpack.c.l.b16 %v1069
        %v3238 = vunpack.c.h.b16 %v1069
        %v3239 = vunpack.c.l.b16 %v1070
        %v3240 = vunpack.c.l.b16 %v1071
        %v3241 = vunpack.c.h.b16 %v1071
        %v3242 = vunpack.c.l.b16 %v1072
        %v3243 = vunpack.c.h.b16 %v1072
        %v3244 = vunpack.c.l.b16 %v1073
        %v3245 = vunpack.c.l.b16 %v1074
        %v3246 = vunpack.c.h.b16 %v1074
        %v3247 = vunpack.c.l.b16 %v1075
        %v3248 = vunpack.c.h.b16 %v1075
        %v3249 = vunpack.c.l.b16 %v1076
        %v3250 = vunpack.c.l.b16 %v1077
        %v3251 = vunpack.c.h.b16 %v1077
        %v3252 = vunpack.c.l.b16 %v1078
        %v3253 = vunpack.c.h.b16 %v1078
        %v3254 = vunpack.c.l.b16 %v1079
        %v3255 = vunpack.c.l.b16 %v1080
        %v3256 = vunpack.c.h.b16 %v1080
        %v3257 = vunpack.c.l.b16 %v1081
        %v3258 = vunpack.c.h.b16 %v1081
        %v3259 = vunpack.c.l.b16 %v1082
        %v3260 = vunpack.c.l.b16 %v1083
        %v3261 = vunpack.c.h.b16 %v1083
        %v3262 = vunpack.c.l.b16 %v1084
        %v3263 = vunpack.c.h.b16 %v1084
        %v3264 = vunpack.c.l.b16 %v1085
        %v3265 = vunpack.c.l.b16 %v1086
        %v3266 = vunpack.c.h.b16 %v1086
        %v3267 = vunpack.c.l.b16 %v1087
        %v3268 = vunpack.c.h.b16 %v1087
        %v3269 = vunpack.c.l.b16 %v1088
        %v3270 = vunpack.c.l.b16 %v1089
        %v3271 = vunpack.c.h.b16 %v1089
        %v3272 = vunpack.c.l.b16 %v1090
        %v3273 = vunpack.c.h.b16 %v1090
        %v3274 = vunpack.c.l.b16 %v1091
        %v3275 = vunpack.c.l.b16 %v1092
        %v3276 = vunpack.c.h.b16 %v1092
        %v3277 = vunpack.c.l.b16 %v1093
        %v3278 = vunpack.c.h.b16 %v1093
        %v3279 = vunpack.c.l.b16 %v1094
        %v3280 = vunpack.c.l.b16 %v1095
        %v3281 = vunpack.c.h.b16 %v1095
        %v3282 = vunpack.c.l.b16 %v1096
        %v3283 = vunpack.c.h.b16 %v1096
        %v3284 = vunpack.c.l.b16 %v1097
        %v3285 = vunpack.c.l.b16 %v1098
        %v3286 = vunpack.c.h.b16 %v1098
        %v3287 = vunpack.c.l.b16 %v1099
        %v3288 = vunpack.c.h.b16 %v1099
        %v3289 = vunpack.c.l.b16 %v1100
        %v3290 = vunpack.c.l.b16 %v1101
        %v3291 = vunpack.c.h.b16 %v1101
        %v3292 = vunpack.c.l.b16 %v1102
        %v3293 = vunpack.c.h.b16 %v1102
        %v3294 = vunpack.c.l.b16 %v1103
        %v3295 = vpack.c.b16 %v2020, %v2015
        %v3296 = vpack.c.b16 %v2021, %v2016
        %v3297 = vpack.c.b16 %v2022, %v2017
        %v3298 = vpack.c.b16 %v2023, %v2018
        %v3299 = vpack.c.b16 %v2024, %v2019
        %v3300 = vpack.c.b16 %v2030, %v2025
        %v3301 = vpack.c.b16 %v2031, %v2026
        %v3302 = vpack.c.b16 %v2032, %v2027
        %v3303 = vpack.c.b16 %v2033, %v2028
        %v3304 = vpack.c.b16 %v2034, %v2029
        %v3305 = vpack.c.b16 %v2040, %v2035
        %v3306 = vpack.c.b16 %v2041, %v2036
        %v3307 = vpack.c.b16 %v2042, %v2037
        %v3308 = vpack.c.b16 %v2043, %v2038
        %v3309 = vpack.c.b16 %v2044, %v2039
        %v3310 = vpack.c.b16 %v2050, %v2045
        %v3311 = vpack.c.b16 %v2051, %v2046
        %v3312 = vpack.c.b16 %v2052, %v2047
        %v3313 = vpack.c.b16 %v2053, %v2048
        %v3314 = vpack.c.b16 %v2054, %v2049
        %v3315 = vpack.c.b16 %v2060, %v2055
        %v3316 = vpack.c.b16 %v2061, %v2056
        %v3317 = vpack.c.b16 %v2062, %v2057
        %v3318 = vpack.c.b16 %v2063, %v2058
        %v3319 = vpack.c.b16 %v2064, %v2059
        %v3320 = vpack.c.b16 %v2070, %v2065
        %v3321 = vpack.c.b16 %v2071, %v2066
        %v3322 = vpack.c.b16 %v2072, %v2067
        %v3323 = vpack.c.b16 %v2073, %v2068
        %v3324 = vpack.c.b16 %v2074, %v2069
        %v3325 = vpack.c.b16 %v2080, %v2075
        %v3326 = vpack.c.b16 %v2081, %v2076
        %v3327 = vpack.c.b16 %v2082, %v2077
        %v3328 = vpack.c.b16 %v2083, %v2078
        %v3329 = vpack.c.b16 %v2084, %v2079
        %v3330 = vpack.c.b16 %v2090, %v2085
        %v3331 = vpack.c.b16 %v2091, %v2086
        %v3332 = vpack.c.b16 %v2092, %v2087
        %v3333 = vpack.c.b16 %v2093, %v2088
        %v3334 = vpack.c.b16 %v2094, %v2089
        %v3335 = vpack.c.b16 %v2100, %v2095
        %v3336 = vpack.c.b16 %v2101, %v2096
        %v3337 = vpack.c.b16 %v2102, %v2097
        %v3338 = vpack.c.b16 %v2103, %v2098
        %v3339 = vpack.c.b16 %v2104, %v2099
        %v3340 = vpack.c.b16 %v2110, %v2105
        %v3341 = vpack.c.b16 %v2111, %v2106
        %v3342 = vpack.c.b16 %v2112, %v2107
        %v3343 = vpack.c.b16 %v2113, %v2108
        %v3344 = vpack.c.b16 %v2114, %v2109
        %v3345 = vpack.c.b16 %v2120, %v2115
        %v3346 = vpack.c.b16 %v2121, %v2116
        %v3347 = vpack.c.b16 %v2122, %v2117
        %v3348 = vpack.c.b16 %v2123, %v2118
        %v3349 = vpack.c.b16 %v2124, %v2119
        %v3350 = vpack.c.b16 %v2130, %v2125
        %v3351 = vpack.c.b16 %v2131, %v2126
        %v3352 = vpack.c.b16 %v2132, %v2127
        %v3353 = vpack.c.b16 %v2133, %v2128
        %v3354 = vpack.c.b16 %v2134, %v2129
        %v3355 = vpack.c.b16 %v2140, %v2135
        %v3356 = vpack.c.b16 %v2141, %v2136
        %v3357 = vpack.c.b16 %v2142, %v2137
        %v3358 = vpack.c.b16 %v2143, %v2138
        %v3359 = vpack.c.b16 %v2144, %v2139
        %v3360 = vpack.c.b16 %v2150, %v2145
        %v3361 = vpack.c.b16 %v2151, %v2146
        %v3362 = vpack.c.b16 %v2152, %v2147
        %v3363 = vpack.c.b16 %v2153, %v2148
        %v3364 = vpack.c.b16 %v2154, %v2149
        %v3365 = vpack.c.b16 %v2160, %v2155
        %v3366 = vpack.c.b16 %v2161, %v2156
        %v3367 = vpack.c.b16 %v2162, %v2157
        %v3368 = vpack.c.b16 %v2163, %v2158
        %v3369 = vpack.c.b16 %v2164, %v2159
        %v3370 = vpack.c.b16 %v2170, %v2165
        %v3371 = vpack.c.b16 %v2171, %v2166
        %v3372 = vpack.c.b16 %v2172, %v2167
        %v3373 = vpack.c.b16 %v2173, %v2168
        %v3374 = vpack.c.b16 %v2174, %v2169
        %v3375 = vpack.c.b16 %v2180, %v2175
        %v3376 = vpack.c.b16 %v2181, %v2176
        %v3377 = vpack.c.b16 %v2182, %v2177
        %v3378 = vpack.c.b16 %v2183, %v2178
        %v3379 = vpack.c.b16 %v2184, %v2179
        %v3380 = vpack.c.b16 %v2190, %v2185
        %v3381 = vpack.c.b16 %v2191, %v2186
        %v3382 = vpack.c.b16 %v2192, %v2187
        %v3383 = vpack.c.b16 %v2193, %v2188
        %v3384 = vpack.c.b16 %v2194, %v2189
        %v3385 = vpack.c.b16 %v2200, %v2195
        %v3386 = vpack.c.b16 %v2201, %v2196
        %v3387 = vpack.c.b16 %v2202, %v2197
        %v3388 = vpack.c.b16 %v2203, %v2198
        %v3389 = vpack.c.b16 %v2204, %v2199
        %v3390 = vpack.c.b16 %v2210, %v2205
        %v3391 = vpack.c.b16 %v2211, %v2206
        %v3392 = vpack.c.b16 %v2212, %v2207
        %v3393 = vpack.c.b16 %v2213, %v2208
        %v3394 = vpack.c.b16 %v2214, %v2209
        %v3395 = vpack.c.b16 %v2220, %v2215
        %v3396 = vpack.c.b16 %v2221, %v2216
        %v3397 = vpack.c.b16 %v2222, %v2217
        %v3398 = vpack.c.b16 %v2223, %v2218
        %v3399 = vpack.c.b16 %v2224, %v2219
        %v3400 = vpack.c.b16 %v2230, %v2225
        %v3401 = vpack.c.b16 %v2231, %v2226
        %v3402 = vpack.c.b16 %v2232, %v2227
        %v3403 = vpack.c.b16 %v2233, %v2228
        %v3404 = vpack.c.b16 %v2234, %v2229
        %v3405 = vpack.c.b16 %v2240, %v2235
        %v3406 = vpack.c.b16 %v2241, %v2236
        %v3407 = vpack.c.b16 %v2242, %v2237
        %v3408 = vpack.c.b16 %v2243, %v2238
        %v3409 = vpack.c.b16 %v2244, %v2239
        %v3410 = vpack.c.b16 %v2250, %v2245
        %v3411 = vpack.c.b16 %v2251, %v2246
        %v3412 = vpack.c.b16 %v2252, %v2247
        %v3413 = vpack.c.b16 %v2253, %v2248
        %v3414 = vpack.c.b16 %v2254, %v2249
        %v3415 = vpack.c.b16 %v2260, %v2255
        %v3416 = vpack.c.b16 %v2261, %v2256
        %v3417 = vpack.c.b16 %v2262, %v2257
        %v3418 = vpack.c.b16 %v2263, %v2258
        %v3419 = vpack.c.b16 %v2264, %v2259
        %v3420 = vpack.c.b16 %v2270, %v2265
        %v3421 = vpack.c.b16 %v2271, %v2266
        %v3422 = vpack.c.b16 %v2272, %v2267
        %v3423 = vpack.c.b16 %v2273, %v2268
        %v3424 = vpack.c.b16 %v2274, %v2269
        %v3425 = vpack.c.b16 %v2280, %v2275
        %v3426 = vpack.c.b16 %v2281, %v2276
        %v3427 = vpack.c.b16 %v2282, %v2277
        %v3428 = vpack.c.b16 %v2283, %v2278
        %v3429 = vpack.c.b16 %v2284, %v2279
        %v3430 = vpack.c.b16 %v2290, %v2285
        %v3431 = vpack.c.b16 %v2291, %v2286
        %v3432 = vpack.c.b16 %v2292, %v2287
        %v3433 = vpack.c.b16 %v2293, %v2288
        %v3434 = vpack.c.b16 %v2294, %v2289
        %v3435 = vpack.c.b16 %v2300, %v2295
        %v3436 = vpack.c.b16 %v2301, %v2296
        %v3437 = vpack.c.b16 %v2302, %v2297
        %v3438 = vpack.c.b16 %v2303, %v2298
        %v3439 = vpack.c.b16 %v2304, %v2299
        %v3440 = vpack.c.b16 %v2310, %v2305
        %v3441 = vpack.c.b16 %v2311, %v2306
        %v3442 = vpack.c.b16 %v2312, %v2307
        %v3443 = vpack.c.b16 %v2313, %v2308
        %v3444 = vpack.c.b16 %v2314, %v2309
        %v3445 = vpack.c.b16 %v2320, %v2315
        %v3446 = vpack.c.b16 %v2321, %v2316
        %v3447 = vpack.c.b16 %v2322, %v2317
        %v3448 = vpack.c.b16 %v2323, %v2318
        %v3449 = vpack.c.b16 %v2324, %v2319
        %v3450 = vpack.c.b16 %v2330, %v2325
        %v3451 = vpack.c.b16 %v2331, %v2326
        %v3452 = vpack.c.b16 %v2332, %v2327
        %v3453 = vpack.c.b16 %v2333, %v2328
        %v3454 = vpack.c.b16 %v2334, %v2329
        %v3455 = vpack.c.b16 %v2340, %v2335
        %v3456 = vpack.c.b16 %v2341, %v2336
        %v3457 = vpack.c.b16 %v2342, %v2337
        %v3458 = vpack.c.b16 %v2343, %v2338
        %v3459 = vpack.c.b16 %v2344, %v2339
        %v3460 = vpack.c.b16 %v2350, %v2345
        %v3461 = vpack.c.b16 %v2351, %v2346
        %v3462 = vpack.c.b16 %v2352, %v2347
        %v3463 = vpack.c.b16 %v2353, %v2348
        %v3464 = vpack.c.b16 %v2354, %v2349
        %v3465 = vpack.c.b16 %v2360, %v2355
        %v3466 = vpack.c.b16 %v2361, %v2356
        %v3467 = vpack.c.b16 %v2362, %v2357
        %v3468 = vpack.c.b16 %v2363, %v2358
        %v3469 = vpack.c.b16 %v2364, %v2359
        %v3470 = vpack.c.b16 %v2370, %v2365
        %v3471 = vpack.c.b16 %v2371, %v2366
        %v3472 = vpack.c.b16 %v2372, %v2367
        %v3473 = vpack.c.b16 %v2373, %v2368
        %v3474 = vpack.c.b16 %v2374, %v2369
        %v3475 = vpack.c.b16 %v2380, %v2375
        %v3476 = vpack.c.b16 %v2381, %v2376
        %v3477 = vpack.c.b16 %v2382, %v2377
        %v3478 = vpack.c.b16 %v2383, %v2378
        %v3479 = vpack.c.b16 %v2384, %v2379
        %v3480 = vpack.c.b16 %v2390, %v2385
        %v3481 = vpack.c.b16 %v2391, %v2386
        %v3482 = vpack.c.b16 %v2392, %v2387
        %v3483 = vpack.c.b16 %v2393, %v2388
        %v3484 = vpack.c.b16 %v2394, %v2389
        %v3485 = vpack.c.b16 %v2400, %v2395
        %v3486 = vpack.c.b16 %v2401, %v2396
        %v3487 = vpack.c.b16 %v2402, %v2397
        %v3488 = vpack.c.b16 %v2403, %v2398
        %v3489 = vpack.c.b16 %v2404, %v2399
        %v3490 = vpack.c.b16 %v2410, %v2405
        %v3491 = vpack.c.b16 %v2411, %v2406
        %v3492 = vpack.c.b16 %v2412, %v2407
        %v3493 = vpack.c.b16 %v2413, %v2408
        %v3494 = vpack.c.b16 %v2414, %v2409
        %v3495 = vpack.c.b16 %v2420, %v2415
        %v3496 = vpack.c.b16 %v2421, %v2416
        %v3497 = vpack.c.b16 %v2422, %v2417
        %v3498 = vpack.c.b16 %v2423, %v2418
        %v3499 = vpack.c.b16 %v2424, %v2419
        %v3500 = vpack.c.b16 %v2430, %v2425
        %v3501 = vpack.c.b16 %v2431, %v2426
        %v3502 = vpack.c.b16 %v2432, %v2427
        %v3503 = vpack.c.b16 %v2433, %v2428
        %v3504 = vpack.c.b16 %v2434, %v2429
        %v3505 = vpack.c.b16 %v2440, %v2435
        %v3506 = vpack.c.b16 %v2441, %v2436
        %v3507 = vpack.c.b16 %v2442, %v2437
        %v3508 = vpack.c.b16 %v2443, %v2438
        %v3509 = vpack.c.b16 %v2444, %v2439
        %v3510 = vpack.c.b16 %v2450, %v2445
        %v3511 = vpack.c.b16 %v2451, %v2446
        %v3512 = vpack.c.b16 %v2452, %v2447
        %v3513 = vpack.c.b16 %v2453, %v2448
        %v3514 = vpack.c.b16 %v2454, %v2449
        %v3515 = vpack.c.b16 %v2460, %v2455
        %v3516 = vpack.c.b16 %v2461, %v2456
        %v3517 = vpack.c.b16 %v2462, %v2457
        %v3518 = vpack.c.b16 %v2463, %v2458
        %v3519 = vpack.c.b16 %v2464, %v2459
        %v3520 = vpack.c.b16 %v2470, %v2465
        %v3521 = vpack.c.b16 %v2471, %v2466
        %v3522 = vpack.c.b16 %v2472, %v2467
        %v3523 = vpack.c.b16 %v2473, %v2468
        %v3524 = vpack.c.b16 %v2474, %v2469
        %v3525 = vpack.c.b16 %v2480, %v2475
        %v3526 = vpack.c.b16 %v2481, %v2476
        %v3527 = vpack.c.b16 %v2482, %v2477
        %v3528 = vpack.c.b16 %v2483, %v2478
        %v3529 = vpack.c.b16 %v2484, %v2479
        %v3530 = vpack.c.b16 %v2490, %v2485
        %v3531 = vpack.c.b16 %v2491, %v2486
        %v3532 = vpack.c.b16 %v2492, %v2487
        %v3533 = vpack.c.b16 %v2493, %v2488
        %v3534 = vpack.c.b16 %v2494, %v2489
        %v3535 = vpack.c.b16 %v2500, %v2495
        %v3536 = vpack.c.b16 %v2501, %v2496
        %v3537 = vpack.c.b16 %v2502, %v2497
        %v3538 = vpack.c.b16 %v2503, %v2498
        %v3539 = vpack.c.b16 %v2504, %v2499
        %v3540 = vpack.c.b16 %v2510, %v2505
        %v3541 = vpack.c.b16 %v2511, %v2506
        %v3542 = vpack.c.b16 %v2512, %v2507
        %v3543 = vpack.c.b16 %v2513, %v2508
        %v3544 = vpack.c.b16 %v2514, %v2509
        %v3545 = vpack.c.b16 %v2520, %v2515
        %v3546 = vpack.c.b16 %v2521, %v2516
        %v3547 = vpack.c.b16 %v2522, %v2517
        %v3548 = vpack.c.b16 %v2523, %v2518
        %v3549 = vpack.c.b16 %v2524, %v2519
        %v3550 = vpack.c.b16 %v2530, %v2525
        %v3551 = vpack.c.b16 %v2531, %v2526
        %v3552 = vpack.c.b16 %v2532, %v2527
        %v3553 = vpack.c.b16 %v2533, %v2528
        %v3554 = vpack.c.b16 %v2534, %v2529
        %v3555 = vpack.c.b16 %v2540, %v2535
        %v3556 = vpack.c.b16 %v2541, %v2536
        %v3557 = vpack.c.b16 %v2542, %v2537
        %v3558 = vpack.c.b16 %v2543, %v2538
        %v3559 = vpack.c.b16 %v2544, %v2539
        %v3560 = vpack.c.b16 %v2550, %v2545
        %v3561 = vpack.c.b16 %v2551, %v2546
        %v3562 = vpack.c.b16 %v2552, %v2547
        %v3563 = vpack.c.b16 %v2553, %v2548
        %v3564 = vpack.c.b16 %v2554, %v2549
        %v3565 = vpack.c.b16 %v2560, %v2555
        %v3566 = vpack.c.b16 %v2561, %v2556
        %v3567 = vpack.c.b16 %v2562, %v2557
        %v3568 = vpack.c.b16 %v2563, %v2558
        %v3569 = vpack.c.b16 %v2564, %v2559
        %v3570 = vpack.c.b16 %v2570, %v2565
        %v3571 = vpack.c.b16 %v2571, %v2566
        %v3572 = vpack.c.b16 %v2572, %v2567
        %v3573 = vpack.c.b16 %v2573, %v2568
        %v3574 = vpack.c.b16 %v2574, %v2569
        %v3575 = vpack.c.b16 %v2580, %v2575
        %v3576 = vpack.c.b16 %v2581, %v2576
        %v3577 = vpack.c.b16 %v2582, %v2577
        %v3578 = vpack.c.b16 %v2583, %v2578
        %v3579 = vpack.c.b16 %v2584, %v2579
        %v3580 = vpack.c.b16 %v2590, %v2585
        %v3581 = vpack.c.b16 %v2591, %v2586
        %v3582 = vpack.c.b16 %v2592, %v2587
        %v3583 = vpack.c.b16 %v2593, %v2588
        %v3584 = vpack.c.b16 %v2594, %v2589
        %v3585 = vpack.c.b16 %v2600, %v2595
        %v3586 = vpack.c.b16 %v2601, %v2596
        %v3587 = vpack.c.b16 %v2602, %v2597
        %v3588 = vpack.c.b16 %v2603, %v2598
        %v3589 = vpack.c.b16 %v2604, %v2599
        %v3590 = vpack.c.b16 %v2610, %v2605
        %v3591 = vpack.c.b16 %v2611, %v2606
        %v3592 = vpack.c.b16 %v2612, %v2607
        %v3593 = vpack.c.b16 %v2613, %v2608
        %v3594 = vpack.c.b16 %v2614, %v2609
        %v3595 = vpack.c.b16 %v2620, %v2615
        %v3596 = vpack.c.b16 %v2621, %v2616
        %v3597 = vpack.c.b16 %v2622, %v2617
        %v3598 = vpack.c.b16 %v2623, %v2618
        %v3599 = vpack.c.b16 %v2624, %v2619
        %v3600 = vpack.c.b16 %v2630, %v2625
        %v3601 = vpack.c.b16 %v2631, %v2626
        %v3602 = vpack.c.b16 %v2632, %v2627
        %v3603 = vpack.c.b16 %v2633, %v2628
        %v3604 = vpack.c.b16 %v2634, %v2629
        %v3605 = vpack.c.b16 %v2640, %v2635
        %v3606 = vpack.c.b16 %v2641, %v2636
        %v3607 = vpack.c.b16 %v2642, %v2637
        %v3608 = vpack.c.b16 %v2643, %v2638
        %v3609 = vpack.c.b16 %v2644, %v2639
        %v3610 = vpack.c.b16 %v2650, %v2645
        %v3611 = vpack.c.b16 %v2651, %v2646
        %v3612 = vpack.c.b16 %v2652, %v2647
        %v3613 = vpack.c.b16 %v2653, %v2648
        %v3614 = vpack.c.b16 %v2654, %v2649
        %v3615 = vpack.c.b16 %v2660, %v2655
        %v3616 = vpack.c.b16 %v2661, %v2656
        %v3617 = vpack.c.b16 %v2662, %v2657
        %v3618 = vpack.c.b16 %v2663, %v2658
        %v3619 = vpack.c.b16 %v2664, %v2659
        %v3620 = vpack.c.b16 %v2670, %v2665
        %v3621 = vpack.c.b16 %v2671, %v2666
        %v3622 = vpack.c.b16 %v2672, %v2667
        %v3623 = vpack.c.b16 %v2673, %v2668
        %v3624 = vpack.c.b16 %v2674, %v2669
        %v3625 = vpack.c.b16 %v2680, %v2675
        %v3626 = vpack.c.b16 %v2681, %v2676
        %v3627 = vpack.c.b16 %v2682, %v2677
        %v3628 = vpack.c.b16 %v2683, %v2678
        %v3629 = vpack.c.b16 %v2684, %v2679
        %v3630 = vpack.c.b16 %v2690, %v2685
        %v3631 = vpack.c.b16 %v2691, %v2686
        %v3632 = vpack.c.b16 %v2692, %v2687
        %v3633 = vpack.c.b16 %v2693, %v2688
        %v3634 = vpack.c.b16 %v2694, %v2689
        %v3635 = vpack.c.b16 %v2700, %v2695
        %v3636 = vpack.c.b16 %v2701, %v2696
        %v3637 = vpack.c.b16 %v2702, %v2697
        %v3638 = vpack.c.b16 %v2703, %v2698
        %v3639 = vpack.c.b16 %v2704, %v2699
        %v3640 = vpack.c.b16 %v2710, %v2705
        %v3641 = vpack.c.b16 %v2711, %v2706
        %v3642 = vpack.c.b16 %v2712, %v2707
        %v3643 = vpack.c.b16 %v2713, %v2708
        %v3644 = vpack.c.b16 %v2714, %v2709
        %v3645 = vpack.c.b16 %v2720, %v2715
        %v3646 = vpack.c.b16 %v2721, %v2716
        %v3647 = vpack.c.b16 %v2722, %v2717
        %v3648 = vpack.c.b16 %v2723, %v2718
        %v3649 = vpack.c.b16 %v2724, %v2719
        %v3650 = vpack.c.b16 %v2730, %v2725
        %v3651 = vpack.c.b16 %v2731, %v2726
        %v3652 = vpack.c.b16 %v2732, %v2727
        %v3653 = vpack.c.b16 %v2733, %v2728
        %v3654 = vpack.c.b16 %v2734, %v2729
        %v3655 = vpack.c.b16 %v2740, %v2735
        %v3656 = vpack.c.b16 %v2741, %v2736
        %v3657 = vpack.c.b16 %v2742, %v2737
        %v3658 = vpack.c.b16 %v2743, %v2738
        %v3659 = vpack.c.b16 %v2744, %v2739
        %v3660 = vpack.c.b16 %v2750, %v2745
        %v3661 = vpack.c.b16 %v2751, %v2746
        %v3662 = vpack.c.b16 %v2752, %v2747
        %v3663 = vpack.c.b16 %v2753, %v2748
        %v3664 = vpack.c.b16 %v2754, %v2749
        %v3665 = vpack.c.b16 %v2760, %v2755
        %v3666 = vpack.c.b16 %v2761, %v2756
        %v3667 = vpack.c.b16 %v2762, %v2757
        %v3668 = vpack.c.b16 %v2763, %v2758
        %v3669 = vpack.c.b16 %v2764, %v2759
        %v3670 = vpack.c.b16 %v2770, %v2765
        %v3671 = vpack.c.b16 %v2771, %v2766
        %v3672 = vpack.c.b16 %v2772, %v2767
        %v3673 = vpack.c.b16 %v2773, %v2768
        %v3674 = vpack.c.b16 %v2774, %v2769
        %v3675 = vpack.c.b16 %v2780, %v2775
        %v3676 = vpack.c.b16 %v2781, %v2776
        %v3677 = vpack.c.b16 %v2782, %v2777
        %v3678 = vpack.c.b16 %v2783, %v2778
        %v3679 = vpack.c.b16 %v2784, %v2779
        %v3680 = vpack.c.b16 %v2790, %v2785
        %v3681 = vpack.c.b16 %v2791, %v2786
        %v3682 = vpack.c.b16 %v2792, %v2787
        %v3683 = vpack.c.b16 %v2793, %v2788
        %v3684 = vpack.c.b16 %v2794, %v2789
        %v3685 = vpack.c.b16 %v2800, %v2795
        %v3686 = vpack.c.b16 %v2801, %v2796
        %v3687 = vpack.c.b16 %v2802, %v2797
        %v3688 = vpack.c.b16 %v2803, %v2798
        %v3689 = vpack.c.b16 %v2804, %v2799
        %v3690 = vpack.c.b16 %v2810, %v2805
        %v3691 = vpack.c.b16 %v2811, %v2806
        %v3692 = vpack.c.b16 %v2812, %v2807
        %v3693 = vpack.c.b16 %v2813, %v2808
        %v3694 = vpack.c.b16 %v2814, %v2809
        %v3695 = vpack.c.b16 %v2820, %v2815
        %v3696 = vpack.c.b16 %v2821, %v2816
        %v3697 = vpack.c.b16 %v2822, %v2817
        %v3698 = vpack.c.b16 %v2823, %v2818
        %v3699 = vpack.c.b16 %v2824, %v2819
        %v3700 = vpack.c.b16 %v2830, %v2825
        %v3701 = vpack.c.b16 %v2831, %v2826
        %v3702 = vpack.c.b16 %v2832, %v2827
        %v3703 = vpack.c.b16 %v2833, %v2828
        %v3704 = vpack.c.b16 %v2834, %v2829
        %v3705 = vpack.c.b16 %v2840, %v2835
        %v3706 = vpack.c.b16 %v2841, %v2836
        %v3707 = vpack.c.b16 %v2842, %v2837
        %v3708 = vpack.c.b16 %v2843, %v2838
        %v3709 = vpack.c.b16 %v2844, %v2839
        %v3710 = vpack.c.b16 %v2850, %v2845
        %v3711 = vpack.c.b16 %v2851, %v2846
        %v3712 = vpack.c.b16 %v2852, %v2847
        %v3713 = vpack.c.b16 %v2853, %v2848
        %v3714 = vpack.c.b16 %v2854, %v2849
        %v3715 = vpack.c.b16 %v2860, %v2855
        %v3716 = vpack.c.b16 %v2861, %v2856
        %v3717 = vpack.c.b16 %v2862, %v2857
        %v3718 = vpack.c.b16 %v2863, %v2858
        %v3719 = vpack.c.b16 %v2864, %v2859
        %v3720 = vpack.c.b16 %v2870, %v2865
        %v3721 = vpack.c.b16 %v2871, %v2866
        %v3722 = vpack.c.b16 %v2872, %v2867
        %v3723 = vpack.c.b16 %v2873, %v2868
        %v3724 = vpack.c.b16 %v2874, %v2869
        %v3725 = vpack.c.b16 %v2880, %v2875
        %v3726 = vpack.c.b16 %v2881, %v2876
        %v3727 = vpack.c.b16 %v2882, %v2877
        %v3728 = vpack.c.b16 %v2883, %v2878
        %v3729 = vpack.c.b16 %v2884, %v2879
        %v3730 = vpack.c.b16 %v2890, %v2885
        %v3731 = vpack.c.b16 %v2891, %v2886
        %v3732 = vpack.c.b16 %v2892, %v2887
        %v3733 = vpack.c.b16 %v2893, %v2888
        %v3734 = vpack.c.b16 %v2894, %v2889
        %v3735 = vpack.c.b16 %v2900, %v2895
        %v3736 = vpack.c.b16 %v2901, %v2896
        %v3737 = vpack.c.b16 %v2902, %v2897
        %v3738 = vpack.c.b16 %v2903, %v2898
        %v3739 = vpack.c.b16 %v2904, %v2899
        %v3740 = vpack.c.b16 %v2910, %v2905
        %v3741 = vpack.c.b16 %v2911, %v2906
        %v3742 = vpack.c.b16 %v2912, %v2907
        %v3743 = vpack.c.b16 %v2913, %v2908
        %v3744 = vpack.c.b16 %v2914, %v2909
        %v3745 = vpack.c.b16 %v2920, %v2915
        %v3746 = vpack.c.b16 %v2921, %v2916
        %v3747 = vpack.c.b16 %v2922, %v2917
        %v3748 = vpack.c.b16 %v2923, %v2918
        %v3749 = vpack.c.b16 %v2924, %v2919
        %v3750 = vpack.c.b16 %v2930, %v2925
        %v3751 = vpack.c.b16 %v2931, %v2926
        %v3752 = vpack.c.b16 %v2932, %v2927
        %v3753 = vpack.c.b16 %v2933, %v2928
        %v3754 = vpack.c.b16 %v2934, %v2929
        %v3755 = vpack.c.b16 %v2940, %v2935
        %v3756 = vpack.c.b16 %v2941, %v2936
        %v3757 = vpack.c.b16 %v2942, %v2937
        %v3758 = vpack.c.b16 %v2943, %v2938
        %v3759 = vpack.c.b16 %v2944, %v2939
        %v3760 = vpack.c.b16 %v2950, %v2945
        %v3761 = vpack.c.b16 %v2951, %v2946
        %v3762 = vpack.c.b16 %v2952, %v2947
        %v3763 = vpack.c.b16 %v2953, %v2948
        %v3764 = vpack.c.b16 %v2954, %v2949
        %v3765 = vpack.c.b16 %v2960, %v2955
        %v3766 = vpack.c.b16 %v2961, %v2956
        %v3767 = vpack.c.b16 %v2962, %v2957
        %v3768 = vpack.c.b16 %v2963, %v2958
        %v3769 = vpack.c.b16 %v2964, %v2959
        %v3770 = vpack.c.b16 %v2970, %v2965
        %v3771 = vpack.c.b16 %v2971, %v2966
        %v3772 = vpack.c.b16 %v2972, %v2967
        %v3773 = vpack.c.b16 %v2973, %v2968
        %v3774 = vpack.c.b16 %v2974, %v2969
        %v3775 = vpack.c.b16 %v2980, %v2975
        %v3776 = vpack.c.b16 %v2981, %v2976
        %v3777 = vpack.c.b16 %v2982, %v2977
        %v3778 = vpack.c.b16 %v2983, %v2978
        %v3779 = vpack.c.b16 %v2984, %v2979
        %v3780 = vpack.c.b16 %v2990, %v2985
        %v3781 = vpack.c.b16 %v2991, %v2986
        %v3782 = vpack.c.b16 %v2992, %v2987
        %v3783 = vpack.c.b16 %v2993, %v2988
        %v3784 = vpack.c.b16 %v2994, %v2989
        %v3785 = vpack.c.b16 %v3000, %v2995
        %v3786 = vpack.c.b16 %v3001, %v2996
        %v3787 = vpack.c.b16 %v3002, %v2997
        %v3788 = vpack.c.b16 %v3003, %v2998
        %v3789 = vpack.c.b16 %v3004, %v2999
        %v3790 = vpack.c.b16 %v3010, %v3005
        %v3791 = vpack.c.b16 %v3011, %v3006
        %v3792 = vpack.c.b16 %v3012, %v3007
        %v3793 = vpack.c.b16 %v3013, %v3008
        %v3794 = vpack.c.b16 %v3014, %v3009
        %v3795 = vpack.c.b16 %v3020, %v3015
        %v3796 = vpack.c.b16 %v3021, %v3016
        %v3797 = vpack.c.b16 %v3022, %v3017
        %v3798 = vpack.c.b16 %v3023, %v3018
        %v3799 = vpack.c.b16 %v3024, %v3019
        %v3800 = vpack.c.b16 %v3030, %v3025
        %v3801 = vpack.c.b16 %v3031, %v3026
        %v3802 = vpack.c.b16 %v3032, %v3027
        %v3803 = vpack.c.b16 %v3033, %v3028
        %v3804 = vpack.c.b16 %v3034, %v3029
        %v3805 = vpack.c.b16 %v3040, %v3035
        %v3806 = vpack.c.b16 %v3041, %v3036
        %v3807 = vpack.c.b16 %v3042, %v3037
        %v3808 = vpack.c.b16 %v3043, %v3038
        %v3809 = vpack.c.b16 %v3044, %v3039
        %v3810 = vpack.c.b16 %v3050, %v3045
        %v3811 = vpack.c.b16 %v3051, %v3046
        %v3812 = vpack.c.b16 %v3052, %v3047
        %v3813 = vpack.c.b16 %v3053, %v3048
        %v3814 = vpack.c.b16 %v3054, %v3049
        %v3815 = vpack.c.b16 %v3060, %v3055
        %v3816 = vpack.c.b16 %v3061, %v3056
        %v3817 = vpack.c.b16 %v3062, %v3057
        %v3818 = vpack.c.b16 %v3063, %v3058
        %v3819 = vpack.c.b16 %v3064, %v3059
        %v3820 = vpack.c.b16 %v3070, %v3065
        %v3821 = vpack.c.b16 %v3071, %v3066
        %v3822 = vpack.c.b16 %v3072, %v3067
        %v3823 = vpack.c.b16 %v3073, %v3068
        %v3824 = vpack.c.b16 %v3074, %v3069
        %v3825 = vpack.c.b16 %v3080, %v3075
        %v3826 = vpack.c.b16 %v3081, %v3076
        %v3827 = vpack.c.b16 %v3082, %v3077
        %v3828 = vpack.c.b16 %v3083, %v3078
        %v3829 = vpack.c.b16 %v3084, %v3079
        %v3830 = vpack.c.b16 %v3090, %v3085
        %v3831 = vpack.c.b16 %v3091, %v3086
        %v3832 = vpack.c.b16 %v3092, %v3087
        %v3833 = vpack.c.b16 %v3093, %v3088
        %v3834 = vpack.c.b16 %v3094, %v3089
        %v3835 = vpack.c.b16 %v3100, %v3095
        %v3836 = vpack.c.b16 %v3101, %v3096
        %v3837 = vpack.c.b16 %v3102, %v3097
        %v3838 = vpack.c.b16 %v3103, %v3098
        %v3839 = vpack.c.b16 %v3104, %v3099
        %v3840 = vpack.c.b16 %v3110, %v3105
        %v3841 = vpack.c.b16 %v3111, %v3106
        %v3842 = vpack.c.b16 %v3112, %v3107
        %v3843 = vpack.c.b16 %v3113, %v3108
        %v3844 = vpack.c.b16 %v3114, %v3109
        %v3845 = vpack.c.b16 %v3120, %v3115
        %v3846 = vpack.c.b16 %v3121, %v3116
        %v3847 = vpack.c.b16 %v3122, %v3117
        %v3848 = vpack.c.b16 %v3123, %v3118
        %v3849 = vpack.c.b16 %v3124, %v3119
        %v3850 = vpack.c.b16 %v3130, %v3125
        %v3851 = vpack.c.b16 %v3131, %v3126
        %v3852 = vpack.c.b16 %v3132, %v3127
        %v3853 = vpack.c.b16 %v3133, %v3128
        %v3854 = vpack.c.b16 %v3134, %v3129
        %v3855 = vpack.c.b16 %v3140, %v3135
        %v3856 = vpack.c.b16 %v3141, %v3136
        %v3857 = vpack.c.b16 %v3142, %v3137
        %v3858 = vpack.c.b16 %v3143, %v3138
        %v3859 = vpack.c.b16 %v3144, %v3139
        %v3860 = vpack.c.b16 %v3150, %v3145
        %v3861 = vpack.c.b16 %v3151, %v3146
        %v3862 = vpack.c.b16 %v3152, %v3147
        %v3863 = vpack.c.b16 %v3153, %v3148
        %v3864 = vpack.c.b16 %v3154, %v3149
        %v3865 = vpack.c.b16 %v3160, %v3155
        %v3866 = vpack.c.b16 %v3161, %v3156
        %v3867 = vpack.c.b16 %v3162, %v3157
        %v3868 = vpack.c.b16 %v3163, %v3158
        %v3869 = vpack.c.b16 %v3164, %v3159
        %v3870 = vpack.c.b16 %v3170, %v3165
        %v3871 = vpack.c.b16 %v3171, %v3166
        %v3872 = vpack.c.b16 %v3172, %v3167
        %v3873 = vpack.c.b16 %v3173, %v3168
        %v3874 = vpack.c.b16 %v3174, %v3169
        %v3875 = vpack.c.b16 %v3180, %v3175
        %v3876 = vpack.c.b16 %v3181, %v3176
        %v3877 = vpack.c.b16 %v3182, %v3177
        %v3878 = vpack.c.b16 %v3183, %v3178
        %v3879 = vpack.c.b16 %v3184, %v3179
        %v3880 = vpack.c.b16 %v3190, %v3185
        %v3881 = vpack.c.b16 %v3191, %v3186
        %v3882 = vpack.c.b16 %v3192, %v3187
        %v3883 = vpack.c.b16 %v3193, %v3188
        %v3884 = vpack.c.b16 %v3194, %v3189
        %v3885 = vpack.c.b16 %v3200, %v3195
        %v3886 = vpack.c.b16 %v3201, %v3196
        %v3887 = vpack.c.b16 %v3202, %v3197
        %v3888 = vpack.c.b16 %v3203, %v3198
        %v3889 = vpack.c.b16 %v3204, %v3199
        %v3890 = vpack.c.b16 %v3210, %v3205
        %v3891 = vpack.c.b16 %v3211, %v3206
        %v3892 = vpack.c.b16 %v3212, %v3207
        %v3893 = vpack.c.b16 %v3213, %v3208
        %v3894 = vpack.c.b16 %v3214, %v3209
        %v3895 = vpack.c.b16 %v3220, %v3215
        %v3896 = vpack.c.b16 %v3221, %v3216
        %v3897 = vpack.c.b16 %v3222, %v3217
        %v3898 = vpack.c.b16 %v3223, %v3218
        %v3899 = vpack.c.b16 %v3224, %v3219
        %v3900 = vpack.c.b16 %v3230, %v3225
        %v3901 = vpack.c.b16 %v3231, %v3226
        %v3902 = vpack.c.b16 %v3232, %v3227
        %v3903 = vpack.c.b16 %v3233, %v3228
        %v3904 = vpack.c.b16 %v3234, %v3229
        %v3905 = vpack.c.b16 %v3240, %v3235
        %v3906 = vpack.c.b16 %v3241, %v3236
        %v3907 = vpack.c.b16 %v3242, %v3237
        %v3908 = vpack.c.b16 %v3243, %v3238
        %v3909 = vpack.c.b16 %v3244, %v3239
        %v3910 = vpack.c.b16 %v3250, %v3245
        %v3911 = vpack.c.b16 %v3251, %v3246
        %v3912 = vpack.c.b16 %v3252, %v3247
        %v3913 = vpack.c.b16 %v3253, %v3248
        %v3914 = vpack.c.b16 %v3254, %v3249
        %v3915 = vpack.c.b16 %v3260, %v3255
        %v3916 = vpack.c.b16 %v3261, %v3256
        %v3917 = vpack.c.b16 %v3262, %v3257
        %v3918 = vpack.c.b16 %v3263, %v3258
        %v3919 = vpack.c.b16 %v3264, %v3259
        %v3920 = vpack.c.b16 %v3270, %v3265
        %v3921 = vpack.c.b16 %v3271, %v3266
        %v3922 = vpack.c.b16 %v3272, %v3267
        %v3923 = vpack.c.b16 %v3273, %v3268
        %v3924 = vpack.c.b16 %v3274, %v3269
        %v3925 = vpack.c.b16 %v3280, %v3275
        %v3926 = vpack.c.b16 %v3281, %v3276
        %v3927 = vpack.c.b16 %v3282, %v3277
        %v3928 = vpack.c.b16 %v3283, %v3278
        %v3929 = vpack.c.b16 %v3284, %v3279
        %v3930 = vpack.c.b16 %v3290, %v3285
        %v3931 = vpack.c.b16 %v3291, %v3286
        %v3932 = vpack.c.b16 %v3292, %v3287
        %v3933 = vpack.c.b16 %v3293, %v3288
        %v3934 = vpack.c.b16 %v3294, %v3289
        %4575 = vmatprep.subr.bf16.mxu0 %v3296
        %4576 = vmatpush1.bf16.msra.mxu0 %v3295
        %4577 = vmatprep.subr.bf16.mxu0 %v3301
        %4578 = vmatpush1.bf16.msra.mxu0 %v3300
        %4579 = vmatprep.subr.bf16.mxu0 %v3306
        %4580 = vmatpush1.bf16.msra.mxu0 %v3305
        %4581 = vmatprep.subr.bf16.mxu0 %v3311
        %4582 = vmatpush1.bf16.msra.mxu0 %v3310
        %4583 = vmatprep.subr.bf16.mxu0 %v3316
        %4584 = vmatpush1.bf16.msra.mxu0 %v3315
        %4585 = vmatprep.subr.bf16.mxu0 %v3321
        %4586 = vmatpush1.bf16.msra.mxu0 %v3320
        %4587 = vmatprep.subr.bf16.mxu0 %v3326
        %4588 = vmatpush1.bf16.msra.mxu0 %v3325
        %4589 = vmatprep.subr.bf16.mxu0 %v3331
        %4590 = vmatpush1.bf16.msra.mxu0 %v3330
        %4591 = vmatprep.subr.bf16.mxu0 %v3336
        %4592 = vmatpush1.bf16.msra.mxu0 %v3335
        %4593 = vmatprep.subr.bf16.mxu0 %v3341
        %4594 = vmatpush1.bf16.msra.mxu0 %v3340
        %4595 = vmatprep.subr.bf16.mxu0 %v3346
        %4596 = vmatpush1.bf16.msra.mxu0 %v3345
        %4597 = vmatprep.subr.bf16.mxu0 %v3351
        %4598 = vmatpush1.bf16.msra.mxu0 %v3350
        %4599 = vmatprep.subr.bf16.mxu0 %v3356
        %4600 = vmatpush1.bf16.msra.mxu0 %v3355
        %4601 = vmatprep.subr.bf16.mxu0 %v3361
        %4602 = vmatpush1.bf16.msra.mxu0 %v3360
        %4603 = vmatprep.subr.bf16.mxu0 %v3366
        %4604 = vmatpush1.bf16.msra.mxu0 %v3365
        %4605 = vmatprep.subr.bf16.mxu0 %v3371
        %4606 = vmatpush1.bf16.msra.mxu0 %v3370
        %4607 = vmatprep.mubr.bf16.mxu0 %v1170
        %4608 = vmatmul.mubr.bf16.gmra.mrb[0].mxu0 %v1156
        %v4609 = vpop.f32.mrb[0].mxu0
        %v4610 = vadd.f32 %v1109, %v4609
        %v4611 = vpop.f32.mrb[0].mxu0
        %v4612 = vadd.f32 %v1113, %v4611
        %v4613 = vpop.f32.mrb[0].mxu0
        %v4614 = vpop.f32.mrb[0].mxu0
        %4615 = vdwg.mxu0
        %4616 = vmatprep.subr.bf16.mxu0 %v3376
        %4617 = vmatpush1.bf16.msra.mxu0 %v3375
        %4618 = vmatprep.subr.bf16.mxu0 %v3381
        %4619 = vmatpush1.bf16.msra.mxu0 %v3380
        %4620 = vmatprep.subr.bf16.mxu0 %v3386
        %4621 = vmatpush1.bf16.msra.mxu0 %v3385
        %4622 = vmatprep.subr.bf16.mxu0 %v3391
        %4623 = vmatpush1.bf16.msra.mxu0 %v3390
        %4624 = vmatprep.subr.bf16.mxu0 %v3396
        %4625 = vmatpush1.bf16.msra.mxu0 %v3395
        %4626 = vmatprep.subr.bf16.mxu0 %v3401
        %4627 = vmatpush1.bf16.msra.mxu0 %v3400
        %4628 = vmatprep.subr.bf16.mxu0 %v3406
        %4629 = vmatpush1.bf16.msra.mxu0 %v3405
        %4630 = vmatprep.subr.bf16.mxu0 %v3411
        %4631 = vmatpush1.bf16.msra.mxu0 %v3410
        %4632 = vmatprep.subr.bf16.mxu0 %v3416
        %4633 = vmatpush1.bf16.msra.mxu0 %v3415
        %4634 = vmatprep.subr.bf16.mxu0 %v3421
        %4635 = vmatpush1.bf16.msra.mxu0 %v3420
        %4636 = vmatprep.subr.bf16.mxu0 %v3426
        %4637 = vmatpush1.bf16.msra.mxu0 %v3425
        %4638 = vmatprep.subr.bf16.mxu0 %v3431
        %4639 = vmatpush1.bf16.msra.mxu0 %v3430
        %4640 = vmatprep.subr.bf16.mxu0 %v3436
        %4641 = vmatpush1.bf16.msra.mxu0 %v3435
        %4642 = vmatprep.subr.bf16.mxu0 %v3441
        %4643 = vmatpush1.bf16.msra.mxu0 %v3440
        %4644 = vmatprep.subr.bf16.mxu0 %v3446
        %4645 = vmatpush1.bf16.msra.mxu0 %v3445
        %4646 = vmatprep.subr.bf16.mxu0 %v3451
        %4647 = vmatpush1.bf16.msra.mxu0 %v3450
        %4648 = vmatprep.mubr.bf16.mxu0 %v1180
        %4649 = vmatmul.mubr.bf16.gmra.mrb[0].mxu0 %v1178
        %v4650 = vpop.f32.mrb[0].mxu0
        %v4651 = vadd.f32 %v4610, %v4650
        %v4652 = vpop.f32.mrb[0].mxu0
        %v4653 = vadd.f32 %v4612, %v4652
        %v4654 = vpop.f32.mrb[0].mxu0
        %v4655 = vpop.f32.mrb[0].mxu0
        %4656 = vdwg.mxu0
        %4657 = vmatprep.subr.bf16.mxu0 %v3456
        %4658 = vmatpush1.bf16.msra.mxu0 %v3455
        %4659 = vmatprep.subr.bf16.mxu0 %v3461
        %4660 = vmatpush1.bf16.msra.mxu0 %v3460
        %4661 = vmatprep.subr.bf16.mxu0 %v3466
        %4662 = vmatpush1.bf16.msra.mxu0 %v3465
        %4663 = vmatprep.subr.bf16.mxu0 %v3471
        %4664 = vmatpush1.bf16.msra.mxu0 %v3470
        %4665 = vmatprep.subr.bf16.mxu0 %v3476
        %4666 = vmatpush1.bf16.msra.mxu0 %v3475
        %4667 = vmatprep.subr.bf16.mxu0 %v3481
        %4668 = vmatpush1.bf16.msra.mxu0 %v3480
        %4669 = vmatprep.subr.bf16.mxu0 %v3486
        %4670 = vmatpush1.bf16.msra.mxu0 %v3485
        %4671 = vmatprep.subr.bf16.mxu0 %v3491
        %4672 = vmatpush1.bf16.msra.mxu0 %v3490
        %4673 = vmatprep.subr.bf16.mxu0 %v3496
        %4674 = vmatpush1.bf16.msra.mxu0 %v3495
        %4675 = vmatprep.subr.bf16.mxu0 %v3501
        %4676 = vmatpush1.bf16.msra.mxu0 %v3500
        %4677 = vmatprep.subr.bf16.mxu0 %v3506
        %4678 = vmatpush1.bf16.msra.mxu0 %v3505
        %4679 = vmatprep.subr.bf16.mxu0 %v3511
        %4680 = vmatpush1.bf16.msra.mxu0 %v3510
        %4681 = vmatprep.subr.bf16.mxu0 %v3516
        %4682 = vmatpush1.bf16.msra.mxu0 %v3515
        %4683 = vmatprep.subr.bf16.mxu0 %v3521
        %4684 = vmatpush1.bf16.msra.mxu0 %v3520
        %4685 = vmatprep.subr.bf16.mxu0 %v3526
        %4686 = vmatpush1.bf16.msra.mxu0 %v3525
        %4687 = vmatprep.subr.bf16.mxu0 %v3531
        %4688 = vmatpush1.bf16.msra.mxu0 %v3530
        %4689 = vmatprep.mubr.bf16.mxu0 %v1177
        %4690 = vmatmul.mubr.bf16.gmra.mrb[0].mxu0 %v1163
        %v4691 = vpop.f32.mrb[0].mxu0
        %v4692 = vadd.f32 %v4651, %v4691
        %v4693 = vpop.f32.mrb[0].mxu0
        %v4694 = vadd.f32 %v4653, %v4693
        %v4695 = vpop.f32.mrb[0].mxu0
        %v4696 = vpop.f32.mrb[0].mxu0
        %4697 = vdwg.mxu0
        %4698 = vmatprep.subr.bf16.mxu0 %v3536
        %4699 = vmatpush1.bf16.msra.mxu0 %v3535
        %4700 = vmatprep.subr.bf16.mxu0 %v3541
        %4701 = vmatpush1.bf16.msra.mxu0 %v3540
        %4702 = vmatprep.subr.bf16.mxu0 %v3546
        %4703 = vmatpush1.bf16.msra.mxu0 %v3545
        %4704 = vmatprep.subr.bf16.mxu0 %v3551
        %4705 = vmatpush1.bf16.msra.mxu0 %v3550
        %4706 = vmatprep.subr.bf16.mxu0 %v3556
        %4707 = vmatpush1.bf16.msra.mxu0 %v3555
        %4708 = vmatprep.subr.bf16.mxu0 %v3561
        %4709 = vmatpush1.bf16.msra.mxu0 %v3560
        %4710 = vmatprep.subr.bf16.mxu0 %v3566
        %4711 = vmatpush1.bf16.msra.mxu0 %v3565
        %4712 = vmatprep.subr.bf16.mxu0 %v3571
        %4713 = vmatpush1.bf16.msra.mxu0 %v3570
        %4714 = vmatprep.subr.bf16.mxu0 %v3576
        %4715 = vmatpush1.bf16.msra.mxu0 %v3575
        %4716 = vmatprep.subr.bf16.mxu0 %v3581
        %4717 = vmatpush1.bf16.msra.mxu0 %v3580
        %4718 = vmatprep.subr.bf16.mxu0 %v3586
        %4719 = vmatpush1.bf16.msra.mxu0 %v3585
        %4720 = vmatprep.subr.bf16.mxu0 %v3591
        %4721 = vmatpush1.bf16.msra.mxu0 %v3590
        %4722 = vmatprep.subr.bf16.mxu0 %v3596
        %4723 = vmatpush1.bf16.msra.mxu0 %v3595
        %4724 = vmatprep.subr.bf16.mxu0 %v3601
        %4725 = vmatpush1.bf16.msra.mxu0 %v3600
        %4726 = vmatprep.subr.bf16.mxu0 %v3606
        %4727 = vmatpush1.bf16.msra.mxu0 %v3605
        %4728 = vmatprep.subr.bf16.mxu0 %v3611
        %4729 = vmatpush1.bf16.msra.mxu0 %v3610
        %4730 = vmatprep.mubr.bf16.mxu0 %v1181
        %4731 = vmatmul.mubr.bf16.gmra.mrb[0].mxu0 %v1179
        %v4732 = vpop.f32.mrb[0].mxu0
        %v4733 = vadd.f32 %v4692, %v4732
        %v4734 = vpop.f32.mrb[0].mxu0
        %v4735 = vadd.f32 %v4694, %v4734
        %v4736 = vpop.f32.mrb[0].mxu0
        %v4737 = vpop.f32.mrb[0].mxu0
        %4738 = vdwg.mxu0
        %4739 = vmatprep.subr.bf16.mxu0 %v3616
        %4740 = vmatpush1.bf16.msra.mxu0 %v3615
        %4741 = vmatprep.subr.bf16.mxu0 %v3621
        %4742 = vmatpush1.bf16.msra.mxu0 %v3620
        %4743 = vmatprep.subr.bf16.mxu0 %v3626
        %4744 = vmatpush1.bf16.msra.mxu0 %v3625
        %4745 = vmatprep.subr.bf16.mxu0 %v3631
        %4746 = vmatpush1.bf16.msra.mxu0 %v3630
        %4747 = vmatprep.subr.bf16.mxu0 %v3636
        %4748 = vmatpush1.bf16.msra.mxu0 %v3635
        %4749 = vmatprep.subr.bf16.mxu0 %v3641
        %4750 = vmatpush1.bf16.msra.mxu0 %v3640
        %4751 = vmatprep.subr.bf16.mxu0 %v3646
        %4752 = vmatpush1.bf16.msra.mxu0 %v3645
        %4753 = vmatprep.subr.bf16.mxu0 %v3651
        %4754 = vmatpush1.bf16.msra.mxu0 %v3650
        %4755 = vmatprep.subr.bf16.mxu0 %v3656
        %4756 = vmatpush1.bf16.msra.mxu0 %v3655
        %4757 = vmatprep.subr.bf16.mxu0 %v3661
        %4758 = vmatpush1.bf16.msra.mxu0 %v3660
        %4759 = vmatprep.subr.bf16.mxu0 %v3666
        %4760 = vmatpush1.bf16.msra.mxu0 %v3665
        %4761 = vmatprep.subr.bf16.mxu0 %v3671
        %4762 = vmatpush1.bf16.msra.mxu0 %v3670
        %4763 = vmatprep.subr.bf16.mxu0 %v3676
        %4764 = vmatpush1.bf16.msra.mxu0 %v3675
        %4765 = vmatprep.subr.bf16.mxu0 %v3681
        %4766 = vmatpush1.bf16.msra.mxu0 %v3680
        %4767 = vmatprep.subr.bf16.mxu0 %v3686
        %4768 = vmatpush1.bf16.msra.mxu0 %v3685
        %4769 = vmatprep.subr.bf16.mxu0 %v3691
        %4770 = vmatpush1.bf16.msra.mxu0 %v3690
        %4771 = vmatprep.mubr.bf16.mxu0 %v1219
        %4772 = vmatmul.mubr.bf16.gmra.mrb[0].mxu0 %v1205
        %v4773 = vpop.f32.mrb[0].mxu0
        %v4774 = vadd.f32 %v4733, %v4773
        %v4775 = vpop.f32.mrb[0].mxu0
        %v4776 = vadd.f32 %v4735, %v4775
        %v4777 = vpop.f32.mrb[0].mxu0
        %v4778 = vpop.f32.mrb[0].mxu0
        %4779 = vdwg.mxu0
        %4780 = vmatprep.subr.bf16.mxu0 %v3696
        %4781 = vmatpush1.bf16.msra.mxu0 %v3695
        %4782 = vmatprep.subr.bf16.mxu0 %v3701
        %4783 = vmatpush1.bf16.msra.mxu0 %v3700
        %4784 = vmatprep.subr.bf16.mxu0 %v3706
        %4785 = vmatpush1.bf16.msra.mxu0 %v3705
        %4786 = vmatprep.subr.bf16.mxu0 %v3711
        %4787 = vmatpush1.bf16.msra.mxu0 %v3710
        %4788 = vmatprep.subr.bf16.mxu0 %v3716
        %4789 = vmatpush1.bf16.msra.mxu0 %v3715
        %4790 = vmatprep.subr.bf16.mxu0 %v3721
        %4791 = vmatpush1.bf16.msra.mxu0 %v3720
        %4792 = vmatprep.subr.bf16.mxu0 %v3726
        %4793 = vmatpush1.bf16.msra.mxu0 %v3725
        %4794 = vmatprep.subr.bf16.mxu0 %v3731
        %4795 = vmatpush1.bf16.msra.mxu0 %v3730
        %4796 = vmatprep.subr.bf16.mxu0 %v3736
        %4797 = vmatpush1.bf16.msra.mxu0 %v3735
        %4798 = vmatprep.subr.bf16.mxu0 %v3741
        %4799 = vmatpush1.bf16.msra.mxu0 %v3740
        %4800 = vmatprep.subr.bf16.mxu0 %v3746
        %4801 = vmatpush1.bf16.msra.mxu0 %v3745
        %4802 = vmatprep.subr.bf16.mxu0 %v3751
        %4803 = vmatpush1.bf16.msra.mxu0 %v3750
        %4804 = vmatprep.subr.bf16.mxu0 %v3756
        %4805 = vmatpush1.bf16.msra.mxu0 %v3755
        %4806 = vmatprep.subr.bf16.mxu0 %v3761
        %4807 = vmatpush1.bf16.msra.mxu0 %v3760
        %4808 = vmatprep.subr.bf16.mxu0 %v3766
        %4809 = vmatpush1.bf16.msra.mxu0 %v3765
        %4810 = vmatprep.subr.bf16.mxu0 %v3771
        %4811 = vmatpush1.bf16.msra.mxu0 %v3770
        %4812 = vmatprep.mubr.bf16.mxu0 %v1229
        %4813 = vmatmul.mubr.bf16.gmra.mrb[0].mxu0 %v1227
        %v4814 = vpop.f32.mrb[0].mxu0
        %v4815 = vadd.f32 %v4774, %v4814
        %v4816 = vpop.f32.mrb[0].mxu0
        %v4817 = vadd.f32 %v4776, %v4816
        %v4818 = vpop.f32.mrb[0].mxu0
        %v4819 = vpop.f32.mrb[0].mxu0
        %4820 = vdwg.mxu0
        %4821 = vmatprep.subr.bf16.mxu0 %v3776
        %4822 = vmatpush1.bf16.msra.mxu0 %v3775
        %4823 = vmatprep.subr.bf16.mxu0 %v3781
        %4824 = vmatpush1.bf16.msra.mxu0 %v3780
        %4825 = vmatprep.subr.bf16.mxu0 %v3786
        %4826 = vmatpush1.bf16.msra.mxu0 %v3785
        %4827 = vmatprep.subr.bf16.mxu0 %v3791
        %4828 = vmatpush1.bf16.msra.mxu0 %v3790
        %4829 = vmatprep.subr.bf16.mxu0 %v3796
        %4830 = vmatpush1.bf16.msra.mxu0 %v3795
        %4831 = vmatprep.subr.bf16.mxu0 %v3801
        %4832 = vmatpush1.bf16.msra.mxu0 %v3800
        %4833 = vmatprep.subr.bf16.mxu0 %v3806
        %4834 = vmatpush1.bf16.msra.mxu0 %v3805
        %4835 = vmatprep.subr.bf16.mxu0 %v3811
        %4836 = vmatpush1.bf16.msra.mxu0 %v3810
        %4837 = vmatprep.subr.bf16.mxu0 %v3816
        %4838 = vmatpush1.bf16.msra.mxu0 %v3815
        %4839 = vmatprep.subr.bf16.mxu0 %v3821
        %4840 = vmatpush1.bf16.msra.mxu0 %v3820
        %4841 = vmatprep.subr.bf16.mxu0 %v3826
        %4842 = vmatpush1.bf16.msra.mxu0 %v3825
        %4843 = vmatprep.subr.bf16.mxu0 %v3831
        %4844 = vmatpush1.bf16.msra.mxu0 %v3830
        %4845 = vmatprep.subr.bf16.mxu0 %v3836
        %4846 = vmatpush1.bf16.msra.mxu0 %v3835
        %4847 = vmatprep.subr.bf16.mxu0 %v3841
        %4848 = vmatpush1.bf16.msra.mxu0 %v3840
        %4849 = vmatprep.subr.bf16.mxu0 %v3846
        %4850 = vmatpush1.bf16.msra.mxu0 %v3845
        %4851 = vmatprep.subr.bf16.mxu0 %v3851
        %4852 = vmatpush1.bf16.msra.mxu0 %v3850
        %4853 = vmatprep.mubr.bf16.mxu0 %v1226
        %4854 = vmatmul.mubr.bf16.gmra.mrb[0].mxu0 %v1212
        %v4855 = vpop.f32.mrb[0].mxu0
        %v4856 = vadd.f32 %v4815, %v4855
        %v4857 = vpop.f32.mrb[0].mxu0
        %v4858 = vadd.f32 %v4817, %v4857
        %v4859 = vpop.f32.mrb[0].mxu0
        %v4860 = vpop.f32.mrb[0].mxu0
        %4861 = vdwg.mxu0
        %4862 = vmatprep.subr.bf16.mxu0 %v3856
        %4863 = vmatpush1.bf16.msra.mxu0 %v3855
        %4864 = vmatprep.subr.bf16.mxu0 %v3861
        %4865 = vmatpush1.bf16.msra.mxu0 %v3860
        %4866 = vmatprep.subr.bf16.mxu0 %v3866
        %4867 = vmatpush1.bf16.msra.mxu0 %v3865
        %4868 = vmatprep.subr.bf16.mxu0 %v3871
        %4869 = vmatpush1.bf16.msra.mxu0 %v3870
        %4870 = vmatprep.subr.bf16.mxu0 %v3876
        %4871 = vmatpush1.bf16.msra.mxu0 %v3875
        %4872 = vmatprep.subr.bf16.mxu0 %v3881
        %4873 = vmatpush1.bf16.msra.mxu0 %v3880
        %4874 = vmatprep.subr.bf16.mxu0 %v3886
        %4875 = vmatpush1.bf16.msra.mxu0 %v3885
        %4876 = vmatprep.subr.bf16.mxu0 %v3891
        %4877 = vmatpush1.bf16.msra.mxu0 %v3890
        %4878 = vmatprep.subr.bf16.mxu0 %v3896
        %4879 = vmatpush1.bf16.msra.mxu0 %v3895
        %4880 = vmatprep.subr.bf16.mxu0 %v3901
        %4881 = vmatpush1.bf16.msra.mxu0 %v3900
        %4882 = vmatprep.subr.bf16.mxu0 %v3906
        %4883 = vmatpush1.bf16.msra.mxu0 %v3905
        %4884 = vmatprep.subr.bf16.mxu0 %v3911
        %4885 = vmatpush1.bf16.msra.mxu0 %v3910
        %4886 = vmatprep.subr.bf16.mxu0 %v3916
        %4887 = vmatpush1.bf16.msra.mxu0 %v3915
        %4888 = vmatprep.subr.bf16.mxu0 %v3921
        %4889 = vmatpush1.bf16.msra.mxu0 %v3920
        %4890 = vmatprep.subr.bf16.mxu0 %v3926
        %4891 = vmatpush1.bf16.msra.mxu0 %v3925
        %4892 = vmatprep.subr.bf16.mxu0 %v3931
        %4893 = vmatpush1.bf16.msra.mxu0 %v3930
        %4894 = vmatprep.mubr.bf16.mxu0 %v1230
        %4895 = vmatmul.mubr.bf16.gmra.mrb[0].mxu0 %v1228
        %v4896 = vpop.f32.mrb[0].mxu0
        %v4897 = vadd.f32 %v4856, %v4896
        %v4898 = vpop.f32.mrb[0].mxu0
        %v4899 = vadd.f32 %v4858, %v4898
        %v4900 = vpop.f32.mrb[0].mxu0
        %v4901 = vpop.f32.mrb[0].mxu0
        %4902 = vdwg.mxu0
        %4903 = vmatprep.subr.bf16.mxu0 %v3298
        %4904 = vmatpush1.bf16.msra.mxu0 %v3297
        %4905 = vmatprep.subr.bf16.mxu0 %v3303
        %4906 = vmatpush1.bf16.msra.mxu0 %v3302
        %4907 = vmatprep.subr.bf16.mxu0 %v3308
        %4908 = vmatpush1.bf16.msra.mxu0 %v3307
        %4909 = vmatprep.subr.bf16.mxu0 %v3313
        %4910 = vmatpush1.bf16.msra.mxu0 %v3312
        %4911 = vmatprep.subr.bf16.mxu0 %v3318
        %4912 = vmatpush1.bf16.msra.mxu0 %v3317
        %4913 = vmatprep.subr.bf16.mxu0 %v3323
        %4914 = vmatpush1.bf16.msra.mxu0 %v3322
        %4915 = vmatprep.subr.bf16.mxu0 %v3328
        %4916 = vmatpush1.bf16.msra.mxu0 %v3327
        %4917 = vmatprep.subr.bf16.mxu0 %v3333
        %4918 = vmatpush1.bf16.msra.mxu0 %v3332
        %4919 = vmatprep.subr.bf16.mxu0 %v3338
        %4920 = vmatpush1.bf16.msra.mxu0 %v3337
        %4921 = vmatprep.subr.bf16.mxu0 %v3343
        %4922 = vmatpush1.bf16.msra.mxu0 %v3342
        %4923 = vmatprep.subr.bf16.mxu0 %v3348
        %4924 = vmatpush1.bf16.msra.mxu0 %v3347
        %4925 = vmatprep.subr.bf16.mxu0 %v3353
        %4926 = vmatpush1.bf16.msra.mxu0 %v3352
        %4927 = vmatprep.subr.bf16.mxu0 %v3358
        %4928 = vmatpush1.bf16.msra.mxu0 %v3357
        %4929 = vmatprep.subr.bf16.mxu0 %v3363
        %4930 = vmatpush1.bf16.msra.mxu0 %v3362
        %4931 = vmatprep.subr.bf16.mxu0 %v3368
        %4932 = vmatpush1.bf16.msra.mxu0 %v3367
        %4933 = vmatprep.subr.bf16.mxu0 %v3373
        %4934 = vmatpush1.bf16.msra.mxu0 %v3372
        %4935 = vmatprep.mubr.bf16.mxu0 %v1170
        %4936 = vmatmul.mubr.bf16.gmra.mrb[0].mxu0 %v1156
        %v4937 = vpop.f32.mrb[0].mxu0
        %v4938 = vadd.f32 %v1117, %v4937
        %v4939 = vpop.f32.mrb[0].mxu0
        %v4940 = vadd.f32 %v1121, %v4939
        %v4941 = vpop.f32.mrb[0].mxu0
        %v4942 = vpop.f32.mrb[0].mxu0
        %4943 = vdwg.mxu0
        %4944 = vmatprep.subr.bf16.mxu0 %v3378
        %4945 = vmatpush1.bf16.msra.mxu0 %v3377
        %4946 = vmatprep.subr.bf16.mxu0 %v3383
        %4947 = vmatpush1.bf16.msra.mxu0 %v3382
        %4948 = vmatprep.subr.bf16.mxu0 %v3388
        %4949 = vmatpush1.bf16.msra.mxu0 %v3387
        %4950 = vmatprep.subr.bf16.mxu0 %v3393
        %4951 = vmatpush1.bf16.msra.mxu0 %v3392
        %4952 = vmatprep.subr.bf16.mxu0 %v3398
        %4953 = vmatpush1.bf16.msra.mxu0 %v3397
        %4954 = vmatprep.subr.bf16.mxu0 %v3403
        %4955 = vmatpush1.bf16.msra.mxu0 %v3402
        %4956 = vmatprep.subr.bf16.mxu0 %v3408
        %4957 = vmatpush1.bf16.msra.mxu0 %v3407
        %4958 = vmatprep.subr.bf16.mxu0 %v3413
        %4959 = vmatpush1.bf16.msra.mxu0 %v3412
        %4960 = vmatprep.subr.bf16.mxu0 %v3418
        %4961 = vmatpush1.bf16.msra.mxu0 %v3417
        %4962 = vmatprep.subr.bf16.mxu0 %v3423
        %4963 = vmatpush1.bf16.msra.mxu0 %v3422
        %4964 = vmatprep.subr.bf16.mxu0 %v3428
        %4965 = vmatpush1.bf16.msra.mxu0 %v3427
        %4966 = vmatprep.subr.bf16.mxu0 %v3433
        %4967 = vmatpush1.bf16.msra.mxu0 %v3432
        %4968 = vmatprep.subr.bf16.mxu0 %v3438
        %4969 = vmatpush1.bf16.msra.mxu0 %v3437
        %4970 = vmatprep.subr.bf16.mxu0 %v3443
        %4971 = vmatpush1.bf16.msra.mxu0 %v3442
        %4972 = vmatprep.subr.bf16.mxu0 %v3448
        %4973 = vmatpush1.bf16.msra.mxu0 %v3447
        %4974 = vmatprep.subr.bf16.mxu0 %v3453
        %4975 = vmatpush1.bf16.msra.mxu0 %v3452
        %4976 = vmatprep.mubr.bf16.mxu0 %v1180
        %4977 = vmatmul.mubr.bf16.gmra.mrb[0].mxu0 %v1178
        %v4978 = vpop.f32.mrb[0].mxu0
        %v4979 = vadd.f32 %v4938, %v4978
        %v4980 = vpop.f32.mrb[0].mxu0
        %v4981 = vadd.f32 %v4940, %v4980
        %v4982 = vpop.f32.mrb[0].mxu0
        %v4983 = vpop.f32.mrb[0].mxu0
        %4984 = vdwg.mxu0
        %4985 = vmatprep.subr.bf16.mxu0 %v3458
        %4986 = vmatpush1.bf16.msra.mxu0 %v3457
        %4987 = vmatprep.subr.bf16.mxu0 %v3463
        %4988 = vmatpush1.bf16.msra.mxu0 %v3462
        %4989 = vmatprep.subr.bf16.mxu0 %v3468
        %4990 = vmatpush1.bf16.msra.mxu0 %v3467
        %4991 = vmatprep.subr.bf16.mxu0 %v3473
        %4992 = vmatpush1.bf16.msra.mxu0 %v3472
        %4993 = vmatprep.subr.bf16.mxu0 %v3478
        %4994 = vmatpush1.bf16.msra.mxu0 %v3477
        %4995 = vmatprep.subr.bf16.mxu0 %v3483
        %4996 = vmatpush1.bf16.msra.mxu0 %v3482
        %4997 = vmatprep.subr.bf16.mxu0 %v3488
        %4998 = vmatpush1.bf16.msra.mxu0 %v3487
        %4999 = vmatprep.subr.bf16.mxu0 %v3493
        %5000 = vmatpush1.bf16.msra.mxu0 %v3492
        %5001 = vmatprep.subr.bf16.mxu0 %v3498
        %5002 = vmatpush1.bf16.msra.mxu0 %v3497
        %5003 = vmatprep.subr.bf16.mxu0 %v3503
        %5004 = vmatpush1.bf16.msra.mxu0 %v3502
        %5005 = vmatprep.subr.bf16.mxu0 %v3508
        %5006 = vmatpush1.bf16.msra.mxu0 %v3507
        %5007 = vmatprep.subr.bf16.mxu0 %v3513
        %5008 = vmatpush1.bf16.msra.mxu0 %v3512
        %5009 = vmatprep.subr.bf16.mxu0 %v3518
        %5010 = vmatpush1.bf16.msra.mxu0 %v3517
        %5011 = vmatprep.subr.bf16.mxu0 %v3523
        %5012 = vmatpush1.bf16.msra.mxu0 %v3522
        %5013 = vmatprep.subr.bf16.mxu0 %v3528
        %5014 = vmatpush1.bf16.msra.mxu0 %v3527
        %5015 = vmatprep.subr.bf16.mxu0 %v3533
        %5016 = vmatpush1.bf16.msra.mxu0 %v3532
        %5017 = vmatprep.mubr.bf16.mxu0 %v1177
        %5018 = vmatmul.mubr.bf16.gmra.mrb[0].mxu0 %v1163
        %v5019 = vpop.f32.mrb[0].mxu0
        %v5020 = vadd.f32 %v4979, %v5019
        %v5021 = vpop.f32.mrb[0].mxu0
        %v5022 = vadd.f32 %v4981, %v5021
        %v5023 = vpop.f32.mrb[0].mxu0
        %v5024 = vpop.f32.mrb[0].mxu0
        %5025 = vdwg.mxu0
        %5026 = vmatprep.subr.bf16.mxu0 %v3538
        %5027 = vmatpush1.bf16.msra.mxu0 %v3537
        %5028 = vmatprep.subr.bf16.mxu0 %v3543
        %5029 = vmatpush1.bf16.msra.mxu0 %v3542
        %5030 = vmatprep.subr.bf16.mxu0 %v3548
        %5031 = vmatpush1.bf16.msra.mxu0 %v3547
        %5032 = vmatprep.subr.bf16.mxu0 %v3553
        %5033 = vmatpush1.bf16.msra.mxu0 %v3552
        %5034 = vmatprep.subr.bf16.mxu0 %v3558
        %5035 = vmatpush1.bf16.msra.mxu0 %v3557
        %5036 = vmatprep.subr.bf16.mxu0 %v3563
        %5037 = vmatpush1.bf16.msra.mxu0 %v3562
        %5038 = vmatprep.subr.bf16.mxu0 %v3568
        %5039 = vmatpush1.bf16.msra.mxu0 %v3567
        %5040 = vmatprep.subr.bf16.mxu0 %v3573
        %5041 = vmatpush1.bf16.msra.mxu0 %v3572
        %5042 = vmatprep.subr.bf16.mxu0 %v3578
        %5043 = vmatpush1.bf16.msra.mxu0 %v3577
        %5044 = vmatprep.subr.bf16.mxu0 %v3583
        %5045 = vmatpush1.bf16.msra.mxu0 %v3582
        %5046 = vmatprep.subr.bf16.mxu0 %v3588
        %5047 = vmatpush1.bf16.msra.mxu0 %v3587
        %5048 = vmatprep.subr.bf16.mxu0 %v3593
        %5049 = vmatpush1.bf16.msra.mxu0 %v3592
        %5050 = vmatprep.subr.bf16.mxu0 %v3598
        %5051 = vmatpush1.bf16.msra.mxu0 %v3597
        %5052 = vmatprep.subr.bf16.mxu0 %v3603
        %5053 = vmatpush1.bf16.msra.mxu0 %v3602
        %5054 = vmatprep.subr.bf16.mxu0 %v3608
        %5055 = vmatpush1.bf16.msra.mxu0 %v3607
        %5056 = vmatprep.subr.bf16.mxu0 %v3613
        %5057 = vmatpush1.bf16.msra.mxu0 %v3612
        %5058 = vmatprep.mubr.bf16.mxu0 %v1181
        %5059 = vmatmul.mubr.bf16.gmra.mrb[0].mxu0 %v1179
        %v5060 = vpop.f32.mrb[0].mxu0
        %v5061 = vadd.f32 %v5020, %v5060
        %v5062 = vpop.f32.mrb[0].mxu0
        %v5063 = vadd.f32 %v5022, %v5062
        %v5064 = vpop.f32.mrb[0].mxu0
        %v5065 = vpop.f32.mrb[0].mxu0
        %5066 = vdwg.mxu0
        %5067 = vmatprep.subr.bf16.mxu0 %v3618
        %5068 = vmatpush1.bf16.msra.mxu0 %v3617
        %5069 = vmatprep.subr.bf16.mxu0 %v3623
        %5070 = vmatpush1.bf16.msra.mxu0 %v3622
        %5071 = vmatprep.subr.bf16.mxu0 %v3628
        %5072 = vmatpush1.bf16.msra.mxu0 %v3627
        %5073 = vmatprep.subr.bf16.mxu0 %v3633
        %5074 = vmatpush1.bf16.msra.mxu0 %v3632
        %5075 = vmatprep.subr.bf16.mxu0 %v3638
        %5076 = vmatpush1.bf16.msra.mxu0 %v3637
        %5077 = vmatprep.subr.bf16.mxu0 %v3643
        %5078 = vmatpush1.bf16.msra.mxu0 %v3642
        %5079 = vmatprep.subr.bf16.mxu0 %v3648
        %5080 = vmatpush1.bf16.msra.mxu0 %v3647
        %5081 = vmatprep.subr.bf16.mxu0 %v3653
        %5082 = vmatpush1.bf16.msra.mxu0 %v3652
        %5083 = vmatprep.subr.bf16.mxu0 %v3658
        %5084 = vmatpush1.bf16.msra.mxu0 %v3657
        %5085 = vmatprep.subr.bf16.mxu0 %v3663
        %5086 = vmatpush1.bf16.msra.mxu0 %v3662
        %5087 = vmatprep.subr.bf16.mxu0 %v3668
        %5088 = vmatpush1.bf16.msra.mxu0 %v3667
        %5089 = vmatprep.subr.bf16.mxu0 %v3673
        %5090 = vmatpush1.bf16.msra.mxu0 %v3672
        %5091 = vmatprep.subr.bf16.mxu0 %v3678
        %5092 = vmatpush1.bf16.msra.mxu0 %v3677
        %5093 = vmatprep.subr.bf16.mxu0 %v3683
        %5094 = vmatpush1.bf16.msra.mxu0 %v3682
        %5095 = vmatprep.subr.bf16.mxu0 %v3688
        %5096 = vmatpush1.bf16.msra.mxu0 %v3687
        %5097 = vmatprep.subr.bf16.mxu0 %v3693
        %5098 = vmatpush1.bf16.msra.mxu0 %v3692
        %5099 = vmatprep.mubr.bf16.mxu0 %v1219
        %5100 = vmatmul.mubr.bf16.gmra.mrb[0].mxu0 %v1205
        %v5101 = vpop.f32.mrb[0].mxu0
        %v5102 = vadd.f32 %v5061, %v5101
        %v5103 = vpop.f32.mrb[0].mxu0
        %v5104 = vadd.f32 %v5063, %v5103
        %v5105 = vpop.f32.mrb[0].mxu0
        %v5106 = vpop.f32.mrb[0].mxu0
        %5107 = vdwg.mxu0
        %5108 = vmatprep.subr.bf16.mxu0 %v3698
        %5109 = vmatpush1.bf16.msra.mxu0 %v3697
        %5110 = vmatprep.subr.bf16.mxu0 %v3703
        %5111 = vmatpush1.bf16.msra.mxu0 %v3702
        %5112 = vmatprep.subr.bf16.mxu0 %v3708
        %5113 = vmatpush1.bf16.msra.mxu0 %v3707
        %5114 = vmatprep.subr.bf16.mxu0 %v3713
        %5115 = vmatpush1.bf16.msra.mxu0 %v3712
        %5116 = vmatprep.subr.bf16.mxu0 %v3718
        %5117 = vmatpush1.bf16.msra.mxu0 %v3717
        %5118 = vmatprep.subr.bf16.mxu0 %v3723
        %5119 = vmatpush1.bf16.msra.mxu0 %v3722
        %5120 = vmatprep.subr.bf16.mxu0 %v3728
        %5121 = vmatpush1.bf16.msra.mxu0 %v3727
        %5122 = vmatprep.subr.bf16.mxu0 %v3733
        %5123 = vmatpush1.bf16.msra.mxu0 %v3732
        %5124 = vmatprep.subr.bf16.mxu0 %v3738
        %5125 = vmatpush1.bf16.msra.mxu0 %v3737
        %5126 = vmatprep.subr.bf16.mxu0 %v3743
        %5127 = vmatpush1.bf16.msra.mxu0 %v3742
        %5128 = vmatprep.subr.bf16.mxu0 %v3748
        %5129 = vmatpush1.bf16.msra.mxu0 %v3747
        %5130 = vmatprep.subr.bf16.mxu0 %v3753
        %5131 = vmatpush1.bf16.msra.mxu0 %v3752
        %5132 = vmatprep.subr.bf16.mxu0 %v3758
        %5133 = vmatpush1.bf16.msra.mxu0 %v3757
        %5134 = vmatprep.subr.bf16.mxu0 %v3763
        %5135 = vmatpush1.bf16.msra.mxu0 %v3762
        %5136 = vmatprep.subr.bf16.mxu0 %v3768
        %5137 = vmatpush1.bf16.msra.mxu0 %v3767
        %5138 = vmatprep.subr.bf16.mxu0 %v3773
        %5139 = vmatpush1.bf16.msra.mxu0 %v3772
        %5140 = vmatprep.mubr.bf16.mxu0 %v1229
        %5141 = vmatmul.mubr.bf16.gmra.mrb[0].mxu0 %v1227
        %v5142 = vpop.f32.mrb[0].mxu0
        %v5143 = vadd.f32 %v5102, %v5142
        %v5144 = vpop.f32.mrb[0].mxu0
        %v5145 = vadd.f32 %v5104, %v5144
        %v5146 = vpop.f32.mrb[0].mxu0
        %v5147 = vpop.f32.mrb[0].mxu0
        %5148 = vdwg.mxu0
        %5149 = vmatprep.subr.bf16.mxu0 %v3778
        %5150 = vmatpush1.bf16.msra.mxu0 %v3777
        %5151 = vmatprep.subr.bf16.mxu0 %v3783
        %5152 = vmatpush1.bf16.msra.mxu0 %v3782
        %5153 = vmatprep.subr.bf16.mxu0 %v3788
        %5154 = vmatpush1.bf16.msra.mxu0 %v3787
        %5155 = vmatprep.subr.bf16.mxu0 %v3793
        %5156 = vmatpush1.bf16.msra.mxu0 %v3792
        %5157 = vmatprep.subr.bf16.mxu0 %v3798
        %5158 = vmatpush1.bf16.msra.mxu0 %v3797
        %5159 = vmatprep.subr.bf16.mxu0 %v3803
        %5160 = vmatpush1.bf16.msra.mxu0 %v3802
        %5161 = vmatprep.subr.bf16.mxu0 %v3808
        %5162 = vmatpush1.bf16.msra.mxu0 %v3807
        %5163 = vmatprep.subr.bf16.mxu0 %v3813
        %5164 = vmatpush1.bf16.msra.mxu0 %v3812
        %5165 = vmatprep.subr.bf16.mxu0 %v3818
        %5166 = vmatpush1.bf16.msra.mxu0 %v3817
        %5167 = vmatprep.subr.bf16.mxu0 %v3823
        %5168 = vmatpush1.bf16.msra.mxu0 %v3822
        %5169 = vmatprep.subr.bf16.mxu0 %v3828
        %5170 = vmatpush1.bf16.msra.mxu0 %v3827
        %5171 = vmatprep.subr.bf16.mxu0 %v3833
        %5172 = vmatpush1.bf16.msra.mxu0 %v3832
        %5173 = vmatprep.subr.bf16.mxu0 %v3838
        %5174 = vmatpush1.bf16.msra.mxu0 %v3837
        %5175 = vmatprep.subr.bf16.mxu0 %v3843
        %5176 = vmatpush1.bf16.msra.mxu0 %v3842
        %5177 = vmatprep.subr.bf16.mxu0 %v3848
        %5178 = vmatpush1.bf16.msra.mxu0 %v3847
        %5179 = vmatprep.subr.bf16.mxu0 %v3853
        %5180 = vmatpush1.bf16.msra.mxu0 %v3852
        %5181 = vmatprep.mubr.bf16.mxu0 %v1226
        %5182 = vmatmul.mubr.bf16.gmra.mrb[0].mxu0 %v1212
        %v5183 = vpop.f32.mrb[0].mxu0
        %v5184 = vadd.f32 %v5143, %v5183
        %v5185 = vpop.f32.mrb[0].mxu0
        %v5186 = vadd.f32 %v5145, %v5185
        %v5187 = vpop.f32.mrb[0].mxu0
        %v5188 = vpop.f32.mrb[0].mxu0
        %5189 = vdwg.mxu0
        %5190 = vmatprep.subr.bf16.mxu0 %v3858
        %5191 = vmatpush1.bf16.msra.mxu0 %v3857
        %5192 = vmatprep.subr.bf16.mxu0 %v3863
        %5193 = vmatpush1.bf16.msra.mxu0 %v3862
        %5194 = vmatprep.subr.bf16.mxu0 %v3868
        %5195 = vmatpush1.bf16.msra.mxu0 %v3867
        %5196 = vmatprep.subr.bf16.mxu0 %v3873
        %5197 = vmatpush1.bf16.msra.mxu0 %v3872
        %5198 = vmatprep.subr.bf16.mxu0 %v3878
        %5199 = vmatpush1.bf16.msra.mxu0 %v3877
        %5200 = vmatprep.subr.bf16.mxu0 %v3883
        %5201 = vmatpush1.bf16.msra.mxu0 %v3882
        %5202 = vmatprep.subr.bf16.mxu0 %v3888
        %5203 = vmatpush1.bf16.msra.mxu0 %v3887
        %5204 = vmatprep.subr.bf16.mxu0 %v3893
        %5205 = vmatpush1.bf16.msra.mxu0 %v3892
        %5206 = vmatprep.subr.bf16.mxu0 %v3898
        %5207 = vmatpush1.bf16.msra.mxu0 %v3897
        %5208 = vmatprep.subr.bf16.mxu0 %v3903
        %5209 = vmatpush1.bf16.msra.mxu0 %v3902
        %5210 = vmatprep.subr.bf16.mxu0 %v3908
        %5211 = vmatpush1.bf16.msra.mxu0 %v3907
        %5212 = vmatprep.subr.bf16.mxu0 %v3913
        %5213 = vmatpush1.bf16.msra.mxu0 %v3912
        %5214 = vmatprep.subr.bf16.mxu0 %v3918
        %5215 = vmatpush1.bf16.msra.mxu0 %v3917
        %5216 = vmatprep.subr.bf16.mxu0 %v3923
        %5217 = vmatpush1.bf16.msra.mxu0 %v3922
        %5218 = vmatprep.subr.bf16.mxu0 %v3928
        %5219 = vmatpush1.bf16.msra.mxu0 %v3927
        %5220 = vmatprep.subr.bf16.mxu0 %v3933
        %5221 = vmatpush1.bf16.msra.mxu0 %v3932
        %5222 = vmatprep.mubr.bf16.mxu0 %v1230
        %5223 = vmatmul.mubr.bf16.gmra.mrb[0].mxu0 %v1228
        %v5224 = vpop.f32.mrb[0].mxu0
        %v5225 = vadd.f32 %v5184, %v5224
        %v5226 = vpop.f32.mrb[0].mxu0
        %v5227 = vadd.f32 %v5186, %v5226
        %v5228 = vpop.f32.mrb[0].mxu0
        %v5229 = vpop.f32.mrb[0].mxu0
        %5230 = vdwg.mxu0
        %5231 = vmatprep.subr.bf16.mxu0 0
        %5232 = vmatpush1.bf16.msra.mxu0 %v3299
        %5233 = vmatprep.subr.bf16.mxu0 0
        %5234 = vmatpush1.bf16.msra.mxu0 %v3304
        %5235 = vmatprep.subr.bf16.mxu0 0
        %5236 = vmatpush1.bf16.msra.mxu0 %v3309
        %5237 = vmatprep.subr.bf16.mxu0 0
        %5238 = vmatpush1.bf16.msra.mxu0 %v3314
        %5239 = vmatprep.subr.bf16.mxu0 0
        %5240 = vmatpush1.bf16.msra.mxu0 %v3319
        %5241 = vmatprep.subr.bf16.mxu0 0
        %5242 = vmatpush1.bf16.msra.mxu0 %v3324
        %5243 = vmatprep.subr.bf16.mxu0 0
        %5244 = vmatpush1.bf16.msra.mxu0 %v3329
        %5245 = vmatprep.subr.bf16.mxu0 0
        %5246 = vmatpush1.bf16.msra.mxu0 %v3334
        %5247 = vmatprep.subr.bf16.mxu0 0
        %5248 = vmatpush1.bf16.msra.mxu0 %v3339
        %5249 = vmatprep.subr.bf16.mxu0 0
        %5250 = vmatpush1.bf16.msra.mxu0 %v3344
        %5251 = vmatprep.subr.bf16.mxu0 0
        %5252 = vmatpush1.bf16.msra.mxu0 %v3349
        %5253 = vmatprep.subr.bf16.mxu0 0
        %5254 = vmatpush1.bf16.msra.mxu0 %v3354
        %5255 = vmatprep.subr.bf16.mxu0 0
        %5256 = vmatpush1.bf16.msra.mxu0 %v3359
        %5257 = vmatprep.subr.bf16.mxu0 0
        %5258 = vmatpush1.bf16.msra.mxu0 %v3364
        %5259 = vmatprep.subr.bf16.mxu0 0
        %5260 = vmatpush1.bf16.msra.mxu0 %v3369
        %5261 = vmatprep.subr.bf16.mxu0 0
        %5262 = vmatpush1.bf16.msra.mxu0 %v3374
        %5263 = vmatprep.mubr.bf16.mxu0 %v1170
        %5264 = vmatmul.mubr.bf16.gmra.mrb[0].mxu0 %v1156
        %v5265 = vpop.f32.mrb[0].mxu0
        %v5266 = vadd.f32 %v1125, %v5265
        %v5267 = vpop.f32.mrb[0].mxu0
        %v5268 = vpop.f32.mrb[0].mxu0
        %v5269 = vpop.f32.mrb[0].mxu0
        %5270 = vdwg.mxu0
        %5271 = vmatprep.subr.bf16.mxu0 0
        %5272 = vmatpush1.bf16.msra.mxu0 %v3379
        %5273 = vmatprep.subr.bf16.mxu0 0
        %5274 = vmatpush1.bf16.msra.mxu0 %v3384
        %5275 = vmatprep.subr.bf16.mxu0 0
        %5276 = vmatpush1.bf16.msra.mxu0 %v3389
        %5277 = vmatprep.subr.bf16.mxu0 0
        %5278 = vmatpush1.bf16.msra.mxu0 %v3394
        %5279 = vmatprep.subr.bf16.mxu0 0
        %5280 = vmatpush1.bf16.msra.mxu0 %v3399
        %5281 = vmatprep.subr.bf16.mxu0 0
        %5282 = vmatpush1.bf16.msra.mxu0 %v3404
        %5283 = vmatprep.subr.bf16.mxu0 0
        %5284 = vmatpush1.bf16.msra.mxu0 %v3409
        %5285 = vmatprep.subr.bf16.mxu0 0
        %5286 = vmatpush1.bf16.msra.mxu0 %v3414
        %5287 = vmatprep.subr.bf16.mxu0 0
        %5288 = vmatpush1.bf16.msra.mxu0 %v3419
        %5289 = vmatprep.subr.bf16.mxu0 0
        %5290 = vmatpush1.bf16.msra.mxu0 %v3424
        %5291 = vmatprep.subr.bf16.mxu0 0
        %5292 = vmatpush1.bf16.msra.mxu0 %v3429
        %5293 = vmatprep.subr.bf16.mxu0 0
        %5294 = vmatpush1.bf16.msra.mxu0 %v3434
        %5295 = vmatprep.subr.bf16.mxu0 0
        %5296 = vmatpush1.bf16.msra.mxu0 %v3439
        %5297 = vmatprep.subr.bf16.mxu0 0
        %5298 = vmatpush1.bf16.msra.mxu0 %v3444
        %5299 = vmatprep.subr.bf16.mxu0 0
        %5300 = vmatpush1.bf16.msra.mxu0 %v3449
        %5301 = vmatprep.subr.bf16.mxu0 0
        %5302 = vmatpush1.bf16.msra.mxu0 %v3454
        %5303 = vmatprep.mubr.bf16.mxu0 %v1180
        %5304 = vmatmul.mubr.bf16.gmra.mrb[0].mxu0 %v1178
        %v5305 = vpop.f32.mrb[0].mxu0
        %v5306 = vadd.f32 %v5266, %v5305
        %v5307 = vpop.f32.mrb[0].mxu0
        %v5308 = vpop.f32.mrb[0].mxu0
        %v5309 = vpop.f32.mrb[0].mxu0
        %5310 = vdwg.mxu0
        %5311 = vmatprep.subr.bf16.mxu0 0
        %5312 = vmatpush1.bf16.msra.mxu0 %v3459
        %5313 = vmatprep.subr.bf16.mxu0 0
        %5314 = vmatpush1.bf16.msra.mxu0 %v3464
        %5315 = vmatprep.subr.bf16.mxu0 0
        %5316 = vmatpush1.bf16.msra.mxu0 %v3469
        %5317 = vmatprep.subr.bf16.mxu0 0
        %5318 = vmatpush1.bf16.msra.mxu0 %v3474
        %5319 = vmatprep.subr.bf16.mxu0 0
        %5320 = vmatpush1.bf16.msra.mxu0 %v3479
        %5321 = vmatprep.subr.bf16.mxu0 0
        %5322 = vmatpush1.bf16.msra.mxu0 %v3484
        %5323 = vmatprep.subr.bf16.mxu0 0
        %5324 = vmatpush1.bf16.msra.mxu0 %v3489
        %5325 = vmatprep.subr.bf16.mxu0 0
        %5326 = vmatpush1.bf16.msra.mxu0 %v3494
        %5327 = vmatprep.subr.bf16.mxu0 0
        %5328 = vmatpush1.bf16.msra.mxu0 %v3499
        %5329 = vmatprep.subr.bf16.mxu0 0
        %5330 = vmatpush1.bf16.msra.mxu0 %v3504
        %5331 = vmatprep.subr.bf16.mxu0 0
        %5332 = vmatpush1.bf16.msra.mxu0 %v3509
        %5333 = vmatprep.subr.bf16.mxu0 0
        %5334 = vmatpush1.bf16.msra.mxu0 %v3514
        %5335 = vmatprep.subr.bf16.mxu0 0
        %5336 = vmatpush1.bf16.msra.mxu0 %v3519
        %5337 = vmatprep.subr.bf16.mxu0 0
        %5338 = vmatpush1.bf16.msra.mxu0 %v3524
        %5339 = vmatprep.subr.bf16.mxu0 0
        %5340 = vmatpush1.bf16.msra.mxu0 %v3529
        %5341 = vmatprep.subr.bf16.mxu0 0
        %5342 = vmatpush1.bf16.msra.mxu0 %v3534
        %5343 = vmatprep.mubr.bf16.mxu0 %v1177
        %5344 = vmatmul.mubr.bf16.gmra.mrb[0].mxu0 %v1163
        %v5345 = vpop.f32.mrb[0].mxu0
        %v5346 = vadd.f32 %v5306, %v5345
        %v5347 = vpop.f32.mrb[0].mxu0
        %v5348 = vpop.f32.mrb[0].mxu0
        %v5349 = vpop.f32.mrb[0].mxu0
        %5350 = vdwg.mxu0
        %5351 = vmatprep.subr.bf16.mxu0 0
        %5352 = vmatpush1.bf16.msra.mxu0 %v3539
        %5353 = vmatprep.subr.bf16.mxu0 0
        %5354 = vmatpush1.bf16.msra.mxu0 %v3544
        %5355 = vmatprep.subr.bf16.mxu0 0
        %5356 = vmatpush1.bf16.msra.mxu0 %v3549
        %5357 = vmatprep.subr.bf16.mxu0 0
        %5358 = vmatpush1.bf16.msra.mxu0 %v3554
        %5359 = vmatprep.subr.bf16.mxu0 0
        %5360 = vmatpush1.bf16.msra.mxu0 %v3559
        %5361 = vmatprep.subr.bf16.mxu0 0
        %5362 = vmatpush1.bf16.msra.mxu0 %v3564
        %5363 = vmatprep.subr.bf16.mxu0 0
        %5364 = vmatpush1.bf16.msra.mxu0 %v3569
        %5365 = vmatprep.subr.bf16.mxu0 0
        %5366 = vmatpush1.bf16.msra.mxu0 %v3574
        %5367 = vmatprep.subr.bf16.mxu0 0
        %5368 = vmatpush1.bf16.msra.mxu0 %v3579
        %5369 = vmatprep.subr.bf16.mxu0 0
        %5370 = vmatpush1.bf16.msra.mxu0 %v3584
        %5371 = vmatprep.subr.bf16.mxu0 0
        %5372 = vmatpush1.bf16.msra.mxu0 %v3589
        %5373 = vmatprep.subr.bf16.mxu0 0
        %5374 = vmatpush1.bf16.msra.mxu0 %v3594
        %5375 = vmatprep.subr.bf16.mxu0 0
        %5376 = vmatpush1.bf16.msra.mxu0 %v3599
        %5377 = vmatprep.subr.bf16.mxu0 0
        %5378 = vmatpush1.bf16.msra.mxu0 %v3604
        %5379 = vmatprep.subr.bf16.mxu0 0
        %5380 = vmatpush1.bf16.msra.mxu0 %v3609
        %5381 = vmatprep.subr.bf16.mxu0 0
        %5382 = vmatpush1.bf16.msra.mxu0 %v3614
        %5383 = vmatprep.mubr.bf16.mxu0 %v1181
        %5384 = vmatmul.mubr.bf16.gmra.mrb[0].mxu0 %v1179
        %v5385 = vpop.f32.mrb[0].mxu0
        %v5386 = vadd.f32 %v5346, %v5385
        %v5387 = vpop.f32.mrb[0].mxu0
        %v5388 = vpop.f32.mrb[0].mxu0
        %v5389 = vpop.f32.mrb[0].mxu0
        %5390 = vdwg.mxu0
        %5391 = vmatprep.subr.bf16.mxu0 0
        %5392 = vmatpush1.bf16.msra.mxu0 %v3619
        %5393 = vmatprep.subr.bf16.mxu0 0
        %5394 = vmatpush1.bf16.msra.mxu0 %v3624
        %5395 = vmatprep.subr.bf16.mxu0 0
        %5396 = vmatpush1.bf16.msra.mxu0 %v3629
        %5397 = vmatprep.subr.bf16.mxu0 0
        %5398 = vmatpush1.bf16.msra.mxu0 %v3634
        %5399 = vmatprep.subr.bf16.mxu0 0
        %5400 = vmatpush1.bf16.msra.mxu0 %v3639
        %5401 = vmatprep.subr.bf16.mxu0 0
        %5402 = vmatpush1.bf16.msra.mxu0 %v3644
        %5403 = vmatprep.subr.bf16.mxu0 0
        %5404 = vmatpush1.bf16.msra.mxu0 %v3649
        %5405 = vmatprep.subr.bf16.mxu0 0
        %5406 = vmatpush1.bf16.msra.mxu0 %v3654
        %5407 = vmatprep.subr.bf16.mxu0 0
        %5408 = vmatpush1.bf16.msra.mxu0 %v3659
        %5409 = vmatprep.subr.bf16.mxu0 0
        %5410 = vmatpush1.bf16.msra.mxu0 %v3664
        %5411 = vmatprep.subr.bf16.mxu0 0
        %5412 = vmatpush1.bf16.msra.mxu0 %v3669
        %5413 = vmatprep.subr.bf16.mxu0 0
        %5414 = vmatpush1.bf16.msra.mxu0 %v3674
        %5415 = vmatprep.subr.bf16.mxu0 0
        %5416 = vmatpush1.bf16.msra.mxu0 %v3679
        %5417 = vmatprep.subr.bf16.mxu0 0
        %5418 = vmatpush1.bf16.msra.mxu0 %v3684
        %5419 = vmatprep.subr.bf16.mxu0 0
        %5420 = vmatpush1.bf16.msra.mxu0 %v3689
        %5421 = vmatprep.subr.bf16.mxu0 0
        %5422 = vmatpush1.bf16.msra.mxu0 %v3694
        %5423 = vmatprep.mubr.bf16.mxu0 %v1219
        %5424 = vmatmul.mubr.bf16.gmra.mrb[0].mxu0 %v1205
        %v5425 = vpop.f32.mrb[0].mxu0
        %v5426 = vadd.f32 %v5386, %v5425
        %v5427 = vpop.f32.mrb[0].mxu0
        %v5428 = vpop.f32.mrb[0].mxu0
        %v5429 = vpop.f32.mrb[0].mxu0
        %5430 = vdwg.mxu0
        %5431 = vmatprep.subr.bf16.mxu0 0
        %5432 = vmatpush1.bf16.msra.mxu0 %v3699
        %5433 = vmatprep.subr.bf16.mxu0 0
        %5434 = vmatpush1.bf16.msra.mxu0 %v3704
        %5435 = vmatprep.subr.bf16.mxu0 0
        %5436 = vmatpush1.bf16.msra.mxu0 %v3709
        %5437 = vmatprep.subr.bf16.mxu0 0
        %5438 = vmatpush1.bf16.msra.mxu0 %v3714
        %5439 = vmatprep.subr.bf16.mxu0 0
        %5440 = vmatpush1.bf16.msra.mxu0 %v3719
        %5441 = vmatprep.subr.bf16.mxu0 0
        %5442 = vmatpush1.bf16.msra.mxu0 %v3724
        %5443 = vmatprep.subr.bf16.mxu0 0
        %5444 = vmatpush1.bf16.msra.mxu0 %v3729
        %5445 = vmatprep.subr.bf16.mxu0 0
        %5446 = vmatpush1.bf16.msra.mxu0 %v3734
        %5447 = vmatprep.subr.bf16.mxu0 0
        %5448 = vmatpush1.bf16.msra.mxu0 %v3739
        %5449 = vmatprep.subr.bf16.mxu0 0
        %5450 = vmatpush1.bf16.msra.mxu0 %v3744
        %5451 = vmatprep.subr.bf16.mxu0 0
        %5452 = vmatpush1.bf16.msra.mxu0 %v3749
        %5453 = vmatprep.subr.bf16.mxu0 0
        %5454 = vmatpush1.bf16.msra.mxu0 %v3754
        %5455 = vmatprep.subr.bf16.mxu0 0
        %5456 = vmatpush1.bf16.msra.mxu0 %v3759
        %5457 = vmatprep.subr.bf16.mxu0 0
        %5458 = vmatpush1.bf16.msra.mxu0 %v3764
        %5459 = vmatprep.subr.bf16.mxu0 0
        %5460 = vmatpush1.bf16.msra.mxu0 %v3769
        %5461 = vmatprep.subr.bf16.mxu0 0
        %5462 = vmatpush1.bf16.msra.mxu0 %v3774
        %5463 = vmatprep.mubr.bf16.mxu0 %v1229
        %5464 = vmatmul.mubr.bf16.gmra.mrb[0].mxu0 %v1227
        %v5465 = vpop.f32.mrb[0].mxu0
        %v5466 = vadd.f32 %v5426, %v5465
        %v5467 = vpop.f32.mrb[0].mxu0
        %v5468 = vpop.f32.mrb[0].mxu0
        %v5469 = vpop.f32.mrb[0].mxu0
        %5470 = vdwg.mxu0
        %5471 = vmatprep.subr.bf16.mxu0 0
        %5472 = vmatpush1.bf16.msra.mxu0 %v3779
        %5473 = vmatprep.subr.bf16.mxu0 0
        %5474 = vmatpush1.bf16.msra.mxu0 %v3784
        %5475 = vmatprep.subr.bf16.mxu0 0
        %5476 = vmatpush1.bf16.msra.mxu0 %v3789
        %5477 = vmatprep.subr.bf16.mxu0 0
        %5478 = vmatpush1.bf16.msra.mxu0 %v3794
        %5479 = vmatprep.subr.bf16.mxu0 0
        %5480 = vmatpush1.bf16.msra.mxu0 %v3799
        %5481 = vmatprep.subr.bf16.mxu0 0
        %5482 = vmatpush1.bf16.msra.mxu0 %v3804
        %5483 = vmatprep.subr.bf16.mxu0 0
        %5484 = vmatpush1.bf16.msra.mxu0 %v3809
        %5485 = vmatprep.subr.bf16.mxu0 0
        %5486 = vmatpush1.bf16.msra.mxu0 %v3814
        %5487 = vmatprep.subr.bf16.mxu0 0
        %5488 = vmatpush1.bf16.msra.mxu0 %v3819
        %5489 = vmatprep.subr.bf16.mxu0 0
        %5490 = vmatpush1.bf16.msra.mxu0 %v3824
        %5491 = vmatprep.subr.bf16.mxu0 0
        %5492 = vmatpush1.bf16.msra.mxu0 %v3829
        %5493 = vmatprep.subr.bf16.mxu0 0
        %5494 = vmatpush1.bf16.msra.mxu0 %v3834
        %5495 = vmatprep.subr.bf16.mxu0 0
        %5496 = vmatpush1.bf16.msra.mxu0 %v3839
        %5497 = vmatprep.subr.bf16.mxu0 0
        %5498 = vmatpush1.bf16.msra.mxu0 %v3844
        %5499 = vmatprep.subr.bf16.mxu0 0
        %5500 = vmatpush1.bf16.msra.mxu0 %v3849
        %5501 = vmatprep.subr.bf16.mxu0 0
        %5502 = vmatpush1.bf16.msra.mxu0 %v3854
        %5503 = vmatprep.mubr.bf16.mxu0 %v1226
        %5504 = vmatmul.mubr.bf16.gmra.mrb[0].mxu0 %v1212
        %v5505 = vpop.f32.mrb[0].mxu0
        %v5506 = vadd.f32 %v5466, %v5505
        %v5507 = vpop.f32.mrb[0].mxu0
        %v5508 = vpop.f32.mrb[0].mxu0
        %v5509 = vpop.f32.mrb[0].mxu0
        %5510 = vdwg.mxu0
        %5511 = vmatprep.subr.bf16.mxu0 0
        %5512 = vmatpush1.bf16.msra.mxu0 %v3859
        %5513 = vmatprep.subr.bf16.mxu0 0
        %5514 = vmatpush1.bf16.msra.mxu0 %v3864
        %5515 = vmatprep.subr.bf16.mxu0 0
        %5516 = vmatpush1.bf16.msra.mxu0 %v3869
        %5517 = vmatprep.subr.bf16.mxu0 0
        %5518 = vmatpush1.bf16.msra.mxu0 %v3874
        %5519 = vmatprep.subr.bf16.mxu0 0
        %5520 = vmatpush1.bf16.msra.mxu0 %v3879
        %5521 = vmatprep.subr.bf16.mxu0 0
        %5522 = vmatpush1.bf16.msra.mxu0 %v3884
        %5523 = vmatprep.subr.bf16.mxu0 0
        %5524 = vmatpush1.bf16.msra.mxu0 %v3889
        %5525 = vmatprep.subr.bf16.mxu0 0
        %5526 = vmatpush1.bf16.msra.mxu0 %v3894
        %5527 = vmatprep.subr.bf16.mxu0 0
        %5528 = vmatpush1.bf16.msra.mxu0 %v3899
        %5529 = vmatprep.subr.bf16.mxu0 0
        %5530 = vmatpush1.bf16.msra.mxu0 %v3904
        %5531 = vmatprep.subr.bf16.mxu0 0
        %5532 = vmatpush1.bf16.msra.mxu0 %v3909
        %5533 = vmatprep.subr.bf16.mxu0 0
        %5534 = vmatpush1.bf16.msra.mxu0 %v3914
        %5535 = vmatprep.subr.bf16.mxu0 0
        %5536 = vmatpush1.bf16.msra.mxu0 %v3919
        %5537 = vmatprep.subr.bf16.mxu0 0
        %5538 = vmatpush1.bf16.msra.mxu0 %v3924
        %5539 = vmatprep.subr.bf16.mxu0 0
        %5540 = vmatpush1.bf16.msra.mxu0 %v3929
        %5541 = vmatprep.subr.bf16.mxu0 0
        %5542 = vmatpush1.bf16.msra.mxu0 %v3934
        %5543 = vmatprep.mubr.bf16.mxu0 %v1230
        %5544 = vmatmul.mubr.bf16.gmra.mrb[0].mxu0 %v1228
        %v5545 = vpop.f32.mrb[0].mxu0
        %v5546 = vadd.f32 %v5506, %v5545
        %v5547 = vpop.f32.mrb[0].mxu0
        %v5548 = vpop.f32.mrb[0].mxu0
        %v5549 = vpop.f32.mrb[0].mxu0
        %5550 = vdwg.mxu0
        %v5551 = vld [vmem:[%s319] sm:$0xff]
        %v5552 = vld [vmem:[%s319 + $0x8] sm:$0x3]
        %v5555 = vcombine.high %v5551, %v5551
        %v5557 = vunpack.c.l.s4 1983009808
        %v5558 = vunpack.c.0.s8 %v5557
        %v5559 = vlaneseq
        %v5560 = vshrl.u32 %v5559, 7
        %v5561 = vsub.s32 %v5558, %v5560
        %v5562 = vrot.slane %v5551, %v5561
        %v5564 = vunpack.c.l.s4 1983009808
        %v5565 = vunpack.c.0.s8 %v5564
        %v5566 = vlaneseq
        %v5567 = vshrl.u32 %v5566, 7
        %v5568 = vsub.s32 %v5565, %v5567
        %v5569 = vrot.slane %v5555, %v5568
        %v5570 = vcombine.high %v5562, %v5562
        %v5571 = vcombine.high %v5569, %v5569
        %v5573 = vunpack.c.l.s4 1983009808
        %v5574 = vunpack.c.0.s8 %v5573
        %v5575 = vlaneseq
        %v5576 = vshrl.u32 %v5575, 7
        %v5577 = vsub.s32 %v5574, %v5576
        %v5578 = vrot.slane %v5552, %v5577
        %v5584 = vmul.f32 %v4897, %v5562
        %v5585 = vmul.f32 %v4899, %v5570
        %v5586 = vmul.f32 %v5225, %v5569
        %v5587 = vmul.f32 %v5227, %v5571
        %v5588 = vmul.f32 %v5546, %v5578
        %vm5589 = vcmask 1041408
        %v5590 = vsel %vm5589, %v5584, 0.0
        %v5591 = vsel %vm5589, %v5585, 0.0
        %v5592 = vadd.f32 %v5590, %v5591
        %v5593 = vsel %vm5589, %v5586, 0.0
        %v5594 = vadd.f32 %v5592, %v5593
        %v5595 = vsel %vm5589, %v5587, 0.0
        %v5596 = vadd.f32 %v5594, %v5595
        %v5597 = vsel %vm5589, %v5588, 0.0
        %v5598 = vadd.f32 %v5596, %v5597
        %5599 = vadd.xlane.f32.xlu0 %v5598
        %v5600 = vpop.xlane.xlu0 %5599
        %vm5601 = vcmask 1024
        %5602 = vst.msk [vmem:[%s324] sm:$0x3] %vm5601, %v5600
        %v5603 = vmul.f32 %v4897, %v4897
        %v5604 = vmul.f32 %v4899, %v4899
        %v5605 = vmul.f32 %v5225, %v5225
        %v5606 = vmul.f32 %v5227, %v5227
        %v5607 = vmul.f32 %v5546, %v5546
        %v5608 = vsel %vm5589, %v5603, 0.0
        %v5609 = vsel %vm5589, %v5604, 0.0
        %v5610 = vadd.f32 %v5608, %v5609
        %v5611 = vsel %vm5589, %v5605, 0.0
        %v5612 = vadd.f32 %v5610, %v5611
        %v5613 = vsel %vm5589, %v5606, 0.0
        %v5614 = vadd.f32 %v5612, %v5613
        %v5615 = vsel %vm5589, %v5607, 0.0
        %v5616 = vadd.f32 %v5614, %v5615
        %5617 = vadd.xlane.f32.xlu0 %v5616
        %v5618 = vpop.xlane.xlu0 %5617
        %5619 = vst.msk [vmem:[%s328] sm:$0x3] %vm5601, %v5618
        %v5620 = vmul.f32 %v5551, %v5551
        %v5621 = vmul.f32 %v5552, %v5552
        %v5624 = vcombine.high %v5620, %v5620
        %v5626 = vunpack.c.l.s4 1983009808
        %v5627 = vunpack.c.0.s8 %v5626
        %v5628 = vlaneseq
        %v5629 = vshrl.u32 %v5628, 7
        %v5630 = vsub.s32 %v5627, %v5629
        %v5631 = vrot.slane %v5620, %v5630
        %v5633 = vunpack.c.l.s4 1983009808
        %v5634 = vunpack.c.0.s8 %v5633
        %v5635 = vlaneseq
        %v5636 = vshrl.u32 %v5635, 7
        %v5637 = vsub.s32 %v5634, %v5636
        %v5638 = vrot.slane %v5624, %v5637
        %v5639 = vcombine.high %v5631, %v5631
        %v5640 = vcombine.high %v5638, %v5638
        %v5642 = vunpack.c.l.s4 1983009808
        %v5643 = vunpack.c.0.s8 %v5642
        %v5644 = vlaneseq
        %v5645 = vshrl.u32 %v5644, 7
        %v5646 = vsub.s32 %v5643, %v5645
        %v5647 = vrot.slane %v5621, %v5646
        %v5653 = vsel %vm5589, %v5631, 0.0
        %v5654 = vsel %vm5589, %v5639, 0.0
        %v5655 = vadd.f32 %v5653, %v5654
        %v5656 = vsel %vm5589, %v5638, 0.0
        %v5657 = vadd.f32 %v5655, %v5656
        %v5658 = vsel %vm5589, %v5640, 0.0
        %v5659 = vadd.f32 %v5657, %v5658
        %v5660 = vsel %vm5589, %v5647, 0.0
        %v5661 = vadd.f32 %v5659, %v5660
        %5662 = vadd.xlane.f32.xlu0 %v5661
        %v5663 = vpop.xlane.xlu0 %5662
        %5664 = vst.msk [vmem:[%s332] sm:$0x3] %vm5601, %v5663
        %p5665 = scmp.lt.s32.totalorder %s21, 1
        %s5666 = scalar_select %p5665, %s21, 1
        %s5667 = smul.addr %s5666, 2
        %s5668 = scalar_lea.vmem %s4, %s5667
        %p5669 = scmp.lt.s32.totalorder %s21, 1
        %s5670 = scalar_select %p5669, %s21, 1
        %s5671 = smul.addr %s5670, 2
        %s5672 = scalar_lea.vmem %s5, %s5671
        %p5673 = scmp.lt.s32.totalorder %s21, 1
        %s5674 = scalar_select %p5673, %s21, 1
        %s5675 = smul.addr %s5674, 2
        %s5676 = scalar_lea.vmem %s6, %s5675
        // Predicated region
        $region41: #{feature_aligned_diffusion_forward.4} parent=35 // pred_check
          %p5677 = pneg %p138
        $region42: #{feature_aligned_diffusion_forward.4} parent=35 // pred_check_branch
          %5679 = sbr.rel (%p5677) target = $region44
        $region43: #{feature_aligned_diffusion_forward.4} parent=35 // pred_region
          _
        $region44: #{feature_aligned_diffusion_forward.4} parent=35 // pred_fallthru
          _
        // Predicated region
        $region45: #{feature_aligned_diffusion_forward.4} parent=35 // pred_check
          %p5680 = pneg %p164
        $region46: #{feature_aligned_diffusion_forward.4} parent=35 // pred_check_branch
          %5682 = sbr.rel (%p5680) target = $region48
        $region47: #{feature_aligned_diffusion_forward.4} parent=35 // pred_region
          _
        $region48: #{feature_aligned_diffusion_forward.4} parent=35 // pred_fallthru
          _
        // Predicated region
        $region49: #{feature_aligned_diffusion_forward.4} parent=35 // pred_check
          %p5683 = pneg %p190
        $region50: #{feature_aligned_diffusion_forward.4} parent=35 // pred_check_branch
          %5685 = sbr.rel (%p5683) target = $region52
        $region51: #{feature_aligned_diffusion_forward.4} parent=35 // pred_region
          _
        $region52: #{feature_aligned_diffusion_forward.4} parent=35 // pred_fallthru
          _
      $region36: #{feature_aligned_diffusion_forward.4} parent=5 // pred_fallthru
        _
      %p5686 = scmp.le.s32.totalorder 2, %s16
      // Predicated region
      $region53: #{feature_aligned_diffusion_forward.4} parent=5 // pred_check
        %p5687 = pneg %p5686
      $region54: #{feature_aligned_diffusion_forward.4} parent=5 // pred_check_branch
        %5689 = sbr.rel (%p5687) target = $region56
      $region55: #{feature_aligned_diffusion_forward.4} parent=5 // pred_region
        %s5690 = ssub.s32 %s16, 2
        // Predicated region
        $region57: #{feature_aligned_diffusion_forward.4} parent=55 // pred_check
          %p5691 = pneg %p144
        $region58: #{feature_aligned_diffusion_forward.4} parent=55 // pred_check_branch
          %5693 = sbr.rel (%p5691) target = $region60
        $region59: #{feature_aligned_diffusion_forward.4} parent=55 // pred_region
          %p5694 = scmp.lt.s32.totalorder %s22, 1
          %s5695 = scalar_select %p5694, %s22, 1
          %s5696 = smul.addr %s5695, 2
          %s5697 = scalar_lea.vmem %s4, %s5696
        $region60: #{feature_aligned_diffusion_forward.4} parent=55 // pred_fallthru
          _
        // Predicated region
        $region61: #{feature_aligned_diffusion_forward.4} parent=55 // pred_check
          %p5698 = pneg %p170
        $region62: #{feature_aligned_diffusion_forward.4} parent=55 // pred_check_branch
          %5700 = sbr.rel (%p5698) target = $region64
        $region63: #{feature_aligned_diffusion_forward.4} parent=55 // pred_region
          %p5701 = scmp.lt.s32.totalorder %s22, 1
          %s5702 = scalar_select %p5701, %s22, 1
          %s5703 = smul.addr %s5702, 2
          %s5704 = scalar_lea.vmem %s5, %s5703
        $region64: #{feature_aligned_diffusion_forward.4} parent=55 // pred_fallthru
          _
        // Predicated region
        $region65: #{feature_aligned_diffusion_forward.4} parent=55 // pred_check
          %p5705 = pneg %p196
        $region66: #{feature_aligned_diffusion_forward.4} parent=55 // pred_check_branch
          %5707 = sbr.rel (%p5705) target = $region68
        $region67: #{feature_aligned_diffusion_forward.4} parent=55 // pred_region
          %p5708 = scmp.lt.s32.totalorder %s22, 1
          %s5709 = scalar_select %p5708, %s22, 1
          %s5710 = smul.addr %s5709, 2
          %s5711 = scalar_lea.vmem %s6, %s5710
        $region68: #{feature_aligned_diffusion_forward.4} parent=55 // pred_fallthru
          _
      $region56: #{feature_aligned_diffusion_forward.4} parent=5 // pred_fallthru
        _
    $region6: #{feature_aligned_diffusion_forward.4} parent=1 // loop_footer
      %s20 = sadd.s32 1, %s16
    $region7: #{feature_aligned_diffusion_forward.4} parent=1 // loop_footer_branch
      %15 = sbr.rel target = $region3
    $region8: #{feature_aligned_diffusion_forward.4} parent=1 // loop_exit
      _
    %5712 = vsyncpa [#allocation3], 1
    %s5713 = scalar_lea.sflag [#allocation3], 1
    %5714 = vsyncpa %s5713, 1

</llo_original>
